<compile_context>
chip_gen: v7x
topology: tpu7x:2x2x1
jax: 0.10.0
libtpu: 0.0.40
codegen_flags: <defaults>
</compile_context>

<pallas_src>
import math

import jax
import jax.numpy as jnp
from jax.experimental import pallas as pl
from jax.experimental.pallas import tpu as pltpu


def _round_up(x, m):
    return ((x + m - 1) // m) * m


def _pad_last(x, to):
    pad = to - x.shape[-1]
    if pad <= 0:
        return x
    widths = [(0, 0)] * (x.ndim - 1) + [(0, pad)]
    return jnp.pad(x, widths)


# ----------------------------------------------------------------------------
# Pallas kernels
# ----------------------------------------------------------------------------
def _make_fused_mm_kernel(act, has_row, has_res, out_dtype):
    """o = maybe_silu(a @ w + b) [+ row] [+ res]; bf16 operands, f32 accumulate."""

    def kernel(*refs):
        i = 0
        a_ref = refs[i]; i += 1
        w_ref = refs[i]; i += 1
        b_ref = refs[i]; i += 1
        row_ref = None
        res_ref = None
        if has_row:
            row_ref = refs[i]; i += 1
        if has_res:
            res_ref = refs[i]; i += 1
        o_ref = refs[i]

        acc = jnp.dot(a_ref[0], w_ref[...], preferred_element_type=jnp.float32)
        acc = acc + b_ref[...]
        if act == "silu":
            acc = acc * jax.nn.sigmoid(acc)
        if has_row:                                   # temb broadcast-add (per batch)
            acc = acc + row_ref[0].astype(jnp.float32)
        if has_res:                                   # residual / skip add
            acc = acc + res_ref[0].astype(jnp.float32)
        o_ref[0] = acc.astype(out_dtype)

    return kernel


def _fused_matmul(a, w, b, *, act=None, row=None, res=None,
                  out_dtype=jnp.bfloat16, tm_max=512):
    """(G, M, Kp) @ (Kp, Np) + bias with fused epilogue; grid (G, M // TM)."""
    G, M, Kp = a.shape
    Kp2, Np = w.shape
    assert Kp == Kp2 and b.shape == (1, Np)

    TM = M
    if TM > tm_max:
        TM = None
        for cand in range(tm_max - tm_max % 16, 0, -16):
            if M % cand == 0:
                TM = cand
                break
        if TM is None:
            TM = M

    in_specs = [
        pl.BlockSpec((1, TM, Kp), lambda g, m: (g, m, 0)),
        pl.BlockSpec((Kp, Np), lambda g, m: (0, 0)),
        pl.BlockSpec((1, Np), lambda g, m: (0, 0)),
    ]
    args = [a, w, b]
    if row is not None:
        in_specs.append(pl.BlockSpec((1, 1, Np), lambda g, m: (g, 0, 0)))
        args.append(row)
    if res is not None:
        in_specs.append(pl.BlockSpec((1, TM, Np), lambda g, m: (g, m, 0)))
        args.append(res)

    return pl.pallas_call(
        _make_fused_mm_kernel(act, row is not None, res is not None, out_dtype),
        out_shape=jax.ShapeDtypeStruct((G, M, Np), out_dtype),
        grid=(G, M // TM),
        in_specs=in_specs,
        out_specs=pl.BlockSpec((1, TM, Np), lambda g, m: (g, m, 0)),
        compiler_params=pltpu.CompilerParams(
            dimension_semantics=("parallel", "parallel")),
    )(*args)


def _make_linattn_kernel(dh, n, scale):
    """Fused linear attention: masked softmaxes + both contractions in VMEM."""

    def kernel(q_ref, k_ref, v_ref, o_ref):
        q = q_ref[...]
        k = k_ref[...]
        v = v_ref[...]
        d_ids = jax.lax.broadcasted_iota(jnp.int32, q.shape, 1)
        n_ids = jax.lax.broadcasted_iota(jnp.int32, q.shape, 2)
        neg = jnp.float32(-1e30)
        # softmax over the feature axis (per spatial position); padded rows masked
        q = jnp.where(d_ids < dh, q, neg)
        q = jax.nn.softmax(q, axis=1) * scale
        # softmax over the spatial axis (per feature); padded columns masked
        k = jnp.where(n_ids < n, k, neg)
        k = jax.nn.softmax(k, axis=2)
        qb = q.astype(jnp.bfloat16)
        kb = k.astype(jnp.bfloat16)
        vb = v.astype(jnp.bfloat16)
        # context[e, d] = sum_n v[e, n] * k[d, n]
        ctx = jnp.einsum("gen,gdn->ged", vb, kb,
                         preferred_element_type=jnp.float32)
        # out[e, n] = sum_d context[e, d] * q[d, n]
        out = jnp.einsum("ged,gdn->gen", ctx.astype(jnp.bfloat16), qb,
                         preferred_element_type=jnp.float32)
        o_ref[...] = out.astype(o_ref.dtype)

    return kernel


def linear_attention(q, k, v, *, dh, n):
    """q, k, v: (G, dh, n) -> out (G, dh, n); one fused kernel per head-group."""
    G = q.shape[0]
    DHp = _round_up(dh, 8)
    Np = _round_up(n, 128)

    def prep(z):
        return jnp.pad(z.astype(jnp.float32),
                       ((0, 0), (0, DHp - dh), (0, Np - n)))

    qp, kp, vp = prep(q), prep(k), prep(v)

    # process several heads per grid step but keep >= 2 steps when possible
    # (two TensorCores on v7x).
    Gb = None
    for cand in range(min(G, 8), 0, -1):
        if G % cand == 0 and G // cand >= 2:
            Gb = cand
            break
    if Gb is None:
        Gb = G

    out = pl.pallas_call(
        _make_linattn_kernel(dh, n, dh ** -0.5),
        out_shape=jax.ShapeDtypeStruct((G, DHp, Np), jnp.float32),
        grid=(G // Gb,),
        in_specs=[pl.BlockSpec((Gb, DHp, Np), lambda g: (g, 0, 0))] * 3,
        out_specs=pl.BlockSpec((Gb, DHp, Np), lambda g: (g, 0, 0)),
        compiler_params=pltpu.CompilerParams(dimension_semantics=("parallel",)),
    )(qp, kp, vp)
    return out[:, :dh, :n]


# ----------------------------------------------------------------------------
# Conv / linear wrappers (transpose-free NHWC patch glue in XLA, MAC in Pallas)
# ----------------------------------------------------------------------------
def _im2col_nhwc(x, k, stride, padding, kp):
    """NHWC patch build; zero filler pads K straight to kp (no extra pad pass)."""
    B, H, W, C = x.shape
    if padding:
        x = jnp.pad(x, ((0, 0), (padding, padding), (padding, padding), (0, 0)))
    Ho = (H + 2 * padding - k) // stride + 1
    Wo = (W + 2 * padding - k) // stride + 1
    parts = []
    for i in range(k):
        for j in range(k):
            parts.append(x[:, i:i + stride * Ho:stride, j:j + stride * Wo:stride, :])
    kc = k * k * C
    if kp > kc:
        parts.append(jnp.zeros((B, Ho, Wo, kp - kc), x.dtype))
    a = jnp.concatenate(parts, axis=-1)
    return a.reshape(B, Ho * Wo, kp), Ho, Wo


def _im2col_up2_nhwc(x, kp):
    """Patches of (nearest-2x upsample -> 3x3 pad-1 conv) built directly from x."""
    B, H, W, C = x.shape
    Ho, Wo = 2 * H, 2 * W
    xpad = jnp.pad(x, ((0, 0), (1, 1), (1, 1), (0, 0)))
    yo = jnp.arange(Ho)
    xo = jnp.arange(Wo)
    parts = []
    for i in range(3):
        ry = (yo + i - 1) // 2 + 1          # rows 0 / H+1 of xpad are the zero border
        rows = jnp.take(xpad, ry, axis=1)
        for j in range(3):
            rx = (xo + j - 1) // 2 + 1
            parts.append(jnp.take(rows, rx, axis=2))
    kc = 9 * C
    if kp > kc:
        parts.append(jnp.zeros((B, Ho, Wo, kp - kc), x.dtype))
    a = jnp.concatenate(parts, axis=-1)
    return a.reshape(B, Ho * Wo, kp), Ho, Wo


def conv2d_fused(p, x, *, stride=1, padding=0, act=None, row=None, res=None,
                 upsample2=False):
    """p: prepared conv params; x: (B,H,W,Cin) bf16. Returns (y_pad, Ho, Wo)."""
    B, H, W, C = x.shape
    k = p["k"]
    if upsample2:
        a, Ho, Wo = _im2col_up2_nhwc(x, p["kp"])
    elif k == 1 and stride == 1 and padding == 0:
        Ho, Wo = H, W
        a = _pad_last(x.reshape(B, H * W, C), p["kp"])
    else:
        a, Ho, Wo = _im2col_nhwc(x, k, stride, padding, p["kp"])
    M = Ho * Wo
    Mp = _round_up(M, 16)
    if Mp != M:
        a = jnp.pad(a, ((0, 0), (0, Mp - M), (0, 0)))
    if res is not None and res.shape[1] != Mp:
        res = jnp.pad(res, ((0, 0), (0, Mp - res.shape[1]), (0, 0)))
    y = _fused_matmul(a, p["w"], p["b"], act=act, row=row, res=res)
    return y, Ho, Wo


def crop_nhwc(y_pad, B, Ho, Wo, cout):
    return y_pad[:, :Ho * Wo, :cout].reshape(B, Ho, Wo, cout)


def linear_fused(p, x2d, *, act=None, crop=True):
    """x2d: (M, din) -> (M, dout) bf16 (or the padded (Mp, Np) slab if crop=False)."""
    M, _ = x2d.shape
    Mp = _round_up(M, 16)
    a = _pad_last(x2d.astype(jnp.bfloat16), p["kp"])
    a = jnp.pad(a, ((0, Mp - M), (0, 0)))[None]
    y = _fused_matmul(a, p["w"], p["b"], act=act)[0]
    if crop:
        return y[:M, :p["cout"]]
    return y


# ----------------------------------------------------------------------------
# Blocks (standard diffusion-UNet equivalents of the named submodules)
# ----------------------------------------------------------------------------
def sinusoidal_embedding(t, dim, max_period):
    half = dim // 2
    freqs = jnp.exp(-math.log(max_period) * jnp.arange(half, dtype=jnp.float32) / half)
    args = t.astype(jnp.float32)[:, None] * freqs[None, :]
    return jnp.concatenate([jnp.sin(args), jnp.cos(args)], axis=-1)


def time_embed(p, t, dim, max_period):
    emb = sinusoidal_embedding(t, dim, max_period)
    emb = linear_fused(p["l1"], emb, act="silu")
    emb = linear_fused(p["l2"], emb)
    return emb                                            # (B, time_embed_dim)


def mini_res(p, x, st):
    """st = SiLU(t_embed) (B, time_embed_dim) f32, shared across MiniRes blocks."""
    B, H, W, C = x.shape
    # temb projection -> one row per batch, fused as a broadcast add in conv1
    t_row = linear_fused(p["temb"], st, crop=False)[:B][:, None, :]   # (B,1,Np)
    h_pad, Ho, Wo = conv2d_fused(p["conv1"], x, padding=1, act="silu", row=t_row)
    h = crop_nhwc(h_pad, B, Ho, Wo, p["conv1"]["cout"])
    if "skip" in p:
        skip_pad, _, _ = conv2d_fused(p["skip"], x)       # 1x1 conv, stays padded
    else:
        skip_pad = _pad_last(x.reshape(B, H * W, C), p["conv2"]["np"])
    out_pad, Ho, Wo = conv2d_fused(p["conv2"], h, padding=1, act="silu",
                                   res=skip_pad)          # residual add fused
    return crop_nhwc(out_pad, B, Ho, Wo, p["conv2"]["cout"])


def self_attn(p, x, heads):
    B, H, W, C = x.shape
    dh = C // heads
    N = H * W
    qkv_pad, _, _ = conv2d_fused(p["qkv"], x)             # (B, N, Np) padded
    qkv = qkv_pad[:, :N, :3 * C]
    q, k, v = jnp.split(qkv, 3, axis=-1)                  # (B, N, C) each

    def to_heads(z):
        z = z.reshape(B, N, heads, dh)
        return jnp.transpose(z, (0, 2, 3, 1)).reshape(B * heads, dh, N)

    out = linear_attention(to_heads(q), to_heads(k), to_heads(v), dh=dh, n=N)
    out = out.reshape(B, heads, dh, N)
    out = jnp.transpose(out, (0, 3, 1, 2)).reshape(B, H, W, C).astype(jnp.bfloat16)
    res_pad = _pad_last(x.reshape(B, N, C), p["proj"]["np"])
    proj_pad, _, _ = conv2d_fused(p["proj"], out, res=res_pad)   # proj + residual fused
    return crop_nhwc(proj_pad, B, H, W, C)


def down_sample(p, x):
    y1, Ho, Wo = conv2d_fused(p["c1"], x, stride=2, padding=1)   # 3x3 stride 2
    # 1x1 conv consumes the padded slab directly (padded lanes are exact zeros)
    y2 = _fused_matmul(y1, p["c2"]["w"], p["c2"]["b"])
    return crop_nhwc(y2, x.shape[0], Ho, Wo, p["c2"]["cout"])


def up_sample(p, x):
    y, Ho, Wo = conv2d_fused(p, x, upsample2=True)               # fused 2x nearest + 3x3
    return crop_nhwc(y, x.shape[0], Ho, Wo, p["cout"])


def mix_concat(hr, lr):
    # NHWC equivalent of: concat along H then reshape on contiguous NCHW memory
    # (out channel 2c <- hr channel c, 2c+1 <- lr channel c).
    B, H, W, C = hr.shape
    return jnp.stack([hr, lr], axis=-1).reshape(B, H, W, 2 * C)


# ----------------------------------------------------------------------------
# Parameter init (deterministic, synthetic) — weights prepared ONCE here
# ----------------------------------------------------------------------------
class KeyGen:
    def __init__(self, key):
        self._key = key

    def __call__(self):
        self._key, sub = jax.random.split(self._key)
        return sub


def init_srecoder_params(key, in_channels, channel_mults=(1,), num_mini=1,
                         num_mids=1, num_attn_heads=3, timesteps=2000,
                         concat_hr_lr=True):
    if concat_hr_lr:
        in_channels *= 2
    depth = len(channel_mults)
    D = in_channels * 4
    channels = [in_channels] + [in_channels * m for m in channel_mults]
    kg = KeyGen(key)

    def conv_p(cin, cout, k):
        # PyTorch layout (Cout, Cin, kh, kw) -> pre-transposed / pre-padded
        # (Kp, Np) bf16 once at init (no per-forward transpose/pad).
        fan = cin * k * k
        w = jax.random.normal(kg(), (cout, cin, k, k), jnp.float32) * (fan ** -0.5)
        kp = _round_up(k * k * cin, 128)
        np_ = _round_up(cout, 128)
        wf = jnp.transpose(w, (2, 3, 1, 0)).reshape(k * k * cin, cout)
        wf = jnp.pad(wf, ((0, kp - k * k * cin), (0, np_ - cout))).astype(jnp.bfloat16)
        return {"w": wf, "b": jnp.zeros((1, np_), jnp.float32),
                "cin": cin, "cout": cout, "k": k, "kp": kp, "np": np_}

    def lin_p(din, dout):
        w = jax.random.normal(kg(), (din, dout), jnp.float32) * (din ** -0.5)
        kp = _round_up(din, 128)
        np_ = _round_up(dout, 128)
        wf = jnp.pad(w, ((0, kp - din), (0, np_ - dout))).astype(jnp.bfloat16)
        return {"w": wf, "b": jnp.zeros((1, np_), jnp.float32),
                "cin": din, "cout": dout, "k": 1, "kp": kp, "np": np_}

    def minires_p(cin, cout):
        p = {"conv1": conv_p(cin, cout, 3), "temb": lin_p(D, cout),
             "conv2": conv_p(cout, cout, 3)}
        if cin != cout:
            p["skip"] = conv_p(cin, cout, 1)
        return p

    def attn_p(c):
        return {"qkv": conv_p(c, 3 * c, 1), "proj": conv_p(c, c, 1)}

    params = {"time_embed": {"l1": lin_p(D, D), "l2": lin_p(D, D)},
              "downs": [], "mids": [], "ups": []}
    for d in range(depth):
        params["downs"].append({
            "res": [minires_p(channels[d], channels[d]) for _ in range(num_mini)],
            "attn": attn_p(channels[d]),
            "down": {"c1": conv_p(channels[d], channels[d] * 4, 3),
                     "c2": conv_p(channels[d] * 4, channels[d + 1], 1)},
        })
    for _ in range(num_mids):
        params["mids"].append({
            "res": [minires_p(channels[-1], channels[-1]) for _ in range(num_mini)],
            "attn": attn_p(channels[-1]),
        })
    for d in reversed(range(1, depth + 1)):
        c = channels[d] + channels[d - 1]
        params["ups"].append({
            "res": [minires_p(c, c) for _ in range(num_mini)],
            "attn": attn_p(c),
            "up": conv_p(c, channels[d - 1], 3),
        })
    params["final_res"] = minires_p(channels[0] * 2, channels[0])
    params["final_conv"] = conv_p(channels[0], channels[0], 3)

    cfg = {"heads": num_attn_heads, "time_embed_dim": D, "timesteps": timesteps,
           "out_channels": channels[0]}
    return params, cfg


# ----------------------------------------------------------------------------
# SREcoder forward
# ----------------------------------------------------------------------------
def srecoder_forward(params, cfg, fh, fl, timestep):
    # NCHW f32 module interface -> NHWC bf16 internal layout
    fh = jnp.transpose(fh, (0, 2, 3, 1)).astype(jnp.bfloat16)
    fl = jnp.transpose(fl, (0, 2, 3, 1)).astype(jnp.bfloat16)
    mix = mix_concat(fh, fl)
    res_x = mix

    temb = time_embed(params["time_embed"], timestep,
                      cfg["time_embed_dim"], cfg["timesteps"])
    st = jax.nn.silu(temb.astype(jnp.float32))        # shared by all MiniRes blocks

    features = []
    for layer in params["downs"]:
        for rp in layer["res"]:
            mix = mini_res(rp, mix, st)
        mix = self_attn(layer["attn"], mix, cfg["heads"])
        mix = down_sample(layer["down"], mix)
        features.append(mix)

    for layer in params["mids"]:
        for rp in layer["res"]:
            mix = mini_res(rp, mix, st)
        mix = self_attn(layer["attn"], mix, cfg["heads"])

    for layer in params["ups"]:
        for rp in layer["res"]:
            mix = mini_res(rp, mix_concat(mix, features.pop()), st)
        mix = self_attn(layer["attn"], mix, cfg["heads"])
        mix = up_sample(layer["up"], mix)

    mix = mini_res(params["final_res"], mix_concat(mix, res_x), st)
    B = mix.shape[0]
    y, Ho, Wo = conv2d_fused(params["final_conv"], mix, padding=1)
    out = crop_nhwc(y, B, Ho, Wo, params["final_conv"]["cout"])
    return jnp.transpose(out, (0, 3, 1, 2)).astype(jnp.float32)   # back to NCHW f32


# ----------------------------------------------------------------------------
if __name__ == "__main__":
    key = jax.random.PRNGKey(0)
    k_fh, k_fl, k_params = jax.random.split(key, 3)

    B, C, H, W = 2, 3, 8, 8
    fh = jax.random.normal(k_fh, (B, C, H, W), jnp.float32)
    fl = jax.random.normal(k_fl, (B, C, H, W), jnp.float32)
    timestep = jnp.array([7, 123], dtype=jnp.int32)

    # channel_mults=[1] keeps channel arithmetic consistent with mix_concat
    # skip-connections (as implied by the reference architecture).
    params, cfg = init_srecoder_params(
        k_params, in_channels=C, channel_mults=(1,), num_mini=1, num_mids=1,
        num_attn_heads=3, timesteps=2000, concat_hr_lr=True)

    fwd = jax.jit(lambda a, b, t: srecoder_forward(params, cfg, a, b, t))
    out = jax.block_until_ready(fwd(fh, fl, timestep))
    assert out.shape == (B, cfg["out_channels"], H, W), out.shape
    assert bool(jnp.all(jnp.isfinite(out)))
    print("KERNEL_OK")
</pallas_src>

<mosaic_0001>
module attributes {stable_mosaic.version = 11 : i64} {
  func.func @kernel(%arg0: i32, %arg1: i32, %arg2: memref<1x16x128xbf16, #tpu.memory_space<vmem>>, %arg3: memref<128x128xbf16, #tpu.memory_space<vmem>>, %arg4: memref<1x128xf32, #tpu.memory_space<vmem>>, %arg5: memref<1x16x128xbf16, #tpu.memory_space<vmem>>) attributes {dimension_semantics = [#tpu.dimension_semantics<parallel>, #tpu.dimension_semantics<parallel>], iteration_bounds = array<i64: 1, 1>, scalar_prefetch = 0 : i64, scratch_operands = 0 : i64, tpu.core_type = #tpu.core_type<tc>, window_params = [{transform_indices = @transform_0, window_bounds = array<i64: 1, 16, 128>}, {pipeline_mode = #tpu.pipeline_mode<synchronous>, transform_indices = @transform_1, window_bounds = array<i64: 128, 128>}, {pipeline_mode = #tpu.pipeline_mode<synchronous>, transform_indices = @transform_2, window_bounds = array<i64: 1, 128>}, {transform_indices = @transform_3, window_bounds = array<i64: 1, 16, 128>}]} {
    %c0 = arith.constant 0 : index
    %c0_0 = arith.constant 0 : index
    %c0_1 = arith.constant 0 : index
    %0 = vector.load %arg2[%c0, %c0_0, %c0_1] : memref<1x16x128xbf16, #tpu.memory_space<vmem>>, vector<1x16x128xbf16>
    %1 = vector.shape_cast %0 : vector<1x16x128xbf16> to vector<16x128xbf16>
    %c0_2 = arith.constant 0 : index
    %c0_3 = arith.constant 0 : index
    %2 = vector.load %arg3[%c0_2, %c0_3] : memref<128x128xbf16, #tpu.memory_space<vmem>>, vector<128x128xbf16>
    %cst = arith.constant dense<0.000000e+00> : vector<16x128xf32>
    %3 = tpu.matmul %1, %2, %cst {dimension_numbers = #tpu.dot_dimension_numbers<[1], [0], [0], [1], [0, 0, 1, 1], [], []>} : vector<16x128xbf16>, vector<128x128xbf16>, vector<16x128xf32> -> vector<16x128xf32>
    %c0_4 = arith.constant 0 : index
    %c0_5 = arith.constant 0 : index
    %4 = vector.load %arg4[%c0_4, %c0_5] : memref<1x128xf32, #tpu.memory_space<vmem>>, vector<1x128xf32>
    %5 = vector.broadcast %4 : vector<1x128xf32> to vector<16x128xf32>
    %6 = arith.addf %3, %5 : vector<16x128xf32>
    %7 = arith.negf %6 : vector<16x128xf32>
    %8 = math.exp %7 : vector<16x128xf32>
    %cst_6 = arith.constant 1.000000e+00 : f32
    %9 = vector.broadcast %cst_6 : f32 to vector<16x128xf32>
    %10 = arith.addf %9, %8 : vector<16x128xf32>
    %11 = arith.divf %9, %10 : vector<16x128xf32>
    %12 = arith.mulf %6, %11 : vector<16x128xf32>
    %13 = arith.truncf %12 : vector<16x128xf32> to vector<16x128xbf16>
    %c0_7 = arith.constant 0 : index
    %c0_8 = arith.constant 0 : index
    %c0_9 = arith.constant 0 : index
    %14 = vector.load %arg5[%c0_7, %c0_8, %c0_9] : memref<1x16x128xbf16, #tpu.memory_space<vmem>>, vector<1x16x128xbf16>
    %15 = vector.shape_cast %14 : vector<1x16x128xbf16> to vector<16x128xbf16>
    %16 = vector.shape_cast %13 : vector<16x128xbf16> to vector<1x16x128xbf16>
    tpu.vector_store %arg5[%c0_7, %c0_8, %c0_9], %16 {strides = array<i32>} : memref<1x16x128xbf16, #tpu.memory_space<vmem>>, vector<1x16x128xbf16>,
    return
  }
  func.func @transform_0(%arg0: i32, %arg1: i32) -> (i32, i32, i32) {
    %c0_i32 = arith.constant 0 : i32
    %c0_i32_0 = arith.constant 0 : i32
    return %arg0, %arg1, %c0_i32 : i32, i32, i32
  }
  func.func @transform_1(%arg0: i32, %arg1: i32) -> (i32, i32) {
    %c0_i32 = arith.constant 0 : i32
    %c0_i32_0 = arith.constant 0 : i32
    %c0_i32_1 = arith.constant 0 : i32
    return %c0_i32, %c0_i32_0 : i32, i32
  }
  func.func @transform_2(%arg0: i32, %arg1: i32) -> (i32, i32) {
    %c0_i32 = arith.constant 0 : i32
    %c0_i32_0 = arith.constant 0 : i32
    %c0_i32_1 = arith.constant 0 : i32
    return %c0_i32, %c0_i32_0 : i32, i32
  }
  func.func @transform_3(%arg0: i32, %arg1: i32) -> (i32, i32, i32) {
    %c0_i32 = arith.constant 0 : i32
    %c0_i32_0 = arith.constant 0 : i32
    return %arg0, %arg1, %c0_i32 : i32, i32, i32
  }
}

module attributes {stable_mosaic.version = 11 : i64} {
  func.func @kernel(%arg0: i32, %arg1: i32, %arg2: memref<1x16x128xbf16, #tpu.memory_space<vmem>>, %arg3: memref<128x128xbf16, #tpu.memory_space<vmem>>, %arg4: memref<1x128xf32, #tpu.memory_space<vmem>>, %arg5: memref<1x16x128xbf16, #tpu.memory_space<vmem>>) attributes {dimension_semantics = [#tpu.dimension_semantics<parallel>, #tpu.dimension_semantics<parallel>], iteration_bounds = array<i64: 1, 1>, scalar_prefetch = 0 : i64, scratch_operands = 0 : i64, tpu.core_type = #tpu.core_type<tc>, window_params = [{transform_indices = @transform_0, window_bounds = array<i64: 1, 16, 128>}, {pipeline_mode = #tpu.pipeline_mode<synchronous>, transform_indices = @transform_1, window_bounds = array<i64: 128, 128>}, {pipeline_mode = #tpu.pipeline_mode<synchronous>, transform_indices = @transform_2, window_bounds = array<i64: 1, 128>}, {transform_indices = @transform_3, window_bounds = array<i64: 1, 16, 128>}]} {
    %c0 = arith.constant 0 : index
    %c0_0 = arith.constant 0 : index
    %c0_1 = arith.constant 0 : index
    %0 = vector.load %arg2[%c0, %c0_0, %c0_1] : memref<1x16x128xbf16, #tpu.memory_space<vmem>>, vector<1x16x128xbf16>
    %1 = vector.shape_cast %0 : vector<1x16x128xbf16> to vector<16x128xbf16>
    %c0_2 = arith.constant 0 : index
    %c0_3 = arith.constant 0 : index
    %2 = vector.load %arg3[%c0_2, %c0_3] : memref<128x128xbf16, #tpu.memory_space<vmem>>, vector<128x128xbf16>
    %cst = arith.constant dense<0.000000e+00> : vector<16x128xf32>
    %3 = tpu.matmul %1, %2, %cst {dimension_numbers = #tpu.dot_dimension_numbers<[1], [0], [0], [1], [0, 0, 1, 1], [], []>} : vector<16x128xbf16>, vector<128x128xbf16>, vector<16x128xf32> -> vector<16x128xf32>
    %c0_4 = arith.constant 0 : index
    %c0_5 = arith.constant 0 : index
    %4 = vector.load %arg4[%c0_4, %c0_5] : memref<1x128xf32, #tpu.memory_space<vmem>>, vector<1x128xf32>
    %5 = vector.broadcast %4 : vector<1x128xf32> to vector<16x128xf32>
    %6 = arith.addf %3, %5 : vector<16x128xf32>
    %7 = arith.truncf %6 : vector<16x128xf32> to vector<16x128xbf16>
    %c0_6 = arith.constant 0 : index
    %c0_7 = arith.constant 0 : index
    %c0_8 = arith.constant 0 : index
    %8 = vector.load %arg5[%c0_6, %c0_7, %c0_8] : memref<1x16x128xbf16, #tpu.memory_space<vmem>>, vector<1x16x128xbf16>
    %9 = vector.shape_cast %8 : vector<1x16x128xbf16> to vector<16x128xbf16>
    %10 = vector.shape_cast %7 : vector<16x128xbf16> to vector<1x16x128xbf16>
    tpu.vector_store %arg5[%c0_6, %c0_7, %c0_8], %10 {strides = array<i32>} : memref<1x16x128xbf16, #tpu.memory_space<vmem>>, vector<1x16x128xbf16>,
    return
  }
  func.func @transform_0(%arg0: i32, %arg1: i32) -> (i32, i32, i32) {
    %c0_i32 = arith.constant 0 : i32
    %c0_i32_0 = arith.constant 0 : i32
    return %arg0, %arg1, %c0_i32 : i32, i32, i32
  }
  func.func @transform_1(%arg0: i32, %arg1: i32) -> (i32, i32) {
    %c0_i32 = arith.constant 0 : i32
    %c0_i32_0 = arith.constant 0 : i32
    %c0_i32_1 = arith.constant 0 : i32
    return %c0_i32, %c0_i32_0 : i32, i32
  }
  func.func @transform_2(%arg0: i32, %arg1: i32) -> (i32, i32) {
    %c0_i32 = arith.constant 0 : i32
    %c0_i32_0 = arith.constant 0 : i32
    %c0_i32_1 = arith.constant 0 : i32
    return %c0_i32, %c0_i32_0 : i32, i32
  }
  func.func @transform_3(%arg0: i32, %arg1: i32) -> (i32, i32, i32) {
    %c0_i32 = arith.constant 0 : i32
    %c0_i32_0 = arith.constant 0 : i32
    return %arg0, %arg1, %c0_i32 : i32, i32, i32
  }
}

module attributes {stable_mosaic.version = 11 : i64} {
  func.func @kernel(%arg0: i32, %arg1: i32, %arg2: memref<1x64x128xbf16, #tpu.memory_space<vmem>>, %arg3: memref<128x128xbf16, #tpu.memory_space<vmem>>, %arg4: memref<1x128xf32, #tpu.memory_space<vmem>>, %arg5: memref<1x1x128xbf16, #tpu.memory_space<vmem>>, %arg6: memref<1x64x128xbf16, #tpu.memory_space<vmem>>) attributes {dimension_semantics = [#tpu.dimension_semantics<parallel>, #tpu.dimension_semantics<parallel>], iteration_bounds = array<i64: 2, 1>, scalar_prefetch = 0 : i64, scratch_operands = 0 : i64, tpu.core_type = #tpu.core_type<tc>, window_params = [{transform_indices = @transform_0, window_bounds = array<i64: 1, 64, 128>}, {pipeline_mode = #tpu.pipeline_mode<synchronous>, transform_indices = @transform_1, window_bounds = array<i64: 128, 128>}, {pipeline_mode = #tpu.pipeline_mode<synchronous>, transform_indices = @transform_2, window_bounds = array<i64: 1, 128>}, {transform_indices = @transform_3, window_bounds = array<i64: 1, 1, 128>}, {transform_indices = @transform_4, window_bounds = array<i64: 1, 64, 128>}]} {
    %c0 = arith.constant 0 : index
    %c0_0 = arith.constant 0 : index
    %c0_1 = arith.constant 0 : index
    %0 = vector.load %arg2[%c0, %c0_0, %c0_1] : memref<1x64x128xbf16, #tpu.memory_space<vmem>>, vector<1x64x128xbf16>
    %1 = vector.shape_cast %0 : vector<1x64x128xbf16> to vector<64x128xbf16>
    %c0_2 = arith.constant 0 : index
    %c0_3 = arith.constant 0 : index
    %2 = vector.load %arg3[%c0_2, %c0_3] : memref<128x128xbf16, #tpu.memory_space<vmem>>, vector<128x128xbf16>
    %cst = arith.constant dense<0.000000e+00> : vector<64x128xf32>
    %3 = tpu.matmul %1, %2, %cst {dimension_numbers = #tpu.dot_dimension_numbers<[1], [0], [0], [1], [0, 0, 1, 1], [], []>} : vector<64x128xbf16>, vector<128x128xbf16>, vector<64x128xf32> -> vector<64x128xf32>
    %c0_4 = arith.constant 0 : index
    %c0_5 = arith.constant 0 : index
    %4 = vector.load %arg4[%c0_4, %c0_5] : memref<1x128xf32, #tpu.memory_space<vmem>>, vector<1x128xf32>
    %5 = vector.broadcast %4 : vector<1x128xf32> to vector<64x128xf32>
    %6 = arith.addf %3, %5 : vector<64x128xf32>
    %7 = arith.negf %6 : vector<64x128xf32>
    %8 = math.exp %7 : vector<64x128xf32>
    %cst_6 = arith.constant 1.000000e+00 : f32
    %9 = vector.broadcast %cst_6 : f32 to vector<64x128xf32>
    %10 = arith.addf %9, %8 : vector<64x128xf32>
    %11 = arith.divf %9, %10 : vector<64x128xf32>
    %12 = arith.mulf %6, %11 : vector<64x128xf32>
    %c0_7 = arith.constant 0 : index
    %c0_8 = arith.constant 0 : index
    %c0_9 = arith.constant 0 : index
    %13 = vector.load %arg5[%c0_7, %c0_8, %c0_9] : memref<1x1x128xbf16, #tpu.memory_space<vmem>>, vector<1x1x128xbf16>
    %14 = vector.shape_cast %13 : vector<1x1x128xbf16> to vector<1x128xbf16>
    %15 = arith.extf %14 : vector<1x128xbf16> to vector<1x128xf32>
    %16 = vector.broadcast %15 : vector<1x128xf32> to vector<64x128xf32>
    %17 = arith.addf %12, %16 : vector<64x128xf32>
    %18 = arith.truncf %17 : vector<64x128xf32> to vector<64x128xbf16>
    %c0_10 = arith.constant 0 : index
    %c0_11 = arith.constant 0 : index
    %c0_12 = arith.constant 0 : index
    %19 = vector.load %arg6[%c0_10, %c0_11, %c0_12] : memref<1x64x128xbf16, #tpu.memory_space<vmem>>, vector<1x64x128xbf16>
    %20 = vector.shape_cast %19 : vector<1x64x128xbf16> to vector<64x128xbf16>
    %21 = vector.shape_cast %18 : vector<64x128xbf16> to vector<1x64x128xbf16>
    tpu.vector_store %arg6[%c0_10, %c0_11, %c0_12], %21 {strides = array<i32>} : memref<1x64x128xbf16, #tpu.memory_space<vmem>>, vector<1x64x128xbf16>,
    return
  }
  func.func @transform_0(%arg0: i32, %arg1: i32) -> (i32, i32, i32) {
    %c0_i32 = arith.constant 0 : i32
    %c0_i32_0 = arith.constant 0 : i32
    return %arg0, %arg1, %c0_i32 : i32, i32, i32
  }
  func.func @transform_1(%arg0: i32, %arg1: i32) -> (i32, i32) {
    %c0_i32 = arith.constant 0 : i32
    %c0_i32_0 = arith.constant 0 : i32
    %c0_i32_1 = arith.constant 0 : i32
    return %c0_i32, %c0_i32_0 : i32, i32
  }
  func.func @transform_2(%arg0: i32, %arg1: i32) -> (i32, i32) {
    %c0_i32 = arith.constant 0 : i32
    %c0_i32_0 = arith.constant 0 : i32
    %c0_i32_1 = arith.constant 0 : i32
    return %c0_i32, %c0_i32_0 : i32, i32
  }
  func.func @transform_3(%arg0: i32, %arg1: i32) -> (i32, i32, i32) {
    %c0_i32 = arith.constant 0 : i32
    %c0_i32_0 = arith.constant 0 : i32
    %c0_i32_1 = arith.constant 0 : i32
    return %arg0, %c0_i32, %c0_i32_0 : i32, i32, i32
  }
  func.func @transform_4(%arg0: i32, %arg1: i32) -> (i32, i32, i32) {
    %c0_i32 = arith.constant 0 : i32
    %c0_i32_0 = arith.constant 0 : i32
    return %arg0, %arg1, %c0_i32 : i32, i32, i32
  }
}

module attributes {stable_mosaic.version = 11 : i64} {
  func.func @kernel(%arg0: i32, %arg1: i32, %arg2: memref<1x64x128xbf16, #tpu.memory_space<vmem>>, %arg3: memref<128x128xbf16, #tpu.memory_space<vmem>>, %arg4: memref<1x128xf32, #tpu.memory_space<vmem>>, %arg5: memref<1x64x128xbf16, #tpu.memory_space<vmem>>, %arg6: memref<1x64x128xbf16, #tpu.memory_space<vmem>>) attributes {dimension_semantics = [#tpu.dimension_semantics<parallel>, #tpu.dimension_semantics<parallel>], iteration_bounds = array<i64: 2, 1>, scalar_prefetch = 0 : i64, scratch_operands = 0 : i64, tpu.core_type = #tpu.core_type<tc>, window_params = [{transform_indices = @transform_0, window_bounds = array<i64: 1, 64, 128>}, {pipeline_mode = #tpu.pipeline_mode<synchronous>, transform_indices = @transform_1, window_bounds = array<i64: 128, 128>}, {pipeline_mode = #tpu.pipeline_mode<synchronous>, transform_indices = @transform_2, window_bounds = array<i64: 1, 128>}, {transform_indices = @transform_3, window_bounds = array<i64: 1, 64, 128>}, {transform_indices = @transform_4, window_bounds = array<i64: 1, 64, 128>}]} {
    %c0 = arith.constant 0 : index
    %c0_0 = arith.constant 0 : index
    %c0_1 = arith.constant 0 : index
    %0 = vector.load %arg2[%c0, %c0_0, %c0_1] : memref<1x64x128xbf16, #tpu.memory_space<vmem>>, vector<1x64x128xbf16>
    %1 = vector.shape_cast %0 : vector<1x64x128xbf16> to vector<64x128xbf16>
    %c0_2 = arith.constant 0 : index
    %c0_3 = arith.constant 0 : index
    %2 = vector.load %arg3[%c0_2, %c0_3] : memref<128x128xbf16, #tpu.memory_space<vmem>>, vector<128x128xbf16>
    %cst = arith.constant dense<0.000000e+00> : vector<64x128xf32>
    %3 = tpu.matmul %1, %2, %cst {dimension_numbers = #tpu.dot_dimension_numbers<[1], [0], [0], [1], [0, 0, 1, 1], [], []>} : vector<64x128xbf16>, vector<128x128xbf16>, vector<64x128xf32> -> vector<64x128xf32>
    %c0_4 = arith.constant 0 : index
    %c0_5 = arith.constant 0 : index
    %4 = vector.load %arg4[%c0_4, %c0_5] : memref<1x128xf32, #tpu.memory_space<vmem>>, vector<1x128xf32>
    %5 = vector.broadcast %4 : vector<1x128xf32> to vector<64x128xf32>
    %6 = arith.addf %3, %5 : vector<64x128xf32>
    %7 = arith.negf %6 : vector<64x128xf32>
    %8 = math.exp %7 : vector<64x128xf32>
    %cst_6 = arith.constant 1.000000e+00 : f32
    %9 = vector.broadcast %cst_6 : f32 to vector<64x128xf32>
    %10 = arith.addf %9, %8 : vector<64x128xf32>
    %11 = arith.divf %9, %10 : vector<64x128xf32>
    %12 = arith.mulf %6, %11 : vector<64x128xf32>
    %c0_7 = arith.constant 0 : index
    %c0_8 = arith.constant 0 : index
    %c0_9 = arith.constant 0 : index
    %13 = vector.load %arg5[%c0_7, %c0_8, %c0_9] : memref<1x64x128xbf16, #tpu.memory_space<vmem>>, vector<1x64x128xbf16>
    %14 = vector.shape_cast %13 : vector<1x64x128xbf16> to vector<64x128xbf16>
    %15 = arith.extf %14 : vector<64x128xbf16> to vector<64x128xf32>
    %16 = arith.addf %12, %15 : vector<64x128xf32>
    %17 = arith.truncf %16 : vector<64x128xf32> to vector<64x128xbf16>
    %c0_10 = arith.constant 0 : index
    %c0_11 = arith.constant 0 : index
    %c0_12 = arith.constant 0 : index
    %18 = vector.load %arg6[%c0_10, %c0_11, %c0_12] : memref<1x64x128xbf16, #tpu.memory_space<vmem>>, vector<1x64x128xbf16>
    %19 = vector.shape_cast %18 : vector<1x64x128xbf16> to vector<64x128xbf16>
    %20 = vector.shape_cast %17 : vector<64x128xbf16> to vector<1x64x128xbf16>
    tpu.vector_store %arg6[%c0_10, %c0_11, %c0_12], %20 {strides = array<i32>} : memref<1x64x128xbf16, #tpu.memory_space<vmem>>, vector<1x64x128xbf16>,
    return
  }
  func.func @transform_0(%arg0: i32, %arg1: i32) -> (i32, i32, i32) {
    %c0_i32 = arith.constant 0 : i32
    %c0_i32_0 = arith.constant 0 : i32
    return %arg0, %arg1, %c0_i32 : i32, i32, i32
  }
  func.func @transform_1(%arg0: i32, %arg1: i32) -> (i32, i32) {
    %c0_i32 = arith.constant 0 : i32
    %c0_i32_0 = arith.constant 0 : i32
    %c0_i32_1 = arith.constant 0 : i32
    return %c0_i32, %c0_i32_0 : i32, i32
  }
  func.func @transform_2(%arg0: i32, %arg1: i32) -> (i32, i32) {
    %c0_i32 = arith.constant 0 : i32
    %c0_i32_0 = arith.constant 0 : i32
    %c0_i32_1 = arith.constant 0 : i32
    return %c0_i32, %c0_i32_0 : i32, i32
  }
  func.func @transform_3(%arg0: i32, %arg1: i32) -> (i32, i32, i32) {
    %c0_i32 = arith.constant 0 : i32
    %c0_i32_0 = arith.constant 0 : i32
    return %arg0, %arg1, %c0_i32 : i32, i32, i32
  }
  func.func @transform_4(%arg0: i32, %arg1: i32) -> (i32, i32, i32) {
    %c0_i32 = arith.constant 0 : i32
    %c0_i32_0 = arith.constant 0 : i32
    return %arg0, %arg1, %c0_i32 : i32, i32, i32
  }
}

module attributes {stable_mosaic.version = 11 : i64} {
  func.func @kernel(%arg0: i32, %arg1: i32, %arg2: memref<1x64x128xbf16, #tpu.memory_space<vmem>>, %arg3: memref<128x128xbf16, #tpu.memory_space<vmem>>, %arg4: memref<1x128xf32, #tpu.memory_space<vmem>>, %arg5: memref<1x64x128xbf16, #tpu.memory_space<vmem>>) attributes {dimension_semantics = [#tpu.dimension_semantics<parallel>, #tpu.dimension_semantics<parallel>], iteration_bounds = array<i64: 2, 1>, scalar_prefetch = 0 : i64, scratch_operands = 0 : i64, tpu.core_type = #tpu.core_type<tc>, window_params = [{transform_indices = @transform_0, window_bounds = array<i64: 1, 64, 128>}, {pipeline_mode = #tpu.pipeline_mode<synchronous>, transform_indices = @transform_1, window_bounds = array<i64: 128, 128>}, {pipeline_mode = #tpu.pipeline_mode<synchronous>, transform_indices = @transform_2, window_bounds = array<i64: 1, 128>}, {transform_indices = @transform_3, window_bounds = array<i64: 1, 64, 128>}]} {
    %c0 = arith.constant 0 : index
    %c0_0 = arith.constant 0 : index
    %c0_1 = arith.constant 0 : index
    %0 = vector.load %arg2[%c0, %c0_0, %c0_1] : memref<1x64x128xbf16, #tpu.memory_space<vmem>>, vector<1x64x128xbf16>
    %1 = vector.shape_cast %0 : vector<1x64x128xbf16> to vector<64x128xbf16>
    %c0_2 = arith.constant 0 : index
    %c0_3 = arith.constant 0 : index
    %2 = vector.load %arg3[%c0_2, %c0_3] : memref<128x128xbf16, #tpu.memory_space<vmem>>, vector<128x128xbf16>
    %cst = arith.constant dense<0.000000e+00> : vector<64x128xf32>
    %3 = tpu.matmul %1, %2, %cst {dimension_numbers = #tpu.dot_dimension_numbers<[1], [0], [0], [1], [0, 0, 1, 1], [], []>} : vector<64x128xbf16>, vector<128x128xbf16>, vector<64x128xf32> -> vector<64x128xf32>
    %c0_4 = arith.constant 0 : index
    %c0_5 = arith.constant 0 : index
    %4 = vector.load %arg4[%c0_4, %c0_5] : memref<1x128xf32, #tpu.memory_space<vmem>>, vector<1x128xf32>
    %5 = vector.broadcast %4 : vector<1x128xf32> to vector<64x128xf32>
    %6 = arith.addf %3, %5 : vector<64x128xf32>
    %7 = arith.truncf %6 : vector<64x128xf32> to vector<64x128xbf16>
    %c0_6 = arith.constant 0 : index
    %c0_7 = arith.constant 0 : index
    %c0_8 = arith.constant 0 : index
    %8 = vector.load %arg5[%c0_6, %c0_7, %c0_8] : memref<1x64x128xbf16, #tpu.memory_space<vmem>>, vector<1x64x128xbf16>
    %9 = vector.shape_cast %8 : vector<1x64x128xbf16> to vector<64x128xbf16>
    %10 = vector.shape_cast %7 : vector<64x128xbf16> to vector<1x64x128xbf16>
    tpu.vector_store %arg5[%c0_6, %c0_7, %c0_8], %10 {strides = array<i32>} : memref<1x64x128xbf16, #tpu.memory_space<vmem>>, vector<1x64x128xbf16>,
    return
  }
  func.func @transform_0(%arg0: i32, %arg1: i32) -> (i32, i32, i32) {
    %c0_i32 = arith.constant 0 : i32
    %c0_i32_0 = arith.constant 0 : i32
    return %arg0, %arg1, %c0_i32 : i32, i32, i32
  }
  func.func @transform_1(%arg0: i32, %arg1: i32) -> (i32, i32) {
    %c0_i32 = arith.constant 0 : i32
    %c0_i32_0 = arith.constant 0 : i32
    %c0_i32_1 = arith.constant 0 : i32
    return %c0_i32, %c0_i32_0 : i32, i32
  }
  func.func @transform_2(%arg0: i32, %arg1: i32) -> (i32, i32) {
    %c0_i32 = arith.constant 0 : i32
    %c0_i32_0 = arith.constant 0 : i32
    %c0_i32_1 = arith.constant 0 : i32
    return %c0_i32, %c0_i32_0 : i32, i32
  }
  func.func @transform_3(%arg0: i32, %arg1: i32) -> (i32, i32, i32) {
    %c0_i32 = arith.constant 0 : i32
    %c0_i32_0 = arith.constant 0 : i32
    return %arg0, %arg1, %c0_i32 : i32, i32, i32
  }
}

module attributes {stable_mosaic.version = 11 : i64} {
  func.func @kernel(%arg0: i32, %arg1: memref<3x8x128xf32, #tpu.memory_space<vmem>>, %arg2: memref<3x8x128xf32, #tpu.memory_space<vmem>>, %arg3: memref<3x8x128xf32, #tpu.memory_space<vmem>>, %arg4: memref<3x8x128xf32, #tpu.memory_space<vmem>>) attributes {dimension_semantics = [#tpu.dimension_semantics<parallel>], iteration_bounds = array<i64: 2>, scalar_prefetch = 0 : i64, scratch_operands = 0 : i64, tpu.core_type = #tpu.core_type<tc>, window_params = [{transform_indices = @transform_0, window_bounds = array<i64: 3, 8, 128>}, {transform_indices = @transform_1, window_bounds = array<i64: 3, 8, 128>}, {transform_indices = @transform_2, window_bounds = array<i64: 3, 8, 128>}, {transform_indices = @transform_3, window_bounds = array<i64: 3, 8, 128>}]} {
    %c0 = arith.constant 0 : index
    %c0_0 = arith.constant 0 : index
    %c0_1 = arith.constant 0 : index
    %0 = vector.load %arg1[%c0, %c0_0, %c0_1] : memref<3x8x128xf32, #tpu.memory_space<vmem>>, vector<3x8x128xf32>
    %c0_2 = arith.constant 0 : index
    %c0_3 = arith.constant 0 : index
    %c0_4 = arith.constant 0 : index
    %1 = vector.load %arg2[%c0_2, %c0_3, %c0_4] : memref<3x8x128xf32, #tpu.memory_space<vmem>>, vector<3x8x128xf32>
    %c0_5 = arith.constant 0 : index
    %c0_6 = arith.constant 0 : index
    %c0_7 = arith.constant 0 : index
    %2 = vector.load %arg3[%c0_5, %c0_6, %c0_7] : memref<3x8x128xf32, #tpu.memory_space<vmem>>, vector<3x8x128xf32>
    %3 = tpu.iota {dimensions = array<i32: 1>} : vector<3x8x128xi32>
    %4 = tpu.iota {dimensions = array<i32: 2>} : vector<3x8x128xi32>
    %c2_i32 = arith.constant 2 : i32
    %5 = vector.broadcast %c2_i32 : i32 to vector<3x8x128xi32>
    %6 = arith.cmpi slt, %3, %5 : vector<3x8x128xi32>
    %cst = arith.constant -1.000000e+30 : f32
    %7 = vector.broadcast %cst : f32 to vector<3x8x128xf32>
    %8 = arith.select %6, %0, %7 : vector<3x8x128xi1>, vector<3x8x128xf32>
    %cst_8 = arith.constant dense<0xFF800000> : vector<3x128xf32>
    %9 = vector.multi_reduction <maximumf>, %8, %cst_8 [1] : vector<3x8x128xf32> to vector<3x128xf32>
    %cst_9 = arith.constant 0xFF800000 : f32
    %10 = vector.broadcast %cst_9 : f32 to vector<3x128xf32>
    %11 = arith.maximumf %10, %9 : vector<3x128xf32>
    %12 = vector.shape_cast %11 : vector<3x128xf32> to vector<3x1x128xf32>
    %13 = vector.broadcast %12 : vector<3x1x128xf32> to vector<3x8x128xf32>
    %14 = arith.subf %8, %13 : vector<3x8x128xf32>
    %15 = math.exp %14 : vector<3x8x128xf32>
    %cst_10 = arith.constant dense<0.000000e+00> : vector<3x128xf32>
    %16 = vector.multi_reduction <add>, %15, %cst_10 [1] : vector<3x8x128xf32> to vector<3x128xf32>
    %17 = vector.shape_cast %16 : vector<3x128xf32> to vector<3x1x128xf32>
    %18 = vector.broadcast %17 : vector<3x1x128xf32> to vector<3x8x128xf32>
    %19 = arith.divf %15, %18 : vector<3x8x128xf32>
    %cst_11 = arith.constant 0.707106769 : f32
    %20 = vector.broadcast %cst_11 : f32 to vector<3x8x128xf32>
    %21 = arith.mulf %19, %20 : vector<3x8x128xf32>
    %c64_i32 = arith.constant 64 : i32
    %22 = vector.broadcast %c64_i32 : i32 to vector<3x8x128xi32>
    %23 = arith.cmpi slt, %4, %22 : vector<3x8x128xi32>
    %cst_12 = arith.constant -1.000000e+30 : f32
    %24 = vector.broadcast %cst_12 : f32 to vector<3x8x128xf32>
    %25 = arith.select %23, %1, %24 : vector<3x8x128xi1>, vector<3x8x128xf32>
    %cst_13 = arith.constant dense<0xFF800000> : vector<3x8xf32>
    %26 = vector.multi_reduction <maximumf>, %25, %cst_13 [2] : vector<3x8x128xf32> to vector<3x8xf32>
    %cst_14 = arith.constant 0xFF800000 : f32
    %27 = vector.broadcast %cst_14 : f32 to vector<3x8xf32>
    %28 = arith.maximumf %27, %26 : vector<3x8xf32>
    %29 = vector.shape_cast %28 : vector<3x8xf32> to vector<3x8x1xf32>
    %30 = vector.broadcast %29 : vector<3x8x1xf32> to vector<3x8x128xf32>
    %31 = arith.subf %25, %30 : vector<3x8x128xf32>
    %32 = math.exp %31 : vector<3x8x128xf32>
    %cst_15 = arith.constant dense<0.000000e+00> : vector<3x8xf32>
    %33 = vector.multi_reduction <add>, %32, %cst_15 [2] : vector<3x8x128xf32> to vector<3x8xf32>
    %34 = vector.shape_cast %33 : vector<3x8xf32> to vector<3x8x1xf32>
    %35 = vector.broadcast %34 : vector<3x8x1xf32> to vector<3x8x128xf32>
    %36 = arith.divf %32, %35 : vector<3x8x128xf32>
    %37 = arith.truncf %21 : vector<3x8x128xf32> to vector<3x8x128xbf16>
    %38 = arith.truncf %36 : vector<3x8x128xf32> to vector<3x8x128xbf16>
    %39 = arith.truncf %2 : vector<3x8x128xf32> to vector<3x8x128xbf16>
    "tpu.trace_start"() <{level = 10 : i32, message = "gen,gdn->ged"}> : () -> ()
    %cst_16 = arith.constant dense<0.000000e+00> : vector<3x8x8xf32>
    %40 = tpu.matmul %39, %38, %cst_16 {dimension_numbers = #tpu.dot_dimension_numbers<[2], [2], [1], [1], [0, 0, 0, 1, 1, 1], [0], [0]>} : vector<3x8x128xbf16>, vector<3x8x128xbf16>, vector<3x8x8xf32> -> vector<3x8x8xf32>
    "tpu.trace_stop"() : () -> ()
    %41 = arith.truncf %40 : vector<3x8x8xf32> to vector<3x8x8xbf16>
    "tpu.trace_start"() <{level = 10 : i32, message = "ged,gdn->gen"}> : () -> ()
    %cst_17 = arith.constant dense<0.000000e+00> : vector<3x8x128xf32>
    %42 = tpu.matmul %41, %37, %cst_17 {dimension_numbers = #tpu.dot_dimension_numbers<[2], [1], [1], [2], [0, 0, 0, 1, 1, 2], [0], [0]>} : vector<3x8x8xbf16>, vector<3x8x128xbf16>, vector<3x8x128xf32> -> vector<3x8x128xf32>
    "tpu.trace_stop"() : () -> ()
    %c0_18 = arith.constant 0 : index
    %c0_19 = arith.constant 0 : index
    %c0_20 = arith.constant 0 : index
    %43 = vector.load %arg4[%c0_18, %c0_19, %c0_20] : memref<3x8x128xf32, #tpu.memory_space<vmem>>, vector<3x8x128xf32>
    tpu.vector_store %arg4[%c0_18, %c0_19, %c0_20], %42 {strides = array<i32>} : memref<3x8x128xf32, #tpu.memory_space<vmem>>, vector<3x8x128xf32>,
    return
  }
  func.func @transform_0(%arg0: i32) -> (i32, i32, i32) {
    %c0_i32 = arith.constant 0 : i32
    %c0_i32_0 = arith.constant 0 : i32
    %c0_i32_1 = arith.constant 0 : i32
    return %arg0, %c0_i32, %c0_i32_0 : i32, i32, i32
  }
  func.func @transform_1(%arg0: i32) -> (i32, i32, i32) {
    %c0_i32 = arith.constant 0 : i32
    %c0_i32_0 = arith.constant 0 : i32
    %c0_i32_1 = arith.constant 0 : i32
    return %arg0, %c0_i32, %c0_i32_0 : i32, i32, i32
  }
  func.func @transform_2(%arg0: i32) -> (i32, i32, i32) {
    %c0_i32 = arith.constant 0 : i32
    %c0_i32_0 = arith.constant 0 : i32
    %c0_i32_1 = arith.constant 0 : i32
    return %arg0, %c0_i32, %c0_i32_0 : i32, i32, i32
  }
  func.func @transform_3(%arg0: i32) -> (i32, i32, i32) {
    %c0_i32 = arith.constant 0 : i32
    %c0_i32_0 = arith.constant 0 : i32
    %c0_i32_1 = arith.constant 0 : i32
    return %arg0, %c0_i32, %c0_i32_0 : i32, i32, i32
  }
}

module attributes {stable_mosaic.version = 11 : i64} {
  func.func @kernel(%arg0: i32, %arg1: i32, %arg2: memref<1x64x128xbf16, #tpu.memory_space<vmem>>, %arg3: memref<128x128xbf16, #tpu.memory_space<vmem>>, %arg4: memref<1x128xf32, #tpu.memory_space<vmem>>, %arg5: memref<1x64x128xbf16, #tpu.memory_space<vmem>>, %arg6: memref<1x64x128xbf16, #tpu.memory_space<vmem>>) attributes {dimension_semantics = [#tpu.dimension_semantics<parallel>, #tpu.dimension_semantics<parallel>], iteration_bounds = array<i64: 2, 1>, scalar_prefetch = 0 : i64, scratch_operands = 0 : i64, tpu.core_type = #tpu.core_type<tc>, window_params = [{transform_indices = @transform_0, window_bounds = array<i64: 1, 64, 128>}, {pipeline_mode = #tpu.pipeline_mode<synchronous>, transform_indices = @transform_1, window_bounds = array<i64: 128, 128>}, {pipeline_mode = #tpu.pipeline_mode<synchronous>, transform_indices = @transform_2, window_bounds = array<i64: 1, 128>}, {transform_indices = @transform_3, window_bounds = array<i64: 1, 64, 128>}, {transform_indices = @transform_4, window_bounds = array<i64: 1, 64, 128>}]} {
    %c0 = arith.constant 0 : index
    %c0_0 = arith.constant 0 : index
    %c0_1 = arith.constant 0 : index
    %0 = vector.load %arg2[%c0, %c0_0, %c0_1] : memref<1x64x128xbf16, #tpu.memory_space<vmem>>, vector<1x64x128xbf16>
    %1 = vector.shape_cast %0 : vector<1x64x128xbf16> to vector<64x128xbf16>
    %c0_2 = arith.constant 0 : index
    %c0_3 = arith.constant 0 : index
    %2 = vector.load %arg3[%c0_2, %c0_3] : memref<128x128xbf16, #tpu.memory_space<vmem>>, vector<128x128xbf16>
    %cst = arith.constant dense<0.000000e+00> : vector<64x128xf32>
    %3 = tpu.matmul %1, %2, %cst {dimension_numbers = #tpu.dot_dimension_numbers<[1], [0], [0], [1], [0, 0, 1, 1], [], []>} : vector<64x128xbf16>, vector<128x128xbf16>, vector<64x128xf32> -> vector<64x128xf32>
    %c0_4 = arith.constant 0 : index
    %c0_5 = arith.constant 0 : index
    %4 = vector.load %arg4[%c0_4, %c0_5] : memref<1x128xf32, #tpu.memory_space<vmem>>, vector<1x128xf32>
    %5 = vector.broadcast %4 : vector<1x128xf32> to vector<64x128xf32>
    %6 = arith.addf %3, %5 : vector<64x128xf32>
    %c0_6 = arith.constant 0 : index
    %c0_7 = arith.constant 0 : index
    %c0_8 = arith.constant 0 : index
    %7 = vector.load %arg5[%c0_6, %c0_7, %c0_8] : memref<1x64x128xbf16, #tpu.memory_space<vmem>>, vector<1x64x128xbf16>
    %8 = vector.shape_cast %7 : vector<1x64x128xbf16> to vector<64x128xbf16>
    %9 = arith.extf %8 : vector<64x128xbf16> to vector<64x128xf32>
    %10 = arith.addf %6, %9 : vector<64x128xf32>
    %11 = arith.truncf %10 : vector<64x128xf32> to vector<64x128xbf16>
    %c0_9 = arith.constant 0 : index
    %c0_10 = arith.constant 0 : index
    %c0_11 = arith.constant 0 : index
    %12 = vector.load %arg6[%c0_9, %c0_10, %c0_11] : memref<1x64x128xbf16, #tpu.memory_space<vmem>>, vector<1x64x128xbf16>
    %13 = vector.shape_cast %12 : vector<1x64x128xbf16> to vector<64x128xbf16>
    %14 = vector.shape_cast %11 : vector<64x128xbf16> to vector<1x64x128xbf16>
    tpu.vector_store %arg6[%c0_9, %c0_10, %c0_11], %14 {strides = array<i32>} : memref<1x64x128xbf16, #tpu.memory_space<vmem>>, vector<1x64x128xbf16>,
    return
  }
  func.func @transform_0(%arg0: i32, %arg1: i32) -> (i32, i32, i32) {
    %c0_i32 = arith.constant 0 : i32
    %c0_i32_0 = arith.constant 0 : i32
    return %arg0, %arg1, %c0_i32 : i32, i32, i32
  }
  func.func @transform_1(%arg0: i32, %arg1: i32) -> (i32, i32) {
    %c0_i32 = arith.constant 0 : i32
    %c0_i32_0 = arith.constant 0 : i32
    %c0_i32_1 = arith.constant 0 : i32
    return %c0_i32, %c0_i32_0 : i32, i32
  }
  func.func @transform_2(%arg0: i32, %arg1: i32) -> (i32, i32) {
    %c0_i32 = arith.constant 0 : i32
    %c0_i32_0 = arith.constant 0 : i32
    %c0_i32_1 = arith.constant 0 : i32
    return %c0_i32, %c0_i32_0 : i32, i32
  }
  func.func @transform_3(%arg0: i32, %arg1: i32) -> (i32, i32, i32) {
    %c0_i32 = arith.constant 0 : i32
    %c0_i32_0 = arith.constant 0 : i32
    return %arg0, %arg1, %c0_i32 : i32, i32, i32
  }
  func.func @transform_4(%arg0: i32, %arg1: i32) -> (i32, i32, i32) {
    %c0_i32 = arith.constant 0 : i32
    %c0_i32_0 = arith.constant 0 : i32
    return %arg0, %arg1, %c0_i32 : i32, i32, i32
  }
}

module attributes {stable_mosaic.version = 11 : i64} {
  func.func @kernel(%arg0: i32, %arg1: i32, %arg2: memref<1x16x128xbf16, #tpu.memory_space<vmem>>, %arg3: memref<128x128xbf16, #tpu.memory_space<vmem>>, %arg4: memref<1x128xf32, #tpu.memory_space<vmem>>, %arg5: memref<1x16x128xbf16, #tpu.memory_space<vmem>>) attributes {dimension_semantics = [#tpu.dimension_semantics<parallel>, #tpu.dimension_semantics<parallel>], iteration_bounds = array<i64: 2, 1>, scalar_prefetch = 0 : i64, scratch_operands = 0 : i64, tpu.core_type = #tpu.core_type<tc>, window_params = [{transform_indices = @transform_0, window_bounds = array<i64: 1, 16, 128>}, {pipeline_mode = #tpu.pipeline_mode<synchronous>, transform_indices = @transform_1, window_bounds = array<i64: 128, 128>}, {pipeline_mode = #tpu.pipeline_mode<synchronous>, transform_indices = @transform_2, window_bounds = array<i64: 1, 128>}, {transform_indices = @transform_3, window_bounds = array<i64: 1, 16, 128>}]} {
    %c0 = arith.constant 0 : index
    %c0_0 = arith.constant 0 : index
    %c0_1 = arith.constant 0 : index
    %0 = vector.load %arg2[%c0, %c0_0, %c0_1] : memref<1x16x128xbf16, #tpu.memory_space<vmem>>, vector<1x16x128xbf16>
    %1 = vector.shape_cast %0 : vector<1x16x128xbf16> to vector<16x128xbf16>
    %c0_2 = arith.constant 0 : index
    %c0_3 = arith.constant 0 : index
    %2 = vector.load %arg3[%c0_2, %c0_3] : memref<128x128xbf16, #tpu.memory_space<vmem>>, vector<128x128xbf16>
    %cst = arith.constant dense<0.000000e+00> : vector<16x128xf32>
    %3 = tpu.matmul %1, %2, %cst {dimension_numbers = #tpu.dot_dimension_numbers<[1], [0], [0], [1], [0, 0, 1, 1], [], []>} : vector<16x128xbf16>, vector<128x128xbf16>, vector<16x128xf32> -> vector<16x128xf32>
    %c0_4 = arith.constant 0 : index
    %c0_5 = arith.constant 0 : index
    %4 = vector.load %arg4[%c0_4, %c0_5] : memref<1x128xf32, #tpu.memory_space<vmem>>, vector<1x128xf32>
    %5 = vector.broadcast %4 : vector<1x128xf32> to vector<16x128xf32>
    %6 = arith.addf %3, %5 : vector<16x128xf32>
    %7 = arith.truncf %6 : vector<16x128xf32> to vector<16x128xbf16>
    %c0_6 = arith.constant 0 : index
    %c0_7 = arith.constant 0 : index
    %c0_8 = arith.constant 0 : index
    %8 = vector.load %arg5[%c0_6, %c0_7, %c0_8] : memref<1x16x128xbf16, #tpu.memory_space<vmem>>, vector<1x16x128xbf16>
    %9 = vector.shape_cast %8 : vector<1x16x128xbf16> to vector<16x128xbf16>
    %10 = vector.shape_cast %7 : vector<16x128xbf16> to vector<1x16x128xbf16>
    tpu.vector_store %arg5[%c0_6, %c0_7, %c0_8], %10 {strides = array<i32>} : memref<1x16x128xbf16, #tpu.memory_space<vmem>>, vector<1x16x128xbf16>,
    return
  }
  func.func @transform_0(%arg0: i32, %arg1: i32) -> (i32, i32, i32) {
    %c0_i32 = arith.constant 0 : i32
    %c0_i32_0 = arith.constant 0 : i32
    return %arg0, %arg1, %c0_i32 : i32, i32, i32
  }
  func.func @transform_1(%arg0: i32, %arg1: i32) -> (i32, i32) {
    %c0_i32 = arith.constant 0 : i32
    %c0_i32_0 = arith.constant 0 : i32
    %c0_i32_1 = arith.constant 0 : i32
    return %c0_i32, %c0_i32_0 : i32, i32
  }
  func.func @transform_2(%arg0: i32, %arg1: i32) -> (i32, i32) {
    %c0_i32 = arith.constant 0 : i32
    %c0_i32_0 = arith.constant 0 : i32
    %c0_i32_1 = arith.constant 0 : i32
    return %c0_i32, %c0_i32_0 : i32, i32
  }
  func.func @transform_3(%arg0: i32, %arg1: i32) -> (i32, i32, i32) {
    %c0_i32 = arith.constant 0 : i32
    %c0_i32_0 = arith.constant 0 : i32
    return %arg0, %arg1, %c0_i32 : i32, i32, i32
  }
}

module attributes {stable_mosaic.version = 11 : i64} {
  func.func @kernel(%arg0: i32, %arg1: i32, %arg2: memref<1x16x128xbf16, #tpu.memory_space<vmem>>, %arg3: memref<128x128xbf16, #tpu.memory_space<vmem>>, %arg4: memref<1x128xf32, #tpu.memory_space<vmem>>, %arg5: memref<1x1x128xbf16, #tpu.memory_space<vmem>>, %arg6: memref<1x16x128xbf16, #tpu.memory_space<vmem>>) attributes {dimension_semantics = [#tpu.dimension_semantics<parallel>, #tpu.dimension_semantics<parallel>], iteration_bounds = array<i64: 2, 1>, scalar_prefetch = 0 : i64, scratch_operands = 0 : i64, tpu.core_type = #tpu.core_type<tc>, window_params = [{transform_indices = @transform_0, window_bounds = array<i64: 1, 16, 128>}, {pipeline_mode = #tpu.pipeline_mode<synchronous>, transform_indices = @transform_1, window_bounds = array<i64: 128, 128>}, {pipeline_mode = #tpu.pipeline_mode<synchronous>, transform_indices = @transform_2, window_bounds = array<i64: 1, 128>}, {transform_indices = @transform_3, window_bounds = array<i64: 1, 1, 128>}, {transform_indices = @transform_4, window_bounds = array<i64: 1, 16, 128>}]} {
    %c0 = arith.constant 0 : index
    %c0_0 = arith.constant 0 : index
    %c0_1 = arith.constant 0 : index
    %0 = vector.load %arg2[%c0, %c0_0, %c0_1] : memref<1x16x128xbf16, #tpu.memory_space<vmem>>, vector<1x16x128xbf16>
    %1 = vector.shape_cast %0 : vector<1x16x128xbf16> to vector<16x128xbf16>
    %c0_2 = arith.constant 0 : index
    %c0_3 = arith.constant 0 : index
    %2 = vector.load %arg3[%c0_2, %c0_3] : memref<128x128xbf16, #tpu.memory_space<vmem>>, vector<128x128xbf16>
    %cst = arith.constant dense<0.000000e+00> : vector<16x128xf32>
    %3 = tpu.matmul %1, %2, %cst {dimension_numbers = #tpu.dot_dimension_numbers<[1], [0], [0], [1], [0, 0, 1, 1], [], []>} : vector<16x128xbf16>, vector<128x128xbf16>, vector<16x128xf32> -> vector<16x128xf32>
    %c0_4 = arith.constant 0 : index
    %c0_5 = arith.constant 0 : index
    %4 = vector.load %arg4[%c0_4, %c0_5] : memref<1x128xf32, #tpu.memory_space<vmem>>, vector<1x128xf32>
    %5 = vector.broadcast %4 : vector<1x128xf32> to vector<16x128xf32>
    %6 = arith.addf %3, %5 : vector<16x128xf32>
    %7 = arith.negf %6 : vector<16x128xf32>
    %8 = math.exp %7 : vector<16x128xf32>
    %cst_6 = arith.constant 1.000000e+00 : f32
    %9 = vector.broadcast %cst_6 : f32 to vector<16x128xf32>
    %10 = arith.addf %9, %8 : vector<16x128xf32>
    %11 = arith.divf %9, %10 : vector<16x128xf32>
    %12 = arith.mulf %6, %11 : vector<16x128xf32>
    %c0_7 = arith.constant 0 : index
    %c0_8 = arith.constant 0 : index
    %c0_9 = arith.constant 0 : index
    %13 = vector.load %arg5[%c0_7, %c0_8, %c0_9] : memref<1x1x128xbf16, #tpu.memory_space<vmem>>, vector<1x1x128xbf16>
    %14 = vector.shape_cast %13 : vector<1x1x128xbf16> to vector<1x128xbf16>
    %15 = arith.extf %14 : vector<1x128xbf16> to vector<1x128xf32>
    %16 = vector.broadcast %15 : vector<1x128xf32> to vector<16x128xf32>
    %17 = arith.addf %12, %16 : vector<16x128xf32>
    %18 = arith.truncf %17 : vector<16x128xf32> to vector<16x128xbf16>
    %c0_10 = arith.constant 0 : index
    %c0_11 = arith.constant 0 : index
    %c0_12 = arith.constant 0 : index
    %19 = vector.load %arg6[%c0_10, %c0_11, %c0_12] : memref<1x16x128xbf16, #tpu.memory_space<vmem>>, vector<1x16x128xbf16>
    %20 = vector.shape_cast %19 : vector<1x16x128xbf16> to vector<16x128xbf16>
    %21 = vector.shape_cast %18 : vector<16x128xbf16> to vector<1x16x128xbf16>
    tpu.vector_store %arg6[%c0_10, %c0_11, %c0_12], %21 {strides = array<i32>} : memref<1x16x128xbf16, #tpu.memory_space<vmem>>, vector<1x16x128xbf16>,
    return
  }
  func.func @transform_0(%arg0: i32, %arg1: i32) -> (i32, i32, i32) {
    %c0_i32 = arith.constant 0 : i32
    %c0_i32_0 = arith.constant 0 : i32
    return %arg0, %arg1, %c0_i32 : i32, i32, i32
  }
  func.func @transform_1(%arg0: i32, %arg1: i32) -> (i32, i32) {
    %c0_i32 = arith.constant 0 : i32
    %c0_i32_0 = arith.constant 0 : i32
    %c0_i32_1 = arith.constant 0 : i32
    return %c0_i32, %c0_i32_0 : i32, i32
  }
  func.func @transform_2(%arg0: i32, %arg1: i32) -> (i32, i32) {
    %c0_i32 = arith.constant 0 : i32
    %c0_i32_0 = arith.constant 0 : i32
    %c0_i32_1 = arith.constant 0 : i32
    return %c0_i32, %c0_i32_0 : i32, i32
  }
  func.func @transform_3(%arg0: i32, %arg1: i32) -> (i32, i32, i32) {
    %c0_i32 = arith.constant 0 : i32
    %c0_i32_0 = arith.constant 0 : i32
    %c0_i32_1 = arith.constant 0 : i32
    return %arg0, %c0_i32, %c0_i32_0 : i32, i32, i32
  }
  func.func @transform_4(%arg0: i32, %arg1: i32) -> (i32, i32, i32) {
    %c0_i32 = arith.constant 0 : i32
    %c0_i32_0 = arith.constant 0 : i32
    return %arg0, %arg1, %c0_i32 : i32, i32, i32
  }
}

module attributes {stable_mosaic.version = 11 : i64} {
  func.func @kernel(%arg0: i32, %arg1: i32, %arg2: memref<1x16x128xbf16, #tpu.memory_space<vmem>>, %arg3: memref<128x128xbf16, #tpu.memory_space<vmem>>, %arg4: memref<1x128xf32, #tpu.memory_space<vmem>>, %arg5: memref<1x16x128xbf16, #tpu.memory_space<vmem>>, %arg6: memref<1x16x128xbf16, #tpu.memory_space<vmem>>) attributes {dimension_semantics = [#tpu.dimension_semantics<parallel>, #tpu.dimension_semantics<parallel>], iteration_bounds = array<i64: 2, 1>, scalar_prefetch = 0 : i64, scratch_operands = 0 : i64, tpu.core_type = #tpu.core_type<tc>, window_params = [{transform_indices = @transform_0, window_bounds = array<i64: 1, 16, 128>}, {pipeline_mode = #tpu.pipeline_mode<synchronous>, transform_indices = @transform_1, window_bounds = array<i64: 128, 128>}, {pipeline_mode = #tpu.pipeline_mode<synchronous>, transform_indices = @transform_2, window_bounds = array<i64: 1, 128>}, {transform_indices = @transform_3, window_bounds = array<i64: 1, 16, 128>}, {transform_indices = @transform_4, window_bounds = array<i64: 1, 16, 128>}]} {
    %c0 = arith.constant 0 : index
    %c0_0 = arith.constant 0 : index
    %c0_1 = arith.constant 0 : index
    %0 = vector.load %arg2[%c0, %c0_0, %c0_1] : memref<1x16x128xbf16, #tpu.memory_space<vmem>>, vector<1x16x128xbf16>
    %1 = vector.shape_cast %0 : vector<1x16x128xbf16> to vector<16x128xbf16>
    %c0_2 = arith.constant 0 : index
    %c0_3 = arith.constant 0 : index
    %2 = vector.load %arg3[%c0_2, %c0_3] : memref<128x128xbf16, #tpu.memory_space<vmem>>, vector<128x128xbf16>
    %cst = arith.constant dense<0.000000e+00> : vector<16x128xf32>
    %3 = tpu.matmul %1, %2, %cst {dimension_numbers = #tpu.dot_dimension_numbers<[1], [0], [0], [1], [0, 0, 1, 1], [], []>} : vector<16x128xbf16>, vector<128x128xbf16>, vector<16x128xf32> -> vector<16x128xf32>
    %c0_4 = arith.constant 0 : index
    %c0_5 = arith.constant 0 : index
    %4 = vector.load %arg4[%c0_4, %c0_5] : memref<1x128xf32, #tpu.memory_space<vmem>>, vector<1x128xf32>
    %5 = vector.broadcast %4 : vector<1x128xf32> to vector<16x128xf32>
    %6 = arith.addf %3, %5 : vector<16x128xf32>
    %7 = arith.negf %6 : vector<16x128xf32>
    %8 = math.exp %7 : vector<16x128xf32>
    %cst_6 = arith.constant 1.000000e+00 : f32
    %9 = vector.broadcast %cst_6 : f32 to vector<16x128xf32>
    %10 = arith.addf %9, %8 : vector<16x128xf32>
    %11 = arith.divf %9, %10 : vector<16x128xf32>
    %12 = arith.mulf %6, %11 : vector<16x128xf32>
    %c0_7 = arith.constant 0 : index
    %c0_8 = arith.constant 0 : index
    %c0_9 = arith.constant 0 : index
    %13 = vector.load %arg5[%c0_7, %c0_8, %c0_9] : memref<1x16x128xbf16, #tpu.memory_space<vmem>>, vector<1x16x128xbf16>
    %14 = vector.shape_cast %13 : vector<1x16x128xbf16> to vector<16x128xbf16>
    %15 = arith.extf %14 : vector<16x128xbf16> to vector<16x128xf32>
    %16 = arith.addf %12, %15 : vector<16x128xf32>
    %17 = arith.truncf %16 : vector<16x128xf32> to vector<16x128xbf16>
    %c0_10 = arith.constant 0 : index
    %c0_11 = arith.constant 0 : index
    %c0_12 = arith.constant 0 : index
    %18 = vector.load %arg6[%c0_10, %c0_11, %c0_12] : memref<1x16x128xbf16, #tpu.memory_space<vmem>>, vector<1x16x128xbf16>
    %19 = vector.shape_cast %18 : vector<1x16x128xbf16> to vector<16x128xbf16>
    %20 = vector.shape_cast %17 : vector<16x128xbf16> to vector<1x16x128xbf16>
    tpu.vector_store %arg6[%c0_10, %c0_11, %c0_12], %20 {strides = array<i32>} : memref<1x16x128xbf16, #tpu.memory_space<vmem>>, vector<1x16x128xbf16>,
    return
  }
  func.func @transform_0(%arg0: i32, %arg1: i32) -> (i32, i32, i32) {
    %c0_i32 = arith.constant 0 : i32
    %c0_i32_0 = arith.constant 0 : i32
    return %arg0, %arg1, %c0_i32 : i32, i32, i32
  }
  func.func @transform_1(%arg0: i32, %arg1: i32) -> (i32, i32) {
    %c0_i32 = arith.constant 0 : i32
    %c0_i32_0 = arith.constant 0 : i32
    %c0_i32_1 = arith.constant 0 : i32
    return %c0_i32, %c0_i32_0 : i32, i32
  }
  func.func @transform_2(%arg0: i32, %arg1: i32) -> (i32, i32) {
    %c0_i32 = arith.constant 0 : i32
    %c0_i32_0 = arith.constant 0 : i32
    %c0_i32_1 = arith.constant 0 : i32
    return %c0_i32, %c0_i32_0 : i32, i32
  }
  func.func @transform_3(%arg0: i32, %arg1: i32) -> (i32, i32, i32) {
    %c0_i32 = arith.constant 0 : i32
    %c0_i32_0 = arith.constant 0 : i32
    return %arg0, %arg1, %c0_i32 : i32, i32, i32
  }
  func.func @transform_4(%arg0: i32, %arg1: i32) -> (i32, i32, i32) {
    %c0_i32 = arith.constant 0 : i32
    %c0_i32_0 = arith.constant 0 : i32
    return %arg0, %arg1, %c0_i32 : i32, i32, i32
  }
}

module attributes {stable_mosaic.version = 11 : i64} {
  func.func @kernel(%arg0: i32, %arg1: memref<3x8x128xf32, #tpu.memory_space<vmem>>, %arg2: memref<3x8x128xf32, #tpu.memory_space<vmem>>, %arg3: memref<3x8x128xf32, #tpu.memory_space<vmem>>, %arg4: memref<3x8x128xf32, #tpu.memory_space<vmem>>) attributes {dimension_semantics = [#tpu.dimension_semantics<parallel>], iteration_bounds = array<i64: 2>, scalar_prefetch = 0 : i64, scratch_operands = 0 : i64, tpu.core_type = #tpu.core_type<tc>, window_params = [{transform_indices = @transform_0, window_bounds = array<i64: 3, 8, 128>}, {transform_indices = @transform_1, window_bounds = array<i64: 3, 8, 128>}, {transform_indices = @transform_2, window_bounds = array<i64: 3, 8, 128>}, {transform_indices = @transform_3, window_bounds = array<i64: 3, 8, 128>}]} {
    %c0 = arith.constant 0 : index
    %c0_0 = arith.constant 0 : index
    %c0_1 = arith.constant 0 : index
    %0 = vector.load %arg1[%c0, %c0_0, %c0_1] : memref<3x8x128xf32, #tpu.memory_space<vmem>>, vector<3x8x128xf32>
    %c0_2 = arith.constant 0 : index
    %c0_3 = arith.constant 0 : index
    %c0_4 = arith.constant 0 : index
    %1 = vector.load %arg2[%c0_2, %c0_3, %c0_4] : memref<3x8x128xf32, #tpu.memory_space<vmem>>, vector<3x8x128xf32>
    %c0_5 = arith.constant 0 : index
    %c0_6 = arith.constant 0 : index
    %c0_7 = arith.constant 0 : index
    %2 = vector.load %arg3[%c0_5, %c0_6, %c0_7] : memref<3x8x128xf32, #tpu.memory_space<vmem>>, vector<3x8x128xf32>
    %3 = tpu.iota {dimensions = array<i32: 1>} : vector<3x8x128xi32>
    %4 = tpu.iota {dimensions = array<i32: 2>} : vector<3x8x128xi32>
    %c2_i32 = arith.constant 2 : i32
    %5 = vector.broadcast %c2_i32 : i32 to vector<3x8x128xi32>
    %6 = arith.cmpi slt, %3, %5 : vector<3x8x128xi32>
    %cst = arith.constant -1.000000e+30 : f32
    %7 = vector.broadcast %cst : f32 to vector<3x8x128xf32>
    %8 = arith.select %6, %0, %7 : vector<3x8x128xi1>, vector<3x8x128xf32>
    %cst_8 = arith.constant dense<0xFF800000> : vector<3x128xf32>
    %9 = vector.multi_reduction <maximumf>, %8, %cst_8 [1] : vector<3x8x128xf32> to vector<3x128xf32>
    %cst_9 = arith.constant 0xFF800000 : f32
    %10 = vector.broadcast %cst_9 : f32 to vector<3x128xf32>
    %11 = arith.maximumf %10, %9 : vector<3x128xf32>
    %12 = vector.shape_cast %11 : vector<3x128xf32> to vector<3x1x128xf32>
    %13 = vector.broadcast %12 : vector<3x1x128xf32> to vector<3x8x128xf32>
    %14 = arith.subf %8, %13 : vector<3x8x128xf32>
    %15 = math.exp %14 : vector<3x8x128xf32>
    %cst_10 = arith.constant dense<0.000000e+00> : vector<3x128xf32>
    %16 = vector.multi_reduction <add>, %15, %cst_10 [1] : vector<3x8x128xf32> to vector<3x128xf32>
    %17 = vector.shape_cast %16 : vector<3x128xf32> to vector<3x1x128xf32>
    %18 = vector.broadcast %17 : vector<3x1x128xf32> to vector<3x8x128xf32>
    %19 = arith.divf %15, %18 : vector<3x8x128xf32>
    %cst_11 = arith.constant 0.707106769 : f32
    %20 = vector.broadcast %cst_11 : f32 to vector<3x8x128xf32>
    %21 = arith.mulf %19, %20 : vector<3x8x128xf32>
    %c16_i32 = arith.constant 16 : i32
    %22 = vector.broadcast %c16_i32 : i32 to vector<3x8x128xi32>
    %23 = arith.cmpi slt, %4, %22 : vector<3x8x128xi32>
    %cst_12 = arith.constant -1.000000e+30 : f32
    %24 = vector.broadcast %cst_12 : f32 to vector<3x8x128xf32>
    %25 = arith.select %23, %1, %24 : vector<3x8x128xi1>, vector<3x8x128xf32>
    %cst_13 = arith.constant dense<0xFF800000> : vector<3x8xf32>
    %26 = vector.multi_reduction <maximumf>, %25, %cst_13 [2] : vector<3x8x128xf32> to vector<3x8xf32>
    %cst_14 = arith.constant 0xFF800000 : f32
    %27 = vector.broadcast %cst_14 : f32 to vector<3x8xf32>
    %28 = arith.maximumf %27, %26 : vector<3x8xf32>
    %29 = vector.shape_cast %28 : vector<3x8xf32> to vector<3x8x1xf32>
    %30 = vector.broadcast %29 : vector<3x8x1xf32> to vector<3x8x128xf32>
    %31 = arith.subf %25, %30 : vector<3x8x128xf32>
    %32 = math.exp %31 : vector<3x8x128xf32>
    %cst_15 = arith.constant dense<0.000000e+00> : vector<3x8xf32>
    %33 = vector.multi_reduction <add>, %32, %cst_15 [2] : vector<3x8x128xf32> to vector<3x8xf32>
    %34 = vector.shape_cast %33 : vector<3x8xf32> to vector<3x8x1xf32>
    %35 = vector.broadcast %34 : vector<3x8x1xf32> to vector<3x8x128xf32>
    %36 = arith.divf %32, %35 : vector<3x8x128xf32>
    %37 = arith.truncf %21 : vector<3x8x128xf32> to vector<3x8x128xbf16>
    %38 = arith.truncf %36 : vector<3x8x128xf32> to vector<3x8x128xbf16>
    %39 = arith.truncf %2 : vector<3x8x128xf32> to vector<3x8x128xbf16>
    "tpu.trace_start"() <{level = 10 : i32, message = "gen,gdn->ged"}> : () -> ()
    %cst_16 = arith.constant dense<0.000000e+00> : vector<3x8x8xf32>
    %40 = tpu.matmul %39, %38, %cst_16 {dimension_numbers = #tpu.dot_dimension_numbers<[2], [2], [1], [1], [0, 0, 0, 1, 1, 1], [0], [0]>} : vector<3x8x128xbf16>, vector<3x8x128xbf16>, vector<3x8x8xf32> -> vector<3x8x8xf32>
    "tpu.trace_stop"() : () -> ()
    %41 = arith.truncf %40 : vector<3x8x8xf32> to vector<3x8x8xbf16>
    "tpu.trace_start"() <{level = 10 : i32, message = "ged,gdn->gen"}> : () -> ()
    %cst_17 = arith.constant dense<0.000000e+00> : vector<3x8x128xf32>
    %42 = tpu.matmul %41, %37, %cst_17 {dimension_numbers = #tpu.dot_dimension_numbers<[2], [1], [1], [2], [0, 0, 0, 1, 1, 2], [0], [0]>} : vector<3x8x8xbf16>, vector<3x8x128xbf16>, vector<3x8x128xf32> -> vector<3x8x128xf32>
    "tpu.trace_stop"() : () -> ()
    %c0_18 = arith.constant 0 : index
    %c0_19 = arith.constant 0 : index
    %c0_20 = arith.constant 0 : index
    %43 = vector.load %arg4[%c0_18, %c0_19, %c0_20] : memref<3x8x128xf32, #tpu.memory_space<vmem>>, vector<3x8x128xf32>
    tpu.vector_store %arg4[%c0_18, %c0_19, %c0_20], %42 {strides = array<i32>} : memref<3x8x128xf32, #tpu.memory_space<vmem>>, vector<3x8x128xf32>,
    return
  }
  func.func @transform_0(%arg0: i32) -> (i32, i32, i32) {
    %c0_i32 = arith.constant 0 : i32
    %c0_i32_0 = arith.constant 0 : i32
    %c0_i32_1 = arith.constant 0 : i32
    return %arg0, %c0_i32, %c0_i32_0 : i32, i32, i32
  }
  func.func @transform_1(%arg0: i32) -> (i32, i32, i32) {
    %c0_i32 = arith.constant 0 : i32
    %c0_i32_0 = arith.constant 0 : i32
    %c0_i32_1 = arith.constant 0 : i32
    return %arg0, %c0_i32, %c0_i32_0 : i32, i32, i32
  }
  func.func @transform_2(%arg0: i32) -> (i32, i32, i32) {
    %c0_i32 = arith.constant 0 : i32
    %c0_i32_0 = arith.constant 0 : i32
    %c0_i32_1 = arith.constant 0 : i32
    return %arg0, %c0_i32, %c0_i32_0 : i32, i32, i32
  }
  func.func @transform_3(%arg0: i32) -> (i32, i32, i32) {
    %c0_i32 = arith.constant 0 : i32
    %c0_i32_0 = arith.constant 0 : i32
    %c0_i32_1 = arith.constant 0 : i32
    return %arg0, %c0_i32, %c0_i32_0 : i32, i32, i32
  }
}

module attributes {stable_mosaic.version = 11 : i64} {
  func.func @kernel(%arg0: i32, %arg1: i32, %arg2: memref<1x16x128xbf16, #tpu.memory_space<vmem>>, %arg3: memref<128x128xbf16, #tpu.memory_space<vmem>>, %arg4: memref<1x128xf32, #tpu.memory_space<vmem>>, %arg5: memref<1x16x128xbf16, #tpu.memory_space<vmem>>, %arg6: memref<1x16x128xbf16, #tpu.memory_space<vmem>>) attributes {dimension_semantics = [#tpu.dimension_semantics<parallel>, #tpu.dimension_semantics<parallel>], iteration_bounds = array<i64: 2, 1>, scalar_prefetch = 0 : i64, scratch_operands = 0 : i64, tpu.core_type = #tpu.core_type<tc>, window_params = [{transform_indices = @transform_0, window_bounds = array<i64: 1, 16, 128>}, {pipeline_mode = #tpu.pipeline_mode<synchronous>, transform_indices = @transform_1, window_bounds = array<i64: 128, 128>}, {pipeline_mode = #tpu.pipeline_mode<synchronous>, transform_indices = @transform_2, window_bounds = array<i64: 1, 128>}, {transform_indices = @transform_3, window_bounds = array<i64: 1, 16, 128>}, {transform_indices = @transform_4, window_bounds = array<i64: 1, 16, 128>}]} {
    %c0 = arith.constant 0 : index
    %c0_0 = arith.constant 0 : index
    %c0_1 = arith.constant 0 : index
    %0 = vector.load %arg2[%c0, %c0_0, %c0_1] : memref<1x16x128xbf16, #tpu.memory_space<vmem>>, vector<1x16x128xbf16>
    %1 = vector.shape_cast %0 : vector<1x16x128xbf16> to vector<16x128xbf16>
    %c0_2 = arith.constant 0 : index
    %c0_3 = arith.constant 0 : index
    %2 = vector.load %arg3[%c0_2, %c0_3] : memref<128x128xbf16, #tpu.memory_space<vmem>>, vector<128x128xbf16>
    %cst = arith.constant dense<0.000000e+00> : vector<16x128xf32>
    %3 = tpu.matmul %1, %2, %cst {dimension_numbers = #tpu.dot_dimension_numbers<[1], [0], [0], [1], [0, 0, 1, 1], [], []>} : vector<16x128xbf16>, vector<128x128xbf16>, vector<16x128xf32> -> vector<16x128xf32>
    %c0_4 = arith.constant 0 : index
    %c0_5 = arith.constant 0 : index
    %4 = vector.load %arg4[%c0_4, %c0_5] : memref<1x128xf32, #tpu.memory_space<vmem>>, vector<1x128xf32>
    %5 = vector.broadcast %4 : vector<1x128xf32> to vector<16x128xf32>
    %6 = arith.addf %3, %5 : vector<16x128xf32>
    %c0_6 = arith.constant 0 : index
    %c0_7 = arith.constant 0 : index
    %c0_8 = arith.constant 0 : index
    %7 = vector.load %arg5[%c0_6, %c0_7, %c0_8] : memref<1x16x128xbf16, #tpu.memory_space<vmem>>, vector<1x16x128xbf16>
    %8 = vector.shape_cast %7 : vector<1x16x128xbf16> to vector<16x128xbf16>
    %9 = arith.extf %8 : vector<16x128xbf16> to vector<16x128xf32>
    %10 = arith.addf %6, %9 : vector<16x128xf32>
    %11 = arith.truncf %10 : vector<16x128xf32> to vector<16x128xbf16>
    %c0_9 = arith.constant 0 : index
    %c0_10 = arith.constant 0 : index
    %c0_11 = arith.constant 0 : index
    %12 = vector.load %arg6[%c0_9, %c0_10, %c0_11] : memref<1x16x128xbf16, #tpu.memory_space<vmem>>, vector<1x16x128xbf16>
    %13 = vector.shape_cast %12 : vector<1x16x128xbf16> to vector<16x128xbf16>
    %14 = vector.shape_cast %11 : vector<16x128xbf16> to vector<1x16x128xbf16>
    tpu.vector_store %arg6[%c0_9, %c0_10, %c0_11], %14 {strides = array<i32>} : memref<1x16x128xbf16, #tpu.memory_space<vmem>>, vector<1x16x128xbf16>,
    return
  }
  func.func @transform_0(%arg0: i32, %arg1: i32) -> (i32, i32, i32) {
    %c0_i32 = arith.constant 0 : i32
    %c0_i32_0 = arith.constant 0 : i32
    return %arg0, %arg1, %c0_i32 : i32, i32, i32
  }
  func.func @transform_1(%arg0: i32, %arg1: i32) -> (i32, i32) {
    %c0_i32 = arith.constant 0 : i32
    %c0_i32_0 = arith.constant 0 : i32
    %c0_i32_1 = arith.constant 0 : i32
    return %c0_i32, %c0_i32_0 : i32, i32
  }
  func.func @transform_2(%arg0: i32, %arg1: i32) -> (i32, i32) {
    %c0_i32 = arith.constant 0 : i32
    %c0_i32_0 = arith.constant 0 : i32
    %c0_i32_1 = arith.constant 0 : i32
    return %c0_i32, %c0_i32_0 : i32, i32
  }
  func.func @transform_3(%arg0: i32, %arg1: i32) -> (i32, i32, i32) {
    %c0_i32 = arith.constant 0 : i32
    %c0_i32_0 = arith.constant 0 : i32
    return %arg0, %arg1, %c0_i32 : i32, i32, i32
  }
  func.func @transform_4(%arg0: i32, %arg1: i32) -> (i32, i32, i32) {
    %c0_i32 = arith.constant 0 : i32
    %c0_i32_0 = arith.constant 0 : i32
    return %arg0, %arg1, %c0_i32 : i32, i32, i32
  }
}

module attributes {stable_mosaic.version = 11 : i64} {
  func.func @kernel(%arg0: i32, %arg1: memref<3x8x128xf32, #tpu.memory_space<vmem>>, %arg2: memref<3x8x128xf32, #tpu.memory_space<vmem>>, %arg3: memref<3x8x128xf32, #tpu.memory_space<vmem>>, %arg4: memref<3x8x128xf32, #tpu.memory_space<vmem>>) attributes {dimension_semantics = [#tpu.dimension_semantics<parallel>], iteration_bounds = array<i64: 2>, scalar_prefetch = 0 : i64, scratch_operands = 0 : i64, tpu.core_type = #tpu.core_type<tc>, window_params = [{transform_indices = @transform_0, window_bounds = array<i64: 3, 8, 128>}, {transform_indices = @transform_1, window_bounds = array<i64: 3, 8, 128>}, {transform_indices = @transform_2, window_bounds = array<i64: 3, 8, 128>}, {transform_indices = @transform_3, window_bounds = array<i64: 3, 8, 128>}]} {
    %c0 = arith.constant 0 : index
    %c0_0 = arith.constant 0 : index
    %c0_1 = arith.constant 0 : index
    %0 = vector.load %arg1[%c0, %c0_0, %c0_1] : memref<3x8x128xf32, #tpu.memory_space<vmem>>, vector<3x8x128xf32>
    %c0_2 = arith.constant 0 : index
    %c0_3 = arith.constant 0 : index
    %c0_4 = arith.constant 0 : index
    %1 = vector.load %arg2[%c0_2, %c0_3, %c0_4] : memref<3x8x128xf32, #tpu.memory_space<vmem>>, vector<3x8x128xf32>
    %c0_5 = arith.constant 0 : index
    %c0_6 = arith.constant 0 : index
    %c0_7 = arith.constant 0 : index
    %2 = vector.load %arg3[%c0_5, %c0_6, %c0_7] : memref<3x8x128xf32, #tpu.memory_space<vmem>>, vector<3x8x128xf32>
    %3 = tpu.iota {dimensions = array<i32: 1>} : vector<3x8x128xi32>
    %4 = tpu.iota {dimensions = array<i32: 2>} : vector<3x8x128xi32>
    %c4_i32 = arith.constant 4 : i32
    %5 = vector.broadcast %c4_i32 : i32 to vector<3x8x128xi32>
    %6 = arith.cmpi slt, %3, %5 : vector<3x8x128xi32>
    %cst = arith.constant -1.000000e+30 : f32
    %7 = vector.broadcast %cst : f32 to vector<3x8x128xf32>
    %8 = arith.select %6, %0, %7 : vector<3x8x128xi1>, vector<3x8x128xf32>
    %cst_8 = arith.constant dense<0xFF800000> : vector<3x128xf32>
    %9 = vector.multi_reduction <maximumf>, %8, %cst_8 [1] : vector<3x8x128xf32> to vector<3x128xf32>
    %cst_9 = arith.constant 0xFF800000 : f32
    %10 = vector.broadcast %cst_9 : f32 to vector<3x128xf32>
    %11 = arith.maximumf %10, %9 : vector<3x128xf32>
    %12 = vector.shape_cast %11 : vector<3x128xf32> to vector<3x1x128xf32>
    %13 = vector.broadcast %12 : vector<3x1x128xf32> to vector<3x8x128xf32>
    %14 = arith.subf %8, %13 : vector<3x8x128xf32>
    %15 = math.exp %14 : vector<3x8x128xf32>
    %cst_10 = arith.constant dense<0.000000e+00> : vector<3x128xf32>
    %16 = vector.multi_reduction <add>, %15, %cst_10 [1] : vector<3x8x128xf32> to vector<3x128xf32>
    %17 = vector.shape_cast %16 : vector<3x128xf32> to vector<3x1x128xf32>
    %18 = vector.broadcast %17 : vector<3x1x128xf32> to vector<3x8x128xf32>
    %19 = arith.divf %15, %18 : vector<3x8x128xf32>
    %cst_11 = arith.constant 5.000000e-01 : f32
    %20 = vector.broadcast %cst_11 : f32 to vector<3x8x128xf32>
    %21 = arith.mulf %19, %20 : vector<3x8x128xf32>
    %c16_i32 = arith.constant 16 : i32
    %22 = vector.broadcast %c16_i32 : i32 to vector<3x8x128xi32>
    %23 = arith.cmpi slt, %4, %22 : vector<3x8x128xi32>
    %cst_12 = arith.constant -1.000000e+30 : f32
    %24 = vector.broadcast %cst_12 : f32 to vector<3x8x128xf32>
    %25 = arith.select %23, %1, %24 : vector<3x8x128xi1>, vector<3x8x128xf32>
    %cst_13 = arith.constant dense<0xFF800000> : vector<3x8xf32>
    %26 = vector.multi_reduction <maximumf>, %25, %cst_13 [2] : vector<3x8x128xf32> to vector<3x8xf32>
    %cst_14 = arith.constant 0xFF800000 : f32
    %27 = vector.broadcast %cst_14 : f32 to vector<3x8xf32>
    %28 = arith.maximumf %27, %26 : vector<3x8xf32>
    %29 = vector.shape_cast %28 : vector<3x8xf32> to vector<3x8x1xf32>
    %30 = vector.broadcast %29 : vector<3x8x1xf32> to vector<3x8x128xf32>
    %31 = arith.subf %25, %30 : vector<3x8x128xf32>
    %32 = math.exp %31 : vector<3x8x128xf32>
    %cst_15 = arith.constant dense<0.000000e+00> : vector<3x8xf32>
    %33 = vector.multi_reduction <add>, %32, %cst_15 [2] : vector<3x8x128xf32> to vector<3x8xf32>
    %34 = vector.shape_cast %33 : vector<3x8xf32> to vector<3x8x1xf32>
    %35 = vector.broadcast %34 : vector<3x8x1xf32> to vector<3x8x128xf32>
    %36 = arith.divf %32, %35 : vector<3x8x128xf32>
    %37 = arith.truncf %21 : vector<3x8x128xf32> to vector<3x8x128xbf16>
    %38 = arith.truncf %36 : vector<3x8x128xf32> to vector<3x8x128xbf16>
    %39 = arith.truncf %2 : vector<3x8x128xf32> to vector<3x8x128xbf16>
    "tpu.trace_start"() <{level = 10 : i32, message = "gen,gdn->ged"}> : () -> ()
    %cst_16 = arith.constant dense<0.000000e+00> : vector<3x8x8xf32>
    %40 = tpu.matmul %39, %38, %cst_16 {dimension_numbers = #tpu.dot_dimension_numbers<[2], [2], [1], [1], [0, 0, 0, 1, 1, 1], [0], [0]>} : vector<3x8x128xbf16>, vector<3x8x128xbf16>, vector<3x8x8xf32> -> vector<3x8x8xf32>
    "tpu.trace_stop"() : () -> ()
    %41 = arith.truncf %40 : vector<3x8x8xf32> to vector<3x8x8xbf16>
    "tpu.trace_start"() <{level = 10 : i32, message = "ged,gdn->gen"}> : () -> ()
    %cst_17 = arith.constant dense<0.000000e+00> : vector<3x8x128xf32>
    %42 = tpu.matmul %41, %37, %cst_17 {dimension_numbers = #tpu.dot_dimension_numbers<[2], [1], [1], [2], [0, 0, 0, 1, 1, 2], [0], [0]>} : vector<3x8x8xbf16>, vector<3x8x128xbf16>, vector<3x8x128xf32> -> vector<3x8x128xf32>
    "tpu.trace_stop"() : () -> ()
    %c0_18 = arith.constant 0 : index
    %c0_19 = arith.constant 0 : index
    %c0_20 = arith.constant 0 : index
    %43 = vector.load %arg4[%c0_18, %c0_19, %c0_20] : memref<3x8x128xf32, #tpu.memory_space<vmem>>, vector<3x8x128xf32>
    tpu.vector_store %arg4[%c0_18, %c0_19, %c0_20], %42 {strides = array<i32>} : memref<3x8x128xf32, #tpu.memory_space<vmem>>, vector<3x8x128xf32>,
    return
  }
  func.func @transform_0(%arg0: i32) -> (i32, i32, i32) {
    %c0_i32 = arith.constant 0 : i32
    %c0_i32_0 = arith.constant 0 : i32
    %c0_i32_1 = arith.constant 0 : i32
    return %arg0, %c0_i32, %c0_i32_0 : i32, i32, i32
  }
  func.func @transform_1(%arg0: i32) -> (i32, i32, i32) {
    %c0_i32 = arith.constant 0 : i32
    %c0_i32_0 = arith.constant 0 : i32
    %c0_i32_1 = arith.constant 0 : i32
    return %arg0, %c0_i32, %c0_i32_0 : i32, i32, i32
  }
  func.func @transform_2(%arg0: i32) -> (i32, i32, i32) {
    %c0_i32 = arith.constant 0 : i32
    %c0_i32_0 = arith.constant 0 : i32
    %c0_i32_1 = arith.constant 0 : i32
    return %arg0, %c0_i32, %c0_i32_0 : i32, i32, i32
  }
  func.func @transform_3(%arg0: i32) -> (i32, i32, i32) {
    %c0_i32 = arith.constant 0 : i32
    %c0_i32_0 = arith.constant 0 : i32
    %c0_i32_1 = arith.constant 0 : i32
    return %arg0, %c0_i32, %c0_i32_0 : i32, i32, i32
  }
}

</mosaic_0001>

<llo_original>
// kernel: _lambda_.29
$region0: #{_lambda_.29}
  #allocation0 [shape = 'u32[]', space=smem, size = 0x4, offset = 0x4, fixed_abs, tag = 'smem constant byte address 0x4 - core index']
  #allocation1 [shape = 'u32[144,128]{1,0:T(1,128)}', space=vmem, size = 0x12000, scoped, tag = 'internal scratch']
  %s0 = inlined_call_operand.vmem [shape: bf16[1,16,128], index: 0, kind: input, shape index: {}]
  %s1 = inlined_call_operand.vmem [shape: bf16[128,128], index: 1, kind: input, shape index: {}]
  %s2 = inlined_call_operand.vmem [shape: f32[1,128], index: 2, kind: input, shape index: {}]
  %s3 = inlined_call_operand.vmem [shape: bf16[1,16,128], index: 3, kind: output, shape index: {}]
  %s4 = sld [smem:[#allocation0]]
  $region22: #{_lambda_.29} parent=0
    _
  %s6 = ssub.s32 1, %s4
  %s7 = scalar_select 0, %s6, %s4
  // Predicated region
  $region2: #{_lambda_.29} parent=0 // pred_check
    _
  $region3: #{_lambda_.29} parent=0 // pred_check_branch
    %9 = sbr.rel (0) target = $region5
  $region4: #{_lambda_.29} parent=0 // pred_region
    _
  $region5: #{_lambda_.29} parent=0 // pred_fallthru
    _
  // Predicated region
  $region6: #{_lambda_.29} parent=0 // pred_check
    _
  $region7: #{_lambda_.29} parent=0 // pred_check_branch
    %11 = sbr.rel (0) target = $region9
  $region8: #{_lambda_.29} parent=0 // pred_region
    _
  $region9: #{_lambda_.29} parent=0 // pred_fallthru
    _
  // Predicated region
  $region10: #{_lambda_.29} parent=0 // pred_check
    _
  $region11: #{_lambda_.29} parent=0 // pred_check_branch
    %13 = sbr.rel (0) target = $region13
  $region12: #{_lambda_.29} parent=0 // pred_region
    _
  $region13: #{_lambda_.29} parent=0 // pred_fallthru
    _
  %v15 = vld [vmem:[%s0] sm:$0xf]
  %v16 = vld [vmem:[%s0 + $0x4] sm:$0xf]
  %v17 = vld [vmem:[%s1] sm:$0xf]
  %v18 = vld [vmem:[%s1 + $0x4] sm:$0xf]
  %v19 = vld [vmem:[%s1 + $0x8] sm:$0xf]
  %v20 = vld [vmem:[%s1 + $0xc] sm:$0xf]
  %v21 = vld [vmem:[%s1 + $0x10] sm:$0xf]
  %v22 = vld [vmem:[%s1 + $0x14] sm:$0xf]
  %v23 = vld [vmem:[%s1 + $0x18] sm:$0xf]
  %v24 = vld [vmem:[%s1 + $0x1c] sm:$0xf]
  %v25 = vld [vmem:[%s1 + $0x20] sm:$0xf]
  %v26 = vld [vmem:[%s1 + $0x24] sm:$0xf]
  %v27 = vld [vmem:[%s1 + $0x28] sm:$0xf]
  %v28 = vld [vmem:[%s1 + $0x2c] sm:$0xf]
  %v29 = vld [vmem:[%s1 + $0x30] sm:$0xf]
  %v30 = vld [vmem:[%s1 + $0x34] sm:$0xf]
  %v31 = vld [vmem:[%s1 + $0x38] sm:$0xf]
  %v32 = vld [vmem:[%s1 + $0x3c] sm:$0xf]
  %v33 = vld [vmem:[%s2] sm:$0x1]
  %v35 = vlaneseq
  %v36 = vshrl.u32 %v35, 7
  %v37 = vsub.s32 0, %v36
  %v38 = vrot.slane %v33, %v37
  %v42 = vunpack.c.l.b16 %v15
  %v43 = vunpack.c.l.b16 %v16
  %v44 = vpack.c.b16 %v43, %v42
  %v62 = vunpack.c.l.b16 %v17
  %v63 = vunpack.c.l.b16 %v18
  %v64 = vunpack.c.l.b16 %v19
  %v65 = vunpack.c.l.b16 %v20
  %v66 = vunpack.c.l.b16 %v21
  %v67 = vunpack.c.l.b16 %v22
  %v68 = vunpack.c.l.b16 %v23
  %v69 = vunpack.c.l.b16 %v24
  %v70 = vunpack.c.l.b16 %v25
  %v71 = vunpack.c.l.b16 %v26
  %v72 = vunpack.c.l.b16 %v27
  %v73 = vunpack.c.l.b16 %v28
  %v74 = vunpack.c.l.b16 %v29
  %v75 = vunpack.c.l.b16 %v30
  %v76 = vunpack.c.l.b16 %v31
  %v77 = vunpack.c.l.b16 %v32
  %v78 = vpack.c.b16 %v63, %v62
  %v79 = vpack.c.b16 %v65, %v64
  %v80 = vpack.c.b16 %v67, %v66
  %v81 = vpack.c.b16 %v69, %v68
  %v82 = vpack.c.b16 %v71, %v70
  %v83 = vpack.c.b16 %v73, %v72
  %v84 = vpack.c.b16 %v75, %v74
  %v85 = vpack.c.b16 %v77, %v76
  %94 = vmatprep.subr.bf16.mxu0 0
  %95 = vmatpush1.bf16.msra.mxu0 %v78
  %96 = vmatprep.subr.bf16.mxu0 0
  %97 = vmatpush1.bf16.msra.mxu0 %v79
  %98 = vmatprep.subr.bf16.mxu0 0
  %99 = vmatpush1.bf16.msra.mxu0 %v80
  %100 = vmatprep.subr.bf16.mxu0 0
  %101 = vmatpush1.bf16.msra.mxu0 %v81
  %102 = vmatprep.subr.bf16.mxu0 0
  %103 = vmatpush1.bf16.msra.mxu0 %v82
  %104 = vmatprep.subr.bf16.mxu0 0
  %105 = vmatpush1.bf16.msra.mxu0 %v83
  %106 = vmatprep.subr.bf16.mxu0 0
  %107 = vmatpush1.bf16.msra.mxu0 %v84
  %108 = vmatprep.subr.bf16.mxu0 0
  %109 = vmatpush1.bf16.msra.mxu0 %v85
  %110 = vmatprep.subr.bf16.mxu0 0
  %111 = vmatpush1.bf16.msra.mxu0 0
  %112 = vmatprep.subr.bf16.mxu0 0
  %113 = vmatpush1.bf16.msra.mxu0 0
  %114 = vmatprep.subr.bf16.mxu0 0
  %115 = vmatpush1.bf16.msra.mxu0 0
  %116 = vmatprep.subr.bf16.mxu0 0
  %117 = vmatpush1.bf16.msra.mxu0 0
  %118 = vmatprep.subr.bf16.mxu0 0
  %119 = vmatpush1.bf16.msra.mxu0 0
  %120 = vmatprep.subr.bf16.mxu0 0
  %121 = vmatpush1.bf16.msra.mxu0 0
  %122 = vmatprep.subr.bf16.mxu0 0
  %123 = vmatpush1.bf16.msra.mxu0 0
  %124 = vmatprep.subr.bf16.mxu0 0
  %125 = vmatpush1.bf16.msra.mxu0 0
  %126 = vmatprep.mubr.bf16.mxu0 0
  %127 = vmatmul.mubr.bf16.gmra.mrb[0].mxu0 %v44
  %v128 = vpop.f32.mrb[0].mxu0
  %v129 = vadd.f32 %v38, %v128
  %v130 = vpop.f32.mrb[0].mxu0
  %v131 = vpop.f32.mrb[0].mxu0
  %v132 = vadd.f32 %v38, %v131
  %v133 = vpop.f32.mrb[0].mxu0
  %134 = vdwg.mxu0
  %v135 = vpack.c.bf16 %v132, %v129
  %v137 = vunpack.c.l.b16 %v135
  %v138 = vunpack.c.h.b16 %v135
  %v139 = vpack.c.b16 %v137, %v137
  %v140 = vpack.c.b16 %v138, %v138
  %143 = vst [vmem:[%s3] sm:$0xf] %v139
  %144 = vst [vmem:[%s3 + $0x4] sm:$0xf] %v140
  // Predicated region
  $region14: #{_lambda_.29} parent=0 // pred_check
    _
  $region15: #{_lambda_.29} parent=0 // pred_check_branch
    %146 = sbr.rel (0) target = $region17
  $region16: #{_lambda_.29} parent=0 // pred_region
    _
  $region17: #{_lambda_.29} parent=0 // pred_fallthru
    _
  // Predicated region
  $region18: #{_lambda_.29} parent=0 // pred_check
    _
  $region19: #{_lambda_.29} parent=0 // pred_check_branch
    %148 = sbr.rel (0) target = $region21
  $region20: #{_lambda_.29} parent=0 // pred_region
    _
  $region21: #{_lambda_.29} parent=0 // pred_fallthru
    _

// kernel: _lambda_.28
$region0: #{_lambda_.28}
  #allocation0 [shape = 'u32[]', space=smem, size = 0x4, offset = 0x4, fixed_abs, tag = 'smem constant byte address 0x4 - core index']
  #allocation1 [shape = 'u32[144,128]{1,0:T(1,128)}', space=vmem, size = 0x12000, scoped, tag = 'internal scratch']
  %s0 = inlined_call_operand.vmem [shape: bf16[1,16,128], index: 0, kind: input, shape index: {}]
  %s1 = inlined_call_operand.vmem [shape: bf16[128,128], index: 1, kind: input, shape index: {}]
  %s2 = inlined_call_operand.vmem [shape: f32[1,128], index: 2, kind: input, shape index: {}]
  %s3 = inlined_call_operand.vmem [shape: bf16[1,16,128], index: 3, kind: output, shape index: {}]
  %s4 = sld [smem:[#allocation0]]
  $region22: #{_lambda_.28} parent=0
    _
  %s6 = ssub.s32 1, %s4
  %s7 = scalar_select 0, %s6, %s4
  // Predicated region
  $region2: #{_lambda_.28} parent=0 // pred_check
    _
  $region3: #{_lambda_.28} parent=0 // pred_check_branch
    %9 = sbr.rel (0) target = $region5
  $region4: #{_lambda_.28} parent=0 // pred_region
    _
  $region5: #{_lambda_.28} parent=0 // pred_fallthru
    _
  // Predicated region
  $region6: #{_lambda_.28} parent=0 // pred_check
    _
  $region7: #{_lambda_.28} parent=0 // pred_check_branch
    %11 = sbr.rel (0) target = $region9
  $region8: #{_lambda_.28} parent=0 // pred_region
    _
  $region9: #{_lambda_.28} parent=0 // pred_fallthru
    _
  // Predicated region
  $region10: #{_lambda_.28} parent=0 // pred_check
    _
  $region11: #{_lambda_.28} parent=0 // pred_check_branch
    %13 = sbr.rel (0) target = $region13
  $region12: #{_lambda_.28} parent=0 // pred_region
    _
  $region13: #{_lambda_.28} parent=0 // pred_fallthru
    _
  %v15 = vld [vmem:[%s0] sm:$0xf]
  %v16 = vld [vmem:[%s0 + $0x4] sm:$0xf]
  %v17 = vld [vmem:[%s1] sm:$0xf]
  %v18 = vld [vmem:[%s1 + $0x4] sm:$0xf]
  %v19 = vld [vmem:[%s1 + $0x8] sm:$0xf]
  %v20 = vld [vmem:[%s1 + $0xc] sm:$0xf]
  %v21 = vld [vmem:[%s1 + $0x10] sm:$0xf]
  %v22 = vld [vmem:[%s1 + $0x14] sm:$0xf]
  %v23 = vld [vmem:[%s1 + $0x18] sm:$0xf]
  %v24 = vld [vmem:[%s1 + $0x1c] sm:$0xf]
  %v25 = vld [vmem:[%s1 + $0x20] sm:$0xf]
  %v26 = vld [vmem:[%s1 + $0x24] sm:$0xf]
  %v27 = vld [vmem:[%s1 + $0x28] sm:$0xf]
  %v28 = vld [vmem:[%s1 + $0x2c] sm:$0xf]
  %v29 = vld [vmem:[%s1 + $0x30] sm:$0xf]
  %v30 = vld [vmem:[%s1 + $0x34] sm:$0xf]
  %v31 = vld [vmem:[%s1 + $0x38] sm:$0xf]
  %v32 = vld [vmem:[%s1 + $0x3c] sm:$0xf]
  %v33 = vld [vmem:[%s2] sm:$0x1]
  %v35 = vlaneseq
  %v36 = vshrl.u32 %v35, 7
  %v37 = vsub.s32 0, %v36
  %v38 = vrot.slane %v33, %v37
  %v42 = vunpack.c.l.b16 %v15
  %v43 = vunpack.c.l.b16 %v16
  %v44 = vpack.c.b16 %v43, %v42
  %v62 = vunpack.c.l.b16 %v17
  %v63 = vunpack.c.l.b16 %v18
  %v64 = vunpack.c.l.b16 %v19
  %v65 = vunpack.c.l.b16 %v20
  %v66 = vunpack.c.l.b16 %v21
  %v67 = vunpack.c.l.b16 %v22
  %v68 = vunpack.c.l.b16 %v23
  %v69 = vunpack.c.l.b16 %v24
  %v70 = vunpack.c.l.b16 %v25
  %v71 = vunpack.c.l.b16 %v26
  %v72 = vunpack.c.l.b16 %v27
  %v73 = vunpack.c.l.b16 %v28
  %v74 = vunpack.c.l.b16 %v29
  %v75 = vunpack.c.l.b16 %v30
  %v76 = vunpack.c.l.b16 %v31
  %v77 = vunpack.c.l.b16 %v32
  %v78 = vpack.c.b16 %v63, %v62
  %v79 = vpack.c.b16 %v65, %v64
  %v80 = vpack.c.b16 %v67, %v66
  %v81 = vpack.c.b16 %v69, %v68
  %v82 = vpack.c.b16 %v71, %v70
  %v83 = vpack.c.b16 %v73, %v72
  %v84 = vpack.c.b16 %v75, %v74
  %v85 = vpack.c.b16 %v77, %v76
  %94 = vmatprep.subr.bf16.mxu0 0
  %95 = vmatpush1.bf16.msra.mxu0 %v78
  %96 = vmatprep.subr.bf16.mxu0 0
  %97 = vmatpush1.bf16.msra.mxu0 %v79
  %98 = vmatprep.subr.bf16.mxu0 0
  %99 = vmatpush1.bf16.msra.mxu0 %v80
  %100 = vmatprep.subr.bf16.mxu0 0
  %101 = vmatpush1.bf16.msra.mxu0 %v81
  %102 = vmatprep.subr.bf16.mxu0 0
  %103 = vmatpush1.bf16.msra.mxu0 %v82
  %104 = vmatprep.subr.bf16.mxu0 0
  %105 = vmatpush1.bf16.msra.mxu0 %v83
  %106 = vmatprep.subr.bf16.mxu0 0
  %107 = vmatpush1.bf16.msra.mxu0 %v84
  %108 = vmatprep.subr.bf16.mxu0 0
  %109 = vmatpush1.bf16.msra.mxu0 %v85
  %110 = vmatprep.subr.bf16.mxu0 0
  %111 = vmatpush1.bf16.msra.mxu0 0
  %112 = vmatprep.subr.bf16.mxu0 0
  %113 = vmatpush1.bf16.msra.mxu0 0
  %114 = vmatprep.subr.bf16.mxu0 0
  %115 = vmatpush1.bf16.msra.mxu0 0
  %116 = vmatprep.subr.bf16.mxu0 0
  %117 = vmatpush1.bf16.msra.mxu0 0
  %118 = vmatprep.subr.bf16.mxu0 0
  %119 = vmatpush1.bf16.msra.mxu0 0
  %120 = vmatprep.subr.bf16.mxu0 0
  %121 = vmatpush1.bf16.msra.mxu0 0
  %122 = vmatprep.subr.bf16.mxu0 0
  %123 = vmatpush1.bf16.msra.mxu0 0
  %124 = vmatprep.subr.bf16.mxu0 0
  %125 = vmatpush1.bf16.msra.mxu0 0
  %126 = vmatprep.mubr.bf16.mxu0 0
  %127 = vmatmul.mubr.bf16.gmra.mrb[0].mxu0 %v44
  %v128 = vpop.f32.mrb[0].mxu0
  %v129 = vadd.f32 %v38, %v128
  %v130 = vpop.f32.mrb[0].mxu0
  %v131 = vpop.f32.mrb[0].mxu0
  %v132 = vadd.f32 %v38, %v131
  %v133 = vpop.f32.mrb[0].mxu0
  %134 = vdwg.mxu0
  %v135 = vxor.u32 %v129, 2147483648
  %v136 = vxor.u32 %v132, 2147483648
  %v137 = vmul.f32 %v135, 1.442695
  %v138 = vpow.pop %v137
  %v139 = vmul.f32 %v136, 1.442695
  %v140 = vpow.pop %v139
  %v141 = vadd.f32 %v138, 1.0
  %v142 = vadd.f32 %v140, 1.0
  %v143 = vrcp.pop %v141
  %v144 = vmul.f32 1.0, %v143
  %v145 = vrcp.pop %v142
  %v146 = vmul.f32 1.0, %v145
  %v147 = vmul.f32 %v129, %v144
  %v148 = vmul.f32 %v132, %v146
  %v149 = vpack.c.bf16 %v148, %v147
  %v151 = vunpack.c.l.b16 %v149
  %v152 = vunpack.c.h.b16 %v149
  %v153 = vpack.c.b16 %v151, %v151
  %v154 = vpack.c.b16 %v152, %v152
  %157 = vst [vmem:[%s3] sm:$0xf] %v153
  %158 = vst [vmem:[%s3 + $0x4] sm:$0xf] %v154
  // Predicated region
  $region14: #{_lambda_.28} parent=0 // pred_check
    _
  $region15: #{_lambda_.28} parent=0 // pred_check_branch
    %160 = sbr.rel (0) target = $region17
  $region16: #{_lambda_.28} parent=0 // pred_region
    _
  $region17: #{_lambda_.28} parent=0 // pred_fallthru
    _
  // Predicated region
  $region18: #{_lambda_.28} parent=0 // pred_check
    _
  $region19: #{_lambda_.28} parent=0 // pred_check_branch
    %162 = sbr.rel (0) target = $region21
  $region20: #{_lambda_.28} parent=0 // pred_region
    _
  $region21: #{_lambda_.28} parent=0 // pred_fallthru
    _

// kernel: _lambda_.31
$region0: #{_lambda_.31}
  #allocation0 [shape = 'u32[]', space=smem, size = 0x4, offset = 0x4, fixed_abs, tag = 'smem constant byte address 0x4 - core index']
  #allocation1 [shape = 'u32[144,128]{1,0:T(1,128)}', space=vmem, size = 0x12000, scoped, tag = 'internal scratch']
  %s0 = inlined_call_operand.vmem [shape: bf16[2,64,128], index: 0, kind: input, shape index: {}]
  %s1 = inlined_call_operand.vmem [shape: bf16[128,128], index: 1, kind: input, shape index: {}]
  %s2 = inlined_call_operand.vmem [shape: f32[1,128], index: 2, kind: input, shape index: {}]
  %s3 = inlined_call_operand.vmem [shape: bf16[2,1,128], index: 3, kind: input, shape index: {}]
  %s4 = inlined_call_operand.vmem [shape: bf16[2,64,128], index: 4, kind: output, shape index: {}]
  %s5 = sld [smem:[#allocation0]]
  $region49: #{_lambda_.31} parent=0
    _
  %s7 = ssub.s32 1, %s5
  %s8 = scalar_select 0, %s7, %s5
  loop: start=0, step=1, limit=4
  $region2: #{_lambda_.31} parent=0 // loop_pre_header
    _
  $region3: #{_lambda_.31} parent=0 // loop_header
    %s10 = sphi 0, %s14
    %p11 = scmp.ge.s32.totalorder %s10, 4
    %s17 = sphi 0, %s29
    %s18 = sphi 0, %s25
    %s19 = sphi 0, %s17
    %s20 = sphi 0, %s18
    %s21 = sphi 0, %s19
    %s22 = sphi 0, %s20
    %s34 = sphi 0, %s36
    %s37 = sphi 0, %s34
    %s38 = sphi 0, %s37
    %s54 = sphi 0, %s38
    %s58 = sphi 0, %s58
    %s60 = sphi 0, %s58
    %s61 = sphi 0, %s60
    %s75 = sphi 0, %s61
    %s79 = sphi 0, %s79
    %s81 = sphi 0, %s79
    %s82 = sphi 0, %s81
    %s96 = sphi 0, %s82
    %s102 = sphi 0, %s104
    %s105 = sphi 0, %s102
    %s106 = sphi 0, %s105
    %s122 = sphi 0, %s106
    %s130 = sphi 0, %s132
    %s133 = sphi 0, %s130
    %s134 = sphi 0, %s133
    %s150 = sphi 0, %s134
  $region4: #{_lambda_.31} parent=0 // loop_header_branch
    %13 = sbr.rel (%p11) target = $region8
  $region5: #{_lambda_.31} parent=0 // loop_body
    %s15 = ssub.s32 %s10, 1
    %s16 = ssub.s32 %s10, 2
    %s23 = sadd.s32 1, %s18
    %p24 = scmp.ge.s32.totalorder %s23, 1
    %s25 = scalar_select %p24, 0, %s23
    %s26 = sadd.s32 1, %s17
    %s27 = scalar_select %p24, %s26, %s17
    %p28 = scmp.ge.s32.totalorder %s27, 2
    %s29 = scalar_select %p28, 0, %s27
    %s30 = ssub.s32 %s17, %s29
    %s31 = ssub.s32 %s18, %s25
    %s32 = sor.u32 %s30, %s31
    %p33 = scmp.eq.s32.totalorder %s32, 0
    %s35 = sadd.s32 %s34, 1
    %s36 = scalar_select %p33, %s34, %s35
    %p39 = pneg %p33
    %p40 = scmp.eq.s32.totalorder %s10, 1
    %p41 = por %p39, %p40
    %p42 = scmp.ne.s32.totalorder %s34, %s37
    %p43 = scmp.eq.s32.totalorder %s10, 0
    %p44 = por %p42, %p43
    %p45 = scmp.ne.s32.totalorder %s34, %s37
    %p46 = scmp.eq.s32.totalorder %s15, 1
    %p47 = por %p45, %p46
    %p48 = scmp.ne.s32.totalorder %s37, %s38
    %p49 = scmp.eq.s32.totalorder %s15, 0
    %p50 = por %p48, %p49
    %p51 = scmp.ne.s32.totalorder %s37, %s38
    %p52 = scmp.eq.s32.totalorder %s16, 1
    %p53 = por %p51, %p52
    %p55 = scmp.ne.s32.totalorder %s38, %s54
    %p56 = scmp.eq.s32.totalorder %s16, 0
    %p57 = por %p55, %p56
    %s59 = sadd.s32 %s58, 1
    %p62 = scmp.eq.s32.totalorder %s10, 1
    %p63 = scmp.ne.s32.totalorder %s58, %s60
    %p64 = scmp.eq.s32.totalorder %s10, 0
    %p65 = por %p63, %p64
    %p66 = scmp.ne.s32.totalorder %s58, %s60
    %p67 = scmp.eq.s32.totalorder %s15, 1
    %p68 = por %p66, %p67
    %p69 = scmp.ne.s32.totalorder %s60, %s61
    %p70 = scmp.eq.s32.totalorder %s15, 0
    %p71 = por %p69, %p70
    %p72 = scmp.ne.s32.totalorder %s60, %s61
    %p73 = scmp.eq.s32.totalorder %s16, 1
    %p74 = por %p72, %p73
    %p76 = scmp.ne.s32.totalorder %s61, %s75
    %p77 = scmp.eq.s32.totalorder %s16, 0
    %p78 = por %p76, %p77
    %s80 = sadd.s32 %s79, 1
    %p83 = scmp.eq.s32.totalorder %s10, 1
    %p84 = scmp.ne.s32.totalorder %s79, %s81
    %p85 = scmp.eq.s32.totalorder %s10, 0
    %p86 = por %p84, %p85
    %p87 = scmp.ne.s32.totalorder %s79, %s81
    %p88 = scmp.eq.s32.totalorder %s15, 1
    %p89 = por %p87, %p88
    %p90 = scmp.ne.s32.totalorder %s81, %s82
    %p91 = scmp.eq.s32.totalorder %s15, 0
    %p92 = por %p90, %p91
    %p93 = scmp.ne.s32.totalorder %s81, %s82
    %p94 = scmp.eq.s32.totalorder %s16, 1
    %p95 = por %p93, %p94
    %p97 = scmp.ne.s32.totalorder %s82, %s96
    %p98 = scmp.eq.s32.totalorder %s16, 0
    %p99 = por %p97, %p98
    %s100 = ssub.s32 %s17, %s29
    %p101 = scmp.eq.s32.totalorder %s100, 0
    %s103 = sadd.s32 %s102, 1
    %s104 = scalar_select %p101, %s102, %s103
    %p107 = pneg %p101
    %p108 = scmp.eq.s32.totalorder %s10, 1
    %p109 = por %p107, %p108
    %p110 = scmp.ne.s32.totalorder %s102, %s105
    %p111 = scmp.eq.s32.totalorder %s10, 0
    %p112 = por %p110, %p111
    %p113 = scmp.ne.s32.totalorder %s102, %s105
    %p114 = scmp.eq.s32.totalorder %s15, 1
    %p115 = por %p113, %p114
    %p116 = scmp.ne.s32.totalorder %s105, %s106
    %p117 = scmp.eq.s32.totalorder %s15, 0
    %p118 = por %p116, %p117
    %p119 = scmp.ne.s32.totalorder %s105, %s106
    %p120 = scmp.eq.s32.totalorder %s16, 1
    %p121 = por %p119, %p120
    %p123 = scmp.ne.s32.totalorder %s106, %s122
    %p124 = scmp.eq.s32.totalorder %s16, 0
    %p125 = por %p123, %p124
    %s126 = ssub.s32 %s17, %s29
    %s127 = ssub.s32 %s18, %s25
    %s128 = sor.u32 %s126, %s127
    %p129 = scmp.eq.s32.totalorder %s128, 0
    %s131 = sadd.s32 %s130, 1
    %s132 = scalar_select %p129, %s130, %s131
    %p135 = pneg %p129
    %p136 = scmp.eq.s32.totalorder %s10, 1
    %p137 = por %p135, %p136
    %p138 = scmp.ne.s32.totalorder %s130, %s133
    %p139 = scmp.eq.s32.totalorder %s10, 0
    %p140 = por %p138, %p139
    %p141 = scmp.ne.s32.totalorder %s130, %s133
    %p142 = scmp.eq.s32.totalorder %s15, 1
    %p143 = por %p141, %p142
    %p144 = scmp.ne.s32.totalorder %s133, %s134
    %p145 = scmp.eq.s32.totalorder %s15, 0
    %p146 = por %p144, %p145
    %p147 = scmp.ne.s32.totalorder %s133, %s134
    %p148 = scmp.eq.s32.totalorder %s16, 1
    %p149 = por %p147, %p148
    %p151 = scmp.ne.s32.totalorder %s134, %s150
    %p152 = scmp.eq.s32.totalorder %s16, 0
    %p153 = por %p151, %p152
    %p154 = scmp.le.s32.totalorder 1, %s10
    %p155 = scmp.lt.s32.totalorder %s10, 3
    %p156 = pnand %p154, %p155
    %p157 = pneg %p156
    // Predicated region
    $region9: #{_lambda_.31} parent=5 // pred_check
      _
    $region10: #{_lambda_.31} parent=5 // pred_check_branch
      %159 = sbr.rel (%p156) target = $region12
    $region11: #{_lambda_.31} parent=5 // pred_region
      %s160 = ssub.s32 %s10, 1
      // Predicated region
      $region13: #{_lambda_.31} parent=11 // pred_check
        %p161 = pneg %p71
      $region14: #{_lambda_.31} parent=11 // pred_check_branch
        %163 = sbr.rel (%p161) target = $region16
      $region15: #{_lambda_.31} parent=11 // pred_region
        _
      $region16: #{_lambda_.31} parent=11 // pred_fallthru
        _
      // Predicated region
      $region17: #{_lambda_.31} parent=11 // pred_check
        %p164 = pneg %p92
      $region18: #{_lambda_.31} parent=11 // pred_check_branch
        %166 = sbr.rel (%p164) target = $region20
      $region19: #{_lambda_.31} parent=11 // pred_region
        _
      $region20: #{_lambda_.31} parent=11 // pred_fallthru
        _
    $region12: #{_lambda_.31} parent=5 // pred_fallthru
      _
    %p167 = scmp.lt.s32.totalorder %s10, 2
    // Predicated region
    $region21: #{_lambda_.31} parent=5 // pred_check
      %p168 = pneg %p167
    $region22: #{_lambda_.31} parent=5 // pred_check_branch
      %170 = sbr.rel (%p168) target = $region24
    $region23: #{_lambda_.31} parent=5 // pred_region
      // Predicated region
      $region25: #{_lambda_.31} parent=23 // pred_check
        %p171 = pneg %p44
      $region26: #{_lambda_.31} parent=23 // pred_check_branch
        %173 = sbr.rel (%p171) target = $region28
      $region27: #{_lambda_.31} parent=23 // pred_region
        %s174 = smul.u32 8, %s18
        %p175 = scmp.lt.s32.totalorder %s17, 1
        %s176 = scalar_select %p175, %s17, 1
        %p177 = scmp.lt.s32.totalorder %s174, 7
        %s178 = scalar_select %p177, %s174, 7
        %s179 = smul.addr %s176, 8
        %s180 = sadd.s32 %s178, %s179
        %s181 = smul.addr %s180, 4
        %s182 = scalar_lea.vmem %s0, %s181
        %s183 = smul.u32 8, %s18
      $region28: #{_lambda_.31} parent=23 // pred_fallthru
        _
      // Predicated region
      $region29: #{_lambda_.31} parent=23 // pred_check
        %p184 = pneg %p112
      $region30: #{_lambda_.31} parent=23 // pred_check_branch
        %186 = sbr.rel (%p184) target = $region32
      $region31: #{_lambda_.31} parent=23 // pred_region
        %p187 = scmp.lt.s32.totalorder %s17, 1
        %s188 = scalar_select %p187, %s17, 1
        %s189 = scalar_lea.vmem %s3, %s188
      $region32: #{_lambda_.31} parent=23 // pred_fallthru
        _
    $region24: #{_lambda_.31} parent=5 // pred_fallthru
      _
    %p190 = scmp.le.s32.totalorder 1, %s10
    %p191 = scmp.lt.s32.totalorder %s10, 3
    %p192 = pnand %p190, %p191
    %p193 = pneg %p192
    // Predicated region
    $region33: #{_lambda_.31} parent=5 // pred_check
      _
    $region34: #{_lambda_.31} parent=5 // pred_check_branch
      %195 = sbr.rel (%p192) target = $region36
    $region35: #{_lambda_.31} parent=5 // pred_region
      %s196 = ssub.s32 %s10, 1
      %s197 = smul.u32 8, %s20
      %p198 = scmp.lt.s32.totalorder %s19, 1
      %s199 = scalar_select %p198, %s19, 1
      %p200 = scmp.lt.s32.totalorder %s197, 7
      %s201 = scalar_select %p200, %s197, 7
      %s202 = smul.addr %s199, 8
      %s203 = sadd.s32 %s201, %s202
      %s204 = smul.addr %s203, 4
      %s205 = scalar_lea.vmem %s0, %s204
      %p206 = pneg %p50
      %p207 = pneg %p47
      %p208 = pneg %p71
      %p209 = pneg %p68
      %p210 = pneg %p92
      %p211 = pneg %p89
      %p212 = scmp.lt.s32.totalorder %s19, 1
      %s213 = scalar_select %p212, %s19, 1
      %s214 = scalar_lea.vmem %s3, %s213
      %p215 = pneg %p118
      %p216 = pneg %p115
      %p217 = pneg %p146
      %p218 = pneg %p143
      %s219 = smul.u32 8, %s20
      %p220 = scmp.lt.s32.totalorder %s19, 1
      %s221 = scalar_select %p220, %s19, 1
      %p222 = scmp.lt.s32.totalorder %s219, 7
      %s223 = scalar_select %p222, %s219, 7
      %s224 = smul.addr %s221, 8
      %s225 = sadd.s32 %s223, %s224
      %s226 = smul.addr %s225, 4
      %s227 = scalar_lea.vmem %s4, %s226
      %s228 = smul.u32 8, %s20
      %p229 = scmp.lt.s32.totalorder %s19, 1
      %s230 = scalar_select %p229, %s19, 1
      %p231 = scmp.lt.s32.totalorder %s228, 7
      %s232 = scalar_select %p231, %s228, 7
      %s233 = smul.addr %s230, 8
      %s234 = sadd.s32 %s232, %s233
      %s235 = smul.addr %s234, 4
      %s236 = scalar_lea.vmem %s0, %s235
      %s237 = smul.u32 8, %s20
      %p238 = scmp.lt.s32.totalorder %s19, 1
      %s239 = scalar_select %p238, %s19, 1
      %s240 = scalar_lea.vmem %s3, %s239
      %s241 = smul.u32 8, %s20
      %p242 = scmp.lt.s32.totalorder %s19, 1
      %s243 = scalar_select %p242, %s19, 1
      %p244 = scmp.lt.s32.totalorder %s241, 7
      %s245 = scalar_select %p244, %s241, 7
      %s246 = smul.addr %s243, 8
      %s247 = sadd.s32 %s245, %s246
      %s248 = smul.addr %s247, 4
      %s249 = scalar_lea.vmem %s4, %s248
      %s250 = smul.u32 8, %s20
      %v252 = vld [vmem:[%s236] sm:$0xf]
      %v253 = vld [vmem:[%s236 + $0x4] sm:$0xf]
      %v254 = vld [vmem:[%s236 + $0x8] sm:$0xf]
      %v255 = vld [vmem:[%s236 + $0xc] sm:$0xf]
      %v256 = vld [vmem:[%s236 + $0x10] sm:$0xf]
      %v257 = vld [vmem:[%s236 + $0x14] sm:$0xf]
      %v258 = vld [vmem:[%s236 + $0x18] sm:$0xf]
      %v259 = vld [vmem:[%s236 + $0x1c] sm:$0xf]
      %v260 = vld [vmem:[%s1] sm:$0xf]
      %v261 = vld [vmem:[%s1 + $0x4] sm:$0xf]
      %v262 = vld [vmem:[%s1 + $0x8] sm:$0xf]
      %v263 = vld [vmem:[%s1 + $0xc] sm:$0xf]
      %v264 = vld [vmem:[%s1 + $0x10] sm:$0xf]
      %v265 = vld [vmem:[%s1 + $0x14] sm:$0xf]
      %v266 = vld [vmem:[%s1 + $0x18] sm:$0xf]
      %v267 = vld [vmem:[%s1 + $0x1c] sm:$0xf]
      %v268 = vld [vmem:[%s1 + $0x20] sm:$0xf]
      %v269 = vld [vmem:[%s1 + $0x24] sm:$0xf]
      %v270 = vld [vmem:[%s1 + $0x28] sm:$0xf]
      %v271 = vld [vmem:[%s1 + $0x2c] sm:$0xf]
      %v272 = vld [vmem:[%s1 + $0x30] sm:$0xf]
      %v273 = vld [vmem:[%s1 + $0x34] sm:$0xf]
      %v274 = vld [vmem:[%s1 + $0x38] sm:$0xf]
      %v275 = vld [vmem:[%s1 + $0x3c] sm:$0xf]
      %v276 = vld [vmem:[%s2] sm:$0x1]
      %v278 = vlaneseq
      %v279 = vshrl.u32 %v278, 7
      %v280 = vsub.s32 0, %v279
      %v281 = vrot.slane %v276, %v280
      %v291 = vunpack.c.l.b16 %v252
      %v292 = vunpack.c.l.b16 %v253
      %v293 = vunpack.c.l.b16 %v254
      %v294 = vunpack.c.l.b16 %v255
      %v295 = vunpack.c.l.b16 %v256
      %v296 = vunpack.c.l.b16 %v257
      %v297 = vunpack.c.l.b16 %v258
      %v298 = vunpack.c.l.b16 %v259
      %v299 = vpack.c.b16 %v292, %v291
      %v300 = vpack.c.b16 %v294, %v293
      %v301 = vpack.c.b16 %v296, %v295
      %v302 = vpack.c.b16 %v298, %v297
      %v323 = vunpack.c.l.b16 %v260
      %v324 = vunpack.c.l.b16 %v261
      %v325 = vunpack.c.l.b16 %v262
      %v326 = vunpack.c.l.b16 %v263
      %v327 = vunpack.c.l.b16 %v264
      %v328 = vunpack.c.l.b16 %v265
      %v329 = vunpack.c.l.b16 %v266
      %v330 = vunpack.c.l.b16 %v267
      %v331 = vunpack.c.l.b16 %v268
      %v332 = vunpack.c.l.b16 %v269
      %v333 = vunpack.c.l.b16 %v270
      %v334 = vunpack.c.l.b16 %v271
      %v335 = vunpack.c.l.b16 %v272
      %v336 = vunpack.c.l.b16 %v273
      %v337 = vunpack.c.l.b16 %v274
      %v338 = vunpack.c.l.b16 %v275
      %v339 = vpack.c.b16 %v324, %v323
      %v340 = vpack.c.b16 %v326, %v325
      %v341 = vpack.c.b16 %v328, %v327
      %v342 = vpack.c.b16 %v330, %v329
      %v343 = vpack.c.b16 %v332, %v331
      %v344 = vpack.c.b16 %v334, %v333
      %v345 = vpack.c.b16 %v336, %v335
      %v346 = vpack.c.b16 %v338, %v337
      %355 = vmatprep.subr.bf16.mxu0 0
      %356 = vmatpush1.bf16.msra.mxu0 %v339
      %357 = vmatprep.subr.bf16.mxu0 0
      %358 = vmatpush1.bf16.msra.mxu0 %v340
      %359 = vmatprep.subr.bf16.mxu0 0
      %360 = vmatpush1.bf16.msra.mxu0 %v341
      %361 = vmatprep.subr.bf16.mxu0 0
      %362 = vmatpush1.bf16.msra.mxu0 %v342
      %363 = vmatprep.subr.bf16.mxu0 0
      %364 = vmatpush1.bf16.msra.mxu0 %v343
      %365 = vmatprep.subr.bf16.mxu0 0
      %366 = vmatpush1.bf16.msra.mxu0 %v344
      %367 = vmatprep.subr.bf16.mxu0 0
      %368 = vmatpush1.bf16.msra.mxu0 %v345
      %369 = vmatprep.subr.bf16.mxu0 0
      %370 = vmatpush1.bf16.msra.mxu0 %v346
      %371 = vmatprep.subr.bf16.mxu0 0
      %372 = vmatpush1.bf16.msra.mxu0 0
      %373 = vmatprep.subr.bf16.mxu0 0
      %374 = vmatpush1.bf16.msra.mxu0 0
      %375 = vmatprep.subr.bf16.mxu0 0
      %376 = vmatpush1.bf16.msra.mxu0 0
      %377 = vmatprep.subr.bf16.mxu0 0
      %378 = vmatpush1.bf16.msra.mxu0 0
      %379 = vmatprep.subr.bf16.mxu0 0
      %380 = vmatpush1.bf16.msra.mxu0 0
      %381 = vmatprep.subr.bf16.mxu0 0
      %382 = vmatpush1.bf16.msra.mxu0 0
      %383 = vmatprep.subr.bf16.mxu0 0
      %384 = vmatpush1.bf16.msra.mxu0 0
      %385 = vmatprep.subr.bf16.mxu0 0
      %386 = vmatpush1.bf16.msra.mxu0 0
      %387 = vmatprep.mubr.bf16.mxu0 0
      %388 = vmatmul.mubr.bf16.gmra.mrb[0].mxu0 %v299
      %v389 = vpop.f32.mrb[0].mxu0
      %v390 = vadd.f32 %v281, %v389
      %v391 = vpop.f32.mrb[0].mxu0
      %v392 = vpop.f32.mrb[0].mxu0
      %v393 = vadd.f32 %v281, %v392
      %v394 = vpop.f32.mrb[0].mxu0
      %395 = vmatprep.mubr.bf16.mxu0 0
      %396 = vmatmul.mubr.bf16.gmra.mrb[0].mxu0 %v300
      %v397 = vpop.f32.mrb[0].mxu0
      %v398 = vadd.f32 %v281, %v397
      %v399 = vpop.f32.mrb[0].mxu0
      %v400 = vpop.f32.mrb[0].mxu0
      %v401 = vadd.f32 %v281, %v400
      %v402 = vpop.f32.mrb[0].mxu0
      %403 = vmatprep.mubr.bf16.mxu0 0
      %404 = vmatmul.mubr.bf16.gmra.mrb[0].mxu0 %v301
      %v405 = vpop.f32.mrb[0].mxu0
      %v406 = vadd.f32 %v281, %v405
      %v407 = vpop.f32.mrb[0].mxu0
      %v408 = vpop.f32.mrb[0].mxu0
      %v409 = vadd.f32 %v281, %v408
      %v410 = vpop.f32.mrb[0].mxu0
      %411 = vmatprep.mubr.bf16.mxu0 0
      %412 = vmatmul.mubr.bf16.gmra.mrb[0].mxu0 %v302
      %v413 = vpop.f32.mrb[0].mxu0
      %v414 = vadd.f32 %v281, %v413
      %v415 = vpop.f32.mrb[0].mxu0
      %v416 = vpop.f32.mrb[0].mxu0
      %v417 = vadd.f32 %v281, %v416
      %v418 = vpop.f32.mrb[0].mxu0
      %419 = vdwg.mxu0
      %v420 = vxor.u32 %v390, 2147483648
      %v421 = vxor.u32 %v393, 2147483648
      %v422 = vxor.u32 %v398, 2147483648
      %v423 = vxor.u32 %v401, 2147483648
      %v424 = vxor.u32 %v406, 2147483648
      %v425 = vxor.u32 %v409, 2147483648
      %v426 = vxor.u32 %v414, 2147483648
      %v427 = vxor.u32 %v417, 2147483648
      %v428 = vmul.f32 %v420, 1.442695
      %v429 = vpow.pop %v428
      %v430 = vmul.f32 %v421, 1.442695
      %v431 = vpow.pop %v430
      %v432 = vmul.f32 %v422, 1.442695
      %v433 = vpow.pop %v432
      %v434 = vmul.f32 %v423, 1.442695
      %v435 = vpow.pop %v434
      %v436 = vmul.f32 %v424, 1.442695
      %v437 = vpow.pop %v436
      %v438 = vmul.f32 %v425, 1.442695
      %v439 = vpow.pop %v438
      %v440 = vmul.f32 %v426, 1.442695
      %v441 = vpow.pop %v440
      %v442 = vmul.f32 %v427, 1.442695
      %v443 = vpow.pop %v442
      %v444 = vadd.f32 %v429, 1.0
      %v445 = vadd.f32 %v431, 1.0
      %v446 = vadd.f32 %v433, 1.0
      %v447 = vadd.f32 %v435, 1.0
      %v448 = vadd.f32 %v437, 1.0
      %v449 = vadd.f32 %v439, 1.0
      %v450 = vadd.f32 %v441, 1.0
      %v451 = vadd.f32 %v443, 1.0
      %v452 = vrcp.pop %v444
      %v453 = vmul.f32 1.0, %v452
      %v454 = vrcp.pop %v445
      %v455 = vmul.f32 1.0, %v454
      %v456 = vrcp.pop %v446
      %v457 = vmul.f32 1.0, %v456
      %v458 = vrcp.pop %v447
      %v459 = vmul.f32 1.0, %v458
      %v460 = vrcp.pop %v448
      %v461 = vmul.f32 1.0, %v460
      %v462 = vrcp.pop %v449
      %v463 = vmul.f32 1.0, %v462
      %v464 = vrcp.pop %v450
      %v465 = vmul.f32 1.0, %v464
      %v466 = vrcp.pop %v451
      %v467 = vmul.f32 1.0, %v466
      %v468 = vmul.f32 %v390, %v453
      %v469 = vmul.f32 %v393, %v455
      %v470 = vmul.f32 %v398, %v457
      %v471 = vmul.f32 %v401, %v459
      %v472 = vmul.f32 %v406, %v461
      %v473 = vmul.f32 %v409, %v463
      %v474 = vmul.f32 %v414, %v465
      %v475 = vmul.f32 %v417, %v467
      %v476 = vld [vmem:[%s240] sm:$0x1]
      %v477 = vunpack.c.l.bf16 %v476
      %v478 = vlaneseq
      %v479 = vshrl.u32 %v478, 7
      %v480 = vsub.s32 0, %v479
      %v481 = vrot.slane %v477, %v480
      %v482 = vadd.f32 %v468, %v481
      %v483 = vadd.f32 %v469, %v481
      %v484 = vadd.f32 %v470, %v481
      %v485 = vadd.f32 %v471, %v481
      %v486 = vadd.f32 %v472, %v481
      %v487 = vadd.f32 %v473, %v481
      %v488 = vadd.f32 %v474, %v481
      %v489 = vadd.f32 %v475, %v481
      %v490 = vpack.c.bf16 %v483, %v482
      %v491 = vpack.c.bf16 %v485, %v484
      %v492 = vpack.c.bf16 %v487, %v486
      %v493 = vpack.c.bf16 %v489, %v488
      %v498 = vunpack.c.l.b16 %v490
      %v499 = vunpack.c.h.b16 %v490
      %v500 = vunpack.c.l.b16 %v491
      %v501 = vunpack.c.h.b16 %v491
      %v502 = vunpack.c.l.b16 %v492
      %v503 = vunpack.c.h.b16 %v492
      %v504 = vunpack.c.l.b16 %v493
      %v505 = vunpack.c.h.b16 %v493
      %v506 = vpack.c.b16 %v498, %v498
      %v507 = vpack.c.b16 %v499, %v499
      %v508 = vpack.c.b16 %v500, %v500
      %v509 = vpack.c.b16 %v501, %v501
      %v510 = vpack.c.b16 %v502, %v502
      %v511 = vpack.c.b16 %v503, %v503
      %v512 = vpack.c.b16 %v504, %v504
      %v513 = vpack.c.b16 %v505, %v505
      %522 = vst [vmem:[%s249] sm:$0xf] %v506
      %523 = vst [vmem:[%s249 + $0x4] sm:$0xf] %v507
      %524 = vst [vmem:[%s249 + $0x8] sm:$0xf] %v508
      %525 = vst [vmem:[%s249 + $0xc] sm:$0xf] %v509
      %526 = vst [vmem:[%s249 + $0x10] sm:$0xf] %v510
      %527 = vst [vmem:[%s249 + $0x14] sm:$0xf] %v511
      %528 = vst [vmem:[%s249 + $0x18] sm:$0xf] %v512
      %529 = vst [vmem:[%s249 + $0x1c] sm:$0xf] %v513
      %s530 = smul.u32 8, %s20
      %p531 = scmp.lt.s32.totalorder %s19, 1
      %s532 = scalar_select %p531, %s19, 1
      %p533 = scmp.lt.s32.totalorder %s530, 7
      %s534 = scalar_select %p533, %s530, 7
      %s535 = smul.addr %s532, 8
      %s536 = sadd.s32 %s534, %s535
      %s537 = smul.addr %s536, 4
      %s538 = scalar_lea.vmem %s4, %s537
      // Predicated region
      $region37: #{_lambda_.31} parent=35 // pred_check
        %p539 = pneg %p143
      $region38: #{_lambda_.31} parent=35 // pred_check_branch
        %541 = sbr.rel (%p539) target = $region40
      $region39: #{_lambda_.31} parent=35 // pred_region
        %s542 = smul.u32 8, %s20
      $region40: #{_lambda_.31} parent=35 // pred_fallthru
        _
    $region36: #{_lambda_.31} parent=5 // pred_fallthru
      _
    %p543 = scmp.le.s32.totalorder 2, %s10
    // Predicated region
    $region41: #{_lambda_.31} parent=5 // pred_check
      %p544 = pneg %p543
    $region42: #{_lambda_.31} parent=5 // pred_check_branch
      %546 = sbr.rel (%p544) target = $region44
    $region43: #{_lambda_.31} parent=5 // pred_region
      %s547 = ssub.s32 %s10, 2
      // Predicated region
      $region45: #{_lambda_.31} parent=43 // pred_check
        %p548 = pneg %p149
      $region46: #{_lambda_.31} parent=43 // pred_check_branch
        %550 = sbr.rel (%p548) target = $region48
      $region47: #{_lambda_.31} parent=43 // pred_region
        %s551 = smul.u32 8, %s22
        %p552 = scmp.lt.s32.totalorder %s21, 1
        %s553 = scalar_select %p552, %s21, 1
        %p554 = scmp.lt.s32.totalorder %s551, 7
        %s555 = scalar_select %p554, %s551, 7
        %s556 = smul.addr %s553, 8
        %s557 = sadd.s32 %s555, %s556
        %s558 = smul.addr %s557, 4
        %s559 = scalar_lea.vmem %s4, %s558
      $region48: #{_lambda_.31} parent=43 // pred_fallthru
        _
    $region44: #{_lambda_.31} parent=5 // pred_fallthru
      _
  $region6: #{_lambda_.31} parent=0 // loop_footer
    %s14 = sadd.s32 1, %s10
  $region7: #{_lambda_.31} parent=0 // loop_footer_branch
    %9 = sbr.rel target = $region3
  $region8: #{_lambda_.31} parent=0 // loop_exit
    _

// kernel: _lambda_.33
$region0: #{_lambda_.33}
  #allocation0 [shape = 'u32[]', space=smem, size = 0x4, offset = 0x4, fixed_abs, tag = 'smem constant byte address 0x4 - core index']
  #allocation1 [shape = 'u32[144,128]{1,0:T(1,128)}', space=vmem, size = 0x12000, scoped, tag = 'internal scratch']
  %s0 = inlined_call_operand.vmem [shape: bf16[2,64,128], index: 0, kind: input, shape index: {}]
  %s1 = inlined_call_operand.vmem [shape: bf16[128,128], index: 1, kind: input, shape index: {}]
  %s2 = inlined_call_operand.vmem [shape: f32[1,128], index: 2, kind: input, shape index: {}]
  %s3 = inlined_call_operand.vmem [shape: bf16[2,64,128], index: 3, kind: output, shape index: {}]
  %s4 = sld [smem:[#allocation0]]
  $region45: #{_lambda_.33} parent=0
    _
  %s6 = ssub.s32 1, %s4
  %s7 = scalar_select 0, %s6, %s4
  loop: start=0, step=1, limit=4
  $region2: #{_lambda_.33} parent=0 // loop_pre_header
    _
  $region3: #{_lambda_.33} parent=0 // loop_header
    %s9 = sphi 0, %s13
    %p10 = scmp.ge.s32.totalorder %s9, 4
    %s16 = sphi 0, %s28
    %s17 = sphi 0, %s24
    %s18 = sphi 0, %s16
    %s19 = sphi 0, %s17
    %s20 = sphi 0, %s18
    %s21 = sphi 0, %s19
    %s33 = sphi 0, %s35
    %s36 = sphi 0, %s33
    %s37 = sphi 0, %s36
    %s53 = sphi 0, %s37
    %s57 = sphi 0, %s57
    %s59 = sphi 0, %s57
    %s60 = sphi 0, %s59
    %s74 = sphi 0, %s60
    %s78 = sphi 0, %s78
    %s80 = sphi 0, %s78
    %s81 = sphi 0, %s80
    %s95 = sphi 0, %s81
    %s103 = sphi 0, %s105
    %s106 = sphi 0, %s103
    %s107 = sphi 0, %s106
    %s123 = sphi 0, %s107
  $region4: #{_lambda_.33} parent=0 // loop_header_branch
    %12 = sbr.rel (%p10) target = $region8
  $region5: #{_lambda_.33} parent=0 // loop_body
    %s14 = ssub.s32 %s9, 1
    %s15 = ssub.s32 %s9, 2
    %s22 = sadd.s32 1, %s17
    %p23 = scmp.ge.s32.totalorder %s22, 1
    %s24 = scalar_select %p23, 0, %s22
    %s25 = sadd.s32 1, %s16
    %s26 = scalar_select %p23, %s25, %s16
    %p27 = scmp.ge.s32.totalorder %s26, 2
    %s28 = scalar_select %p27, 0, %s26
    %s29 = ssub.s32 %s16, %s28
    %s30 = ssub.s32 %s17, %s24
    %s31 = sor.u32 %s29, %s30
    %p32 = scmp.eq.s32.totalorder %s31, 0
    %s34 = sadd.s32 %s33, 1
    %s35 = scalar_select %p32, %s33, %s34
    %p38 = pneg %p32
    %p39 = scmp.eq.s32.totalorder %s9, 1
    %p40 = por %p38, %p39
    %p41 = scmp.ne.s32.totalorder %s33, %s36
    %p42 = scmp.eq.s32.totalorder %s9, 0
    %p43 = por %p41, %p42
    %p44 = scmp.ne.s32.totalorder %s33, %s36
    %p45 = scmp.eq.s32.totalorder %s14, 1
    %p46 = por %p44, %p45
    %p47 = scmp.ne.s32.totalorder %s36, %s37
    %p48 = scmp.eq.s32.totalorder %s14, 0
    %p49 = por %p47, %p48
    %p50 = scmp.ne.s32.totalorder %s36, %s37
    %p51 = scmp.eq.s32.totalorder %s15, 1
    %p52 = por %p50, %p51
    %p54 = scmp.ne.s32.totalorder %s37, %s53
    %p55 = scmp.eq.s32.totalorder %s15, 0
    %p56 = por %p54, %p55
    %s58 = sadd.s32 %s57, 1
    %p61 = scmp.eq.s32.totalorder %s9, 1
    %p62 = scmp.ne.s32.totalorder %s57, %s59
    %p63 = scmp.eq.s32.totalorder %s9, 0
    %p64 = por %p62, %p63
    %p65 = scmp.ne.s32.totalorder %s57, %s59
    %p66 = scmp.eq.s32.totalorder %s14, 1
    %p67 = por %p65, %p66
    %p68 = scmp.ne.s32.totalorder %s59, %s60
    %p69 = scmp.eq.s32.totalorder %s14, 0
    %p70 = por %p68, %p69
    %p71 = scmp.ne.s32.totalorder %s59, %s60
    %p72 = scmp.eq.s32.totalorder %s15, 1
    %p73 = por %p71, %p72
    %p75 = scmp.ne.s32.totalorder %s60, %s74
    %p76 = scmp.eq.s32.totalorder %s15, 0
    %p77 = por %p75, %p76
    %s79 = sadd.s32 %s78, 1
    %p82 = scmp.eq.s32.totalorder %s9, 1
    %p83 = scmp.ne.s32.totalorder %s78, %s80
    %p84 = scmp.eq.s32.totalorder %s9, 0
    %p85 = por %p83, %p84
    %p86 = scmp.ne.s32.totalorder %s78, %s80
    %p87 = scmp.eq.s32.totalorder %s14, 1
    %p88 = por %p86, %p87
    %p89 = scmp.ne.s32.totalorder %s80, %s81
    %p90 = scmp.eq.s32.totalorder %s14, 0
    %p91 = por %p89, %p90
    %p92 = scmp.ne.s32.totalorder %s80, %s81
    %p93 = scmp.eq.s32.totalorder %s15, 1
    %p94 = por %p92, %p93
    %p96 = scmp.ne.s32.totalorder %s81, %s95
    %p97 = scmp.eq.s32.totalorder %s15, 0
    %p98 = por %p96, %p97
    %s99 = ssub.s32 %s16, %s28
    %s100 = ssub.s32 %s17, %s24
    %s101 = sor.u32 %s99, %s100
    %p102 = scmp.eq.s32.totalorder %s101, 0
    %s104 = sadd.s32 %s103, 1
    %s105 = scalar_select %p102, %s103, %s104
    %p108 = pneg %p102
    %p109 = scmp.eq.s32.totalorder %s9, 1
    %p110 = por %p108, %p109
    %p111 = scmp.ne.s32.totalorder %s103, %s106
    %p112 = scmp.eq.s32.totalorder %s9, 0
    %p113 = por %p111, %p112
    %p114 = scmp.ne.s32.totalorder %s103, %s106
    %p115 = scmp.eq.s32.totalorder %s14, 1
    %p116 = por %p114, %p115
    %p117 = scmp.ne.s32.totalorder %s106, %s107
    %p118 = scmp.eq.s32.totalorder %s14, 0
    %p119 = por %p117, %p118
    %p120 = scmp.ne.s32.totalorder %s106, %s107
    %p121 = scmp.eq.s32.totalorder %s15, 1
    %p122 = por %p120, %p121
    %p124 = scmp.ne.s32.totalorder %s107, %s123
    %p125 = scmp.eq.s32.totalorder %s15, 0
    %p126 = por %p124, %p125
    %p127 = scmp.le.s32.totalorder 1, %s9
    %p128 = scmp.lt.s32.totalorder %s9, 3
    %p129 = pnand %p127, %p128
    %p130 = pneg %p129
    // Predicated region
    $region9: #{_lambda_.33} parent=5 // pred_check
      _
    $region10: #{_lambda_.33} parent=5 // pred_check_branch
      %132 = sbr.rel (%p129) target = $region12
    $region11: #{_lambda_.33} parent=5 // pred_region
      %s133 = ssub.s32 %s9, 1
      // Predicated region
      $region13: #{_lambda_.33} parent=11 // pred_check
        %p134 = pneg %p70
      $region14: #{_lambda_.33} parent=11 // pred_check_branch
        %136 = sbr.rel (%p134) target = $region16
      $region15: #{_lambda_.33} parent=11 // pred_region
        _
      $region16: #{_lambda_.33} parent=11 // pred_fallthru
        _
      // Predicated region
      $region17: #{_lambda_.33} parent=11 // pred_check
        %p137 = pneg %p91
      $region18: #{_lambda_.33} parent=11 // pred_check_branch
        %139 = sbr.rel (%p137) target = $region20
      $region19: #{_lambda_.33} parent=11 // pred_region
        _
      $region20: #{_lambda_.33} parent=11 // pred_fallthru
        _
    $region12: #{_lambda_.33} parent=5 // pred_fallthru
      _
    %p140 = scmp.lt.s32.totalorder %s9, 2
    // Predicated region
    $region21: #{_lambda_.33} parent=5 // pred_check
      %p141 = pneg %p140
    $region22: #{_lambda_.33} parent=5 // pred_check_branch
      %143 = sbr.rel (%p141) target = $region24
    $region23: #{_lambda_.33} parent=5 // pred_region
      // Predicated region
      $region25: #{_lambda_.33} parent=23 // pred_check
        %p144 = pneg %p43
      $region26: #{_lambda_.33} parent=23 // pred_check_branch
        %146 = sbr.rel (%p144) target = $region28
      $region27: #{_lambda_.33} parent=23 // pred_region
        %s147 = smul.u32 8, %s17
        %p148 = scmp.lt.s32.totalorder %s16, 1
        %s149 = scalar_select %p148, %s16, 1
        %p150 = scmp.lt.s32.totalorder %s147, 7
        %s151 = scalar_select %p150, %s147, 7
        %s152 = smul.addr %s149, 8
        %s153 = sadd.s32 %s151, %s152
        %s154 = smul.addr %s153, 4
        %s155 = scalar_lea.vmem %s0, %s154
        %s156 = smul.u32 8, %s17
      $region28: #{_lambda_.33} parent=23 // pred_fallthru
        _
    $region24: #{_lambda_.33} parent=5 // pred_fallthru
      _
    %p157 = scmp.le.s32.totalorder 1, %s9
    %p158 = scmp.lt.s32.totalorder %s9, 3
    %p159 = pnand %p157, %p158
    %p160 = pneg %p159
    // Predicated region
    $region29: #{_lambda_.33} parent=5 // pred_check
      _
    $region30: #{_lambda_.33} parent=5 // pred_check_branch
      %162 = sbr.rel (%p159) target = $region32
    $region31: #{_lambda_.33} parent=5 // pred_region
      %s163 = ssub.s32 %s9, 1
      %s164 = smul.u32 8, %s19
      %p165 = scmp.lt.s32.totalorder %s18, 1
      %s166 = scalar_select %p165, %s18, 1
      %p167 = scmp.lt.s32.totalorder %s164, 7
      %s168 = scalar_select %p167, %s164, 7
      %s169 = smul.addr %s166, 8
      %s170 = sadd.s32 %s168, %s169
      %s171 = smul.addr %s170, 4
      %s172 = scalar_lea.vmem %s0, %s171
      %p173 = pneg %p49
      %p174 = pneg %p46
      %p175 = pneg %p70
      %p176 = pneg %p67
      %p177 = pneg %p91
      %p178 = pneg %p88
      %p179 = pneg %p119
      %p180 = pneg %p116
      %s181 = smul.u32 8, %s19
      %p182 = scmp.lt.s32.totalorder %s18, 1
      %s183 = scalar_select %p182, %s18, 1
      %p184 = scmp.lt.s32.totalorder %s181, 7
      %s185 = scalar_select %p184, %s181, 7
      %s186 = smul.addr %s183, 8
      %s187 = sadd.s32 %s185, %s186
      %s188 = smul.addr %s187, 4
      %s189 = scalar_lea.vmem %s3, %s188
      %s190 = smul.u32 8, %s19
      %p191 = scmp.lt.s32.totalorder %s18, 1
      %s192 = scalar_select %p191, %s18, 1
      %p193 = scmp.lt.s32.totalorder %s190, 7
      %s194 = scalar_select %p193, %s190, 7
      %s195 = smul.addr %s192, 8
      %s196 = sadd.s32 %s194, %s195
      %s197 = smul.addr %s196, 4
      %s198 = scalar_lea.vmem %s0, %s197
      %s199 = smul.u32 8, %s19
      %s200 = smul.u32 8, %s19
      %p201 = scmp.lt.s32.totalorder %s18, 1
      %s202 = scalar_select %p201, %s18, 1
      %p203 = scmp.lt.s32.totalorder %s200, 7
      %s204 = scalar_select %p203, %s200, 7
      %s205 = smul.addr %s202, 8
      %s206 = sadd.s32 %s204, %s205
      %s207 = smul.addr %s206, 4
      %s208 = scalar_lea.vmem %s3, %s207
      %s209 = smul.u32 8, %s19
      %v211 = vld [vmem:[%s198] sm:$0xf]
      %v212 = vld [vmem:[%s198 + $0x4] sm:$0xf]
      %v213 = vld [vmem:[%s198 + $0x8] sm:$0xf]
      %v214 = vld [vmem:[%s198 + $0xc] sm:$0xf]
      %v215 = vld [vmem:[%s198 + $0x10] sm:$0xf]
      %v216 = vld [vmem:[%s198 + $0x14] sm:$0xf]
      %v217 = vld [vmem:[%s198 + $0x18] sm:$0xf]
      %v218 = vld [vmem:[%s198 + $0x1c] sm:$0xf]
      %v219 = vld [vmem:[%s1] sm:$0xf]
      %v220 = vld [vmem:[%s1 + $0x4] sm:$0xf]
      %v221 = vld [vmem:[%s1 + $0x8] sm:$0xf]
      %v222 = vld [vmem:[%s1 + $0xc] sm:$0xf]
      %v223 = vld [vmem:[%s1 + $0x10] sm:$0xf]
      %v224 = vld [vmem:[%s1 + $0x14] sm:$0xf]
      %v225 = vld [vmem:[%s1 + $0x18] sm:$0xf]
      %v226 = vld [vmem:[%s1 + $0x1c] sm:$0xf]
      %v227 = vld [vmem:[%s1 + $0x20] sm:$0xf]
      %v228 = vld [vmem:[%s1 + $0x24] sm:$0xf]
      %v229 = vld [vmem:[%s1 + $0x28] sm:$0xf]
      %v230 = vld [vmem:[%s1 + $0x2c] sm:$0xf]
      %v231 = vld [vmem:[%s1 + $0x30] sm:$0xf]
      %v232 = vld [vmem:[%s1 + $0x34] sm:$0xf]
      %v233 = vld [vmem:[%s1 + $0x38] sm:$0xf]
      %v234 = vld [vmem:[%s1 + $0x3c] sm:$0xf]
      %v235 = vld [vmem:[%s2] sm:$0x1]
      %v237 = vlaneseq
      %v238 = vshrl.u32 %v237, 7
      %v239 = vsub.s32 0, %v238
      %v240 = vrot.slane %v235, %v239
      %v250 = vunpack.c.l.b16 %v211
      %v251 = vunpack.c.l.b16 %v212
      %v252 = vunpack.c.l.b16 %v213
      %v253 = vunpack.c.l.b16 %v214
      %v254 = vunpack.c.l.b16 %v215
      %v255 = vunpack.c.l.b16 %v216
      %v256 = vunpack.c.l.b16 %v217
      %v257 = vunpack.c.l.b16 %v218
      %v258 = vpack.c.b16 %v251, %v250
      %v259 = vpack.c.b16 %v253, %v252
      %v260 = vpack.c.b16 %v255, %v254
      %v261 = vpack.c.b16 %v257, %v256
      %v282 = vunpack.c.l.b16 %v219
      %v283 = vunpack.c.l.b16 %v220
      %v284 = vunpack.c.l.b16 %v221
      %v285 = vunpack.c.l.b16 %v222
      %v286 = vunpack.c.l.b16 %v223
      %v287 = vunpack.c.l.b16 %v224
      %v288 = vunpack.c.l.b16 %v225
      %v289 = vunpack.c.l.b16 %v226
      %v290 = vunpack.c.l.b16 %v227
      %v291 = vunpack.c.l.b16 %v228
      %v292 = vunpack.c.l.b16 %v229
      %v293 = vunpack.c.l.b16 %v230
      %v294 = vunpack.c.l.b16 %v231
      %v295 = vunpack.c.l.b16 %v232
      %v296 = vunpack.c.l.b16 %v233
      %v297 = vunpack.c.l.b16 %v234
      %v298 = vpack.c.b16 %v283, %v282
      %v299 = vpack.c.b16 %v285, %v284
      %v300 = vpack.c.b16 %v287, %v286
      %v301 = vpack.c.b16 %v289, %v288
      %v302 = vpack.c.b16 %v291, %v290
      %v303 = vpack.c.b16 %v293, %v292
      %v304 = vpack.c.b16 %v295, %v294
      %v305 = vpack.c.b16 %v297, %v296
      %314 = vmatprep.subr.bf16.mxu0 0
      %315 = vmatpush1.bf16.msra.mxu0 %v298
      %316 = vmatprep.subr.bf16.mxu0 0
      %317 = vmatpush1.bf16.msra.mxu0 %v299
      %318 = vmatprep.subr.bf16.mxu0 0
      %319 = vmatpush1.bf16.msra.mxu0 %v300
      %320 = vmatprep.subr.bf16.mxu0 0
      %321 = vmatpush1.bf16.msra.mxu0 %v301
      %322 = vmatprep.subr.bf16.mxu0 0
      %323 = vmatpush1.bf16.msra.mxu0 %v302
      %324 = vmatprep.subr.bf16.mxu0 0
      %325 = vmatpush1.bf16.msra.mxu0 %v303
      %326 = vmatprep.subr.bf16.mxu0 0
      %327 = vmatpush1.bf16.msra.mxu0 %v304
      %328 = vmatprep.subr.bf16.mxu0 0
      %329 = vmatpush1.bf16.msra.mxu0 %v305
      %330 = vmatprep.subr.bf16.mxu0 0
      %331 = vmatpush1.bf16.msra.mxu0 0
      %332 = vmatprep.subr.bf16.mxu0 0
      %333 = vmatpush1.bf16.msra.mxu0 0
      %334 = vmatprep.subr.bf16.mxu0 0
      %335 = vmatpush1.bf16.msra.mxu0 0
      %336 = vmatprep.subr.bf16.mxu0 0
      %337 = vmatpush1.bf16.msra.mxu0 0
      %338 = vmatprep.subr.bf16.mxu0 0
      %339 = vmatpush1.bf16.msra.mxu0 0
      %340 = vmatprep.subr.bf16.mxu0 0
      %341 = vmatpush1.bf16.msra.mxu0 0
      %342 = vmatprep.subr.bf16.mxu0 0
      %343 = vmatpush1.bf16.msra.mxu0 0
      %344 = vmatprep.subr.bf16.mxu0 0
      %345 = vmatpush1.bf16.msra.mxu0 0
      %346 = vmatprep.mubr.bf16.mxu0 0
      %347 = vmatmul.mubr.bf16.gmra.mrb[0].mxu0 %v258
      %v348 = vpop.f32.mrb[0].mxu0
      %v349 = vadd.f32 %v240, %v348
      %v350 = vpop.f32.mrb[0].mxu0
      %v351 = vpop.f32.mrb[0].mxu0
      %v352 = vadd.f32 %v240, %v351
      %v353 = vpop.f32.mrb[0].mxu0
      %354 = vmatprep.mubr.bf16.mxu0 0
      %355 = vmatmul.mubr.bf16.gmra.mrb[0].mxu0 %v259
      %v356 = vpop.f32.mrb[0].mxu0
      %v357 = vadd.f32 %v240, %v356
      %v358 = vpop.f32.mrb[0].mxu0
      %v359 = vpop.f32.mrb[0].mxu0
      %v360 = vadd.f32 %v240, %v359
      %v361 = vpop.f32.mrb[0].mxu0
      %362 = vmatprep.mubr.bf16.mxu0 0
      %363 = vmatmul.mubr.bf16.gmra.mrb[0].mxu0 %v260
      %v364 = vpop.f32.mrb[0].mxu0
      %v365 = vadd.f32 %v240, %v364
      %v366 = vpop.f32.mrb[0].mxu0
      %v367 = vpop.f32.mrb[0].mxu0
      %v368 = vadd.f32 %v240, %v367
      %v369 = vpop.f32.mrb[0].mxu0
      %370 = vmatprep.mubr.bf16.mxu0 0
      %371 = vmatmul.mubr.bf16.gmra.mrb[0].mxu0 %v261
      %v372 = vpop.f32.mrb[0].mxu0
      %v373 = vadd.f32 %v240, %v372
      %v374 = vpop.f32.mrb[0].mxu0
      %v375 = vpop.f32.mrb[0].mxu0
      %v376 = vadd.f32 %v240, %v375
      %v377 = vpop.f32.mrb[0].mxu0
      %378 = vdwg.mxu0
      %v379 = vpack.c.bf16 %v352, %v349
      %v380 = vpack.c.bf16 %v360, %v357
      %v381 = vpack.c.bf16 %v368, %v365
      %v382 = vpack.c.bf16 %v376, %v373
      %v387 = vunpack.c.l.b16 %v379
      %v388 = vunpack.c.h.b16 %v379
      %v389 = vunpack.c.l.b16 %v380
      %v390 = vunpack.c.h.b16 %v380
      %v391 = vunpack.c.l.b16 %v381
      %v392 = vunpack.c.h.b16 %v381
      %v393 = vunpack.c.l.b16 %v382
      %v394 = vunpack.c.h.b16 %v382
      %v395 = vpack.c.b16 %v387, %v387
      %v396 = vpack.c.b16 %v388, %v388
      %v397 = vpack.c.b16 %v389, %v389
      %v398 = vpack.c.b16 %v390, %v390
      %v399 = vpack.c.b16 %v391, %v391
      %v400 = vpack.c.b16 %v392, %v392
      %v401 = vpack.c.b16 %v393, %v393
      %v402 = vpack.c.b16 %v394, %v394
      %411 = vst [vmem:[%s208] sm:$0xf] %v395
      %412 = vst [vmem:[%s208 + $0x4] sm:$0xf] %v396
      %413 = vst [vmem:[%s208 + $0x8] sm:$0xf] %v397
      %414 = vst [vmem:[%s208 + $0xc] sm:$0xf] %v398
      %415 = vst [vmem:[%s208 + $0x10] sm:$0xf] %v399
      %416 = vst [vmem:[%s208 + $0x14] sm:$0xf] %v400
      %417 = vst [vmem:[%s208 + $0x18] sm:$0xf] %v401
      %418 = vst [vmem:[%s208 + $0x1c] sm:$0xf] %v402
      %s419 = smul.u32 8, %s19
      %p420 = scmp.lt.s32.totalorder %s18, 1
      %s421 = scalar_select %p420, %s18, 1
      %p422 = scmp.lt.s32.totalorder %s419, 7
      %s423 = scalar_select %p422, %s419, 7
      %s424 = smul.addr %s421, 8
      %s425 = sadd.s32 %s423, %s424
      %s426 = smul.addr %s425, 4
      %s427 = scalar_lea.vmem %s3, %s426
      // Predicated region
      $region33: #{_lambda_.33} parent=31 // pred_check
        %p428 = pneg %p116
      $region34: #{_lambda_.33} parent=31 // pred_check_branch
        %430 = sbr.rel (%p428) target = $region36
      $region35: #{_lambda_.33} parent=31 // pred_region
        %s431 = smul.u32 8, %s19
      $region36: #{_lambda_.33} parent=31 // pred_fallthru
        _
    $region32: #{_lambda_.33} parent=5 // pred_fallthru
      _
    %p432 = scmp.le.s32.totalorder 2, %s9
    // Predicated region
    $region37: #{_lambda_.33} parent=5 // pred_check
      %p433 = pneg %p432
    $region38: #{_lambda_.33} parent=5 // pred_check_branch
      %435 = sbr.rel (%p433) target = $region40
    $region39: #{_lambda_.33} parent=5 // pred_region
      %s436 = ssub.s32 %s9, 2
      // Predicated region
      $region41: #{_lambda_.33} parent=39 // pred_check
        %p437 = pneg %p122
      $region42: #{_lambda_.33} parent=39 // pred_check_branch
        %439 = sbr.rel (%p437) target = $region44
      $region43: #{_lambda_.33} parent=39 // pred_region
        %s440 = smul.u32 8, %s21
        %p441 = scmp.lt.s32.totalorder %s20, 1
        %s442 = scalar_select %p441, %s20, 1
        %p443 = scmp.lt.s32.totalorder %s440, 7
        %s444 = scalar_select %p443, %s440, 7
        %s445 = smul.addr %s442, 8
        %s446 = sadd.s32 %s444, %s445
        %s447 = smul.addr %s446, 4
        %s448 = scalar_lea.vmem %s3, %s447
      $region44: #{_lambda_.33} parent=39 // pred_fallthru
        _
    $region40: #{_lambda_.33} parent=5 // pred_fallthru
      _
  $region6: #{_lambda_.33} parent=0 // loop_footer
    %s13 = sadd.s32 1, %s9
  $region7: #{_lambda_.33} parent=0 // loop_footer_branch
    %8 = sbr.rel target = $region3
  $region8: #{_lambda_.33} parent=0 // loop_exit
    _

// kernel: _lambda_.32
$region0: #{_lambda_.32}
  #allocation0 [shape = 'u32[]', space=smem, size = 0x4, offset = 0x4, fixed_abs, tag = 'smem constant byte address 0x4 - core index']
  #allocation1 [shape = 'u32[144,128]{1,0:T(1,128)}', space=vmem, size = 0x12000, scoped, tag = 'internal scratch']
  %s0 = inlined_call_operand.vmem [shape: bf16[2,64,128], index: 0, kind: input, shape index: {}]
  %s1 = inlined_call_operand.vmem [shape: bf16[128,128], index: 1, kind: input, shape index: {}]
  %s2 = inlined_call_operand.vmem [shape: f32[1,128], index: 2, kind: input, shape index: {}]
  %s3 = inlined_call_operand.vmem [shape: bf16[2,64,128], index: 3, kind: input, shape index: {}]
  %s4 = inlined_call_operand.vmem [shape: bf16[2,64,128], index: 4, kind: output, shape index: {}]
  %s5 = sld [smem:[#allocation0]]
  $region49: #{_lambda_.32} parent=0
    _
  %s7 = ssub.s32 1, %s5
  %s8 = scalar_select 0, %s7, %s5
  loop: start=0, step=1, limit=4
  $region2: #{_lambda_.32} parent=0 // loop_pre_header
    _
  $region3: #{_lambda_.32} parent=0 // loop_header
    %s10 = sphi 0, %s14
    %p11 = scmp.ge.s32.totalorder %s10, 4
    %s17 = sphi 0, %s29
    %s18 = sphi 0, %s25
    %s19 = sphi 0, %s17
    %s20 = sphi 0, %s18
    %s21 = sphi 0, %s19
    %s22 = sphi 0, %s20
    %s34 = sphi 0, %s36
    %s37 = sphi 0, %s34
    %s38 = sphi 0, %s37
    %s54 = sphi 0, %s38
    %s58 = sphi 0, %s58
    %s60 = sphi 0, %s58
    %s61 = sphi 0, %s60
    %s75 = sphi 0, %s61
    %s79 = sphi 0, %s79
    %s81 = sphi 0, %s79
    %s82 = sphi 0, %s81
    %s96 = sphi 0, %s82
    %s104 = sphi 0, %s106
    %s107 = sphi 0, %s104
    %s108 = sphi 0, %s107
    %s124 = sphi 0, %s108
    %s132 = sphi 0, %s134
    %s135 = sphi 0, %s132
    %s136 = sphi 0, %s135
    %s152 = sphi 0, %s136
  $region4: #{_lambda_.32} parent=0 // loop_header_branch
    %13 = sbr.rel (%p11) target = $region8
  $region5: #{_lambda_.32} parent=0 // loop_body
    %s15 = ssub.s32 %s10, 1
    %s16 = ssub.s32 %s10, 2
    %s23 = sadd.s32 1, %s18
    %p24 = scmp.ge.s32.totalorder %s23, 1
    %s25 = scalar_select %p24, 0, %s23
    %s26 = sadd.s32 1, %s17
    %s27 = scalar_select %p24, %s26, %s17
    %p28 = scmp.ge.s32.totalorder %s27, 2
    %s29 = scalar_select %p28, 0, %s27
    %s30 = ssub.s32 %s17, %s29
    %s31 = ssub.s32 %s18, %s25
    %s32 = sor.u32 %s30, %s31
    %p33 = scmp.eq.s32.totalorder %s32, 0
    %s35 = sadd.s32 %s34, 1
    %s36 = scalar_select %p33, %s34, %s35
    %p39 = pneg %p33
    %p40 = scmp.eq.s32.totalorder %s10, 1
    %p41 = por %p39, %p40
    %p42 = scmp.ne.s32.totalorder %s34, %s37
    %p43 = scmp.eq.s32.totalorder %s10, 0
    %p44 = por %p42, %p43
    %p45 = scmp.ne.s32.totalorder %s34, %s37
    %p46 = scmp.eq.s32.totalorder %s15, 1
    %p47 = por %p45, %p46
    %p48 = scmp.ne.s32.totalorder %s37, %s38
    %p49 = scmp.eq.s32.totalorder %s15, 0
    %p50 = por %p48, %p49
    %p51 = scmp.ne.s32.totalorder %s37, %s38
    %p52 = scmp.eq.s32.totalorder %s16, 1
    %p53 = por %p51, %p52
    %p55 = scmp.ne.s32.totalorder %s38, %s54
    %p56 = scmp.eq.s32.totalorder %s16, 0
    %p57 = por %p55, %p56
    %s59 = sadd.s32 %s58, 1
    %p62 = scmp.eq.s32.totalorder %s10, 1
    %p63 = scmp.ne.s32.totalorder %s58, %s60
    %p64 = scmp.eq.s32.totalorder %s10, 0
    %p65 = por %p63, %p64
    %p66 = scmp.ne.s32.totalorder %s58, %s60
    %p67 = scmp.eq.s32.totalorder %s15, 1
    %p68 = por %p66, %p67
    %p69 = scmp.ne.s32.totalorder %s60, %s61
    %p70 = scmp.eq.s32.totalorder %s15, 0
    %p71 = por %p69, %p70
    %p72 = scmp.ne.s32.totalorder %s60, %s61
    %p73 = scmp.eq.s32.totalorder %s16, 1
    %p74 = por %p72, %p73
    %p76 = scmp.ne.s32.totalorder %s61, %s75
    %p77 = scmp.eq.s32.totalorder %s16, 0
    %p78 = por %p76, %p77
    %s80 = sadd.s32 %s79, 1
    %p83 = scmp.eq.s32.totalorder %s10, 1
    %p84 = scmp.ne.s32.totalorder %s79, %s81
    %p85 = scmp.eq.s32.totalorder %s10, 0
    %p86 = por %p84, %p85
    %p87 = scmp.ne.s32.totalorder %s79, %s81
    %p88 = scmp.eq.s32.totalorder %s15, 1
    %p89 = por %p87, %p88
    %p90 = scmp.ne.s32.totalorder %s81, %s82
    %p91 = scmp.eq.s32.totalorder %s15, 0
    %p92 = por %p90, %p91
    %p93 = scmp.ne.s32.totalorder %s81, %s82
    %p94 = scmp.eq.s32.totalorder %s16, 1
    %p95 = por %p93, %p94
    %p97 = scmp.ne.s32.totalorder %s82, %s96
    %p98 = scmp.eq.s32.totalorder %s16, 0
    %p99 = por %p97, %p98
    %s100 = ssub.s32 %s17, %s29
    %s101 = ssub.s32 %s18, %s25
    %s102 = sor.u32 %s100, %s101
    %p103 = scmp.eq.s32.totalorder %s102, 0
    %s105 = sadd.s32 %s104, 1
    %s106 = scalar_select %p103, %s104, %s105
    %p109 = pneg %p103
    %p110 = scmp.eq.s32.totalorder %s10, 1
    %p111 = por %p109, %p110
    %p112 = scmp.ne.s32.totalorder %s104, %s107
    %p113 = scmp.eq.s32.totalorder %s10, 0
    %p114 = por %p112, %p113
    %p115 = scmp.ne.s32.totalorder %s104, %s107
    %p116 = scmp.eq.s32.totalorder %s15, 1
    %p117 = por %p115, %p116
    %p118 = scmp.ne.s32.totalorder %s107, %s108
    %p119 = scmp.eq.s32.totalorder %s15, 0
    %p120 = por %p118, %p119
    %p121 = scmp.ne.s32.totalorder %s107, %s108
    %p122 = scmp.eq.s32.totalorder %s16, 1
    %p123 = por %p121, %p122
    %p125 = scmp.ne.s32.totalorder %s108, %s124
    %p126 = scmp.eq.s32.totalorder %s16, 0
    %p127 = por %p125, %p126
    %s128 = ssub.s32 %s17, %s29
    %s129 = ssub.s32 %s18, %s25
    %s130 = sor.u32 %s128, %s129
    %p131 = scmp.eq.s32.totalorder %s130, 0
    %s133 = sadd.s32 %s132, 1
    %s134 = scalar_select %p131, %s132, %s133
    %p137 = pneg %p131
    %p138 = scmp.eq.s32.totalorder %s10, 1
    %p139 = por %p137, %p138
    %p140 = scmp.ne.s32.totalorder %s132, %s135
    %p141 = scmp.eq.s32.totalorder %s10, 0
    %p142 = por %p140, %p141
    %p143 = scmp.ne.s32.totalorder %s132, %s135
    %p144 = scmp.eq.s32.totalorder %s15, 1
    %p145 = por %p143, %p144
    %p146 = scmp.ne.s32.totalorder %s135, %s136
    %p147 = scmp.eq.s32.totalorder %s15, 0
    %p148 = por %p146, %p147
    %p149 = scmp.ne.s32.totalorder %s135, %s136
    %p150 = scmp.eq.s32.totalorder %s16, 1
    %p151 = por %p149, %p150
    %p153 = scmp.ne.s32.totalorder %s136, %s152
    %p154 = scmp.eq.s32.totalorder %s16, 0
    %p155 = por %p153, %p154
    %p156 = scmp.le.s32.totalorder 1, %s10
    %p157 = scmp.lt.s32.totalorder %s10, 3
    %p158 = pnand %p156, %p157
    %p159 = pneg %p158
    // Predicated region
    $region9: #{_lambda_.32} parent=5 // pred_check
      _
    $region10: #{_lambda_.32} parent=5 // pred_check_branch
      %161 = sbr.rel (%p158) target = $region12
    $region11: #{_lambda_.32} parent=5 // pred_region
      %s162 = ssub.s32 %s10, 1
      // Predicated region
      $region13: #{_lambda_.32} parent=11 // pred_check
        %p163 = pneg %p71
      $region14: #{_lambda_.32} parent=11 // pred_check_branch
        %165 = sbr.rel (%p163) target = $region16
      $region15: #{_lambda_.32} parent=11 // pred_region
        _
      $region16: #{_lambda_.32} parent=11 // pred_fallthru
        _
      // Predicated region
      $region17: #{_lambda_.32} parent=11 // pred_check
        %p166 = pneg %p92
      $region18: #{_lambda_.32} parent=11 // pred_check_branch
        %168 = sbr.rel (%p166) target = $region20
      $region19: #{_lambda_.32} parent=11 // pred_region
        _
      $region20: #{_lambda_.32} parent=11 // pred_fallthru
        _
    $region12: #{_lambda_.32} parent=5 // pred_fallthru
      _
    %p169 = scmp.lt.s32.totalorder %s10, 2
    // Predicated region
    $region21: #{_lambda_.32} parent=5 // pred_check
      %p170 = pneg %p169
    $region22: #{_lambda_.32} parent=5 // pred_check_branch
      %172 = sbr.rel (%p170) target = $region24
    $region23: #{_lambda_.32} parent=5 // pred_region
      // Predicated region
      $region25: #{_lambda_.32} parent=23 // pred_check
        %p173 = pneg %p44
      $region26: #{_lambda_.32} parent=23 // pred_check_branch
        %175 = sbr.rel (%p173) target = $region28
      $region27: #{_lambda_.32} parent=23 // pred_region
        %s176 = smul.u32 8, %s18
        %p177 = scmp.lt.s32.totalorder %s17, 1
        %s178 = scalar_select %p177, %s17, 1
        %p179 = scmp.lt.s32.totalorder %s176, 7
        %s180 = scalar_select %p179, %s176, 7
        %s181 = smul.addr %s178, 8
        %s182 = sadd.s32 %s180, %s181
        %s183 = smul.addr %s182, 4
        %s184 = scalar_lea.vmem %s0, %s183
        %s185 = smul.u32 8, %s18
      $region28: #{_lambda_.32} parent=23 // pred_fallthru
        _
      // Predicated region
      $region29: #{_lambda_.32} parent=23 // pred_check
        %p186 = pneg %p114
      $region30: #{_lambda_.32} parent=23 // pred_check_branch
        %188 = sbr.rel (%p186) target = $region32
      $region31: #{_lambda_.32} parent=23 // pred_region
        %s189 = smul.u32 8, %s18
        %p190 = scmp.lt.s32.totalorder %s17, 1
        %s191 = scalar_select %p190, %s17, 1
        %p192 = scmp.lt.s32.totalorder %s189, 7
        %s193 = scalar_select %p192, %s189, 7
        %s194 = smul.addr %s191, 8
        %s195 = sadd.s32 %s193, %s194
        %s196 = smul.addr %s195, 4
        %s197 = scalar_lea.vmem %s3, %s196
        %s198 = smul.u32 8, %s18
      $region32: #{_lambda_.32} parent=23 // pred_fallthru
        _
    $region24: #{_lambda_.32} parent=5 // pred_fallthru
      _
    %p199 = scmp.le.s32.totalorder 1, %s10
    %p200 = scmp.lt.s32.totalorder %s10, 3
    %p201 = pnand %p199, %p200
    %p202 = pneg %p201
    // Predicated region
    $region33: #{_lambda_.32} parent=5 // pred_check
      _
    $region34: #{_lambda_.32} parent=5 // pred_check_branch
      %204 = sbr.rel (%p201) target = $region36
    $region35: #{_lambda_.32} parent=5 // pred_region
      %s205 = ssub.s32 %s10, 1
      %s206 = smul.u32 8, %s20
      %p207 = scmp.lt.s32.totalorder %s19, 1
      %s208 = scalar_select %p207, %s19, 1
      %p209 = scmp.lt.s32.totalorder %s206, 7
      %s210 = scalar_select %p209, %s206, 7
      %s211 = smul.addr %s208, 8
      %s212 = sadd.s32 %s210, %s211
      %s213 = smul.addr %s212, 4
      %s214 = scalar_lea.vmem %s0, %s213
      %p215 = pneg %p50
      %p216 = pneg %p47
      %p217 = pneg %p71
      %p218 = pneg %p68
      %p219 = pneg %p92
      %p220 = pneg %p89
      %s221 = smul.u32 8, %s20
      %p222 = scmp.lt.s32.totalorder %s19, 1
      %s223 = scalar_select %p222, %s19, 1
      %p224 = scmp.lt.s32.totalorder %s221, 7
      %s225 = scalar_select %p224, %s221, 7
      %s226 = smul.addr %s223, 8
      %s227 = sadd.s32 %s225, %s226
      %s228 = smul.addr %s227, 4
      %s229 = scalar_lea.vmem %s3, %s228
      %p230 = pneg %p120
      %p231 = pneg %p117
      %p232 = pneg %p148
      %p233 = pneg %p145
      %s234 = smul.u32 8, %s20
      %p235 = scmp.lt.s32.totalorder %s19, 1
      %s236 = scalar_select %p235, %s19, 1
      %p237 = scmp.lt.s32.totalorder %s234, 7
      %s238 = scalar_select %p237, %s234, 7
      %s239 = smul.addr %s236, 8
      %s240 = sadd.s32 %s238, %s239
      %s241 = smul.addr %s240, 4
      %s242 = scalar_lea.vmem %s4, %s241
      %s243 = smul.u32 8, %s20
      %p244 = scmp.lt.s32.totalorder %s19, 1
      %s245 = scalar_select %p244, %s19, 1
      %p246 = scmp.lt.s32.totalorder %s243, 7
      %s247 = scalar_select %p246, %s243, 7
      %s248 = smul.addr %s245, 8
      %s249 = sadd.s32 %s247, %s248
      %s250 = smul.addr %s249, 4
      %s251 = scalar_lea.vmem %s0, %s250
      %s252 = smul.u32 8, %s20
      %s253 = smul.u32 8, %s20
      %p254 = scmp.lt.s32.totalorder %s19, 1
      %s255 = scalar_select %p254, %s19, 1
      %p256 = scmp.lt.s32.totalorder %s253, 7
      %s257 = scalar_select %p256, %s253, 7
      %s258 = smul.addr %s255, 8
      %s259 = sadd.s32 %s257, %s258
      %s260 = smul.addr %s259, 4
      %s261 = scalar_lea.vmem %s3, %s260
      %s262 = smul.u32 8, %s20
      %s263 = smul.u32 8, %s20
      %p264 = scmp.lt.s32.totalorder %s19, 1
      %s265 = scalar_select %p264, %s19, 1
      %p266 = scmp.lt.s32.totalorder %s263, 7
      %s267 = scalar_select %p266, %s263, 7
      %s268 = smul.addr %s265, 8
      %s269 = sadd.s32 %s267, %s268
      %s270 = smul.addr %s269, 4
      %s271 = scalar_lea.vmem %s4, %s270
      %s272 = smul.u32 8, %s20
      %v274 = vld [vmem:[%s251] sm:$0xf]
      %v275 = vld [vmem:[%s251 + $0x4] sm:$0xf]
      %v276 = vld [vmem:[%s251 + $0x8] sm:$0xf]
      %v277 = vld [vmem:[%s251 + $0xc] sm:$0xf]
      %v278 = vld [vmem:[%s251 + $0x10] sm:$0xf]
      %v279 = vld [vmem:[%s251 + $0x14] sm:$0xf]
      %v280 = vld [vmem:[%s251 + $0x18] sm:$0xf]
      %v281 = vld [vmem:[%s251 + $0x1c] sm:$0xf]
      %v282 = vld [vmem:[%s1] sm:$0xf]
      %v283 = vld [vmem:[%s1 + $0x4] sm:$0xf]
      %v284 = vld [vmem:[%s1 + $0x8] sm:$0xf]
      %v285 = vld [vmem:[%s1 + $0xc] sm:$0xf]
      %v286 = vld [vmem:[%s1 + $0x10] sm:$0xf]
      %v287 = vld [vmem:[%s1 + $0x14] sm:$0xf]
      %v288 = vld [vmem:[%s1 + $0x18] sm:$0xf]
      %v289 = vld [vmem:[%s1 + $0x1c] sm:$0xf]
      %v290 = vld [vmem:[%s1 + $0x20] sm:$0xf]
      %v291 = vld [vmem:[%s1 + $0x24] sm:$0xf]
      %v292 = vld [vmem:[%s1 + $0x28] sm:$0xf]
      %v293 = vld [vmem:[%s1 + $0x2c] sm:$0xf]
      %v294 = vld [vmem:[%s1 + $0x30] sm:$0xf]
      %v295 = vld [vmem:[%s1 + $0x34] sm:$0xf]
      %v296 = vld [vmem:[%s1 + $0x38] sm:$0xf]
      %v297 = vld [vmem:[%s1 + $0x3c] sm:$0xf]
      %v298 = vld [vmem:[%s2] sm:$0x1]
      %v300 = vlaneseq
      %v301 = vshrl.u32 %v300, 7
      %v302 = vsub.s32 0, %v301
      %v303 = vrot.slane %v298, %v302
      %v313 = vunpack.c.l.b16 %v274
      %v314 = vunpack.c.l.b16 %v275
      %v315 = vunpack.c.l.b16 %v276
      %v316 = vunpack.c.l.b16 %v277
      %v317 = vunpack.c.l.b16 %v278
      %v318 = vunpack.c.l.b16 %v279
      %v319 = vunpack.c.l.b16 %v280
      %v320 = vunpack.c.l.b16 %v281
      %v321 = vpack.c.b16 %v314, %v313
      %v322 = vpack.c.b16 %v316, %v315
      %v323 = vpack.c.b16 %v318, %v317
      %v324 = vpack.c.b16 %v320, %v319
      %v345 = vunpack.c.l.b16 %v282
      %v346 = vunpack.c.l.b16 %v283
      %v347 = vunpack.c.l.b16 %v284
      %v348 = vunpack.c.l.b16 %v285
      %v349 = vunpack.c.l.b16 %v286
      %v350 = vunpack.c.l.b16 %v287
      %v351 = vunpack.c.l.b16 %v288
      %v352 = vunpack.c.l.b16 %v289
      %v353 = vunpack.c.l.b16 %v290
      %v354 = vunpack.c.l.b16 %v291
      %v355 = vunpack.c.l.b16 %v292
      %v356 = vunpack.c.l.b16 %v293
      %v357 = vunpack.c.l.b16 %v294
      %v358 = vunpack.c.l.b16 %v295
      %v359 = vunpack.c.l.b16 %v296
      %v360 = vunpack.c.l.b16 %v297
      %v361 = vpack.c.b16 %v346, %v345
      %v362 = vpack.c.b16 %v348, %v347
      %v363 = vpack.c.b16 %v350, %v349
      %v364 = vpack.c.b16 %v352, %v351
      %v365 = vpack.c.b16 %v354, %v353
      %v366 = vpack.c.b16 %v356, %v355
      %v367 = vpack.c.b16 %v358, %v357
      %v368 = vpack.c.b16 %v360, %v359
      %377 = vmatprep.subr.bf16.mxu0 0
      %378 = vmatpush1.bf16.msra.mxu0 %v361
      %379 = vmatprep.subr.bf16.mxu0 0
      %380 = vmatpush1.bf16.msra.mxu0 %v362
      %381 = vmatprep.subr.bf16.mxu0 0
      %382 = vmatpush1.bf16.msra.mxu0 %v363
      %383 = vmatprep.subr.bf16.mxu0 0
      %384 = vmatpush1.bf16.msra.mxu0 %v364
      %385 = vmatprep.subr.bf16.mxu0 0
      %386 = vmatpush1.bf16.msra.mxu0 %v365
      %387 = vmatprep.subr.bf16.mxu0 0
      %388 = vmatpush1.bf16.msra.mxu0 %v366
      %389 = vmatprep.subr.bf16.mxu0 0
      %390 = vmatpush1.bf16.msra.mxu0 %v367
      %391 = vmatprep.subr.bf16.mxu0 0
      %392 = vmatpush1.bf16.msra.mxu0 %v368
      %393 = vmatprep.subr.bf16.mxu0 0
      %394 = vmatpush1.bf16.msra.mxu0 0
      %395 = vmatprep.subr.bf16.mxu0 0
      %396 = vmatpush1.bf16.msra.mxu0 0
      %397 = vmatprep.subr.bf16.mxu0 0
      %398 = vmatpush1.bf16.msra.mxu0 0
      %399 = vmatprep.subr.bf16.mxu0 0
      %400 = vmatpush1.bf16.msra.mxu0 0
      %401 = vmatprep.subr.bf16.mxu0 0
      %402 = vmatpush1.bf16.msra.mxu0 0
      %403 = vmatprep.subr.bf16.mxu0 0
      %404 = vmatpush1.bf16.msra.mxu0 0
      %405 = vmatprep.subr.bf16.mxu0 0
      %406 = vmatpush1.bf16.msra.mxu0 0
      %407 = vmatprep.subr.bf16.mxu0 0
      %408 = vmatpush1.bf16.msra.mxu0 0
      %409 = vmatprep.mubr.bf16.mxu0 0
      %410 = vmatmul.mubr.bf16.gmra.mrb[0].mxu0 %v321
      %v411 = vpop.f32.mrb[0].mxu0
      %v412 = vadd.f32 %v303, %v411
      %v413 = vpop.f32.mrb[0].mxu0
      %v414 = vpop.f32.mrb[0].mxu0
      %v415 = vadd.f32 %v303, %v414
      %v416 = vpop.f32.mrb[0].mxu0
      %417 = vmatprep.mubr.bf16.mxu0 0
      %418 = vmatmul.mubr.bf16.gmra.mrb[0].mxu0 %v322
      %v419 = vpop.f32.mrb[0].mxu0
      %v420 = vadd.f32 %v303, %v419
      %v421 = vpop.f32.mrb[0].mxu0
      %v422 = vpop.f32.mrb[0].mxu0
      %v423 = vadd.f32 %v303, %v422
      %v424 = vpop.f32.mrb[0].mxu0
      %425 = vmatprep.mubr.bf16.mxu0 0
      %426 = vmatmul.mubr.bf16.gmra.mrb[0].mxu0 %v323
      %v427 = vpop.f32.mrb[0].mxu0
      %v428 = vadd.f32 %v303, %v427
      %v429 = vpop.f32.mrb[0].mxu0
      %v430 = vpop.f32.mrb[0].mxu0
      %v431 = vadd.f32 %v303, %v430
      %v432 = vpop.f32.mrb[0].mxu0
      %433 = vmatprep.mubr.bf16.mxu0 0
      %434 = vmatmul.mubr.bf16.gmra.mrb[0].mxu0 %v324
      %v435 = vpop.f32.mrb[0].mxu0
      %v436 = vadd.f32 %v303, %v435
      %v437 = vpop.f32.mrb[0].mxu0
      %v438 = vpop.f32.mrb[0].mxu0
      %v439 = vadd.f32 %v303, %v438
      %v440 = vpop.f32.mrb[0].mxu0
      %441 = vdwg.mxu0
      %v442 = vxor.u32 %v412, 2147483648
      %v443 = vxor.u32 %v415, 2147483648
      %v444 = vxor.u32 %v420, 2147483648
      %v445 = vxor.u32 %v423, 2147483648
      %v446 = vxor.u32 %v428, 2147483648
      %v447 = vxor.u32 %v431, 2147483648
      %v448 = vxor.u32 %v436, 2147483648
      %v449 = vxor.u32 %v439, 2147483648
      %v450 = vmul.f32 %v442, 1.442695
      %v451 = vpow.pop %v450
      %v452 = vmul.f32 %v443, 1.442695
      %v453 = vpow.pop %v452
      %v454 = vmul.f32 %v444, 1.442695
      %v455 = vpow.pop %v454
      %v456 = vmul.f32 %v445, 1.442695
      %v457 = vpow.pop %v456
      %v458 = vmul.f32 %v446, 1.442695
      %v459 = vpow.pop %v458
      %v460 = vmul.f32 %v447, 1.442695
      %v461 = vpow.pop %v460
      %v462 = vmul.f32 %v448, 1.442695
      %v463 = vpow.pop %v462
      %v464 = vmul.f32 %v449, 1.442695
      %v465 = vpow.pop %v464
      %v466 = vadd.f32 %v451, 1.0
      %v467 = vadd.f32 %v453, 1.0
      %v468 = vadd.f32 %v455, 1.0
      %v469 = vadd.f32 %v457, 1.0
      %v470 = vadd.f32 %v459, 1.0
      %v471 = vadd.f32 %v461, 1.0
      %v472 = vadd.f32 %v463, 1.0
      %v473 = vadd.f32 %v465, 1.0
      %v474 = vrcp.pop %v466
      %v475 = vmul.f32 1.0, %v474
      %v476 = vrcp.pop %v467
      %v477 = vmul.f32 1.0, %v476
      %v478 = vrcp.pop %v468
      %v479 = vmul.f32 1.0, %v478
      %v480 = vrcp.pop %v469
      %v481 = vmul.f32 1.0, %v480
      %v482 = vrcp.pop %v470
      %v483 = vmul.f32 1.0, %v482
      %v484 = vrcp.pop %v471
      %v485 = vmul.f32 1.0, %v484
      %v486 = vrcp.pop %v472
      %v487 = vmul.f32 1.0, %v486
      %v488 = vrcp.pop %v473
      %v489 = vmul.f32 1.0, %v488
      %v490 = vmul.f32 %v412, %v475
      %v491 = vmul.f32 %v415, %v477
      %v492 = vmul.f32 %v420, %v479
      %v493 = vmul.f32 %v423, %v481
      %v494 = vmul.f32 %v428, %v483
      %v495 = vmul.f32 %v431, %v485
      %v496 = vmul.f32 %v436, %v487
      %v497 = vmul.f32 %v439, %v489
      %v498 = vld [vmem:[%s261] sm:$0xf]
      %v499 = vld [vmem:[%s261 + $0x4] sm:$0xf]
      %v500 = vld [vmem:[%s261 + $0x8] sm:$0xf]
      %v501 = vld [vmem:[%s261 + $0xc] sm:$0xf]
      %v502 = vld [vmem:[%s261 + $0x10] sm:$0xf]
      %v503 = vld [vmem:[%s261 + $0x14] sm:$0xf]
      %v504 = vld [vmem:[%s261 + $0x18] sm:$0xf]
      %v505 = vld [vmem:[%s261 + $0x1c] sm:$0xf]
      %v506 = vunpack.c.l.bf16 %v498
      %v507 = vunpack.c.l.bf16 %v499
      %v508 = vunpack.c.l.bf16 %v500
      %v509 = vunpack.c.l.bf16 %v501
      %v510 = vunpack.c.l.bf16 %v502
      %v511 = vunpack.c.l.bf16 %v503
      %v512 = vunpack.c.l.bf16 %v504
      %v513 = vunpack.c.l.bf16 %v505
      %v514 = vadd.f32 %v490, %v506
      %v515 = vadd.f32 %v491, %v507
      %v516 = vadd.f32 %v492, %v508
      %v517 = vadd.f32 %v493, %v509
      %v518 = vadd.f32 %v494, %v510
      %v519 = vadd.f32 %v495, %v511
      %v520 = vadd.f32 %v496, %v512
      %v521 = vadd.f32 %v497, %v513
      %v522 = vpack.c.bf16 %v515, %v514
      %v523 = vpack.c.bf16 %v517, %v516
      %v524 = vpack.c.bf16 %v519, %v518
      %v525 = vpack.c.bf16 %v521, %v520
      %v530 = vunpack.c.l.b16 %v522
      %v531 = vunpack.c.h.b16 %v522
      %v532 = vunpack.c.l.b16 %v523
      %v533 = vunpack.c.h.b16 %v523
      %v534 = vunpack.c.l.b16 %v524
      %v535 = vunpack.c.h.b16 %v524
      %v536 = vunpack.c.l.b16 %v525
      %v537 = vunpack.c.h.b16 %v525
      %v538 = vpack.c.b16 %v530, %v530
      %v539 = vpack.c.b16 %v531, %v531
      %v540 = vpack.c.b16 %v532, %v532
      %v541 = vpack.c.b16 %v533, %v533
      %v542 = vpack.c.b16 %v534, %v534
      %v543 = vpack.c.b16 %v535, %v535
      %v544 = vpack.c.b16 %v536, %v536
      %v545 = vpack.c.b16 %v537, %v537
      %554 = vst [vmem:[%s271] sm:$0xf] %v538
      %555 = vst [vmem:[%s271 + $0x4] sm:$0xf] %v539
      %556 = vst [vmem:[%s271 + $0x8] sm:$0xf] %v540
      %557 = vst [vmem:[%s271 + $0xc] sm:$0xf] %v541
      %558 = vst [vmem:[%s271 + $0x10] sm:$0xf] %v542
      %559 = vst [vmem:[%s271 + $0x14] sm:$0xf] %v543
      %560 = vst [vmem:[%s271 + $0x18] sm:$0xf] %v544
      %561 = vst [vmem:[%s271 + $0x1c] sm:$0xf] %v545
      %s562 = smul.u32 8, %s20
      %p563 = scmp.lt.s32.totalorder %s19, 1
      %s564 = scalar_select %p563, %s19, 1
      %p565 = scmp.lt.s32.totalorder %s562, 7
      %s566 = scalar_select %p565, %s562, 7
      %s567 = smul.addr %s564, 8
      %s568 = sadd.s32 %s566, %s567
      %s569 = smul.addr %s568, 4
      %s570 = scalar_lea.vmem %s4, %s569
      // Predicated region
      $region37: #{_lambda_.32} parent=35 // pred_check
        %p571 = pneg %p145
      $region38: #{_lambda_.32} parent=35 // pred_check_branch
        %573 = sbr.rel (%p571) target = $region40
      $region39: #{_lambda_.32} parent=35 // pred_region
        %s574 = smul.u32 8, %s20
      $region40: #{_lambda_.32} parent=35 // pred_fallthru
        _
    $region36: #{_lambda_.32} parent=5 // pred_fallthru
      _
    %p575 = scmp.le.s32.totalorder 2, %s10
    // Predicated region
    $region41: #{_lambda_.32} parent=5 // pred_check
      %p576 = pneg %p575
    $region42: #{_lambda_.32} parent=5 // pred_check_branch
      %578 = sbr.rel (%p576) target = $region44
    $region43: #{_lambda_.32} parent=5 // pred_region
      %s579 = ssub.s32 %s10, 2
      // Predicated region
      $region45: #{_lambda_.32} parent=43 // pred_check
        %p580 = pneg %p151
      $region46: #{_lambda_.32} parent=43 // pred_check_branch
        %582 = sbr.rel (%p580) target = $region48
      $region47: #{_lambda_.32} parent=43 // pred_region
        %s583 = smul.u32 8, %s22
        %p584 = scmp.lt.s32.totalorder %s21, 1
        %s585 = scalar_select %p584, %s21, 1
        %p586 = scmp.lt.s32.totalorder %s583, 7
        %s587 = scalar_select %p586, %s583, 7
        %s588 = smul.addr %s585, 8
        %s589 = sadd.s32 %s587, %s588
        %s590 = smul.addr %s589, 4
        %s591 = scalar_lea.vmem %s4, %s590
      $region48: #{_lambda_.32} parent=43 // pred_fallthru
        _
    $region44: #{_lambda_.32} parent=5 // pred_fallthru
      _
  $region6: #{_lambda_.32} parent=0 // loop_footer
    %s14 = sadd.s32 1, %s10
  $region7: #{_lambda_.32} parent=0 // loop_footer_branch
    %9 = sbr.rel target = $region3
  $region8: #{_lambda_.32} parent=0 // loop_exit
    _

// kernel: _lambda_.34
$region0: #{_lambda_.34}
  #allocation0 [shape = 'u32[]', space=smem, size = 0x4, offset = 0x4, fixed_abs, tag = 'smem constant byte address 0x4 - core index']
  #allocation1 [shape = 'u32[144,128]{1,0:T(1,128)}', space=vmem, size = 0x12000, scoped, tag = 'internal scratch']
  %s0 = inlined_call_operand.vmem [shape: f32[6,8,128], index: 0, kind: input, shape index: {}]
  %s1 = inlined_call_operand.vmem [shape: f32[6,8,128], index: 1, kind: input, shape index: {}]
  %s2 = inlined_call_operand.vmem [shape: f32[6,8,128], index: 2, kind: input, shape index: {}]
  %s3 = inlined_call_operand.vmem [shape: f32[6,8,128], index: 3, kind: output, shape index: {}]
  %s4 = sld [smem:[#allocation0]]
  $region45: #{_lambda_.34} parent=0
    _
  %s6 = ssub.s32 1, %s4
  %s7 = scalar_select 0, %s6, %s4
  loop: start=0, step=1, limit=4
  $region2: #{_lambda_.34} parent=0 // loop_pre_header
    _
  $region3: #{_lambda_.34} parent=0 // loop_header
    %s9 = sphi 0, %s13
    %p10 = scmp.ge.s32.totalorder %s9, 4
    %s19 = sphi 0, %s21
    %s22 = sphi 0, %s19
    %s23 = sphi 0, %s22
    %s39 = sphi 0, %s23
    %s45 = sphi 0, %s47
    %s48 = sphi 0, %s45
    %s49 = sphi 0, %s48
    %s65 = sphi 0, %s49
    %s71 = sphi 0, %s73
    %s74 = sphi 0, %s71
    %s75 = sphi 0, %s74
    %s91 = sphi 0, %s75
    %s97 = sphi 0, %s99
    %s100 = sphi 0, %s97
    %s101 = sphi 0, %s100
    %s117 = sphi 0, %s101
  $region4: #{_lambda_.34} parent=0 // loop_header_branch
    %12 = sbr.rel (%p10) target = $region8
  $region5: #{_lambda_.34} parent=0 // loop_body
    %s14 = ssub.s32 %s9, 1
    %s15 = ssub.s32 %s9, 2
    %s16 = sadd.s32 %s9, 1
    %s17 = ssub.s32 %s9, %s16
    %p18 = scmp.eq.s32.totalorder %s17, 0
    %s20 = sadd.s32 %s19, 1
    %s21 = scalar_select %p18, %s19, %s20
    %p24 = pneg %p18
    %p25 = scmp.eq.s32.totalorder %s9, 1
    %p26 = por %p24, %p25
    %p27 = scmp.ne.s32.totalorder %s19, %s22
    %p28 = scmp.eq.s32.totalorder %s9, 0
    %p29 = por %p27, %p28
    %p30 = scmp.ne.s32.totalorder %s19, %s22
    %p31 = scmp.eq.s32.totalorder %s14, 1
    %p32 = por %p30, %p31
    %p33 = scmp.ne.s32.totalorder %s22, %s23
    %p34 = scmp.eq.s32.totalorder %s14, 0
    %p35 = por %p33, %p34
    %p36 = scmp.ne.s32.totalorder %s22, %s23
    %p37 = scmp.eq.s32.totalorder %s15, 1
    %p38 = por %p36, %p37
    %p40 = scmp.ne.s32.totalorder %s23, %s39
    %p41 = scmp.eq.s32.totalorder %s15, 0
    %p42 = por %p40, %p41
    %s43 = ssub.s32 %s9, %s16
    %p44 = scmp.eq.s32.totalorder %s43, 0
    %s46 = sadd.s32 %s45, 1
    %s47 = scalar_select %p44, %s45, %s46
    %p50 = pneg %p44
    %p51 = scmp.eq.s32.totalorder %s9, 1
    %p52 = por %p50, %p51
    %p53 = scmp.ne.s32.totalorder %s45, %s48
    %p54 = scmp.eq.s32.totalorder %s9, 0
    %p55 = por %p53, %p54
    %p56 = scmp.ne.s32.totalorder %s45, %s48
    %p57 = scmp.eq.s32.totalorder %s14, 1
    %p58 = por %p56, %p57
    %p59 = scmp.ne.s32.totalorder %s48, %s49
    %p60 = scmp.eq.s32.totalorder %s14, 0
    %p61 = por %p59, %p60
    %p62 = scmp.ne.s32.totalorder %s48, %s49
    %p63 = scmp.eq.s32.totalorder %s15, 1
    %p64 = por %p62, %p63
    %p66 = scmp.ne.s32.totalorder %s49, %s65
    %p67 = scmp.eq.s32.totalorder %s15, 0
    %p68 = por %p66, %p67
    %s69 = ssub.s32 %s9, %s16
    %p70 = scmp.eq.s32.totalorder %s69, 0
    %s72 = sadd.s32 %s71, 1
    %s73 = scalar_select %p70, %s71, %s72
    %p76 = pneg %p70
    %p77 = scmp.eq.s32.totalorder %s9, 1
    %p78 = por %p76, %p77
    %p79 = scmp.ne.s32.totalorder %s71, %s74
    %p80 = scmp.eq.s32.totalorder %s9, 0
    %p81 = por %p79, %p80
    %p82 = scmp.ne.s32.totalorder %s71, %s74
    %p83 = scmp.eq.s32.totalorder %s14, 1
    %p84 = por %p82, %p83
    %p85 = scmp.ne.s32.totalorder %s74, %s75
    %p86 = scmp.eq.s32.totalorder %s14, 0
    %p87 = por %p85, %p86
    %p88 = scmp.ne.s32.totalorder %s74, %s75
    %p89 = scmp.eq.s32.totalorder %s15, 1
    %p90 = por %p88, %p89
    %p92 = scmp.ne.s32.totalorder %s75, %s91
    %p93 = scmp.eq.s32.totalorder %s15, 0
    %p94 = por %p92, %p93
    %s95 = ssub.s32 %s9, %s16
    %p96 = scmp.eq.s32.totalorder %s95, 0
    %s98 = sadd.s32 %s97, 1
    %s99 = scalar_select %p96, %s97, %s98
    %p102 = pneg %p96
    %p103 = scmp.eq.s32.totalorder %s9, 1
    %p104 = por %p102, %p103
    %p105 = scmp.ne.s32.totalorder %s97, %s100
    %p106 = scmp.eq.s32.totalorder %s9, 0
    %p107 = por %p105, %p106
    %p108 = scmp.ne.s32.totalorder %s97, %s100
    %p109 = scmp.eq.s32.totalorder %s14, 1
    %p110 = por %p108, %p109
    %p111 = scmp.ne.s32.totalorder %s100, %s101
    %p112 = scmp.eq.s32.totalorder %s14, 0
    %p113 = por %p111, %p112
    %p114 = scmp.ne.s32.totalorder %s100, %s101
    %p115 = scmp.eq.s32.totalorder %s15, 1
    %p116 = por %p114, %p115
    %p118 = scmp.ne.s32.totalorder %s101, %s117
    %p119 = scmp.eq.s32.totalorder %s15, 0
    %p120 = por %p118, %p119
    %p121 = scmp.le.s32.totalorder 1, %s9
    %p122 = scmp.lt.s32.totalorder %s9, 3
    %p123 = pnand %p121, %p122
    %p124 = pneg %p123
    // Predicated region
    $region9: #{_lambda_.34} parent=5 // pred_check
      _
    $region10: #{_lambda_.34} parent=5 // pred_check_branch
      %126 = sbr.rel (%p123) target = $region12
    $region11: #{_lambda_.34} parent=5 // pred_region
      %s127 = ssub.s32 %s9, 1
    $region12: #{_lambda_.34} parent=5 // pred_fallthru
      _
    %p128 = scmp.lt.s32.totalorder %s9, 2
    // Predicated region
    $region13: #{_lambda_.34} parent=5 // pred_check
      %p129 = pneg %p128
    $region14: #{_lambda_.34} parent=5 // pred_check_branch
      %131 = sbr.rel (%p129) target = $region16
    $region15: #{_lambda_.34} parent=5 // pred_region
      // Predicated region
      $region17: #{_lambda_.34} parent=15 // pred_check
        %p132 = pneg %p29
      $region18: #{_lambda_.34} parent=15 // pred_check_branch
        %134 = sbr.rel (%p132) target = $region20
      $region19: #{_lambda_.34} parent=15 // pred_region
        %s135 = smul.u32 3, %s9
        %p136 = scmp.lt.s32.totalorder %s135, 5
        %s137 = scalar_select %p136, %s135, 5
        %s138 = smul.addr %s137, 8
        %s139 = scalar_lea.vmem %s0, %s138
        %s140 = smul.u32 3, %s9
      $region20: #{_lambda_.34} parent=15 // pred_fallthru
        _
      // Predicated region
      $region21: #{_lambda_.34} parent=15 // pred_check
        %p141 = pneg %p55
      $region22: #{_lambda_.34} parent=15 // pred_check_branch
        %143 = sbr.rel (%p141) target = $region24
      $region23: #{_lambda_.34} parent=15 // pred_region
        %s144 = smul.u32 3, %s9
        %p145 = scmp.lt.s32.totalorder %s144, 5
        %s146 = scalar_select %p145, %s144, 5
        %s147 = smul.addr %s146, 8
        %s148 = scalar_lea.vmem %s1, %s147
        %s149 = smul.u32 3, %s9
      $region24: #{_lambda_.34} parent=15 // pred_fallthru
        _
      // Predicated region
      $region25: #{_lambda_.34} parent=15 // pred_check
        %p150 = pneg %p81
      $region26: #{_lambda_.34} parent=15 // pred_check_branch
        %152 = sbr.rel (%p150) target = $region28
      $region27: #{_lambda_.34} parent=15 // pred_region
        %s153 = smul.u32 3, %s9
        %p154 = scmp.lt.s32.totalorder %s153, 5
        %s155 = scalar_select %p154, %s153, 5
        %s156 = smul.addr %s155, 8
        %s157 = scalar_lea.vmem %s2, %s156
        %s158 = smul.u32 3, %s9
      $region28: #{_lambda_.34} parent=15 // pred_fallthru
        _
    $region16: #{_lambda_.34} parent=5 // pred_fallthru
      _
    %p159 = scmp.le.s32.totalorder 1, %s9
    %p160 = scmp.lt.s32.totalorder %s9, 3
    %p161 = pnand %p159, %p160
    %p162 = pneg %p161
    // Predicated region
    $region29: #{_lambda_.34} parent=5 // pred_check
      _
    $region30: #{_lambda_.34} parent=5 // pred_check_branch
      %164 = sbr.rel (%p161) target = $region32
    $region31: #{_lambda_.34} parent=5 // pred_region
      %s165 = ssub.s32 %s9, 1
      %s166 = smul.u32 3, %s14
      %p167 = scmp.lt.s32.totalorder %s166, 5
      %s168 = scalar_select %p167, %s166, 5
      %s169 = smul.addr %s168, 8
      %s170 = scalar_lea.vmem %s0, %s169
      %p171 = pneg %p35
      %p172 = pneg %p32
      %s173 = smul.u32 3, %s14
      %p174 = scmp.lt.s32.totalorder %s173, 5
      %s175 = scalar_select %p174, %s173, 5
      %s176 = smul.addr %s175, 8
      %s177 = scalar_lea.vmem %s1, %s176
      %p178 = pneg %p61
      %p179 = pneg %p58
      %s180 = smul.u32 3, %s14
      %p181 = scmp.lt.s32.totalorder %s180, 5
      %s182 = scalar_select %p181, %s180, 5
      %s183 = smul.addr %s182, 8
      %s184 = scalar_lea.vmem %s2, %s183
      %p185 = pneg %p87
      %p186 = pneg %p84
      %p187 = pneg %p113
      %p188 = pneg %p110
      %s189 = smul.u32 3, %s14
      %p190 = scmp.lt.s32.totalorder %s189, 5
      %s191 = scalar_select %p190, %s189, 5
      %s192 = smul.addr %s191, 8
      %s193 = scalar_lea.vmem %s3, %s192
      %s194 = smul.u32 3, %s14
      %p195 = scmp.lt.s32.totalorder %s194, 5
      %s196 = scalar_select %p195, %s194, 5
      %s197 = smul.addr %s196, 8
      %s198 = scalar_lea.vmem %s0, %s197
      %s199 = smul.u32 3, %s14
      %s200 = smul.u32 3, %s14
      %p201 = scmp.lt.s32.totalorder %s200, 5
      %s202 = scalar_select %p201, %s200, 5
      %s203 = smul.addr %s202, 8
      %s204 = scalar_lea.vmem %s1, %s203
      %s205 = smul.u32 3, %s14
      %s206 = smul.u32 3, %s14
      %p207 = scmp.lt.s32.totalorder %s206, 5
      %s208 = scalar_select %p207, %s206, 5
      %s209 = smul.addr %s208, 8
      %s210 = scalar_lea.vmem %s2, %s209
      %s211 = smul.u32 3, %s14
      %s212 = smul.u32 3, %s14
      %p213 = scmp.lt.s32.totalorder %s212, 5
      %s214 = scalar_select %p213, %s212, 5
      %s215 = smul.addr %s214, 8
      %s216 = scalar_lea.vmem %s3, %s215
      %s217 = smul.u32 3, %s14
      %v219 = vld [vmem:[%s198] sm:$0xff]
      %v220 = vld [vmem:[%s198 + $0x8] sm:$0xff]
      %v221 = vld [vmem:[%s198 + $0x10] sm:$0xff]
      %v222 = vld [vmem:[%s204] sm:$0xff]
      %v223 = vld [vmem:[%s204 + $0x8] sm:$0xff]
      %v224 = vld [vmem:[%s204 + $0x10] sm:$0xff]
      %v225 = vld [vmem:[%s210] sm:$0xff]
      %v226 = vld [vmem:[%s210 + $0x8] sm:$0xff]
      %v227 = vld [vmem:[%s210 + $0x10] sm:$0xff]
      %v228 = vlaneseq
      %v229 = vshrl.u32 %v228, 7
      %v230 = vlaneseq
      %v231 = vand.u32 %v230, 127
      %vm232 = vcmp.lt.s32.totalorder %v229, 2
      %v233 = vsel %vm232, %v219, -1e+30
      %v234 = vsel %vm232, %v220, -1e+30
      %v235 = vsel %vm232, %v221, -1e+30
      %v236 = vrot.slane %v233, 4
      %v237 = vmax.f32 %v233, %v236
      %v238 = vrot.slane %v237, 2
      %v239 = vmax.f32 %v237, %v238
      %v240 = vrot.slane %v239, 1
      %v241 = vmax.f32 %v239, %v240
      %v242 = vrot.slane %v234, 4
      %v243 = vmax.f32 %v234, %v242
      %v244 = vrot.slane %v243, 2
      %v245 = vmax.f32 %v243, %v244
      %v246 = vrot.slane %v245, 1
      %v247 = vmax.f32 %v245, %v246
      %v248 = vrot.slane %v235, 4
      %v249 = vmax.f32 %v235, %v248
      %v250 = vrot.slane %v249, 2
      %v251 = vmax.f32 %v249, %v250
      %v252 = vrot.slane %v251, 1
      %v253 = vmax.f32 %v251, %v252
      %v254 = vsub.f32 %v233, %v241
      %v255 = vsub.f32 %v234, %v247
      %v256 = vsub.f32 %v235, %v253
      %v257 = vmul.f32 %v254, 1.442695
      %v258 = vpow.pop %v257
      %v259 = vmul.f32 %v255, 1.442695
      %v260 = vpow.pop %v259
      %v261 = vmul.f32 %v256, 1.442695
      %v262 = vpow.pop %v261
      %v263 = vrot.slane %v258, 4
      %v264 = vadd.f32 %v258, %v263
      %v265 = vrot.slane %v264, 2
      %v266 = vadd.f32 %v264, %v265
      %v267 = vrot.slane %v266, 1
      %v268 = vadd.f32 %v266, %v267
      %v269 = vrot.slane %v260, 4
      %v270 = vadd.f32 %v260, %v269
      %v271 = vrot.slane %v270, 2
      %v272 = vadd.f32 %v270, %v271
      %v273 = vrot.slane %v272, 1
      %v274 = vadd.f32 %v272, %v273
      %v275 = vrot.slane %v262, 4
      %v276 = vadd.f32 %v262, %v275
      %v277 = vrot.slane %v276, 2
      %v278 = vadd.f32 %v276, %v277
      %v279 = vrot.slane %v278, 1
      %v280 = vadd.f32 %v278, %v279
      %v281 = vrcp.pop %v268
      %v282 = vmul.f32 %v258, %v281
      %v283 = vrcp.pop %v274
      %v284 = vmul.f32 %v260, %v283
      %v285 = vrcp.pop %v280
      %v286 = vmul.f32 %v262, %v285
      %v287 = vmul.f32 %v282, 0.70710677
      %v288 = vmul.f32 %v284, 0.70710677
      %v289 = vmul.f32 %v286, 0.70710677
      %vm290 = vcmp.lt.s32.totalorder %v231, 64
      %v291 = vsel %vm290, %v222, -1e+30
      %v292 = vsel %vm290, %v223, -1e+30
      %v293 = vsel %vm290, %v224, -1e+30
      %294 = vmax.xlane.f32.xlu0 %v291
      %v295 = vpop.xlane.xlu0 %294
      %296 = vmax.xlane.f32.xlu0 %v292
      %v297 = vpop.xlane.xlu0 %296
      %298 = vmax.xlane.f32.xlu0 %v293
      %v299 = vpop.xlane.xlu0 %298
      %v300 = vsub.f32 %v291, %v295
      %v301 = vsub.f32 %v292, %v297
      %v302 = vsub.f32 %v293, %v299
      %v303 = vmul.f32 %v300, 1.442695
      %v304 = vpow.pop %v303
      %v305 = vmul.f32 %v301, 1.442695
      %v306 = vpow.pop %v305
      %v307 = vmul.f32 %v302, 1.442695
      %v308 = vpow.pop %v307
      %309 = vadd.xlane.f32.xlu0 %v304
      %v310 = vpop.xlane.xlu0 %309
      %311 = vadd.xlane.f32.xlu0 %v306
      %v312 = vpop.xlane.xlu0 %311
      %313 = vadd.xlane.f32.xlu0 %v308
      %v314 = vpop.xlane.xlu0 %313
      %v315 = vrcp.pop %v310
      %v316 = vmul.f32 %v304, %v315
      %v317 = vrcp.pop %v312
      %v318 = vmul.f32 %v306, %v317
      %v319 = vrcp.pop %v314
      %v320 = vmul.f32 %v308, %v319
      %v321 = vpack.c.bf16 %v287, %v287
      %v322 = vpack.c.bf16 %v288, %v288
      %v323 = vpack.c.bf16 %v289, %v289
      %v324 = vpack.c.bf16 %v316, %v316
      %v325 = vpack.c.bf16 %v318, %v318
      %v326 = vpack.c.bf16 %v320, %v320
      %v327 = vpack.c.bf16 %v225, %v225
      %v328 = vpack.c.bf16 %v226, %v226
      %v329 = vpack.c.bf16 %v227, %v227
      %330 = vmatprep.subr.bf16.mxu0 0
      %331 = vmatpush1.bf16.xpose.msra.mxu0 %v324
      %332 = vmatprep.subr.bf16.mxu0 0
      %333 = vmatpush1.bf16.xpose.msra.mxu0 0
      %334 = vmatprep.subr.bf16.mxu0 0
      %335 = vmatpush1.bf16.xpose.msra.mxu0 0
      %336 = vmatprep.subr.bf16.mxu0 0
      %337 = vmatpush1.bf16.xpose.msra.mxu0 0
      %338 = vmatprep.subr.bf16.mxu0 0
      %339 = vmatpush1.bf16.xpose.msra.mxu0 0
      %340 = vmatprep.subr.bf16.mxu0 0
      %341 = vmatpush1.bf16.xpose.msra.mxu0 0
      %342 = vmatprep.subr.bf16.mxu0 0
      %343 = vmatpush1.bf16.xpose.msra.mxu0 0
      %344 = vmatprep.subr.bf16.mxu0 0
      %345 = vmatpush1.bf16.xpose.msra.mxu0 0
      %346 = vmatprep.subr.bf16.mxu0 0
      %347 = vmatpush1.bf16.xpose.msra.mxu0 0
      %348 = vmatprep.subr.bf16.mxu0 0
      %349 = vmatpush1.bf16.xpose.msra.mxu0 0
      %350 = vmatprep.subr.bf16.mxu0 0
      %351 = vmatpush1.bf16.xpose.msra.mxu0 0
      %352 = vmatprep.subr.bf16.mxu0 0
      %353 = vmatpush1.bf16.xpose.msra.mxu0 0
      %354 = vmatprep.subr.bf16.mxu0 0
      %355 = vmatpush1.bf16.xpose.msra.mxu0 0
      %356 = vmatprep.subr.bf16.mxu0 0
      %357 = vmatpush1.bf16.xpose.msra.mxu0 0
      %358 = vmatprep.subr.bf16.mxu0 0
      %359 = vmatpush1.bf16.xpose.msra.mxu0 0
      %360 = vmatprep.subr.bf16.mxu0 0
      %361 = vmatpush1.bf16.xpose.msra.mxu0 0
      %362 = vmatprep.mubr.bf16.mxu0 0
      %363 = vmatmul.mubr.bf16.gmra.mrb[0].mxu0 %v327
      %v364 = vpop.f32.mrb[0].mxu0
      %v365 = vadd.f32 0.0, %v364
      %v366 = vpop.f32.mrb[0].mxu0
      %v367 = vpop.f32.mrb[0].mxu0
      %v368 = vpop.f32.mrb[0].mxu0
      %369 = vdwg.mxu0
      %370 = vmatprep.subr.bf16.mxu0 0
      %371 = vmatpush1.bf16.xpose.msra.mxu0 %v325
      %372 = vmatprep.subr.bf16.mxu0 0
      %373 = vmatpush1.bf16.xpose.msra.mxu0 0
      %374 = vmatprep.subr.bf16.mxu0 0
      %375 = vmatpush1.bf16.xpose.msra.mxu0 0
      %376 = vmatprep.subr.bf16.mxu0 0
      %377 = vmatpush1.bf16.xpose.msra.mxu0 0
      %378 = vmatprep.subr.bf16.mxu0 0
      %379 = vmatpush1.bf16.xpose.msra.mxu0 0
      %380 = vmatprep.subr.bf16.mxu0 0
      %381 = vmatpush1.bf16.xpose.msra.mxu0 0
      %382 = vmatprep.subr.bf16.mxu0 0
      %383 = vmatpush1.bf16.xpose.msra.mxu0 0
      %384 = vmatprep.subr.bf16.mxu0 0
      %385 = vmatpush1.bf16.xpose.msra.mxu0 0
      %386 = vmatprep.subr.bf16.mxu0 0
      %387 = vmatpush1.bf16.xpose.msra.mxu0 0
      %388 = vmatprep.subr.bf16.mxu0 0
      %389 = vmatpush1.bf16.xpose.msra.mxu0 0
      %390 = vmatprep.subr.bf16.mxu0 0
      %391 = vmatpush1.bf16.xpose.msra.mxu0 0
      %392 = vmatprep.subr.bf16.mxu0 0
      %393 = vmatpush1.bf16.xpose.msra.mxu0 0
      %394 = vmatprep.subr.bf16.mxu0 0
      %395 = vmatpush1.bf16.xpose.msra.mxu0 0
      %396 = vmatprep.subr.bf16.mxu0 0
      %397 = vmatpush1.bf16.xpose.msra.mxu0 0
      %398 = vmatprep.subr.bf16.mxu0 0
      %399 = vmatpush1.bf16.xpose.msra.mxu0 0
      %400 = vmatprep.subr.bf16.mxu0 0
      %401 = vmatpush1.bf16.xpose.msra.mxu0 0
      %402 = vmatprep.mubr.bf16.mxu0 0
      %403 = vmatmul.mubr.bf16.gmra.mrb[0].mxu0 %v328
      %v404 = vpop.f32.mrb[0].mxu0
      %v405 = vadd.f32 0.0, %v404
      %v406 = vpop.f32.mrb[0].mxu0
      %v407 = vpop.f32.mrb[0].mxu0
      %v408 = vpop.f32.mrb[0].mxu0
      %409 = vdwg.mxu0
      %410 = vmatprep.subr.bf16.mxu0 0
      %411 = vmatpush1.bf16.xpose.msra.mxu0 %v326
      %412 = vmatprep.subr.bf16.mxu0 0
      %413 = vmatpush1.bf16.xpose.msra.mxu0 0
      %414 = vmatprep.subr.bf16.mxu0 0
      %415 = vmatpush1.bf16.xpose.msra.mxu0 0
      %416 = vmatprep.subr.bf16.mxu0 0
      %417 = vmatpush1.bf16.xpose.msra.mxu0 0
      %418 = vmatprep.subr.bf16.mxu0 0
      %419 = vmatpush1.bf16.xpose.msra.mxu0 0
      %420 = vmatprep.subr.bf16.mxu0 0
      %421 = vmatpush1.bf16.xpose.msra.mxu0 0
      %422 = vmatprep.subr.bf16.mxu0 0
      %423 = vmatpush1.bf16.xpose.msra.mxu0 0
      %424 = vmatprep.subr.bf16.mxu0 0
      %425 = vmatpush1.bf16.xpose.msra.mxu0 0
      %426 = vmatprep.subr.bf16.mxu0 0
      %427 = vmatpush1.bf16.xpose.msra.mxu0 0
      %428 = vmatprep.subr.bf16.mxu0 0
      %429 = vmatpush1.bf16.xpose.msra.mxu0 0
      %430 = vmatprep.subr.bf16.mxu0 0
      %431 = vmatpush1.bf16.xpose.msra.mxu0 0
      %432 = vmatprep.subr.bf16.mxu0 0
      %433 = vmatpush1.bf16.xpose.msra.mxu0 0
      %434 = vmatprep.subr.bf16.mxu0 0
      %435 = vmatpush1.bf16.xpose.msra.mxu0 0
      %436 = vmatprep.subr.bf16.mxu0 0
      %437 = vmatpush1.bf16.xpose.msra.mxu0 0
      %438 = vmatprep.subr.bf16.mxu0 0
      %439 = vmatpush1.bf16.xpose.msra.mxu0 0
      %440 = vmatprep.subr.bf16.mxu0 0
      %441 = vmatpush1.bf16.xpose.msra.mxu0 0
      %442 = vmatprep.mubr.bf16.mxu0 0
      %443 = vmatmul.mubr.bf16.gmra.mrb[0].mxu0 %v329
      %v444 = vpop.f32.mrb[0].mxu0
      %v445 = vadd.f32 0.0, %v444
      %v446 = vpop.f32.mrb[0].mxu0
      %v447 = vpop.f32.mrb[0].mxu0
      %v448 = vpop.f32.mrb[0].mxu0
      %449 = vdwg.mxu0
      %v450 = vpack.c.bf16 %v365, %v365
      %v451 = vpack.c.bf16 %v405, %v405
      %v452 = vpack.c.bf16 %v445, %v445
      %vm453 = vcmask 64512
      %v455 = vsel %vm453, %v450, 0
      %vm457 = vcmask 1043456
      %v459 = vsel %vm457, %v321, 0
      %461 = vmatprep.subr.bf16.mxu0 0
      %462 = vmatpush1.bf16.msra.mxu0 %v459
      %463 = vmatprep.subr.bf16.mxu0 0
      %464 = vmatpush1.bf16.msra.mxu0 0
      %465 = vmatprep.subr.bf16.mxu0 0
      %466 = vmatpush1.bf16.msra.mxu0 0
      %467 = vmatprep.subr.bf16.mxu0 0
      %468 = vmatpush1.bf16.msra.mxu0 0
      %469 = vmatprep.subr.bf16.mxu0 0
      %470 = vmatpush1.bf16.msra.mxu0 0
      %471 = vmatprep.subr.bf16.mxu0 0
      %472 = vmatpush1.bf16.msra.mxu0 0
      %473 = vmatprep.subr.bf16.mxu0 0
      %474 = vmatpush1.bf16.msra.mxu0 0
      %475 = vmatprep.subr.bf16.mxu0 0
      %476 = vmatpush1.bf16.msra.mxu0 0
      %477 = vmatprep.subr.bf16.mxu0 0
      %478 = vmatpush1.bf16.msra.mxu0 0
      %479 = vmatprep.subr.bf16.mxu0 0
      %480 = vmatpush1.bf16.msra.mxu0 0
      %481 = vmatprep.subr.bf16.mxu0 0
      %482 = vmatpush1.bf16.msra.mxu0 0
      %483 = vmatprep.subr.bf16.mxu0 0
      %484 = vmatpush1.bf16.msra.mxu0 0
      %485 = vmatprep.subr.bf16.mxu0 0
      %486 = vmatpush1.bf16.msra.mxu0 0
      %487 = vmatprep.subr.bf16.mxu0 0
      %488 = vmatpush1.bf16.msra.mxu0 0
      %489 = vmatprep.subr.bf16.mxu0 0
      %490 = vmatpush1.bf16.msra.mxu0 0
      %491 = vmatprep.subr.bf16.mxu0 0
      %492 = vmatpush1.bf16.msra.mxu0 0
      %493 = vmatprep.mubr.bf16.mxu0 0
      %494 = vmatmul.mubr.bf16.gmra.mrb[0].mxu0 %v455
      %v495 = vpop.f32.mrb[0].mxu0
      %v496 = vadd.f32 0.0, %v495
      %v497 = vpop.f32.mrb[0].mxu0
      %v498 = vpop.f32.mrb[0].mxu0
      %v499 = vpop.f32.mrb[0].mxu0
      %500 = vdwg.mxu0
      %v502 = vsel %vm453, %v451, 0
      %v505 = vsel %vm457, %v322, 0
      %507 = vmatprep.subr.bf16.mxu0 0
      %508 = vmatpush1.bf16.msra.mxu0 %v505
      %509 = vmatprep.subr.bf16.mxu0 0
      %510 = vmatpush1.bf16.msra.mxu0 0
      %511 = vmatprep.subr.bf16.mxu0 0
      %512 = vmatpush1.bf16.msra.mxu0 0
      %513 = vmatprep.subr.bf16.mxu0 0
      %514 = vmatpush1.bf16.msra.mxu0 0
      %515 = vmatprep.subr.bf16.mxu0 0
      %516 = vmatpush1.bf16.msra.mxu0 0
      %517 = vmatprep.subr.bf16.mxu0 0
      %518 = vmatpush1.bf16.msra.mxu0 0
      %519 = vmatprep.subr.bf16.mxu0 0
      %520 = vmatpush1.bf16.msra.mxu0 0
      %521 = vmatprep.subr.bf16.mxu0 0
      %522 = vmatpush1.bf16.msra.mxu0 0
      %523 = vmatprep.subr.bf16.mxu0 0
      %524 = vmatpush1.bf16.msra.mxu0 0
      %525 = vmatprep.subr.bf16.mxu0 0
      %526 = vmatpush1.bf16.msra.mxu0 0
      %527 = vmatprep.subr.bf16.mxu0 0
      %528 = vmatpush1.bf16.msra.mxu0 0
      %529 = vmatprep.subr.bf16.mxu0 0
      %530 = vmatpush1.bf16.msra.mxu0 0
      %531 = vmatprep.subr.bf16.mxu0 0
      %532 = vmatpush1.bf16.msra.mxu0 0
      %533 = vmatprep.subr.bf16.mxu0 0
      %534 = vmatpush1.bf16.msra.mxu0 0
      %535 = vmatprep.subr.bf16.mxu0 0
      %536 = vmatpush1.bf16.msra.mxu0 0
      %537 = vmatprep.subr.bf16.mxu0 0
      %538 = vmatpush1.bf16.msra.mxu0 0
      %539 = vmatprep.mubr.bf16.mxu0 0
      %540 = vmatmul.mubr.bf16.gmra.mrb[0].mxu0 %v502
      %v541 = vpop.f32.mrb[0].mxu0
      %v542 = vadd.f32 0.0, %v541
      %v543 = vpop.f32.mrb[0].mxu0
      %v544 = vpop.f32.mrb[0].mxu0
      %v545 = vpop.f32.mrb[0].mxu0
      %546 = vdwg.mxu0
      %v548 = vsel %vm453, %v452, 0
      %v551 = vsel %vm457, %v323, 0
      %553 = vmatprep.subr.bf16.mxu0 0
      %554 = vmatpush1.bf16.msra.mxu0 %v551
      %555 = vmatprep.subr.bf16.mxu0 0
      %556 = vmatpush1.bf16.msra.mxu0 0
      %557 = vmatprep.subr.bf16.mxu0 0
      %558 = vmatpush1.bf16.msra.mxu0 0
      %559 = vmatprep.subr.bf16.mxu0 0
      %560 = vmatpush1.bf16.msra.mxu0 0
      %561 = vmatprep.subr.bf16.mxu0 0
      %562 = vmatpush1.bf16.msra.mxu0 0
      %563 = vmatprep.subr.bf16.mxu0 0
      %564 = vmatpush1.bf16.msra.mxu0 0
      %565 = vmatprep.subr.bf16.mxu0 0
      %566 = vmatpush1.bf16.msra.mxu0 0
      %567 = vmatprep.subr.bf16.mxu0 0
      %568 = vmatpush1.bf16.msra.mxu0 0
      %569 = vmatprep.subr.bf16.mxu0 0
      %570 = vmatpush1.bf16.msra.mxu0 0
      %571 = vmatprep.subr.bf16.mxu0 0
      %572 = vmatpush1.bf16.msra.mxu0 0
      %573 = vmatprep.subr.bf16.mxu0 0
      %574 = vmatpush1.bf16.msra.mxu0 0
      %575 = vmatprep.subr.bf16.mxu0 0
      %576 = vmatpush1.bf16.msra.mxu0 0
      %577 = vmatprep.subr.bf16.mxu0 0
      %578 = vmatpush1.bf16.msra.mxu0 0
      %579 = vmatprep.subr.bf16.mxu0 0
      %580 = vmatpush1.bf16.msra.mxu0 0
      %581 = vmatprep.subr.bf16.mxu0 0
      %582 = vmatpush1.bf16.msra.mxu0 0
      %583 = vmatprep.subr.bf16.mxu0 0
      %584 = vmatpush1.bf16.msra.mxu0 0
      %585 = vmatprep.mubr.bf16.mxu0 0
      %586 = vmatmul.mubr.bf16.gmra.mrb[0].mxu0 %v548
      %v587 = vpop.f32.mrb[0].mxu0
      %v588 = vadd.f32 0.0, %v587
      %v589 = vpop.f32.mrb[0].mxu0
      %v590 = vpop.f32.mrb[0].mxu0
      %v591 = vpop.f32.mrb[0].mxu0
      %592 = vdwg.mxu0
      %593 = vst [vmem:[%s216] sm:$0xff] %v496
      %594 = vst [vmem:[%s216 + $0x8] sm:$0xff] %v542
      %595 = vst [vmem:[%s216 + $0x10] sm:$0xff] %v588
      %s596 = smul.u32 3, %s14
      %p597 = scmp.lt.s32.totalorder %s596, 5
      %s598 = scalar_select %p597, %s596, 5
      %s599 = smul.addr %s598, 8
      %s600 = scalar_lea.vmem %s3, %s599
      // Predicated region
      $region33: #{_lambda_.34} parent=31 // pred_check
        %p601 = pneg %p110
      $region34: #{_lambda_.34} parent=31 // pred_check_branch
        %603 = sbr.rel (%p601) target = $region36
      $region35: #{_lambda_.34} parent=31 // pred_region
        %s604 = smul.u32 3, %s14
      $region36: #{_lambda_.34} parent=31 // pred_fallthru
        _
    $region32: #{_lambda_.34} parent=5 // pred_fallthru
      _
    %p605 = scmp.le.s32.totalorder 2, %s9
    // Predicated region
    $region37: #{_lambda_.34} parent=5 // pred_check
      %p606 = pneg %p605
    $region38: #{_lambda_.34} parent=5 // pred_check_branch
      %608 = sbr.rel (%p606) target = $region40
    $region39: #{_lambda_.34} parent=5 // pred_region
      %s609 = ssub.s32 %s9, 2
      // Predicated region
      $region41: #{_lambda_.34} parent=39 // pred_check
        %p610 = pneg %p116
      $region42: #{_lambda_.34} parent=39 // pred_check_branch
        %612 = sbr.rel (%p610) target = $region44
      $region43: #{_lambda_.34} parent=39 // pred_region
        %s613 = smul.u32 3, %s15
        %p614 = scmp.lt.s32.totalorder %s613, 5
        %s615 = scalar_select %p614, %s613, 5
        %s616 = smul.addr %s615, 8
        %s617 = scalar_lea.vmem %s3, %s616
      $region44: #{_lambda_.34} parent=39 // pred_fallthru
        _
    $region40: #{_lambda_.34} parent=5 // pred_fallthru
      _
  $region6: #{_lambda_.34} parent=0 // loop_footer
    %s13 = sadd.s32 1, %s9
  $region7: #{_lambda_.34} parent=0 // loop_footer_branch
    %8 = sbr.rel target = $region3
  $region8: #{_lambda_.34} parent=0 // loop_exit
    _

// kernel: _lambda_.35
$region0: #{_lambda_.35}
  #allocation0 [shape = 'u32[]', space=smem, size = 0x4, offset = 0x4, fixed_abs, tag = 'smem constant byte address 0x4 - core index']
  #allocation1 [shape = 'u32[144,128]{1,0:T(1,128)}', space=vmem, size = 0x12000, scoped, tag = 'internal scratch']
  %s0 = inlined_call_operand.vmem [shape: bf16[2,64,128], index: 0, kind: input, shape index: {}]
  %s1 = inlined_call_operand.vmem [shape: bf16[128,128], index: 1, kind: input, shape index: {}]
  %s2 = inlined_call_operand.vmem [shape: f32[1,128], index: 2, kind: input, shape index: {}]
  %s3 = inlined_call_operand.vmem [shape: bf16[2,64,128], index: 3, kind: input, shape index: {}]
  %s4 = inlined_call_operand.vmem [shape: bf16[2,64,128], index: 4, kind: output, shape index: {}]
  %s5 = sld [smem:[#allocation0]]
  $region49: #{_lambda_.35} parent=0
    _
  %s7 = ssub.s32 1, %s5
  %s8 = scalar_select 0, %s7, %s5
  loop: start=0, step=1, limit=4
  $region2: #{_lambda_.35} parent=0 // loop_pre_header
    _
  $region3: #{_lambda_.35} parent=0 // loop_header
    %s10 = sphi 0, %s14
    %p11 = scmp.ge.s32.totalorder %s10, 4
    %s17 = sphi 0, %s29
    %s18 = sphi 0, %s25
    %s19 = sphi 0, %s17
    %s20 = sphi 0, %s18
    %s21 = sphi 0, %s19
    %s22 = sphi 0, %s20
    %s34 = sphi 0, %s36
    %s37 = sphi 0, %s34
    %s38 = sphi 0, %s37
    %s54 = sphi 0, %s38
    %s58 = sphi 0, %s58
    %s60 = sphi 0, %s58
    %s61 = sphi 0, %s60
    %s75 = sphi 0, %s61
    %s79 = sphi 0, %s79
    %s81 = sphi 0, %s79
    %s82 = sphi 0, %s81
    %s96 = sphi 0, %s82
    %s104 = sphi 0, %s106
    %s107 = sphi 0, %s104
    %s108 = sphi 0, %s107
    %s124 = sphi 0, %s108
    %s132 = sphi 0, %s134
    %s135 = sphi 0, %s132
    %s136 = sphi 0, %s135
    %s152 = sphi 0, %s136
  $region4: #{_lambda_.35} parent=0 // loop_header_branch
    %13 = sbr.rel (%p11) target = $region8
  $region5: #{_lambda_.35} parent=0 // loop_body
    %s15 = ssub.s32 %s10, 1
    %s16 = ssub.s32 %s10, 2
    %s23 = sadd.s32 1, %s18
    %p24 = scmp.ge.s32.totalorder %s23, 1
    %s25 = scalar_select %p24, 0, %s23
    %s26 = sadd.s32 1, %s17
    %s27 = scalar_select %p24, %s26, %s17
    %p28 = scmp.ge.s32.totalorder %s27, 2
    %s29 = scalar_select %p28, 0, %s27
    %s30 = ssub.s32 %s17, %s29
    %s31 = ssub.s32 %s18, %s25
    %s32 = sor.u32 %s30, %s31
    %p33 = scmp.eq.s32.totalorder %s32, 0
    %s35 = sadd.s32 %s34, 1
    %s36 = scalar_select %p33, %s34, %s35
    %p39 = pneg %p33
    %p40 = scmp.eq.s32.totalorder %s10, 1
    %p41 = por %p39, %p40
    %p42 = scmp.ne.s32.totalorder %s34, %s37
    %p43 = scmp.eq.s32.totalorder %s10, 0
    %p44 = por %p42, %p43
    %p45 = scmp.ne.s32.totalorder %s34, %s37
    %p46 = scmp.eq.s32.totalorder %s15, 1
    %p47 = por %p45, %p46
    %p48 = scmp.ne.s32.totalorder %s37, %s38
    %p49 = scmp.eq.s32.totalorder %s15, 0
    %p50 = por %p48, %p49
    %p51 = scmp.ne.s32.totalorder %s37, %s38
    %p52 = scmp.eq.s32.totalorder %s16, 1
    %p53 = por %p51, %p52
    %p55 = scmp.ne.s32.totalorder %s38, %s54
    %p56 = scmp.eq.s32.totalorder %s16, 0
    %p57 = por %p55, %p56
    %s59 = sadd.s32 %s58, 1
    %p62 = scmp.eq.s32.totalorder %s10, 1
    %p63 = scmp.ne.s32.totalorder %s58, %s60
    %p64 = scmp.eq.s32.totalorder %s10, 0
    %p65 = por %p63, %p64
    %p66 = scmp.ne.s32.totalorder %s58, %s60
    %p67 = scmp.eq.s32.totalorder %s15, 1
    %p68 = por %p66, %p67
    %p69 = scmp.ne.s32.totalorder %s60, %s61
    %p70 = scmp.eq.s32.totalorder %s15, 0
    %p71 = por %p69, %p70
    %p72 = scmp.ne.s32.totalorder %s60, %s61
    %p73 = scmp.eq.s32.totalorder %s16, 1
    %p74 = por %p72, %p73
    %p76 = scmp.ne.s32.totalorder %s61, %s75
    %p77 = scmp.eq.s32.totalorder %s16, 0
    %p78 = por %p76, %p77
    %s80 = sadd.s32 %s79, 1
    %p83 = scmp.eq.s32.totalorder %s10, 1
    %p84 = scmp.ne.s32.totalorder %s79, %s81
    %p85 = scmp.eq.s32.totalorder %s10, 0
    %p86 = por %p84, %p85
    %p87 = scmp.ne.s32.totalorder %s79, %s81
    %p88 = scmp.eq.s32.totalorder %s15, 1
    %p89 = por %p87, %p88
    %p90 = scmp.ne.s32.totalorder %s81, %s82
    %p91 = scmp.eq.s32.totalorder %s15, 0
    %p92 = por %p90, %p91
    %p93 = scmp.ne.s32.totalorder %s81, %s82
    %p94 = scmp.eq.s32.totalorder %s16, 1
    %p95 = por %p93, %p94
    %p97 = scmp.ne.s32.totalorder %s82, %s96
    %p98 = scmp.eq.s32.totalorder %s16, 0
    %p99 = por %p97, %p98
    %s100 = ssub.s32 %s17, %s29
    %s101 = ssub.s32 %s18, %s25
    %s102 = sor.u32 %s100, %s101
    %p103 = scmp.eq.s32.totalorder %s102, 0
    %s105 = sadd.s32 %s104, 1
    %s106 = scalar_select %p103, %s104, %s105
    %p109 = pneg %p103
    %p110 = scmp.eq.s32.totalorder %s10, 1
    %p111 = por %p109, %p110
    %p112 = scmp.ne.s32.totalorder %s104, %s107
    %p113 = scmp.eq.s32.totalorder %s10, 0
    %p114 = por %p112, %p113
    %p115 = scmp.ne.s32.totalorder %s104, %s107
    %p116 = scmp.eq.s32.totalorder %s15, 1
    %p117 = por %p115, %p116
    %p118 = scmp.ne.s32.totalorder %s107, %s108
    %p119 = scmp.eq.s32.totalorder %s15, 0
    %p120 = por %p118, %p119
    %p121 = scmp.ne.s32.totalorder %s107, %s108
    %p122 = scmp.eq.s32.totalorder %s16, 1
    %p123 = por %p121, %p122
    %p125 = scmp.ne.s32.totalorder %s108, %s124
    %p126 = scmp.eq.s32.totalorder %s16, 0
    %p127 = por %p125, %p126
    %s128 = ssub.s32 %s17, %s29
    %s129 = ssub.s32 %s18, %s25
    %s130 = sor.u32 %s128, %s129
    %p131 = scmp.eq.s32.totalorder %s130, 0
    %s133 = sadd.s32 %s132, 1
    %s134 = scalar_select %p131, %s132, %s133
    %p137 = pneg %p131
    %p138 = scmp.eq.s32.totalorder %s10, 1
    %p139 = por %p137, %p138
    %p140 = scmp.ne.s32.totalorder %s132, %s135
    %p141 = scmp.eq.s32.totalorder %s10, 0
    %p142 = por %p140, %p141
    %p143 = scmp.ne.s32.totalorder %s132, %s135
    %p144 = scmp.eq.s32.totalorder %s15, 1
    %p145 = por %p143, %p144
    %p146 = scmp.ne.s32.totalorder %s135, %s136
    %p147 = scmp.eq.s32.totalorder %s15, 0
    %p148 = por %p146, %p147
    %p149 = scmp.ne.s32.totalorder %s135, %s136
    %p150 = scmp.eq.s32.totalorder %s16, 1
    %p151 = por %p149, %p150
    %p153 = scmp.ne.s32.totalorder %s136, %s152
    %p154 = scmp.eq.s32.totalorder %s16, 0
    %p155 = por %p153, %p154
    %p156 = scmp.le.s32.totalorder 1, %s10
    %p157 = scmp.lt.s32.totalorder %s10, 3
    %p158 = pnand %p156, %p157
    %p159 = pneg %p158
    // Predicated region
    $region9: #{_lambda_.35} parent=5 // pred_check
      _
    $region10: #{_lambda_.35} parent=5 // pred_check_branch
      %161 = sbr.rel (%p158) target = $region12
    $region11: #{_lambda_.35} parent=5 // pred_region
      %s162 = ssub.s32 %s10, 1
      // Predicated region
      $region13: #{_lambda_.35} parent=11 // pred_check
        %p163 = pneg %p71
      $region14: #{_lambda_.35} parent=11 // pred_check_branch
        %165 = sbr.rel (%p163) target = $region16
      $region15: #{_lambda_.35} parent=11 // pred_region
        _
      $region16: #{_lambda_.35} parent=11 // pred_fallthru
        _
      // Predicated region
      $region17: #{_lambda_.35} parent=11 // pred_check
        %p166 = pneg %p92
      $region18: #{_lambda_.35} parent=11 // pred_check_branch
        %168 = sbr.rel (%p166) target = $region20
      $region19: #{_lambda_.35} parent=11 // pred_region
        _
      $region20: #{_lambda_.35} parent=11 // pred_fallthru
        _
    $region12: #{_lambda_.35} parent=5 // pred_fallthru
      _
    %p169 = scmp.lt.s32.totalorder %s10, 2
    // Predicated region
    $region21: #{_lambda_.35} parent=5 // pred_check
      %p170 = pneg %p169
    $region22: #{_lambda_.35} parent=5 // pred_check_branch
      %172 = sbr.rel (%p170) target = $region24
    $region23: #{_lambda_.35} parent=5 // pred_region
      // Predicated region
      $region25: #{_lambda_.35} parent=23 // pred_check
        %p173 = pneg %p44
      $region26: #{_lambda_.35} parent=23 // pred_check_branch
        %175 = sbr.rel (%p173) target = $region28
      $region27: #{_lambda_.35} parent=23 // pred_region
        %s176 = smul.u32 8, %s18
        %p177 = scmp.lt.s32.totalorder %s17, 1
        %s178 = scalar_select %p177, %s17, 1
        %p179 = scmp.lt.s32.totalorder %s176, 7
        %s180 = scalar_select %p179, %s176, 7
        %s181 = smul.addr %s178, 8
        %s182 = sadd.s32 %s180, %s181
        %s183 = smul.addr %s182, 4
        %s184 = scalar_lea.vmem %s0, %s183
        %s185 = smul.u32 8, %s18
      $region28: #{_lambda_.35} parent=23 // pred_fallthru
        _
      // Predicated region
      $region29: #{_lambda_.35} parent=23 // pred_check
        %p186 = pneg %p114
      $region30: #{_lambda_.35} parent=23 // pred_check_branch
        %188 = sbr.rel (%p186) target = $region32
      $region31: #{_lambda_.35} parent=23 // pred_region
        %s189 = smul.u32 8, %s18
        %p190 = scmp.lt.s32.totalorder %s17, 1
        %s191 = scalar_select %p190, %s17, 1
        %p192 = scmp.lt.s32.totalorder %s189, 7
        %s193 = scalar_select %p192, %s189, 7
        %s194 = smul.addr %s191, 8
        %s195 = sadd.s32 %s193, %s194
        %s196 = smul.addr %s195, 4
        %s197 = scalar_lea.vmem %s3, %s196
        %s198 = smul.u32 8, %s18
      $region32: #{_lambda_.35} parent=23 // pred_fallthru
        _
    $region24: #{_lambda_.35} parent=5 // pred_fallthru
      _
    %p199 = scmp.le.s32.totalorder 1, %s10
    %p200 = scmp.lt.s32.totalorder %s10, 3
    %p201 = pnand %p199, %p200
    %p202 = pneg %p201
    // Predicated region
    $region33: #{_lambda_.35} parent=5 // pred_check
      _
    $region34: #{_lambda_.35} parent=5 // pred_check_branch
      %204 = sbr.rel (%p201) target = $region36
    $region35: #{_lambda_.35} parent=5 // pred_region
      %s205 = ssub.s32 %s10, 1
      %s206 = smul.u32 8, %s20
      %p207 = scmp.lt.s32.totalorder %s19, 1
      %s208 = scalar_select %p207, %s19, 1
      %p209 = scmp.lt.s32.totalorder %s206, 7
      %s210 = scalar_select %p209, %s206, 7
      %s211 = smul.addr %s208, 8
      %s212 = sadd.s32 %s210, %s211
      %s213 = smul.addr %s212, 4
      %s214 = scalar_lea.vmem %s0, %s213
      %p215 = pneg %p50
      %p216 = pneg %p47
      %p217 = pneg %p71
      %p218 = pneg %p68
      %p219 = pneg %p92
      %p220 = pneg %p89
      %s221 = smul.u32 8, %s20
      %p222 = scmp.lt.s32.totalorder %s19, 1
      %s223 = scalar_select %p222, %s19, 1
      %p224 = scmp.lt.s32.totalorder %s221, 7
      %s225 = scalar_select %p224, %s221, 7
      %s226 = smul.addr %s223, 8
      %s227 = sadd.s32 %s225, %s226
      %s228 = smul.addr %s227, 4
      %s229 = scalar_lea.vmem %s3, %s228
      %p230 = pneg %p120
      %p231 = pneg %p117
      %p232 = pneg %p148
      %p233 = pneg %p145
      %s234 = smul.u32 8, %s20
      %p235 = scmp.lt.s32.totalorder %s19, 1
      %s236 = scalar_select %p235, %s19, 1
      %p237 = scmp.lt.s32.totalorder %s234, 7
      %s238 = scalar_select %p237, %s234, 7
      %s239 = smul.addr %s236, 8
      %s240 = sadd.s32 %s238, %s239
      %s241 = smul.addr %s240, 4
      %s242 = scalar_lea.vmem %s4, %s241
      %s243 = smul.u32 8, %s20
      %p244 = scmp.lt.s32.totalorder %s19, 1
      %s245 = scalar_select %p244, %s19, 1
      %p246 = scmp.lt.s32.totalorder %s243, 7
      %s247 = scalar_select %p246, %s243, 7
      %s248 = smul.addr %s245, 8
      %s249 = sadd.s32 %s247, %s248
      %s250 = smul.addr %s249, 4
      %s251 = scalar_lea.vmem %s0, %s250
      %s252 = smul.u32 8, %s20
      %s253 = smul.u32 8, %s20
      %p254 = scmp.lt.s32.totalorder %s19, 1
      %s255 = scalar_select %p254, %s19, 1
      %p256 = scmp.lt.s32.totalorder %s253, 7
      %s257 = scalar_select %p256, %s253, 7
      %s258 = smul.addr %s255, 8
      %s259 = sadd.s32 %s257, %s258
      %s260 = smul.addr %s259, 4
      %s261 = scalar_lea.vmem %s3, %s260
      %s262 = smul.u32 8, %s20
      %s263 = smul.u32 8, %s20
      %p264 = scmp.lt.s32.totalorder %s19, 1
      %s265 = scalar_select %p264, %s19, 1
      %p266 = scmp.lt.s32.totalorder %s263, 7
      %s267 = scalar_select %p266, %s263, 7
      %s268 = smul.addr %s265, 8
      %s269 = sadd.s32 %s267, %s268
      %s270 = smul.addr %s269, 4
      %s271 = scalar_lea.vmem %s4, %s270
      %s272 = smul.u32 8, %s20
      %v274 = vld [vmem:[%s251] sm:$0xf]
      %v275 = vld [vmem:[%s251 + $0x4] sm:$0xf]
      %v276 = vld [vmem:[%s251 + $0x8] sm:$0xf]
      %v277 = vld [vmem:[%s251 + $0xc] sm:$0xf]
      %v278 = vld [vmem:[%s251 + $0x10] sm:$0xf]
      %v279 = vld [vmem:[%s251 + $0x14] sm:$0xf]
      %v280 = vld [vmem:[%s251 + $0x18] sm:$0xf]
      %v281 = vld [vmem:[%s251 + $0x1c] sm:$0xf]
      %v282 = vld [vmem:[%s1] sm:$0xf]
      %v283 = vld [vmem:[%s1 + $0x4] sm:$0xf]
      %v284 = vld [vmem:[%s1 + $0x8] sm:$0xf]
      %v285 = vld [vmem:[%s1 + $0xc] sm:$0xf]
      %v286 = vld [vmem:[%s1 + $0x10] sm:$0xf]
      %v287 = vld [vmem:[%s1 + $0x14] sm:$0xf]
      %v288 = vld [vmem:[%s1 + $0x18] sm:$0xf]
      %v289 = vld [vmem:[%s1 + $0x1c] sm:$0xf]
      %v290 = vld [vmem:[%s1 + $0x20] sm:$0xf]
      %v291 = vld [vmem:[%s1 + $0x24] sm:$0xf]
      %v292 = vld [vmem:[%s1 + $0x28] sm:$0xf]
      %v293 = vld [vmem:[%s1 + $0x2c] sm:$0xf]
      %v294 = vld [vmem:[%s1 + $0x30] sm:$0xf]
      %v295 = vld [vmem:[%s1 + $0x34] sm:$0xf]
      %v296 = vld [vmem:[%s1 + $0x38] sm:$0xf]
      %v297 = vld [vmem:[%s1 + $0x3c] sm:$0xf]
      %v298 = vld [vmem:[%s2] sm:$0x1]
      %v300 = vlaneseq
      %v301 = vshrl.u32 %v300, 7
      %v302 = vsub.s32 0, %v301
      %v303 = vrot.slane %v298, %v302
      %v313 = vunpack.c.l.b16 %v274
      %v314 = vunpack.c.l.b16 %v275
      %v315 = vunpack.c.l.b16 %v276
      %v316 = vunpack.c.l.b16 %v277
      %v317 = vunpack.c.l.b16 %v278
      %v318 = vunpack.c.l.b16 %v279
      %v319 = vunpack.c.l.b16 %v280
      %v320 = vunpack.c.l.b16 %v281
      %v321 = vpack.c.b16 %v314, %v313
      %v322 = vpack.c.b16 %v316, %v315
      %v323 = vpack.c.b16 %v318, %v317
      %v324 = vpack.c.b16 %v320, %v319
      %v345 = vunpack.c.l.b16 %v282
      %v346 = vunpack.c.l.b16 %v283
      %v347 = vunpack.c.l.b16 %v284
      %v348 = vunpack.c.l.b16 %v285
      %v349 = vunpack.c.l.b16 %v286
      %v350 = vunpack.c.l.b16 %v287
      %v351 = vunpack.c.l.b16 %v288
      %v352 = vunpack.c.l.b16 %v289
      %v353 = vunpack.c.l.b16 %v290
      %v354 = vunpack.c.l.b16 %v291
      %v355 = vunpack.c.l.b16 %v292
      %v356 = vunpack.c.l.b16 %v293
      %v357 = vunpack.c.l.b16 %v294
      %v358 = vunpack.c.l.b16 %v295
      %v359 = vunpack.c.l.b16 %v296
      %v360 = vunpack.c.l.b16 %v297
      %v361 = vpack.c.b16 %v346, %v345
      %v362 = vpack.c.b16 %v348, %v347
      %v363 = vpack.c.b16 %v350, %v349
      %v364 = vpack.c.b16 %v352, %v351
      %v365 = vpack.c.b16 %v354, %v353
      %v366 = vpack.c.b16 %v356, %v355
      %v367 = vpack.c.b16 %v358, %v357
      %v368 = vpack.c.b16 %v360, %v359
      %377 = vmatprep.subr.bf16.mxu0 0
      %378 = vmatpush1.bf16.msra.mxu0 %v361
      %379 = vmatprep.subr.bf16.mxu0 0
      %380 = vmatpush1.bf16.msra.mxu0 %v362
      %381 = vmatprep.subr.bf16.mxu0 0
      %382 = vmatpush1.bf16.msra.mxu0 %v363
      %383 = vmatprep.subr.bf16.mxu0 0
      %384 = vmatpush1.bf16.msra.mxu0 %v364
      %385 = vmatprep.subr.bf16.mxu0 0
      %386 = vmatpush1.bf16.msra.mxu0 %v365
      %387 = vmatprep.subr.bf16.mxu0 0
      %388 = vmatpush1.bf16.msra.mxu0 %v366
      %389 = vmatprep.subr.bf16.mxu0 0
      %390 = vmatpush1.bf16.msra.mxu0 %v367
      %391 = vmatprep.subr.bf16.mxu0 0
      %392 = vmatpush1.bf16.msra.mxu0 %v368
      %393 = vmatprep.subr.bf16.mxu0 0
      %394 = vmatpush1.bf16.msra.mxu0 0
      %395 = vmatprep.subr.bf16.mxu0 0
      %396 = vmatpush1.bf16.msra.mxu0 0
      %397 = vmatprep.subr.bf16.mxu0 0
      %398 = vmatpush1.bf16.msra.mxu0 0
      %399 = vmatprep.subr.bf16.mxu0 0
      %400 = vmatpush1.bf16.msra.mxu0 0
      %401 = vmatprep.subr.bf16.mxu0 0
      %402 = vmatpush1.bf16.msra.mxu0 0
      %403 = vmatprep.subr.bf16.mxu0 0
      %404 = vmatpush1.bf16.msra.mxu0 0
      %405 = vmatprep.subr.bf16.mxu0 0
      %406 = vmatpush1.bf16.msra.mxu0 0
      %407 = vmatprep.subr.bf16.mxu0 0
      %408 = vmatpush1.bf16.msra.mxu0 0
      %409 = vmatprep.mubr.bf16.mxu0 0
      %410 = vmatmul.mubr.bf16.gmra.mrb[0].mxu0 %v321
      %v411 = vpop.f32.mrb[0].mxu0
      %v412 = vadd.f32 %v303, %v411
      %v413 = vpop.f32.mrb[0].mxu0
      %v414 = vpop.f32.mrb[0].mxu0
      %v415 = vadd.f32 %v303, %v414
      %v416 = vpop.f32.mrb[0].mxu0
      %417 = vmatprep.mubr.bf16.mxu0 0
      %418 = vmatmul.mubr.bf16.gmra.mrb[0].mxu0 %v322
      %v419 = vpop.f32.mrb[0].mxu0
      %v420 = vadd.f32 %v303, %v419
      %v421 = vpop.f32.mrb[0].mxu0
      %v422 = vpop.f32.mrb[0].mxu0
      %v423 = vadd.f32 %v303, %v422
      %v424 = vpop.f32.mrb[0].mxu0
      %425 = vmatprep.mubr.bf16.mxu0 0
      %426 = vmatmul.mubr.bf16.gmra.mrb[0].mxu0 %v323
      %v427 = vpop.f32.mrb[0].mxu0
      %v428 = vadd.f32 %v303, %v427
      %v429 = vpop.f32.mrb[0].mxu0
      %v430 = vpop.f32.mrb[0].mxu0
      %v431 = vadd.f32 %v303, %v430
      %v432 = vpop.f32.mrb[0].mxu0
      %433 = vmatprep.mubr.bf16.mxu0 0
      %434 = vmatmul.mubr.bf16.gmra.mrb[0].mxu0 %v324
      %v435 = vpop.f32.mrb[0].mxu0
      %v436 = vadd.f32 %v303, %v435
      %v437 = vpop.f32.mrb[0].mxu0
      %v438 = vpop.f32.mrb[0].mxu0
      %v439 = vadd.f32 %v303, %v438
      %v440 = vpop.f32.mrb[0].mxu0
      %441 = vdwg.mxu0
      %v442 = vld [vmem:[%s261] sm:$0xf]
      %v443 = vld [vmem:[%s261 + $0x4] sm:$0xf]
      %v444 = vld [vmem:[%s261 + $0x8] sm:$0xf]
      %v445 = vld [vmem:[%s261 + $0xc] sm:$0xf]
      %v446 = vld [vmem:[%s261 + $0x10] sm:$0xf]
      %v447 = vld [vmem:[%s261 + $0x14] sm:$0xf]
      %v448 = vld [vmem:[%s261 + $0x18] sm:$0xf]
      %v449 = vld [vmem:[%s261 + $0x1c] sm:$0xf]
      %v450 = vunpack.c.l.bf16 %v442
      %v451 = vunpack.c.l.bf16 %v443
      %v452 = vunpack.c.l.bf16 %v444
      %v453 = vunpack.c.l.bf16 %v445
      %v454 = vunpack.c.l.bf16 %v446
      %v455 = vunpack.c.l.bf16 %v447
      %v456 = vunpack.c.l.bf16 %v448
      %v457 = vunpack.c.l.bf16 %v449
      %v458 = vadd.f32 %v412, %v450
      %v459 = vadd.f32 %v415, %v451
      %v460 = vadd.f32 %v420, %v452
      %v461 = vadd.f32 %v423, %v453
      %v462 = vadd.f32 %v428, %v454
      %v463 = vadd.f32 %v431, %v455
      %v464 = vadd.f32 %v436, %v456
      %v465 = vadd.f32 %v439, %v457
      %v466 = vpack.c.bf16 %v459, %v458
      %v467 = vpack.c.bf16 %v461, %v460
      %v468 = vpack.c.bf16 %v463, %v462
      %v469 = vpack.c.bf16 %v465, %v464
      %v474 = vunpack.c.l.b16 %v466
      %v475 = vunpack.c.h.b16 %v466
      %v476 = vunpack.c.l.b16 %v467
      %v477 = vunpack.c.h.b16 %v467
      %v478 = vunpack.c.l.b16 %v468
      %v479 = vunpack.c.h.b16 %v468
      %v480 = vunpack.c.l.b16 %v469
      %v481 = vunpack.c.h.b16 %v469
      %v482 = vpack.c.b16 %v474, %v474
      %v483 = vpack.c.b16 %v475, %v475
      %v484 = vpack.c.b16 %v476, %v476
      %v485 = vpack.c.b16 %v477, %v477
      %v486 = vpack.c.b16 %v478, %v478
      %v487 = vpack.c.b16 %v479, %v479
      %v488 = vpack.c.b16 %v480, %v480
      %v489 = vpack.c.b16 %v481, %v481
      %498 = vst [vmem:[%s271] sm:$0xf] %v482
      %499 = vst [vmem:[%s271 + $0x4] sm:$0xf] %v483
      %500 = vst [vmem:[%s271 + $0x8] sm:$0xf] %v484
      %501 = vst [vmem:[%s271 + $0xc] sm:$0xf] %v485
      %502 = vst [vmem:[%s271 + $0x10] sm:$0xf] %v486
      %503 = vst [vmem:[%s271 + $0x14] sm:$0xf] %v487
      %504 = vst [vmem:[%s271 + $0x18] sm:$0xf] %v488
      %505 = vst [vmem:[%s271 + $0x1c] sm:$0xf] %v489
      %s506 = smul.u32 8, %s20
      %p507 = scmp.lt.s32.totalorder %s19, 1
      %s508 = scalar_select %p507, %s19, 1
      %p509 = scmp.lt.s32.totalorder %s506, 7
      %s510 = scalar_select %p509, %s506, 7
      %s511 = smul.addr %s508, 8
      %s512 = sadd.s32 %s510, %s511
      %s513 = smul.addr %s512, 4
      %s514 = scalar_lea.vmem %s4, %s513
      // Predicated region
      $region37: #{_lambda_.35} parent=35 // pred_check
        %p515 = pneg %p145
      $region38: #{_lambda_.35} parent=35 // pred_check_branch
        %517 = sbr.rel (%p515) target = $region40
      $region39: #{_lambda_.35} parent=35 // pred_region
        %s518 = smul.u32 8, %s20
      $region40: #{_lambda_.35} parent=35 // pred_fallthru
        _
    $region36: #{_lambda_.35} parent=5 // pred_fallthru
      _
    %p519 = scmp.le.s32.totalorder 2, %s10
    // Predicated region
    $region41: #{_lambda_.35} parent=5 // pred_check
      %p520 = pneg %p519
    $region42: #{_lambda_.35} parent=5 // pred_check_branch
      %522 = sbr.rel (%p520) target = $region44
    $region43: #{_lambda_.35} parent=5 // pred_region
      %s523 = ssub.s32 %s10, 2
      // Predicated region
      $region45: #{_lambda_.35} parent=43 // pred_check
        %p524 = pneg %p151
      $region46: #{_lambda_.35} parent=43 // pred_check_branch
        %526 = sbr.rel (%p524) target = $region48
      $region47: #{_lambda_.35} parent=43 // pred_region
        %s527 = smul.u32 8, %s22
        %p528 = scmp.lt.s32.totalorder %s21, 1
        %s529 = scalar_select %p528, %s21, 1
        %p530 = scmp.lt.s32.totalorder %s527, 7
        %s531 = scalar_select %p530, %s527, 7
        %s532 = smul.addr %s529, 8
        %s533 = sadd.s32 %s531, %s532
        %s534 = smul.addr %s533, 4
        %s535 = scalar_lea.vmem %s4, %s534
      $region48: #{_lambda_.35} parent=43 // pred_fallthru
        _
    $region44: #{_lambda_.35} parent=5 // pred_fallthru
      _
  $region6: #{_lambda_.35} parent=0 // loop_footer
    %s14 = sadd.s32 1, %s10
  $region7: #{_lambda_.35} parent=0 // loop_footer_branch
    %9 = sbr.rel target = $region3
  $region8: #{_lambda_.35} parent=0 // loop_exit
    _

// kernel: _lambda_.36
$region0: #{_lambda_.36}
  #allocation0 [shape = 'u32[]', space=smem, size = 0x4, offset = 0x4, fixed_abs, tag = 'smem constant byte address 0x4 - core index']
  #allocation1 [shape = 'u32[144,128]{1,0:T(1,128)}', space=vmem, size = 0x12000, scoped, tag = 'internal scratch']
  %s0 = inlined_call_operand.vmem [shape: bf16[2,16,128], index: 0, kind: input, shape index: {}]
  %s1 = inlined_call_operand.vmem [shape: bf16[128,128], index: 1, kind: input, shape index: {}]
  %s2 = inlined_call_operand.vmem [shape: f32[1,128], index: 2, kind: input, shape index: {}]
  %s3 = inlined_call_operand.vmem [shape: bf16[2,16,128], index: 3, kind: output, shape index: {}]
  %s4 = sld [smem:[#allocation0]]
  $region45: #{_lambda_.36} parent=0
    _
  %s6 = ssub.s32 1, %s4
  %s7 = scalar_select 0, %s6, %s4
  loop: start=0, step=1, limit=4
  $region2: #{_lambda_.36} parent=0 // loop_pre_header
    _
  $region3: #{_lambda_.36} parent=0 // loop_header
    %s9 = sphi 0, %s13
    %p10 = scmp.ge.s32.totalorder %s9, 4
    %s16 = sphi 0, %s28
    %s17 = sphi 0, %s24
    %s18 = sphi 0, %s16
    %s19 = sphi 0, %s17
    %s20 = sphi 0, %s18
    %s21 = sphi 0, %s19
    %s33 = sphi 0, %s35
    %s36 = sphi 0, %s33
    %s37 = sphi 0, %s36
    %s53 = sphi 0, %s37
    %s57 = sphi 0, %s57
    %s59 = sphi 0, %s57
    %s60 = sphi 0, %s59
    %s74 = sphi 0, %s60
    %s78 = sphi 0, %s78
    %s80 = sphi 0, %s78
    %s81 = sphi 0, %s80
    %s95 = sphi 0, %s81
    %s103 = sphi 0, %s105
    %s106 = sphi 0, %s103
    %s107 = sphi 0, %s106
    %s123 = sphi 0, %s107
  $region4: #{_lambda_.36} parent=0 // loop_header_branch
    %12 = sbr.rel (%p10) target = $region8
  $region5: #{_lambda_.36} parent=0 // loop_body
    %s14 = ssub.s32 %s9, 1
    %s15 = ssub.s32 %s9, 2
    %s22 = sadd.s32 1, %s17
    %p23 = scmp.ge.s32.totalorder %s22, 1
    %s24 = scalar_select %p23, 0, %s22
    %s25 = sadd.s32 1, %s16
    %s26 = scalar_select %p23, %s25, %s16
    %p27 = scmp.ge.s32.totalorder %s26, 2
    %s28 = scalar_select %p27, 0, %s26
    %s29 = ssub.s32 %s16, %s28
    %s30 = ssub.s32 %s17, %s24
    %s31 = sor.u32 %s29, %s30
    %p32 = scmp.eq.s32.totalorder %s31, 0
    %s34 = sadd.s32 %s33, 1
    %s35 = scalar_select %p32, %s33, %s34
    %p38 = pneg %p32
    %p39 = scmp.eq.s32.totalorder %s9, 1
    %p40 = por %p38, %p39
    %p41 = scmp.ne.s32.totalorder %s33, %s36
    %p42 = scmp.eq.s32.totalorder %s9, 0
    %p43 = por %p41, %p42
    %p44 = scmp.ne.s32.totalorder %s33, %s36
    %p45 = scmp.eq.s32.totalorder %s14, 1
    %p46 = por %p44, %p45
    %p47 = scmp.ne.s32.totalorder %s36, %s37
    %p48 = scmp.eq.s32.totalorder %s14, 0
    %p49 = por %p47, %p48
    %p50 = scmp.ne.s32.totalorder %s36, %s37
    %p51 = scmp.eq.s32.totalorder %s15, 1
    %p52 = por %p50, %p51
    %p54 = scmp.ne.s32.totalorder %s37, %s53
    %p55 = scmp.eq.s32.totalorder %s15, 0
    %p56 = por %p54, %p55
    %s58 = sadd.s32 %s57, 1
    %p61 = scmp.eq.s32.totalorder %s9, 1
    %p62 = scmp.ne.s32.totalorder %s57, %s59
    %p63 = scmp.eq.s32.totalorder %s9, 0
    %p64 = por %p62, %p63
    %p65 = scmp.ne.s32.totalorder %s57, %s59
    %p66 = scmp.eq.s32.totalorder %s14, 1
    %p67 = por %p65, %p66
    %p68 = scmp.ne.s32.totalorder %s59, %s60
    %p69 = scmp.eq.s32.totalorder %s14, 0
    %p70 = por %p68, %p69
    %p71 = scmp.ne.s32.totalorder %s59, %s60
    %p72 = scmp.eq.s32.totalorder %s15, 1
    %p73 = por %p71, %p72
    %p75 = scmp.ne.s32.totalorder %s60, %s74
    %p76 = scmp.eq.s32.totalorder %s15, 0
    %p77 = por %p75, %p76
    %s79 = sadd.s32 %s78, 1
    %p82 = scmp.eq.s32.totalorder %s9, 1
    %p83 = scmp.ne.s32.totalorder %s78, %s80
    %p84 = scmp.eq.s32.totalorder %s9, 0
    %p85 = por %p83, %p84
    %p86 = scmp.ne.s32.totalorder %s78, %s80
    %p87 = scmp.eq.s32.totalorder %s14, 1
    %p88 = por %p86, %p87
    %p89 = scmp.ne.s32.totalorder %s80, %s81
    %p90 = scmp.eq.s32.totalorder %s14, 0
    %p91 = por %p89, %p90
    %p92 = scmp.ne.s32.totalorder %s80, %s81
    %p93 = scmp.eq.s32.totalorder %s15, 1
    %p94 = por %p92, %p93
    %p96 = scmp.ne.s32.totalorder %s81, %s95
    %p97 = scmp.eq.s32.totalorder %s15, 0
    %p98 = por %p96, %p97
    %s99 = ssub.s32 %s16, %s28
    %s100 = ssub.s32 %s17, %s24
    %s101 = sor.u32 %s99, %s100
    %p102 = scmp.eq.s32.totalorder %s101, 0
    %s104 = sadd.s32 %s103, 1
    %s105 = scalar_select %p102, %s103, %s104
    %p108 = pneg %p102
    %p109 = scmp.eq.s32.totalorder %s9, 1
    %p110 = por %p108, %p109
    %p111 = scmp.ne.s32.totalorder %s103, %s106
    %p112 = scmp.eq.s32.totalorder %s9, 0
    %p113 = por %p111, %p112
    %p114 = scmp.ne.s32.totalorder %s103, %s106
    %p115 = scmp.eq.s32.totalorder %s14, 1
    %p116 = por %p114, %p115
    %p117 = scmp.ne.s32.totalorder %s106, %s107
    %p118 = scmp.eq.s32.totalorder %s14, 0
    %p119 = por %p117, %p118
    %p120 = scmp.ne.s32.totalorder %s106, %s107
    %p121 = scmp.eq.s32.totalorder %s15, 1
    %p122 = por %p120, %p121
    %p124 = scmp.ne.s32.totalorder %s107, %s123
    %p125 = scmp.eq.s32.totalorder %s15, 0
    %p126 = por %p124, %p125
    %p127 = scmp.le.s32.totalorder 1, %s9
    %p128 = scmp.lt.s32.totalorder %s9, 3
    %p129 = pnand %p127, %p128
    %p130 = pneg %p129
    // Predicated region
    $region9: #{_lambda_.36} parent=5 // pred_check
      _
    $region10: #{_lambda_.36} parent=5 // pred_check_branch
      %132 = sbr.rel (%p129) target = $region12
    $region11: #{_lambda_.36} parent=5 // pred_region
      %s133 = ssub.s32 %s9, 1
      // Predicated region
      $region13: #{_lambda_.36} parent=11 // pred_check
        %p134 = pneg %p70
      $region14: #{_lambda_.36} parent=11 // pred_check_branch
        %136 = sbr.rel (%p134) target = $region16
      $region15: #{_lambda_.36} parent=11 // pred_region
        _
      $region16: #{_lambda_.36} parent=11 // pred_fallthru
        _
      // Predicated region
      $region17: #{_lambda_.36} parent=11 // pred_check
        %p137 = pneg %p91
      $region18: #{_lambda_.36} parent=11 // pred_check_branch
        %139 = sbr.rel (%p137) target = $region20
      $region19: #{_lambda_.36} parent=11 // pred_region
        _
      $region20: #{_lambda_.36} parent=11 // pred_fallthru
        _
    $region12: #{_lambda_.36} parent=5 // pred_fallthru
      _
    %p140 = scmp.lt.s32.totalorder %s9, 2
    // Predicated region
    $region21: #{_lambda_.36} parent=5 // pred_check
      %p141 = pneg %p140
    $region22: #{_lambda_.36} parent=5 // pred_check_branch
      %143 = sbr.rel (%p141) target = $region24
    $region23: #{_lambda_.36} parent=5 // pred_region
      // Predicated region
      $region25: #{_lambda_.36} parent=23 // pred_check
        %p144 = pneg %p43
      $region26: #{_lambda_.36} parent=23 // pred_check_branch
        %146 = sbr.rel (%p144) target = $region28
      $region27: #{_lambda_.36} parent=23 // pred_region
        %s147 = smul.u32 2, %s17
        %p148 = scmp.lt.s32.totalorder %s16, 1
        %s149 = scalar_select %p148, %s16, 1
        %p150 = scmp.lt.s32.totalorder %s147, 1
        %s151 = scalar_select %p150, %s147, 1
        %s152 = smul.addr %s149, 2
        %s153 = sadd.s32 %s151, %s152
        %s154 = smul.addr %s153, 4
        %s155 = scalar_lea.vmem %s0, %s154
        %s156 = smul.u32 2, %s17
      $region28: #{_lambda_.36} parent=23 // pred_fallthru
        _
    $region24: #{_lambda_.36} parent=5 // pred_fallthru
      _
    %p157 = scmp.le.s32.totalorder 1, %s9
    %p158 = scmp.lt.s32.totalorder %s9, 3
    %p159 = pnand %p157, %p158
    %p160 = pneg %p159
    // Predicated region
    $region29: #{_lambda_.36} parent=5 // pred_check
      _
    $region30: #{_lambda_.36} parent=5 // pred_check_branch
      %162 = sbr.rel (%p159) target = $region32
    $region31: #{_lambda_.36} parent=5 // pred_region
      %s163 = ssub.s32 %s9, 1
      %s164 = smul.u32 2, %s19
      %p165 = scmp.lt.s32.totalorder %s18, 1
      %s166 = scalar_select %p165, %s18, 1
      %p167 = scmp.lt.s32.totalorder %s164, 1
      %s168 = scalar_select %p167, %s164, 1
      %s169 = smul.addr %s166, 2
      %s170 = sadd.s32 %s168, %s169
      %s171 = smul.addr %s170, 4
      %s172 = scalar_lea.vmem %s0, %s171
      %p173 = pneg %p49
      %p174 = pneg %p46
      %p175 = pneg %p70
      %p176 = pneg %p67
      %p177 = pneg %p91
      %p178 = pneg %p88
      %p179 = pneg %p119
      %p180 = pneg %p116
      %s181 = smul.u32 2, %s19
      %p182 = scmp.lt.s32.totalorder %s18, 1
      %s183 = scalar_select %p182, %s18, 1
      %p184 = scmp.lt.s32.totalorder %s181, 1
      %s185 = scalar_select %p184, %s181, 1
      %s186 = smul.addr %s183, 2
      %s187 = sadd.s32 %s185, %s186
      %s188 = smul.addr %s187, 4
      %s189 = scalar_lea.vmem %s3, %s188
      %s190 = smul.u32 2, %s19
      %p191 = scmp.lt.s32.totalorder %s18, 1
      %s192 = scalar_select %p191, %s18, 1
      %p193 = scmp.lt.s32.totalorder %s190, 1
      %s194 = scalar_select %p193, %s190, 1
      %s195 = smul.addr %s192, 2
      %s196 = sadd.s32 %s194, %s195
      %s197 = smul.addr %s196, 4
      %s198 = scalar_lea.vmem %s0, %s197
      %s199 = smul.u32 2, %s19
      %s200 = smul.u32 2, %s19
      %p201 = scmp.lt.s32.totalorder %s18, 1
      %s202 = scalar_select %p201, %s18, 1
      %p203 = scmp.lt.s32.totalorder %s200, 1
      %s204 = scalar_select %p203, %s200, 1
      %s205 = smul.addr %s202, 2
      %s206 = sadd.s32 %s204, %s205
      %s207 = smul.addr %s206, 4
      %s208 = scalar_lea.vmem %s3, %s207
      %s209 = smul.u32 2, %s19
      %v211 = vld [vmem:[%s198] sm:$0xf]
      %v212 = vld [vmem:[%s198 + $0x4] sm:$0xf]
      %v213 = vld [vmem:[%s1] sm:$0xf]
      %v214 = vld [vmem:[%s1 + $0x4] sm:$0xf]
      %v215 = vld [vmem:[%s1 + $0x8] sm:$0xf]
      %v216 = vld [vmem:[%s1 + $0xc] sm:$0xf]
      %v217 = vld [vmem:[%s1 + $0x10] sm:$0xf]
      %v218 = vld [vmem:[%s1 + $0x14] sm:$0xf]
      %v219 = vld [vmem:[%s1 + $0x18] sm:$0xf]
      %v220 = vld [vmem:[%s1 + $0x1c] sm:$0xf]
      %v221 = vld [vmem:[%s1 + $0x20] sm:$0xf]
      %v222 = vld [vmem:[%s1 + $0x24] sm:$0xf]
      %v223 = vld [vmem:[%s1 + $0x28] sm:$0xf]
      %v224 = vld [vmem:[%s1 + $0x2c] sm:$0xf]
      %v225 = vld [vmem:[%s1 + $0x30] sm:$0xf]
      %v226 = vld [vmem:[%s1 + $0x34] sm:$0xf]
      %v227 = vld [vmem:[%s1 + $0x38] sm:$0xf]
      %v228 = vld [vmem:[%s1 + $0x3c] sm:$0xf]
      %v229 = vld [vmem:[%s2] sm:$0x1]
      %v231 = vlaneseq
      %v232 = vshrl.u32 %v231, 7
      %v233 = vsub.s32 0, %v232
      %v234 = vrot.slane %v229, %v233
      %v238 = vunpack.c.l.b16 %v211
      %v239 = vunpack.c.l.b16 %v212
      %v240 = vpack.c.b16 %v239, %v238
      %v258 = vunpack.c.l.b16 %v213
      %v259 = vunpack.c.l.b16 %v214
      %v260 = vunpack.c.l.b16 %v215
      %v261 = vunpack.c.l.b16 %v216
      %v262 = vunpack.c.l.b16 %v217
      %v263 = vunpack.c.l.b16 %v218
      %v264 = vunpack.c.l.b16 %v219
      %v265 = vunpack.c.l.b16 %v220
      %v266 = vunpack.c.l.b16 %v221
      %v267 = vunpack.c.l.b16 %v222
      %v268 = vunpack.c.l.b16 %v223
      %v269 = vunpack.c.l.b16 %v224
      %v270 = vunpack.c.l.b16 %v225
      %v271 = vunpack.c.l.b16 %v226
      %v272 = vunpack.c.l.b16 %v227
      %v273 = vunpack.c.l.b16 %v228
      %v274 = vpack.c.b16 %v259, %v258
      %v275 = vpack.c.b16 %v261, %v260
      %v276 = vpack.c.b16 %v263, %v262
      %v277 = vpack.c.b16 %v265, %v264
      %v278 = vpack.c.b16 %v267, %v266
      %v279 = vpack.c.b16 %v269, %v268
      %v280 = vpack.c.b16 %v271, %v270
      %v281 = vpack.c.b16 %v273, %v272
      %290 = vmatprep.subr.bf16.mxu0 0
      %291 = vmatpush1.bf16.msra.mxu0 %v274
      %292 = vmatprep.subr.bf16.mxu0 0
      %293 = vmatpush1.bf16.msra.mxu0 %v275
      %294 = vmatprep.subr.bf16.mxu0 0
      %295 = vmatpush1.bf16.msra.mxu0 %v276
      %296 = vmatprep.subr.bf16.mxu0 0
      %297 = vmatpush1.bf16.msra.mxu0 %v277
      %298 = vmatprep.subr.bf16.mxu0 0
      %299 = vmatpush1.bf16.msra.mxu0 %v278
      %300 = vmatprep.subr.bf16.mxu0 0
      %301 = vmatpush1.bf16.msra.mxu0 %v279
      %302 = vmatprep.subr.bf16.mxu0 0
      %303 = vmatpush1.bf16.msra.mxu0 %v280
      %304 = vmatprep.subr.bf16.mxu0 0
      %305 = vmatpush1.bf16.msra.mxu0 %v281
      %306 = vmatprep.subr.bf16.mxu0 0
      %307 = vmatpush1.bf16.msra.mxu0 0
      %308 = vmatprep.subr.bf16.mxu0 0
      %309 = vmatpush1.bf16.msra.mxu0 0
      %310 = vmatprep.subr.bf16.mxu0 0
      %311 = vmatpush1.bf16.msra.mxu0 0
      %312 = vmatprep.subr.bf16.mxu0 0
      %313 = vmatpush1.bf16.msra.mxu0 0
      %314 = vmatprep.subr.bf16.mxu0 0
      %315 = vmatpush1.bf16.msra.mxu0 0
      %316 = vmatprep.subr.bf16.mxu0 0
      %317 = vmatpush1.bf16.msra.mxu0 0
      %318 = vmatprep.subr.bf16.mxu0 0
      %319 = vmatpush1.bf16.msra.mxu0 0
      %320 = vmatprep.subr.bf16.mxu0 0
      %321 = vmatpush1.bf16.msra.mxu0 0
      %322 = vmatprep.mubr.bf16.mxu0 0
      %323 = vmatmul.mubr.bf16.gmra.mrb[0].mxu0 %v240
      %v324 = vpop.f32.mrb[0].mxu0
      %v325 = vadd.f32 %v234, %v324
      %v326 = vpop.f32.mrb[0].mxu0
      %v327 = vpop.f32.mrb[0].mxu0
      %v328 = vadd.f32 %v234, %v327
      %v329 = vpop.f32.mrb[0].mxu0
      %330 = vdwg.mxu0
      %v331 = vpack.c.bf16 %v328, %v325
      %v333 = vunpack.c.l.b16 %v331
      %v334 = vunpack.c.h.b16 %v331
      %v335 = vpack.c.b16 %v333, %v333
      %v336 = vpack.c.b16 %v334, %v334
      %339 = vst [vmem:[%s208] sm:$0xf] %v335
      %340 = vst [vmem:[%s208 + $0x4] sm:$0xf] %v336
      %s341 = smul.u32 2, %s19
      %p342 = scmp.lt.s32.totalorder %s18, 1
      %s343 = scalar_select %p342, %s18, 1
      %p344 = scmp.lt.s32.totalorder %s341, 1
      %s345 = scalar_select %p344, %s341, 1
      %s346 = smul.addr %s343, 2
      %s347 = sadd.s32 %s345, %s346
      %s348 = smul.addr %s347, 4
      %s349 = scalar_lea.vmem %s3, %s348
      // Predicated region
      $region33: #{_lambda_.36} parent=31 // pred_check
        %p350 = pneg %p116
      $region34: #{_lambda_.36} parent=31 // pred_check_branch
        %352 = sbr.rel (%p350) target = $region36
      $region35: #{_lambda_.36} parent=31 // pred_region
        %s353 = smul.u32 2, %s19
      $region36: #{_lambda_.36} parent=31 // pred_fallthru
        _
    $region32: #{_lambda_.36} parent=5 // pred_fallthru
      _
    %p354 = scmp.le.s32.totalorder 2, %s9
    // Predicated region
    $region37: #{_lambda_.36} parent=5 // pred_check
      %p355 = pneg %p354
    $region38: #{_lambda_.36} parent=5 // pred_check_branch
      %357 = sbr.rel (%p355) target = $region40
    $region39: #{_lambda_.36} parent=5 // pred_region
      %s358 = ssub.s32 %s9, 2
      // Predicated region
      $region41: #{_lambda_.36} parent=39 // pred_check
        %p359 = pneg %p122
      $region42: #{_lambda_.36} parent=39 // pred_check_branch
        %361 = sbr.rel (%p359) target = $region44
      $region43: #{_lambda_.36} parent=39 // pred_region
        %s362 = smul.u32 2, %s21
        %p363 = scmp.lt.s32.totalorder %s20, 1
        %s364 = scalar_select %p363, %s20, 1
        %p365 = scmp.lt.s32.totalorder %s362, 1
        %s366 = scalar_select %p365, %s362, 1
        %s367 = smul.addr %s364, 2
        %s368 = sadd.s32 %s366, %s367
        %s369 = smul.addr %s368, 4
        %s370 = scalar_lea.vmem %s3, %s369
      $region44: #{_lambda_.36} parent=39 // pred_fallthru
        _
    $region40: #{_lambda_.36} parent=5 // pred_fallthru
      _
  $region6: #{_lambda_.36} parent=0 // loop_footer
    %s13 = sadd.s32 1, %s9
  $region7: #{_lambda_.36} parent=0 // loop_footer_branch
    %8 = sbr.rel target = $region3
  $region8: #{_lambda_.36} parent=0 // loop_exit
    _

// kernel: _lambda_.39
$region0: #{_lambda_.39}
  #allocation0 [shape = 'u32[]', space=smem, size = 0x4, offset = 0x4, fixed_abs, tag = 'smem constant byte address 0x4 - core index']
  #allocation1 [shape = 'u32[144,128]{1,0:T(1,128)}', space=vmem, size = 0x12000, scoped, tag = 'internal scratch']
  %s0 = inlined_call_operand.vmem [shape: bf16[2,16,128], index: 0, kind: input, shape index: {}]
  %s1 = inlined_call_operand.vmem [shape: bf16[128,128], index: 1, kind: input, shape index: {}]
  %s2 = inlined_call_operand.vmem [shape: f32[1,128], index: 2, kind: input, shape index: {}]
  %s3 = inlined_call_operand.vmem [shape: bf16[2,1,128], index: 3, kind: input, shape index: {}]
  %s4 = inlined_call_operand.vmem [shape: bf16[2,16,128], index: 4, kind: output, shape index: {}]
  %s5 = sld [smem:[#allocation0]]
  $region49: #{_lambda_.39} parent=0
    _
  %s7 = ssub.s32 1, %s5
  %s8 = scalar_select 0, %s7, %s5
  loop: start=0, step=1, limit=4
  $region2: #{_lambda_.39} parent=0 // loop_pre_header
    _
  $region3: #{_lambda_.39} parent=0 // loop_header
    %s10 = sphi 0, %s14
    %p11 = scmp.ge.s32.totalorder %s10, 4
    %s17 = sphi 0, %s29
    %s18 = sphi 0, %s25
    %s19 = sphi 0, %s17
    %s20 = sphi 0, %s18
    %s21 = sphi 0, %s19
    %s22 = sphi 0, %s20
    %s34 = sphi 0, %s36
    %s37 = sphi 0, %s34
    %s38 = sphi 0, %s37
    %s54 = sphi 0, %s38
    %s58 = sphi 0, %s58
    %s60 = sphi 0, %s58
    %s61 = sphi 0, %s60
    %s75 = sphi 0, %s61
    %s79 = sphi 0, %s79
    %s81 = sphi 0, %s79
    %s82 = sphi 0, %s81
    %s96 = sphi 0, %s82
    %s102 = sphi 0, %s104
    %s105 = sphi 0, %s102
    %s106 = sphi 0, %s105
    %s122 = sphi 0, %s106
    %s130 = sphi 0, %s132
    %s133 = sphi 0, %s130
    %s134 = sphi 0, %s133
    %s150 = sphi 0, %s134
  $region4: #{_lambda_.39} parent=0 // loop_header_branch
    %13 = sbr.rel (%p11) target = $region8
  $region5: #{_lambda_.39} parent=0 // loop_body
    %s15 = ssub.s32 %s10, 1
    %s16 = ssub.s32 %s10, 2
    %s23 = sadd.s32 1, %s18
    %p24 = scmp.ge.s32.totalorder %s23, 1
    %s25 = scalar_select %p24, 0, %s23
    %s26 = sadd.s32 1, %s17
    %s27 = scalar_select %p24, %s26, %s17
    %p28 = scmp.ge.s32.totalorder %s27, 2
    %s29 = scalar_select %p28, 0, %s27
    %s30 = ssub.s32 %s17, %s29
    %s31 = ssub.s32 %s18, %s25
    %s32 = sor.u32 %s30, %s31
    %p33 = scmp.eq.s32.totalorder %s32, 0
    %s35 = sadd.s32 %s34, 1
    %s36 = scalar_select %p33, %s34, %s35
    %p39 = pneg %p33
    %p40 = scmp.eq.s32.totalorder %s10, 1
    %p41 = por %p39, %p40
    %p42 = scmp.ne.s32.totalorder %s34, %s37
    %p43 = scmp.eq.s32.totalorder %s10, 0
    %p44 = por %p42, %p43
    %p45 = scmp.ne.s32.totalorder %s34, %s37
    %p46 = scmp.eq.s32.totalorder %s15, 1
    %p47 = por %p45, %p46
    %p48 = scmp.ne.s32.totalorder %s37, %s38
    %p49 = scmp.eq.s32.totalorder %s15, 0
    %p50 = por %p48, %p49
    %p51 = scmp.ne.s32.totalorder %s37, %s38
    %p52 = scmp.eq.s32.totalorder %s16, 1
    %p53 = por %p51, %p52
    %p55 = scmp.ne.s32.totalorder %s38, %s54
    %p56 = scmp.eq.s32.totalorder %s16, 0
    %p57 = por %p55, %p56
    %s59 = sadd.s32 %s58, 1
    %p62 = scmp.eq.s32.totalorder %s10, 1
    %p63 = scmp.ne.s32.totalorder %s58, %s60
    %p64 = scmp.eq.s32.totalorder %s10, 0
    %p65 = por %p63, %p64
    %p66 = scmp.ne.s32.totalorder %s58, %s60
    %p67 = scmp.eq.s32.totalorder %s15, 1
    %p68 = por %p66, %p67
    %p69 = scmp.ne.s32.totalorder %s60, %s61
    %p70 = scmp.eq.s32.totalorder %s15, 0
    %p71 = por %p69, %p70
    %p72 = scmp.ne.s32.totalorder %s60, %s61
    %p73 = scmp.eq.s32.totalorder %s16, 1
    %p74 = por %p72, %p73
    %p76 = scmp.ne.s32.totalorder %s61, %s75
    %p77 = scmp.eq.s32.totalorder %s16, 0
    %p78 = por %p76, %p77
    %s80 = sadd.s32 %s79, 1
    %p83 = scmp.eq.s32.totalorder %s10, 1
    %p84 = scmp.ne.s32.totalorder %s79, %s81
    %p85 = scmp.eq.s32.totalorder %s10, 0
    %p86 = por %p84, %p85
    %p87 = scmp.ne.s32.totalorder %s79, %s81
    %p88 = scmp.eq.s32.totalorder %s15, 1
    %p89 = por %p87, %p88
    %p90 = scmp.ne.s32.totalorder %s81, %s82
    %p91 = scmp.eq.s32.totalorder %s15, 0
    %p92 = por %p90, %p91
    %p93 = scmp.ne.s32.totalorder %s81, %s82
    %p94 = scmp.eq.s32.totalorder %s16, 1
    %p95 = por %p93, %p94
    %p97 = scmp.ne.s32.totalorder %s82, %s96
    %p98 = scmp.eq.s32.totalorder %s16, 0
    %p99 = por %p97, %p98
    %s100 = ssub.s32 %s17, %s29
    %p101 = scmp.eq.s32.totalorder %s100, 0
    %s103 = sadd.s32 %s102, 1
    %s104 = scalar_select %p101, %s102, %s103
    %p107 = pneg %p101
    %p108 = scmp.eq.s32.totalorder %s10, 1
    %p109 = por %p107, %p108
    %p110 = scmp.ne.s32.totalorder %s102, %s105
    %p111 = scmp.eq.s32.totalorder %s10, 0
    %p112 = por %p110, %p111
    %p113 = scmp.ne.s32.totalorder %s102, %s105
    %p114 = scmp.eq.s32.totalorder %s15, 1
    %p115 = por %p113, %p114
    %p116 = scmp.ne.s32.totalorder %s105, %s106
    %p117 = scmp.eq.s32.totalorder %s15, 0
    %p118 = por %p116, %p117
    %p119 = scmp.ne.s32.totalorder %s105, %s106
    %p120 = scmp.eq.s32.totalorder %s16, 1
    %p121 = por %p119, %p120
    %p123 = scmp.ne.s32.totalorder %s106, %s122
    %p124 = scmp.eq.s32.totalorder %s16, 0
    %p125 = por %p123, %p124
    %s126 = ssub.s32 %s17, %s29
    %s127 = ssub.s32 %s18, %s25
    %s128 = sor.u32 %s126, %s127
    %p129 = scmp.eq.s32.totalorder %s128, 0
    %s131 = sadd.s32 %s130, 1
    %s132 = scalar_select %p129, %s130, %s131
    %p135 = pneg %p129
    %p136 = scmp.eq.s32.totalorder %s10, 1
    %p137 = por %p135, %p136
    %p138 = scmp.ne.s32.totalorder %s130, %s133
    %p139 = scmp.eq.s32.totalorder %s10, 0
    %p140 = por %p138, %p139
    %p141 = scmp.ne.s32.totalorder %s130, %s133
    %p142 = scmp.eq.s32.totalorder %s15, 1
    %p143 = por %p141, %p142
    %p144 = scmp.ne.s32.totalorder %s133, %s134
    %p145 = scmp.eq.s32.totalorder %s15, 0
    %p146 = por %p144, %p145
    %p147 = scmp.ne.s32.totalorder %s133, %s134
    %p148 = scmp.eq.s32.totalorder %s16, 1
    %p149 = por %p147, %p148
    %p151 = scmp.ne.s32.totalorder %s134, %s150
    %p152 = scmp.eq.s32.totalorder %s16, 0
    %p153 = por %p151, %p152
    %p154 = scmp.le.s32.totalorder 1, %s10
    %p155 = scmp.lt.s32.totalorder %s10, 3
    %p156 = pnand %p154, %p155
    %p157 = pneg %p156
    // Predicated region
    $region9: #{_lambda_.39} parent=5 // pred_check
      _
    $region10: #{_lambda_.39} parent=5 // pred_check_branch
      %159 = sbr.rel (%p156) target = $region12
    $region11: #{_lambda_.39} parent=5 // pred_region
      %s160 = ssub.s32 %s10, 1
      // Predicated region
      $region13: #{_lambda_.39} parent=11 // pred_check
        %p161 = pneg %p71
      $region14: #{_lambda_.39} parent=11 // pred_check_branch
        %163 = sbr.rel (%p161) target = $region16
      $region15: #{_lambda_.39} parent=11 // pred_region
        _
      $region16: #{_lambda_.39} parent=11 // pred_fallthru
        _
      // Predicated region
      $region17: #{_lambda_.39} parent=11 // pred_check
        %p164 = pneg %p92
      $region18: #{_lambda_.39} parent=11 // pred_check_branch
        %166 = sbr.rel (%p164) target = $region20
      $region19: #{_lambda_.39} parent=11 // pred_region
        _
      $region20: #{_lambda_.39} parent=11 // pred_fallthru
        _
    $region12: #{_lambda_.39} parent=5 // pred_fallthru
      _
    %p167 = scmp.lt.s32.totalorder %s10, 2
    // Predicated region
    $region21: #{_lambda_.39} parent=5 // pred_check
      %p168 = pneg %p167
    $region22: #{_lambda_.39} parent=5 // pred_check_branch
      %170 = sbr.rel (%p168) target = $region24
    $region23: #{_lambda_.39} parent=5 // pred_region
      // Predicated region
      $region25: #{_lambda_.39} parent=23 // pred_check
        %p171 = pneg %p44
      $region26: #{_lambda_.39} parent=23 // pred_check_branch
        %173 = sbr.rel (%p171) target = $region28
      $region27: #{_lambda_.39} parent=23 // pred_region
        %s174 = smul.u32 2, %s18
        %p175 = scmp.lt.s32.totalorder %s17, 1
        %s176 = scalar_select %p175, %s17, 1
        %p177 = scmp.lt.s32.totalorder %s174, 1
        %s178 = scalar_select %p177, %s174, 1
        %s179 = smul.addr %s176, 2
        %s180 = sadd.s32 %s178, %s179
        %s181 = smul.addr %s180, 4
        %s182 = scalar_lea.vmem %s0, %s181
        %s183 = smul.u32 2, %s18
      $region28: #{_lambda_.39} parent=23 // pred_fallthru
        _
      // Predicated region
      $region29: #{_lambda_.39} parent=23 // pred_check
        %p184 = pneg %p112
      $region30: #{_lambda_.39} parent=23 // pred_check_branch
        %186 = sbr.rel (%p184) target = $region32
      $region31: #{_lambda_.39} parent=23 // pred_region
        %p187 = scmp.lt.s32.totalorder %s17, 1
        %s188 = scalar_select %p187, %s17, 1
        %s189 = scalar_lea.vmem %s3, %s188
      $region32: #{_lambda_.39} parent=23 // pred_fallthru
        _
    $region24: #{_lambda_.39} parent=5 // pred_fallthru
      _
    %p190 = scmp.le.s32.totalorder 1, %s10
    %p191 = scmp.lt.s32.totalorder %s10, 3
    %p192 = pnand %p190, %p191
    %p193 = pneg %p192
    // Predicated region
    $region33: #{_lambda_.39} parent=5 // pred_check
      _
    $region34: #{_lambda_.39} parent=5 // pred_check_branch
      %195 = sbr.rel (%p192) target = $region36
    $region35: #{_lambda_.39} parent=5 // pred_region
      %s196 = ssub.s32 %s10, 1
      %s197 = smul.u32 2, %s20
      %p198 = scmp.lt.s32.totalorder %s19, 1
      %s199 = scalar_select %p198, %s19, 1
      %p200 = scmp.lt.s32.totalorder %s197, 1
      %s201 = scalar_select %p200, %s197, 1
      %s202 = smul.addr %s199, 2
      %s203 = sadd.s32 %s201, %s202
      %s204 = smul.addr %s203, 4
      %s205 = scalar_lea.vmem %s0, %s204
      %p206 = pneg %p50
      %p207 = pneg %p47
      %p208 = pneg %p71
      %p209 = pneg %p68
      %p210 = pneg %p92
      %p211 = pneg %p89
      %p212 = scmp.lt.s32.totalorder %s19, 1
      %s213 = scalar_select %p212, %s19, 1
      %s214 = scalar_lea.vmem %s3, %s213
      %p215 = pneg %p118
      %p216 = pneg %p115
      %p217 = pneg %p146
      %p218 = pneg %p143
      %s219 = smul.u32 2, %s20
      %p220 = scmp.lt.s32.totalorder %s19, 1
      %s221 = scalar_select %p220, %s19, 1
      %p222 = scmp.lt.s32.totalorder %s219, 1
      %s223 = scalar_select %p222, %s219, 1
      %s224 = smul.addr %s221, 2
      %s225 = sadd.s32 %s223, %s224
      %s226 = smul.addr %s225, 4
      %s227 = scalar_lea.vmem %s4, %s226
      %s228 = smul.u32 2, %s20
      %p229 = scmp.lt.s32.totalorder %s19, 1
      %s230 = scalar_select %p229, %s19, 1
      %p231 = scmp.lt.s32.totalorder %s228, 1
      %s232 = scalar_select %p231, %s228, 1
      %s233 = smul.addr %s230, 2
      %s234 = sadd.s32 %s232, %s233
      %s235 = smul.addr %s234, 4
      %s236 = scalar_lea.vmem %s0, %s235
      %s237 = smul.u32 2, %s20
      %p238 = scmp.lt.s32.totalorder %s19, 1
      %s239 = scalar_select %p238, %s19, 1
      %s240 = scalar_lea.vmem %s3, %s239
      %s241 = smul.u32 2, %s20
      %p242 = scmp.lt.s32.totalorder %s19, 1
      %s243 = scalar_select %p242, %s19, 1
      %p244 = scmp.lt.s32.totalorder %s241, 1
      %s245 = scalar_select %p244, %s241, 1
      %s246 = smul.addr %s243, 2
      %s247 = sadd.s32 %s245, %s246
      %s248 = smul.addr %s247, 4
      %s249 = scalar_lea.vmem %s4, %s248
      %s250 = smul.u32 2, %s20
      %v252 = vld [vmem:[%s236] sm:$0xf]
      %v253 = vld [vmem:[%s236 + $0x4] sm:$0xf]
      %v254 = vld [vmem:[%s1] sm:$0xf]
      %v255 = vld [vmem:[%s1 + $0x4] sm:$0xf]
      %v256 = vld [vmem:[%s1 + $0x8] sm:$0xf]
      %v257 = vld [vmem:[%s1 + $0xc] sm:$0xf]
      %v258 = vld [vmem:[%s1 + $0x10] sm:$0xf]
      %v259 = vld [vmem:[%s1 + $0x14] sm:$0xf]
      %v260 = vld [vmem:[%s1 + $0x18] sm:$0xf]
      %v261 = vld [vmem:[%s1 + $0x1c] sm:$0xf]
      %v262 = vld [vmem:[%s1 + $0x20] sm:$0xf]
      %v263 = vld [vmem:[%s1 + $0x24] sm:$0xf]
      %v264 = vld [vmem:[%s1 + $0x28] sm:$0xf]
      %v265 = vld [vmem:[%s1 + $0x2c] sm:$0xf]
      %v266 = vld [vmem:[%s1 + $0x30] sm:$0xf]
      %v267 = vld [vmem:[%s1 + $0x34] sm:$0xf]
      %v268 = vld [vmem:[%s1 + $0x38] sm:$0xf]
      %v269 = vld [vmem:[%s1 + $0x3c] sm:$0xf]
      %v270 = vld [vmem:[%s2] sm:$0x1]
      %v272 = vlaneseq
      %v273 = vshrl.u32 %v272, 7
      %v274 = vsub.s32 0, %v273
      %v275 = vrot.slane %v270, %v274
      %v279 = vunpack.c.l.b16 %v252
      %v280 = vunpack.c.l.b16 %v253
      %v281 = vpack.c.b16 %v280, %v279
      %v299 = vunpack.c.l.b16 %v254
      %v300 = vunpack.c.l.b16 %v255
      %v301 = vunpack.c.l.b16 %v256
      %v302 = vunpack.c.l.b16 %v257
      %v303 = vunpack.c.l.b16 %v258
      %v304 = vunpack.c.l.b16 %v259
      %v305 = vunpack.c.l.b16 %v260
      %v306 = vunpack.c.l.b16 %v261
      %v307 = vunpack.c.l.b16 %v262
      %v308 = vunpack.c.l.b16 %v263
      %v309 = vunpack.c.l.b16 %v264
      %v310 = vunpack.c.l.b16 %v265
      %v311 = vunpack.c.l.b16 %v266
      %v312 = vunpack.c.l.b16 %v267
      %v313 = vunpack.c.l.b16 %v268
      %v314 = vunpack.c.l.b16 %v269
      %v315 = vpack.c.b16 %v300, %v299
      %v316 = vpack.c.b16 %v302, %v301
      %v317 = vpack.c.b16 %v304, %v303
      %v318 = vpack.c.b16 %v306, %v305
      %v319 = vpack.c.b16 %v308, %v307
      %v320 = vpack.c.b16 %v310, %v309
      %v321 = vpack.c.b16 %v312, %v311
      %v322 = vpack.c.b16 %v314, %v313
      %331 = vmatprep.subr.bf16.mxu0 0
      %332 = vmatpush1.bf16.msra.mxu0 %v315
      %333 = vmatprep.subr.bf16.mxu0 0
      %334 = vmatpush1.bf16.msra.mxu0 %v316
      %335 = vmatprep.subr.bf16.mxu0 0
      %336 = vmatpush1.bf16.msra.mxu0 %v317
      %337 = vmatprep.subr.bf16.mxu0 0
      %338 = vmatpush1.bf16.msra.mxu0 %v318
      %339 = vmatprep.subr.bf16.mxu0 0
      %340 = vmatpush1.bf16.msra.mxu0 %v319
      %341 = vmatprep.subr.bf16.mxu0 0
      %342 = vmatpush1.bf16.msra.mxu0 %v320
      %343 = vmatprep.subr.bf16.mxu0 0
      %344 = vmatpush1.bf16.msra.mxu0 %v321
      %345 = vmatprep.subr.bf16.mxu0 0
      %346 = vmatpush1.bf16.msra.mxu0 %v322
      %347 = vmatprep.subr.bf16.mxu0 0
      %348 = vmatpush1.bf16.msra.mxu0 0
      %349 = vmatprep.subr.bf16.mxu0 0
      %350 = vmatpush1.bf16.msra.mxu0 0
      %351 = vmatprep.subr.bf16.mxu0 0
      %352 = vmatpush1.bf16.msra.mxu0 0
      %353 = vmatprep.subr.bf16.mxu0 0
      %354 = vmatpush1.bf16.msra.mxu0 0
      %355 = vmatprep.subr.bf16.mxu0 0
      %356 = vmatpush1.bf16.msra.mxu0 0
      %357 = vmatprep.subr.bf16.mxu0 0
      %358 = vmatpush1.bf16.msra.mxu0 0
      %359 = vmatprep.subr.bf16.mxu0 0
      %360 = vmatpush1.bf16.msra.mxu0 0
      %361 = vmatprep.subr.bf16.mxu0 0
      %362 = vmatpush1.bf16.msra.mxu0 0
      %363 = vmatprep.mubr.bf16.mxu0 0
      %364 = vmatmul.mubr.bf16.gmra.mrb[0].mxu0 %v281
      %v365 = vpop.f32.mrb[0].mxu0
      %v366 = vadd.f32 %v275, %v365
      %v367 = vpop.f32.mrb[0].mxu0
      %v368 = vpop.f32.mrb[0].mxu0
      %v369 = vadd.f32 %v275, %v368
      %v370 = vpop.f32.mrb[0].mxu0
      %371 = vdwg.mxu0
      %v372 = vxor.u32 %v366, 2147483648
      %v373 = vxor.u32 %v369, 2147483648
      %v374 = vmul.f32 %v372, 1.442695
      %v375 = vpow.pop %v374
      %v376 = vmul.f32 %v373, 1.442695
      %v377 = vpow.pop %v376
      %v378 = vadd.f32 %v375, 1.0
      %v379 = vadd.f32 %v377, 1.0
      %v380 = vrcp.pop %v378
      %v381 = vmul.f32 1.0, %v380
      %v382 = vrcp.pop %v379
      %v383 = vmul.f32 1.0, %v382
      %v384 = vmul.f32 %v366, %v381
      %v385 = vmul.f32 %v369, %v383
      %v386 = vld [vmem:[%s240] sm:$0x1]
      %v387 = vunpack.c.l.bf16 %v386
      %v388 = vlaneseq
      %v389 = vshrl.u32 %v388, 7
      %v390 = vsub.s32 0, %v389
      %v391 = vrot.slane %v387, %v390
      %v392 = vadd.f32 %v384, %v391
      %v393 = vadd.f32 %v385, %v391
      %v394 = vpack.c.bf16 %v393, %v392
      %v396 = vunpack.c.l.b16 %v394
      %v397 = vunpack.c.h.b16 %v394
      %v398 = vpack.c.b16 %v396, %v396
      %v399 = vpack.c.b16 %v397, %v397
      %402 = vst [vmem:[%s249] sm:$0xf] %v398
      %403 = vst [vmem:[%s249 + $0x4] sm:$0xf] %v399
      %s404 = smul.u32 2, %s20
      %p405 = scmp.lt.s32.totalorder %s19, 1
      %s406 = scalar_select %p405, %s19, 1
      %p407 = scmp.lt.s32.totalorder %s404, 1
      %s408 = scalar_select %p407, %s404, 1
      %s409 = smul.addr %s406, 2
      %s410 = sadd.s32 %s408, %s409
      %s411 = smul.addr %s410, 4
      %s412 = scalar_lea.vmem %s4, %s411
      // Predicated region
      $region37: #{_lambda_.39} parent=35 // pred_check
        %p413 = pneg %p143
      $region38: #{_lambda_.39} parent=35 // pred_check_branch
        %415 = sbr.rel (%p413) target = $region40
      $region39: #{_lambda_.39} parent=35 // pred_region
        %s416 = smul.u32 2, %s20
      $region40: #{_lambda_.39} parent=35 // pred_fallthru
        _
    $region36: #{_lambda_.39} parent=5 // pred_fallthru
      _
    %p417 = scmp.le.s32.totalorder 2, %s10
    // Predicated region
    $region41: #{_lambda_.39} parent=5 // pred_check
      %p418 = pneg %p417
    $region42: #{_lambda_.39} parent=5 // pred_check_branch
      %420 = sbr.rel (%p418) target = $region44
    $region43: #{_lambda_.39} parent=5 // pred_region
      %s421 = ssub.s32 %s10, 2
      // Predicated region
      $region45: #{_lambda_.39} parent=43 // pred_check
        %p422 = pneg %p149
      $region46: #{_lambda_.39} parent=43 // pred_check_branch
        %424 = sbr.rel (%p422) target = $region48
      $region47: #{_lambda_.39} parent=43 // pred_region
        %s425 = smul.u32 2, %s22
        %p426 = scmp.lt.s32.totalorder %s21, 1
        %s427 = scalar_select %p426, %s21, 1
        %p428 = scmp.lt.s32.totalorder %s425, 1
        %s429 = scalar_select %p428, %s425, 1
        %s430 = smul.addr %s427, 2
        %s431 = sadd.s32 %s429, %s430
        %s432 = smul.addr %s431, 4
        %s433 = scalar_lea.vmem %s4, %s432
      $region48: #{_lambda_.39} parent=43 // pred_fallthru
        _
    $region44: #{_lambda_.39} parent=5 // pred_fallthru
      _
  $region6: #{_lambda_.39} parent=0 // loop_footer
    %s14 = sadd.s32 1, %s10
  $region7: #{_lambda_.39} parent=0 // loop_footer_branch
    %9 = sbr.rel target = $region3
  $region8: #{_lambda_.39} parent=0 // loop_exit
    _

// kernel: _lambda_.40
$region0: #{_lambda_.40}
  #allocation0 [shape = 'u32[]', space=smem, size = 0x4, offset = 0x4, fixed_abs, tag = 'smem constant byte address 0x4 - core index']
  #allocation1 [shape = 'u32[144,128]{1,0:T(1,128)}', space=vmem, size = 0x12000, scoped, tag = 'internal scratch']
  %s0 = inlined_call_operand.vmem [shape: bf16[2,16,128], index: 0, kind: input, shape index: {}]
  %s1 = inlined_call_operand.vmem [shape: bf16[128,128], index: 1, kind: input, shape index: {}]
  %s2 = inlined_call_operand.vmem [shape: f32[1,128], index: 2, kind: input, shape index: {}]
  %s3 = inlined_call_operand.vmem [shape: bf16[2,16,128], index: 3, kind: input, shape index: {}]
  %s4 = inlined_call_operand.vmem [shape: bf16[2,16,128], index: 4, kind: output, shape index: {}]
  %s5 = sld [smem:[#allocation0]]
  $region49: #{_lambda_.40} parent=0
    _
  %s7 = ssub.s32 1, %s5
  %s8 = scalar_select 0, %s7, %s5
  loop: start=0, step=1, limit=4
  $region2: #{_lambda_.40} parent=0 // loop_pre_header
    _
  $region3: #{_lambda_.40} parent=0 // loop_header
    %s10 = sphi 0, %s14
    %p11 = scmp.ge.s32.totalorder %s10, 4
    %s17 = sphi 0, %s29
    %s18 = sphi 0, %s25
    %s19 = sphi 0, %s17
    %s20 = sphi 0, %s18
    %s21 = sphi 0, %s19
    %s22 = sphi 0, %s20
    %s34 = sphi 0, %s36
    %s37 = sphi 0, %s34
    %s38 = sphi 0, %s37
    %s54 = sphi 0, %s38
    %s58 = sphi 0, %s58
    %s60 = sphi 0, %s58
    %s61 = sphi 0, %s60
    %s75 = sphi 0, %s61
    %s79 = sphi 0, %s79
    %s81 = sphi 0, %s79
    %s82 = sphi 0, %s81
    %s96 = sphi 0, %s82
    %s104 = sphi 0, %s106
    %s107 = sphi 0, %s104
    %s108 = sphi 0, %s107
    %s124 = sphi 0, %s108
    %s132 = sphi 0, %s134
    %s135 = sphi 0, %s132
    %s136 = sphi 0, %s135
    %s152 = sphi 0, %s136
  $region4: #{_lambda_.40} parent=0 // loop_header_branch
    %13 = sbr.rel (%p11) target = $region8
  $region5: #{_lambda_.40} parent=0 // loop_body
    %s15 = ssub.s32 %s10, 1
    %s16 = ssub.s32 %s10, 2
    %s23 = sadd.s32 1, %s18
    %p24 = scmp.ge.s32.totalorder %s23, 1
    %s25 = scalar_select %p24, 0, %s23
    %s26 = sadd.s32 1, %s17
    %s27 = scalar_select %p24, %s26, %s17
    %p28 = scmp.ge.s32.totalorder %s27, 2
    %s29 = scalar_select %p28, 0, %s27
    %s30 = ssub.s32 %s17, %s29
    %s31 = ssub.s32 %s18, %s25
    %s32 = sor.u32 %s30, %s31
    %p33 = scmp.eq.s32.totalorder %s32, 0
    %s35 = sadd.s32 %s34, 1
    %s36 = scalar_select %p33, %s34, %s35
    %p39 = pneg %p33
    %p40 = scmp.eq.s32.totalorder %s10, 1
    %p41 = por %p39, %p40
    %p42 = scmp.ne.s32.totalorder %s34, %s37
    %p43 = scmp.eq.s32.totalorder %s10, 0
    %p44 = por %p42, %p43
    %p45 = scmp.ne.s32.totalorder %s34, %s37
    %p46 = scmp.eq.s32.totalorder %s15, 1
    %p47 = por %p45, %p46
    %p48 = scmp.ne.s32.totalorder %s37, %s38
    %p49 = scmp.eq.s32.totalorder %s15, 0
    %p50 = por %p48, %p49
    %p51 = scmp.ne.s32.totalorder %s37, %s38
    %p52 = scmp.eq.s32.totalorder %s16, 1
    %p53 = por %p51, %p52
    %p55 = scmp.ne.s32.totalorder %s38, %s54
    %p56 = scmp.eq.s32.totalorder %s16, 0
    %p57 = por %p55, %p56
    %s59 = sadd.s32 %s58, 1
    %p62 = scmp.eq.s32.totalorder %s10, 1
    %p63 = scmp.ne.s32.totalorder %s58, %s60
    %p64 = scmp.eq.s32.totalorder %s10, 0
    %p65 = por %p63, %p64
    %p66 = scmp.ne.s32.totalorder %s58, %s60
    %p67 = scmp.eq.s32.totalorder %s15, 1
    %p68 = por %p66, %p67
    %p69 = scmp.ne.s32.totalorder %s60, %s61
    %p70 = scmp.eq.s32.totalorder %s15, 0
    %p71 = por %p69, %p70
    %p72 = scmp.ne.s32.totalorder %s60, %s61
    %p73 = scmp.eq.s32.totalorder %s16, 1
    %p74 = por %p72, %p73
    %p76 = scmp.ne.s32.totalorder %s61, %s75
    %p77 = scmp.eq.s32.totalorder %s16, 0
    %p78 = por %p76, %p77
    %s80 = sadd.s32 %s79, 1
    %p83 = scmp.eq.s32.totalorder %s10, 1
    %p84 = scmp.ne.s32.totalorder %s79, %s81
    %p85 = scmp.eq.s32.totalorder %s10, 0
    %p86 = por %p84, %p85
    %p87 = scmp.ne.s32.totalorder %s79, %s81
    %p88 = scmp.eq.s32.totalorder %s15, 1
    %p89 = por %p87, %p88
    %p90 = scmp.ne.s32.totalorder %s81, %s82
    %p91 = scmp.eq.s32.totalorder %s15, 0
    %p92 = por %p90, %p91
    %p93 = scmp.ne.s32.totalorder %s81, %s82
    %p94 = scmp.eq.s32.totalorder %s16, 1
    %p95 = por %p93, %p94
    %p97 = scmp.ne.s32.totalorder %s82, %s96
    %p98 = scmp.eq.s32.totalorder %s16, 0
    %p99 = por %p97, %p98
    %s100 = ssub.s32 %s17, %s29
    %s101 = ssub.s32 %s18, %s25
    %s102 = sor.u32 %s100, %s101
    %p103 = scmp.eq.s32.totalorder %s102, 0
    %s105 = sadd.s32 %s104, 1
    %s106 = scalar_select %p103, %s104, %s105
    %p109 = pneg %p103
    %p110 = scmp.eq.s32.totalorder %s10, 1
    %p111 = por %p109, %p110
    %p112 = scmp.ne.s32.totalorder %s104, %s107
    %p113 = scmp.eq.s32.totalorder %s10, 0
    %p114 = por %p112, %p113
    %p115 = scmp.ne.s32.totalorder %s104, %s107
    %p116 = scmp.eq.s32.totalorder %s15, 1
    %p117 = por %p115, %p116
    %p118 = scmp.ne.s32.totalorder %s107, %s108
    %p119 = scmp.eq.s32.totalorder %s15, 0
    %p120 = por %p118, %p119
    %p121 = scmp.ne.s32.totalorder %s107, %s108
    %p122 = scmp.eq.s32.totalorder %s16, 1
    %p123 = por %p121, %p122
    %p125 = scmp.ne.s32.totalorder %s108, %s124
    %p126 = scmp.eq.s32.totalorder %s16, 0
    %p127 = por %p125, %p126
    %s128 = ssub.s32 %s17, %s29
    %s129 = ssub.s32 %s18, %s25
    %s130 = sor.u32 %s128, %s129
    %p131 = scmp.eq.s32.totalorder %s130, 0
    %s133 = sadd.s32 %s132, 1
    %s134 = scalar_select %p131, %s132, %s133
    %p137 = pneg %p131
    %p138 = scmp.eq.s32.totalorder %s10, 1
    %p139 = por %p137, %p138
    %p140 = scmp.ne.s32.totalorder %s132, %s135
    %p141 = scmp.eq.s32.totalorder %s10, 0
    %p142 = por %p140, %p141
    %p143 = scmp.ne.s32.totalorder %s132, %s135
    %p144 = scmp.eq.s32.totalorder %s15, 1
    %p145 = por %p143, %p144
    %p146 = scmp.ne.s32.totalorder %s135, %s136
    %p147 = scmp.eq.s32.totalorder %s15, 0
    %p148 = por %p146, %p147
    %p149 = scmp.ne.s32.totalorder %s135, %s136
    %p150 = scmp.eq.s32.totalorder %s16, 1
    %p151 = por %p149, %p150
    %p153 = scmp.ne.s32.totalorder %s136, %s152
    %p154 = scmp.eq.s32.totalorder %s16, 0
    %p155 = por %p153, %p154
    %p156 = scmp.le.s32.totalorder 1, %s10
    %p157 = scmp.lt.s32.totalorder %s10, 3
    %p158 = pnand %p156, %p157
    %p159 = pneg %p158
    // Predicated region
    $region9: #{_lambda_.40} parent=5 // pred_check
      _
    $region10: #{_lambda_.40} parent=5 // pred_check_branch
      %161 = sbr.rel (%p158) target = $region12
    $region11: #{_lambda_.40} parent=5 // pred_region
      %s162 = ssub.s32 %s10, 1
      // Predicated region
      $region13: #{_lambda_.40} parent=11 // pred_check
        %p163 = pneg %p71
      $region14: #{_lambda_.40} parent=11 // pred_check_branch
        %165 = sbr.rel (%p163) target = $region16
      $region15: #{_lambda_.40} parent=11 // pred_region
        _
      $region16: #{_lambda_.40} parent=11 // pred_fallthru
        _
      // Predicated region
      $region17: #{_lambda_.40} parent=11 // pred_check
        %p166 = pneg %p92
      $region18: #{_lambda_.40} parent=11 // pred_check_branch
        %168 = sbr.rel (%p166) target = $region20
      $region19: #{_lambda_.40} parent=11 // pred_region
        _
      $region20: #{_lambda_.40} parent=11 // pred_fallthru
        _
    $region12: #{_lambda_.40} parent=5 // pred_fallthru
      _
    %p169 = scmp.lt.s32.totalorder %s10, 2
    // Predicated region
    $region21: #{_lambda_.40} parent=5 // pred_check
      %p170 = pneg %p169
    $region22: #{_lambda_.40} parent=5 // pred_check_branch
      %172 = sbr.rel (%p170) target = $region24
    $region23: #{_lambda_.40} parent=5 // pred_region
      // Predicated region
      $region25: #{_lambda_.40} parent=23 // pred_check
        %p173 = pneg %p44
      $region26: #{_lambda_.40} parent=23 // pred_check_branch
        %175 = sbr.rel (%p173) target = $region28
      $region27: #{_lambda_.40} parent=23 // pred_region
        %s176 = smul.u32 2, %s18
        %p177 = scmp.lt.s32.totalorder %s17, 1
        %s178 = scalar_select %p177, %s17, 1
        %p179 = scmp.lt.s32.totalorder %s176, 1
        %s180 = scalar_select %p179, %s176, 1
        %s181 = smul.addr %s178, 2
        %s182 = sadd.s32 %s180, %s181
        %s183 = smul.addr %s182, 4
        %s184 = scalar_lea.vmem %s0, %s183
        %s185 = smul.u32 2, %s18
      $region28: #{_lambda_.40} parent=23 // pred_fallthru
        _
      // Predicated region
      $region29: #{_lambda_.40} parent=23 // pred_check
        %p186 = pneg %p114
      $region30: #{_lambda_.40} parent=23 // pred_check_branch
        %188 = sbr.rel (%p186) target = $region32
      $region31: #{_lambda_.40} parent=23 // pred_region
        %s189 = smul.u32 2, %s18
        %p190 = scmp.lt.s32.totalorder %s17, 1
        %s191 = scalar_select %p190, %s17, 1
        %p192 = scmp.lt.s32.totalorder %s189, 1
        %s193 = scalar_select %p192, %s189, 1
        %s194 = smul.addr %s191, 2
        %s195 = sadd.s32 %s193, %s194
        %s196 = smul.addr %s195, 4
        %s197 = scalar_lea.vmem %s3, %s196
        %s198 = smul.u32 2, %s18
      $region32: #{_lambda_.40} parent=23 // pred_fallthru
        _
    $region24: #{_lambda_.40} parent=5 // pred_fallthru
      _
    %p199 = scmp.le.s32.totalorder 1, %s10
    %p200 = scmp.lt.s32.totalorder %s10, 3
    %p201 = pnand %p199, %p200
    %p202 = pneg %p201
    // Predicated region
    $region33: #{_lambda_.40} parent=5 // pred_check
      _
    $region34: #{_lambda_.40} parent=5 // pred_check_branch
      %204 = sbr.rel (%p201) target = $region36
    $region35: #{_lambda_.40} parent=5 // pred_region
      %s205 = ssub.s32 %s10, 1
      %s206 = smul.u32 2, %s20
      %p207 = scmp.lt.s32.totalorder %s19, 1
      %s208 = scalar_select %p207, %s19, 1
      %p209 = scmp.lt.s32.totalorder %s206, 1
      %s210 = scalar_select %p209, %s206, 1
      %s211 = smul.addr %s208, 2
      %s212 = sadd.s32 %s210, %s211
      %s213 = smul.addr %s212, 4
      %s214 = scalar_lea.vmem %s0, %s213
      %p215 = pneg %p50
      %p216 = pneg %p47
      %p217 = pneg %p71
      %p218 = pneg %p68
      %p219 = pneg %p92
      %p220 = pneg %p89
      %s221 = smul.u32 2, %s20
      %p222 = scmp.lt.s32.totalorder %s19, 1
      %s223 = scalar_select %p222, %s19, 1
      %p224 = scmp.lt.s32.totalorder %s221, 1
      %s225 = scalar_select %p224, %s221, 1
      %s226 = smul.addr %s223, 2
      %s227 = sadd.s32 %s225, %s226
      %s228 = smul.addr %s227, 4
      %s229 = scalar_lea.vmem %s3, %s228
      %p230 = pneg %p120
      %p231 = pneg %p117
      %p232 = pneg %p148
      %p233 = pneg %p145
      %s234 = smul.u32 2, %s20
      %p235 = scmp.lt.s32.totalorder %s19, 1
      %s236 = scalar_select %p235, %s19, 1
      %p237 = scmp.lt.s32.totalorder %s234, 1
      %s238 = scalar_select %p237, %s234, 1
      %s239 = smul.addr %s236, 2
      %s240 = sadd.s32 %s238, %s239
      %s241 = smul.addr %s240, 4
      %s242 = scalar_lea.vmem %s4, %s241
      %s243 = smul.u32 2, %s20
      %p244 = scmp.lt.s32.totalorder %s19, 1
      %s245 = scalar_select %p244, %s19, 1
      %p246 = scmp.lt.s32.totalorder %s243, 1
      %s247 = scalar_select %p246, %s243, 1
      %s248 = smul.addr %s245, 2
      %s249 = sadd.s32 %s247, %s248
      %s250 = smul.addr %s249, 4
      %s251 = scalar_lea.vmem %s0, %s250
      %s252 = smul.u32 2, %s20
      %s253 = smul.u32 2, %s20
      %p254 = scmp.lt.s32.totalorder %s19, 1
      %s255 = scalar_select %p254, %s19, 1
      %p256 = scmp.lt.s32.totalorder %s253, 1
      %s257 = scalar_select %p256, %s253, 1
      %s258 = smul.addr %s255, 2
      %s259 = sadd.s32 %s257, %s258
      %s260 = smul.addr %s259, 4
      %s261 = scalar_lea.vmem %s3, %s260
      %s262 = smul.u32 2, %s20
      %s263 = smul.u32 2, %s20
      %p264 = scmp.lt.s32.totalorder %s19, 1
      %s265 = scalar_select %p264, %s19, 1
      %p266 = scmp.lt.s32.totalorder %s263, 1
      %s267 = scalar_select %p266, %s263, 1
      %s268 = smul.addr %s265, 2
      %s269 = sadd.s32 %s267, %s268
      %s270 = smul.addr %s269, 4
      %s271 = scalar_lea.vmem %s4, %s270
      %s272 = smul.u32 2, %s20
      %v274 = vld [vmem:[%s251] sm:$0xf]
      %v275 = vld [vmem:[%s251 + $0x4] sm:$0xf]
      %v276 = vld [vmem:[%s1] sm:$0xf]
      %v277 = vld [vmem:[%s1 + $0x4] sm:$0xf]
      %v278 = vld [vmem:[%s1 + $0x8] sm:$0xf]
      %v279 = vld [vmem:[%s1 + $0xc] sm:$0xf]
      %v280 = vld [vmem:[%s1 + $0x10] sm:$0xf]
      %v281 = vld [vmem:[%s1 + $0x14] sm:$0xf]
      %v282 = vld [vmem:[%s1 + $0x18] sm:$0xf]
      %v283 = vld [vmem:[%s1 + $0x1c] sm:$0xf]
      %v284 = vld [vmem:[%s1 + $0x20] sm:$0xf]
      %v285 = vld [vmem:[%s1 + $0x24] sm:$0xf]
      %v286 = vld [vmem:[%s1 + $0x28] sm:$0xf]
      %v287 = vld [vmem:[%s1 + $0x2c] sm:$0xf]
      %v288 = vld [vmem:[%s1 + $0x30] sm:$0xf]
      %v289 = vld [vmem:[%s1 + $0x34] sm:$0xf]
      %v290 = vld [vmem:[%s1 + $0x38] sm:$0xf]
      %v291 = vld [vmem:[%s1 + $0x3c] sm:$0xf]
      %v292 = vld [vmem:[%s2] sm:$0x1]
      %v294 = vlaneseq
      %v295 = vshrl.u32 %v294, 7
      %v296 = vsub.s32 0, %v295
      %v297 = vrot.slane %v292, %v296
      %v301 = vunpack.c.l.b16 %v274
      %v302 = vunpack.c.l.b16 %v275
      %v303 = vpack.c.b16 %v302, %v301
      %v321 = vunpack.c.l.b16 %v276
      %v322 = vunpack.c.l.b16 %v277
      %v323 = vunpack.c.l.b16 %v278
      %v324 = vunpack.c.l.b16 %v279
      %v325 = vunpack.c.l.b16 %v280
      %v326 = vunpack.c.l.b16 %v281
      %v327 = vunpack.c.l.b16 %v282
      %v328 = vunpack.c.l.b16 %v283
      %v329 = vunpack.c.l.b16 %v284
      %v330 = vunpack.c.l.b16 %v285
      %v331 = vunpack.c.l.b16 %v286
      %v332 = vunpack.c.l.b16 %v287
      %v333 = vunpack.c.l.b16 %v288
      %v334 = vunpack.c.l.b16 %v289
      %v335 = vunpack.c.l.b16 %v290
      %v336 = vunpack.c.l.b16 %v291
      %v337 = vpack.c.b16 %v322, %v321
      %v338 = vpack.c.b16 %v324, %v323
      %v339 = vpack.c.b16 %v326, %v325
      %v340 = vpack.c.b16 %v328, %v327
      %v341 = vpack.c.b16 %v330, %v329
      %v342 = vpack.c.b16 %v332, %v331
      %v343 = vpack.c.b16 %v334, %v333
      %v344 = vpack.c.b16 %v336, %v335
      %353 = vmatprep.subr.bf16.mxu0 0
      %354 = vmatpush1.bf16.msra.mxu0 %v337
      %355 = vmatprep.subr.bf16.mxu0 0
      %356 = vmatpush1.bf16.msra.mxu0 %v338
      %357 = vmatprep.subr.bf16.mxu0 0
      %358 = vmatpush1.bf16.msra.mxu0 %v339
      %359 = vmatprep.subr.bf16.mxu0 0
      %360 = vmatpush1.bf16.msra.mxu0 %v340
      %361 = vmatprep.subr.bf16.mxu0 0
      %362 = vmatpush1.bf16.msra.mxu0 %v341
      %363 = vmatprep.subr.bf16.mxu0 0
      %364 = vmatpush1.bf16.msra.mxu0 %v342
      %365 = vmatprep.subr.bf16.mxu0 0
      %366 = vmatpush1.bf16.msra.mxu0 %v343
      %367 = vmatprep.subr.bf16.mxu0 0
      %368 = vmatpush1.bf16.msra.mxu0 %v344
      %369 = vmatprep.subr.bf16.mxu0 0
      %370 = vmatpush1.bf16.msra.mxu0 0
      %371 = vmatprep.subr.bf16.mxu0 0
      %372 = vmatpush1.bf16.msra.mxu0 0
      %373 = vmatprep.subr.bf16.mxu0 0
      %374 = vmatpush1.bf16.msra.mxu0 0
      %375 = vmatprep.subr.bf16.mxu0 0
      %376 = vmatpush1.bf16.msra.mxu0 0
      %377 = vmatprep.subr.bf16.mxu0 0
      %378 = vmatpush1.bf16.msra.mxu0 0
      %379 = vmatprep.subr.bf16.mxu0 0
      %380 = vmatpush1.bf16.msra.mxu0 0
      %381 = vmatprep.subr.bf16.mxu0 0
      %382 = vmatpush1.bf16.msra.mxu0 0
      %383 = vmatprep.subr.bf16.mxu0 0
      %384 = vmatpush1.bf16.msra.mxu0 0
      %385 = vmatprep.mubr.bf16.mxu0 0
      %386 = vmatmul.mubr.bf16.gmra.mrb[0].mxu0 %v303
      %v387 = vpop.f32.mrb[0].mxu0
      %v388 = vadd.f32 %v297, %v387
      %v389 = vpop.f32.mrb[0].mxu0
      %v390 = vpop.f32.mrb[0].mxu0
      %v391 = vadd.f32 %v297, %v390
      %v392 = vpop.f32.mrb[0].mxu0
      %393 = vdwg.mxu0
      %v394 = vxor.u32 %v388, 2147483648
      %v395 = vxor.u32 %v391, 2147483648
      %v396 = vmul.f32 %v394, 1.442695
      %v397 = vpow.pop %v396
      %v398 = vmul.f32 %v395, 1.442695
      %v399 = vpow.pop %v398
      %v400 = vadd.f32 %v397, 1.0
      %v401 = vadd.f32 %v399, 1.0
      %v402 = vrcp.pop %v400
      %v403 = vmul.f32 1.0, %v402
      %v404 = vrcp.pop %v401
      %v405 = vmul.f32 1.0, %v404
      %v406 = vmul.f32 %v388, %v403
      %v407 = vmul.f32 %v391, %v405
      %v408 = vld [vmem:[%s261] sm:$0xf]
      %v409 = vld [vmem:[%s261 + $0x4] sm:$0xf]
      %v410 = vunpack.c.l.bf16 %v408
      %v411 = vunpack.c.l.bf16 %v409
      %v412 = vadd.f32 %v406, %v410
      %v413 = vadd.f32 %v407, %v411
      %v414 = vpack.c.bf16 %v413, %v412
      %v416 = vunpack.c.l.b16 %v414
      %v417 = vunpack.c.h.b16 %v414
      %v418 = vpack.c.b16 %v416, %v416
      %v419 = vpack.c.b16 %v417, %v417
      %422 = vst [vmem:[%s271] sm:$0xf] %v418
      %423 = vst [vmem:[%s271 + $0x4] sm:$0xf] %v419
      %s424 = smul.u32 2, %s20
      %p425 = scmp.lt.s32.totalorder %s19, 1
      %s426 = scalar_select %p425, %s19, 1
      %p427 = scmp.lt.s32.totalorder %s424, 1
      %s428 = scalar_select %p427, %s424, 1
      %s429 = smul.addr %s426, 2
      %s430 = sadd.s32 %s428, %s429
      %s431 = smul.addr %s430, 4
      %s432 = scalar_lea.vmem %s4, %s431
      // Predicated region
      $region37: #{_lambda_.40} parent=35 // pred_check
        %p433 = pneg %p145
      $region38: #{_lambda_.40} parent=35 // pred_check_branch
        %435 = sbr.rel (%p433) target = $region40
      $region39: #{_lambda_.40} parent=35 // pred_region
        %s436 = smul.u32 2, %s20
      $region40: #{_lambda_.40} parent=35 // pred_fallthru
        _
    $region36: #{_lambda_.40} parent=5 // pred_fallthru
      _
    %p437 = scmp.le.s32.totalorder 2, %s10
    // Predicated region
    $region41: #{_lambda_.40} parent=5 // pred_check
      %p438 = pneg %p437
    $region42: #{_lambda_.40} parent=5 // pred_check_branch
      %440 = sbr.rel (%p438) target = $region44
    $region43: #{_lambda_.40} parent=5 // pred_region
      %s441 = ssub.s32 %s10, 2
      // Predicated region
      $region45: #{_lambda_.40} parent=43 // pred_check
        %p442 = pneg %p151
      $region46: #{_lambda_.40} parent=43 // pred_check_branch
        %444 = sbr.rel (%p442) target = $region48
      $region47: #{_lambda_.40} parent=43 // pred_region
        %s445 = smul.u32 2, %s22
        %p446 = scmp.lt.s32.totalorder %s21, 1
        %s447 = scalar_select %p446, %s21, 1
        %p448 = scmp.lt.s32.totalorder %s445, 1
        %s449 = scalar_select %p448, %s445, 1
        %s450 = smul.addr %s447, 2
        %s451 = sadd.s32 %s449, %s450
        %s452 = smul.addr %s451, 4
        %s453 = scalar_lea.vmem %s4, %s452
      $region48: #{_lambda_.40} parent=43 // pred_fallthru
        _
    $region44: #{_lambda_.40} parent=5 // pred_fallthru
      _
  $region6: #{_lambda_.40} parent=0 // loop_footer
    %s14 = sadd.s32 1, %s10
  $region7: #{_lambda_.40} parent=0 // loop_footer_branch
    %9 = sbr.rel target = $region3
  $region8: #{_lambda_.40} parent=0 // loop_exit
    _

// kernel: _lambda_.42
$region0: #{_lambda_.42}
  #allocation0 [shape = 'u32[]', space=smem, size = 0x4, offset = 0x4, fixed_abs, tag = 'smem constant byte address 0x4 - core index']
  #allocation1 [shape = 'u32[144,128]{1,0:T(1,128)}', space=vmem, size = 0x12000, scoped, tag = 'internal scratch']
  %s0 = inlined_call_operand.vmem [shape: f32[6,8,128], index: 0, kind: input, shape index: {}]
  %s1 = inlined_call_operand.vmem [shape: f32[6,8,128], index: 1, kind: input, shape index: {}]
  %s2 = inlined_call_operand.vmem [shape: f32[6,8,128], index: 2, kind: input, shape index: {}]
  %s3 = inlined_call_operand.vmem [shape: f32[6,8,128], index: 3, kind: output, shape index: {}]
  %s4 = sld [smem:[#allocation0]]
  $region45: #{_lambda_.42} parent=0
    _
  %s6 = ssub.s32 1, %s4
  %s7 = scalar_select 0, %s6, %s4
  loop: start=0, step=1, limit=4
  $region2: #{_lambda_.42} parent=0 // loop_pre_header
    _
  $region3: #{_lambda_.42} parent=0 // loop_header
    %s9 = sphi 0, %s13
    %p10 = scmp.ge.s32.totalorder %s9, 4
    %s19 = sphi 0, %s21
    %s22 = sphi 0, %s19
    %s23 = sphi 0, %s22
    %s39 = sphi 0, %s23
    %s45 = sphi 0, %s47
    %s48 = sphi 0, %s45
    %s49 = sphi 0, %s48
    %s65 = sphi 0, %s49
    %s71 = sphi 0, %s73
    %s74 = sphi 0, %s71
    %s75 = sphi 0, %s74
    %s91 = sphi 0, %s75
    %s97 = sphi 0, %s99
    %s100 = sphi 0, %s97
    %s101 = sphi 0, %s100
    %s117 = sphi 0, %s101
  $region4: #{_lambda_.42} parent=0 // loop_header_branch
    %12 = sbr.rel (%p10) target = $region8
  $region5: #{_lambda_.42} parent=0 // loop_body
    %s14 = ssub.s32 %s9, 1
    %s15 = ssub.s32 %s9, 2
    %s16 = sadd.s32 %s9, 1
    %s17 = ssub.s32 %s9, %s16
    %p18 = scmp.eq.s32.totalorder %s17, 0
    %s20 = sadd.s32 %s19, 1
    %s21 = scalar_select %p18, %s19, %s20
    %p24 = pneg %p18
    %p25 = scmp.eq.s32.totalorder %s9, 1
    %p26 = por %p24, %p25
    %p27 = scmp.ne.s32.totalorder %s19, %s22
    %p28 = scmp.eq.s32.totalorder %s9, 0
    %p29 = por %p27, %p28
    %p30 = scmp.ne.s32.totalorder %s19, %s22
    %p31 = scmp.eq.s32.totalorder %s14, 1
    %p32 = por %p30, %p31
    %p33 = scmp.ne.s32.totalorder %s22, %s23
    %p34 = scmp.eq.s32.totalorder %s14, 0
    %p35 = por %p33, %p34
    %p36 = scmp.ne.s32.totalorder %s22, %s23
    %p37 = scmp.eq.s32.totalorder %s15, 1
    %p38 = por %p36, %p37
    %p40 = scmp.ne.s32.totalorder %s23, %s39
    %p41 = scmp.eq.s32.totalorder %s15, 0
    %p42 = por %p40, %p41
    %s43 = ssub.s32 %s9, %s16
    %p44 = scmp.eq.s32.totalorder %s43, 0
    %s46 = sadd.s32 %s45, 1
    %s47 = scalar_select %p44, %s45, %s46
    %p50 = pneg %p44
    %p51 = scmp.eq.s32.totalorder %s9, 1
    %p52 = por %p50, %p51
    %p53 = scmp.ne.s32.totalorder %s45, %s48
    %p54 = scmp.eq.s32.totalorder %s9, 0
    %p55 = por %p53, %p54
    %p56 = scmp.ne.s32.totalorder %s45, %s48
    %p57 = scmp.eq.s32.totalorder %s14, 1
    %p58 = por %p56, %p57
    %p59 = scmp.ne.s32.totalorder %s48, %s49
    %p60 = scmp.eq.s32.totalorder %s14, 0
    %p61 = por %p59, %p60
    %p62 = scmp.ne.s32.totalorder %s48, %s49
    %p63 = scmp.eq.s32.totalorder %s15, 1
    %p64 = por %p62, %p63
    %p66 = scmp.ne.s32.totalorder %s49, %s65
    %p67 = scmp.eq.s32.totalorder %s15, 0
    %p68 = por %p66, %p67
    %s69 = ssub.s32 %s9, %s16
    %p70 = scmp.eq.s32.totalorder %s69, 0
    %s72 = sadd.s32 %s71, 1
    %s73 = scalar_select %p70, %s71, %s72
    %p76 = pneg %p70
    %p77 = scmp.eq.s32.totalorder %s9, 1
    %p78 = por %p76, %p77
    %p79 = scmp.ne.s32.totalorder %s71, %s74
    %p80 = scmp.eq.s32.totalorder %s9, 0
    %p81 = por %p79, %p80
    %p82 = scmp.ne.s32.totalorder %s71, %s74
    %p83 = scmp.eq.s32.totalorder %s14, 1
    %p84 = por %p82, %p83
    %p85 = scmp.ne.s32.totalorder %s74, %s75
    %p86 = scmp.eq.s32.totalorder %s14, 0
    %p87 = por %p85, %p86
    %p88 = scmp.ne.s32.totalorder %s74, %s75
    %p89 = scmp.eq.s32.totalorder %s15, 1
    %p90 = por %p88, %p89
    %p92 = scmp.ne.s32.totalorder %s75, %s91
    %p93 = scmp.eq.s32.totalorder %s15, 0
    %p94 = por %p92, %p93
    %s95 = ssub.s32 %s9, %s16
    %p96 = scmp.eq.s32.totalorder %s95, 0
    %s98 = sadd.s32 %s97, 1
    %s99 = scalar_select %p96, %s97, %s98
    %p102 = pneg %p96
    %p103 = scmp.eq.s32.totalorder %s9, 1
    %p104 = por %p102, %p103
    %p105 = scmp.ne.s32.totalorder %s97, %s100
    %p106 = scmp.eq.s32.totalorder %s9, 0
    %p107 = por %p105, %p106
    %p108 = scmp.ne.s32.totalorder %s97, %s100
    %p109 = scmp.eq.s32.totalorder %s14, 1
    %p110 = por %p108, %p109
    %p111 = scmp.ne.s32.totalorder %s100, %s101
    %p112 = scmp.eq.s32.totalorder %s14, 0
    %p113 = por %p111, %p112
    %p114 = scmp.ne.s32.totalorder %s100, %s101
    %p115 = scmp.eq.s32.totalorder %s15, 1
    %p116 = por %p114, %p115
    %p118 = scmp.ne.s32.totalorder %s101, %s117
    %p119 = scmp.eq.s32.totalorder %s15, 0
    %p120 = por %p118, %p119
    %p121 = scmp.le.s32.totalorder 1, %s9
    %p122 = scmp.lt.s32.totalorder %s9, 3
    %p123 = pnand %p121, %p122
    %p124 = pneg %p123
    // Predicated region
    $region9: #{_lambda_.42} parent=5 // pred_check
      _
    $region10: #{_lambda_.42} parent=5 // pred_check_branch
      %126 = sbr.rel (%p123) target = $region12
    $region11: #{_lambda_.42} parent=5 // pred_region
      %s127 = ssub.s32 %s9, 1
    $region12: #{_lambda_.42} parent=5 // pred_fallthru
      _
    %p128 = scmp.lt.s32.totalorder %s9, 2
    // Predicated region
    $region13: #{_lambda_.42} parent=5 // pred_check
      %p129 = pneg %p128
    $region14: #{_lambda_.42} parent=5 // pred_check_branch
      %131 = sbr.rel (%p129) target = $region16
    $region15: #{_lambda_.42} parent=5 // pred_region
      // Predicated region
      $region17: #{_lambda_.42} parent=15 // pred_check
        %p132 = pneg %p29
      $region18: #{_lambda_.42} parent=15 // pred_check_branch
        %134 = sbr.rel (%p132) target = $region20
      $region19: #{_lambda_.42} parent=15 // pred_region
        %s135 = smul.u32 3, %s9
        %p136 = scmp.lt.s32.totalorder %s135, 5
        %s137 = scalar_select %p136, %s135, 5
        %s138 = smul.addr %s137, 8
        %s139 = scalar_lea.vmem %s0, %s138
        %s140 = smul.u32 3, %s9
      $region20: #{_lambda_.42} parent=15 // pred_fallthru
        _
      // Predicated region
      $region21: #{_lambda_.42} parent=15 // pred_check
        %p141 = pneg %p55
      $region22: #{_lambda_.42} parent=15 // pred_check_branch
        %143 = sbr.rel (%p141) target = $region24
      $region23: #{_lambda_.42} parent=15 // pred_region
        %s144 = smul.u32 3, %s9
        %p145 = scmp.lt.s32.totalorder %s144, 5
        %s146 = scalar_select %p145, %s144, 5
        %s147 = smul.addr %s146, 8
        %s148 = scalar_lea.vmem %s1, %s147
        %s149 = smul.u32 3, %s9
      $region24: #{_lambda_.42} parent=15 // pred_fallthru
        _
      // Predicated region
      $region25: #{_lambda_.42} parent=15 // pred_check
        %p150 = pneg %p81
      $region26: #{_lambda_.42} parent=15 // pred_check_branch
        %152 = sbr.rel (%p150) target = $region28
      $region27: #{_lambda_.42} parent=15 // pred_region
        %s153 = smul.u32 3, %s9
        %p154 = scmp.lt.s32.totalorder %s153, 5
        %s155 = scalar_select %p154, %s153, 5
        %s156 = smul.addr %s155, 8
        %s157 = scalar_lea.vmem %s2, %s156
        %s158 = smul.u32 3, %s9
      $region28: #{_lambda_.42} parent=15 // pred_fallthru
        _
    $region16: #{_lambda_.42} parent=5 // pred_fallthru
      _
    %p159 = scmp.le.s32.totalorder 1, %s9
    %p160 = scmp.lt.s32.totalorder %s9, 3
    %p161 = pnand %p159, %p160
    %p162 = pneg %p161
    // Predicated region
    $region29: #{_lambda_.42} parent=5 // pred_check
      _
    $region30: #{_lambda_.42} parent=5 // pred_check_branch
      %164 = sbr.rel (%p161) target = $region32
    $region31: #{_lambda_.42} parent=5 // pred_region
      %s165 = ssub.s32 %s9, 1
      %s166 = smul.u32 3, %s14
      %p167 = scmp.lt.s32.totalorder %s166, 5
      %s168 = scalar_select %p167, %s166, 5
      %s169 = smul.addr %s168, 8
      %s170 = scalar_lea.vmem %s0, %s169
      %p171 = pneg %p35
      %p172 = pneg %p32
      %s173 = smul.u32 3, %s14
      %p174 = scmp.lt.s32.totalorder %s173, 5
      %s175 = scalar_select %p174, %s173, 5
      %s176 = smul.addr %s175, 8
      %s177 = scalar_lea.vmem %s1, %s176
      %p178 = pneg %p61
      %p179 = pneg %p58
      %s180 = smul.u32 3, %s14
      %p181 = scmp.lt.s32.totalorder %s180, 5
      %s182 = scalar_select %p181, %s180, 5
      %s183 = smul.addr %s182, 8
      %s184 = scalar_lea.vmem %s2, %s183
      %p185 = pneg %p87
      %p186 = pneg %p84
      %p187 = pneg %p113
      %p188 = pneg %p110
      %s189 = smul.u32 3, %s14
      %p190 = scmp.lt.s32.totalorder %s189, 5
      %s191 = scalar_select %p190, %s189, 5
      %s192 = smul.addr %s191, 8
      %s193 = scalar_lea.vmem %s3, %s192
      %s194 = smul.u32 3, %s14
      %p195 = scmp.lt.s32.totalorder %s194, 5
      %s196 = scalar_select %p195, %s194, 5
      %s197 = smul.addr %s196, 8
      %s198 = scalar_lea.vmem %s0, %s197
      %s199 = smul.u32 3, %s14
      %s200 = smul.u32 3, %s14
      %p201 = scmp.lt.s32.totalorder %s200, 5
      %s202 = scalar_select %p201, %s200, 5
      %s203 = smul.addr %s202, 8
      %s204 = scalar_lea.vmem %s1, %s203
      %s205 = smul.u32 3, %s14
      %s206 = smul.u32 3, %s14
      %p207 = scmp.lt.s32.totalorder %s206, 5
      %s208 = scalar_select %p207, %s206, 5
      %s209 = smul.addr %s208, 8
      %s210 = scalar_lea.vmem %s2, %s209
      %s211 = smul.u32 3, %s14
      %s212 = smul.u32 3, %s14
      %p213 = scmp.lt.s32.totalorder %s212, 5
      %s214 = scalar_select %p213, %s212, 5
      %s215 = smul.addr %s214, 8
      %s216 = scalar_lea.vmem %s3, %s215
      %s217 = smul.u32 3, %s14
      %v219 = vld [vmem:[%s198] sm:$0xff]
      %v220 = vld [vmem:[%s198 + $0x8] sm:$0xff]
      %v221 = vld [vmem:[%s198 + $0x10] sm:$0xff]
      %v222 = vld [vmem:[%s204] sm:$0xff]
      %v223 = vld [vmem:[%s204 + $0x8] sm:$0xff]
      %v224 = vld [vmem:[%s204 + $0x10] sm:$0xff]
      %v225 = vld [vmem:[%s210] sm:$0xff]
      %v226 = vld [vmem:[%s210 + $0x8] sm:$0xff]
      %v227 = vld [vmem:[%s210 + $0x10] sm:$0xff]
      %v228 = vlaneseq
      %v229 = vshrl.u32 %v228, 7
      %v230 = vlaneseq
      %v231 = vand.u32 %v230, 127
      %vm232 = vcmp.lt.s32.totalorder %v229, 2
      %v233 = vsel %vm232, %v219, -1e+30
      %v234 = vsel %vm232, %v220, -1e+30
      %v235 = vsel %vm232, %v221, -1e+30
      %v236 = vrot.slane %v233, 4
      %v237 = vmax.f32 %v233, %v236
      %v238 = vrot.slane %v237, 2
      %v239 = vmax.f32 %v237, %v238
      %v240 = vrot.slane %v239, 1
      %v241 = vmax.f32 %v239, %v240
      %v242 = vrot.slane %v234, 4
      %v243 = vmax.f32 %v234, %v242
      %v244 = vrot.slane %v243, 2
      %v245 = vmax.f32 %v243, %v244
      %v246 = vrot.slane %v245, 1
      %v247 = vmax.f32 %v245, %v246
      %v248 = vrot.slane %v235, 4
      %v249 = vmax.f32 %v235, %v248
      %v250 = vrot.slane %v249, 2
      %v251 = vmax.f32 %v249, %v250
      %v252 = vrot.slane %v251, 1
      %v253 = vmax.f32 %v251, %v252
      %v254 = vsub.f32 %v233, %v241
      %v255 = vsub.f32 %v234, %v247
      %v256 = vsub.f32 %v235, %v253
      %v257 = vmul.f32 %v254, 1.442695
      %v258 = vpow.pop %v257
      %v259 = vmul.f32 %v255, 1.442695
      %v260 = vpow.pop %v259
      %v261 = vmul.f32 %v256, 1.442695
      %v262 = vpow.pop %v261
      %v263 = vrot.slane %v258, 4
      %v264 = vadd.f32 %v258, %v263
      %v265 = vrot.slane %v264, 2
      %v266 = vadd.f32 %v264, %v265
      %v267 = vrot.slane %v266, 1
      %v268 = vadd.f32 %v266, %v267
      %v269 = vrot.slane %v260, 4
      %v270 = vadd.f32 %v260, %v269
      %v271 = vrot.slane %v270, 2
      %v272 = vadd.f32 %v270, %v271
      %v273 = vrot.slane %v272, 1
      %v274 = vadd.f32 %v272, %v273
      %v275 = vrot.slane %v262, 4
      %v276 = vadd.f32 %v262, %v275
      %v277 = vrot.slane %v276, 2
      %v278 = vadd.f32 %v276, %v277
      %v279 = vrot.slane %v278, 1
      %v280 = vadd.f32 %v278, %v279
      %v281 = vrcp.pop %v268
      %v282 = vmul.f32 %v258, %v281
      %v283 = vrcp.pop %v274
      %v284 = vmul.f32 %v260, %v283
      %v285 = vrcp.pop %v280
      %v286 = vmul.f32 %v262, %v285
      %v287 = vmul.f32 %v282, 0.70710677
      %v288 = vmul.f32 %v284, 0.70710677
      %v289 = vmul.f32 %v286, 0.70710677
      %vm290 = vcmp.lt.s32.totalorder %v231, 16
      %v291 = vsel %vm290, %v222, -1e+30
      %v292 = vsel %vm290, %v223, -1e+30
      %v293 = vsel %vm290, %v224, -1e+30
      %294 = vmax.xlane.f32.xlu0 %v291
      %v295 = vpop.xlane.xlu0 %294
      %296 = vmax.xlane.f32.xlu0 %v292
      %v297 = vpop.xlane.xlu0 %296
      %298 = vmax.xlane.f32.xlu0 %v293
      %v299 = vpop.xlane.xlu0 %298
      %v300 = vsub.f32 %v291, %v295
      %v301 = vsub.f32 %v292, %v297
      %v302 = vsub.f32 %v293, %v299
      %v303 = vmul.f32 %v300, 1.442695
      %v304 = vpow.pop %v303
      %v305 = vmul.f32 %v301, 1.442695
      %v306 = vpow.pop %v305
      %v307 = vmul.f32 %v302, 1.442695
      %v308 = vpow.pop %v307
      %309 = vadd.xlane.f32.xlu0 %v304
      %v310 = vpop.xlane.xlu0 %309
      %311 = vadd.xlane.f32.xlu0 %v306
      %v312 = vpop.xlane.xlu0 %311
      %313 = vadd.xlane.f32.xlu0 %v308
      %v314 = vpop.xlane.xlu0 %313
      %v315 = vrcp.pop %v310
      %v316 = vmul.f32 %v304, %v315
      %v317 = vrcp.pop %v312
      %v318 = vmul.f32 %v306, %v317
      %v319 = vrcp.pop %v314
      %v320 = vmul.f32 %v308, %v319
      %v321 = vpack.c.bf16 %v287, %v287
      %v322 = vpack.c.bf16 %v288, %v288
      %v323 = vpack.c.bf16 %v289, %v289
      %v324 = vpack.c.bf16 %v316, %v316
      %v325 = vpack.c.bf16 %v318, %v318
      %v326 = vpack.c.bf16 %v320, %v320
      %v327 = vpack.c.bf16 %v225, %v225
      %v328 = vpack.c.bf16 %v226, %v226
      %v329 = vpack.c.bf16 %v227, %v227
      %330 = vmatprep.subr.bf16.mxu0 0
      %331 = vmatpush1.bf16.xpose.msra.mxu0 %v324
      %332 = vmatprep.subr.bf16.mxu0 0
      %333 = vmatpush1.bf16.xpose.msra.mxu0 0
      %334 = vmatprep.subr.bf16.mxu0 0
      %335 = vmatpush1.bf16.xpose.msra.mxu0 0
      %336 = vmatprep.subr.bf16.mxu0 0
      %337 = vmatpush1.bf16.xpose.msra.mxu0 0
      %338 = vmatprep.subr.bf16.mxu0 0
      %339 = vmatpush1.bf16.xpose.msra.mxu0 0
      %340 = vmatprep.subr.bf16.mxu0 0
      %341 = vmatpush1.bf16.xpose.msra.mxu0 0
      %342 = vmatprep.subr.bf16.mxu0 0
      %343 = vmatpush1.bf16.xpose.msra.mxu0 0
      %344 = vmatprep.subr.bf16.mxu0 0
      %345 = vmatpush1.bf16.xpose.msra.mxu0 0
      %346 = vmatprep.subr.bf16.mxu0 0
      %347 = vmatpush1.bf16.xpose.msra.mxu0 0
      %348 = vmatprep.subr.bf16.mxu0 0
      %349 = vmatpush1.bf16.xpose.msra.mxu0 0
      %350 = vmatprep.subr.bf16.mxu0 0
      %351 = vmatpush1.bf16.xpose.msra.mxu0 0
      %352 = vmatprep.subr.bf16.mxu0 0
      %353 = vmatpush1.bf16.xpose.msra.mxu0 0
      %354 = vmatprep.subr.bf16.mxu0 0
      %355 = vmatpush1.bf16.xpose.msra.mxu0 0
      %356 = vmatprep.subr.bf16.mxu0 0
      %357 = vmatpush1.bf16.xpose.msra.mxu0 0
      %358 = vmatprep.subr.bf16.mxu0 0
      %359 = vmatpush1.bf16.xpose.msra.mxu0 0
      %360 = vmatprep.subr.bf16.mxu0 0
      %361 = vmatpush1.bf16.xpose.msra.mxu0 0
      %362 = vmatprep.mubr.bf16.mxu0 0
      %363 = vmatmul.mubr.bf16.gmra.mrb[0].mxu0 %v327
      %v364 = vpop.f32.mrb[0].mxu0
      %v365 = vadd.f32 0.0, %v364
      %v366 = vpop.f32.mrb[0].mxu0
      %v367 = vpop.f32.mrb[0].mxu0
      %v368 = vpop.f32.mrb[0].mxu0
      %369 = vdwg.mxu0
      %370 = vmatprep.subr.bf16.mxu0 0
      %371 = vmatpush1.bf16.xpose.msra.mxu0 %v325
      %372 = vmatprep.subr.bf16.mxu0 0
      %373 = vmatpush1.bf16.xpose.msra.mxu0 0
      %374 = vmatprep.subr.bf16.mxu0 0
      %375 = vmatpush1.bf16.xpose.msra.mxu0 0
      %376 = vmatprep.subr.bf16.mxu0 0
      %377 = vmatpush1.bf16.xpose.msra.mxu0 0
      %378 = vmatprep.subr.bf16.mxu0 0
      %379 = vmatpush1.bf16.xpose.msra.mxu0 0
      %380 = vmatprep.subr.bf16.mxu0 0
      %381 = vmatpush1.bf16.xpose.msra.mxu0 0
      %382 = vmatprep.subr.bf16.mxu0 0
      %383 = vmatpush1.bf16.xpose.msra.mxu0 0
      %384 = vmatprep.subr.bf16.mxu0 0
      %385 = vmatpush1.bf16.xpose.msra.mxu0 0
      %386 = vmatprep.subr.bf16.mxu0 0
      %387 = vmatpush1.bf16.xpose.msra.mxu0 0
      %388 = vmatprep.subr.bf16.mxu0 0
      %389 = vmatpush1.bf16.xpose.msra.mxu0 0
      %390 = vmatprep.subr.bf16.mxu0 0
      %391 = vmatpush1.bf16.xpose.msra.mxu0 0
      %392 = vmatprep.subr.bf16.mxu0 0
      %393 = vmatpush1.bf16.xpose.msra.mxu0 0
      %394 = vmatprep.subr.bf16.mxu0 0
      %395 = vmatpush1.bf16.xpose.msra.mxu0 0
      %396 = vmatprep.subr.bf16.mxu0 0
      %397 = vmatpush1.bf16.xpose.msra.mxu0 0
      %398 = vmatprep.subr.bf16.mxu0 0
      %399 = vmatpush1.bf16.xpose.msra.mxu0 0
      %400 = vmatprep.subr.bf16.mxu0 0
      %401 = vmatpush1.bf16.xpose.msra.mxu0 0
      %402 = vmatprep.mubr.bf16.mxu0 0
      %403 = vmatmul.mubr.bf16.gmra.mrb[0].mxu0 %v328
      %v404 = vpop.f32.mrb[0].mxu0
      %v405 = vadd.f32 0.0, %v404
      %v406 = vpop.f32.mrb[0].mxu0
      %v407 = vpop.f32.mrb[0].mxu0
      %v408 = vpop.f32.mrb[0].mxu0
      %409 = vdwg.mxu0
      %410 = vmatprep.subr.bf16.mxu0 0
      %411 = vmatpush1.bf16.xpose.msra.mxu0 %v326
      %412 = vmatprep.subr.bf16.mxu0 0
      %413 = vmatpush1.bf16.xpose.msra.mxu0 0
      %414 = vmatprep.subr.bf16.mxu0 0
      %415 = vmatpush1.bf16.xpose.msra.mxu0 0
      %416 = vmatprep.subr.bf16.mxu0 0
      %417 = vmatpush1.bf16.xpose.msra.mxu0 0
      %418 = vmatprep.subr.bf16.mxu0 0
      %419 = vmatpush1.bf16.xpose.msra.mxu0 0
      %420 = vmatprep.subr.bf16.mxu0 0
      %421 = vmatpush1.bf16.xpose.msra.mxu0 0
      %422 = vmatprep.subr.bf16.mxu0 0
      %423 = vmatpush1.bf16.xpose.msra.mxu0 0
      %424 = vmatprep.subr.bf16.mxu0 0
      %425 = vmatpush1.bf16.xpose.msra.mxu0 0
      %426 = vmatprep.subr.bf16.mxu0 0
      %427 = vmatpush1.bf16.xpose.msra.mxu0 0
      %428 = vmatprep.subr.bf16.mxu0 0
      %429 = vmatpush1.bf16.xpose.msra.mxu0 0
      %430 = vmatprep.subr.bf16.mxu0 0
      %431 = vmatpush1.bf16.xpose.msra.mxu0 0
      %432 = vmatprep.subr.bf16.mxu0 0
      %433 = vmatpush1.bf16.xpose.msra.mxu0 0
      %434 = vmatprep.subr.bf16.mxu0 0
      %435 = vmatpush1.bf16.xpose.msra.mxu0 0
      %436 = vmatprep.subr.bf16.mxu0 0
      %437 = vmatpush1.bf16.xpose.msra.mxu0 0
      %438 = vmatprep.subr.bf16.mxu0 0
      %439 = vmatpush1.bf16.xpose.msra.mxu0 0
      %440 = vmatprep.subr.bf16.mxu0 0
      %441 = vmatpush1.bf16.xpose.msra.mxu0 0
      %442 = vmatprep.mubr.bf16.mxu0 0
      %443 = vmatmul.mubr.bf16.gmra.mrb[0].mxu0 %v329
      %v444 = vpop.f32.mrb[0].mxu0
      %v445 = vadd.f32 0.0, %v444
      %v446 = vpop.f32.mrb[0].mxu0
      %v447 = vpop.f32.mrb[0].mxu0
      %v448 = vpop.f32.mrb[0].mxu0
      %449 = vdwg.mxu0
      %v450 = vpack.c.bf16 %v365, %v365
      %v451 = vpack.c.bf16 %v405, %v405
      %v452 = vpack.c.bf16 %v445, %v445
      %vm453 = vcmask 64512
      %v455 = vsel %vm453, %v450, 0
      %vm457 = vcmask 1043456
      %v459 = vsel %vm457, %v321, 0
      %461 = vmatprep.subr.bf16.mxu0 0
      %462 = vmatpush1.bf16.msra.mxu0 %v459
      %463 = vmatprep.subr.bf16.mxu0 0
      %464 = vmatpush1.bf16.msra.mxu0 0
      %465 = vmatprep.subr.bf16.mxu0 0
      %466 = vmatpush1.bf16.msra.mxu0 0
      %467 = vmatprep.subr.bf16.mxu0 0
      %468 = vmatpush1.bf16.msra.mxu0 0
      %469 = vmatprep.subr.bf16.mxu0 0
      %470 = vmatpush1.bf16.msra.mxu0 0
      %471 = vmatprep.subr.bf16.mxu0 0
      %472 = vmatpush1.bf16.msra.mxu0 0
      %473 = vmatprep.subr.bf16.mxu0 0
      %474 = vmatpush1.bf16.msra.mxu0 0
      %475 = vmatprep.subr.bf16.mxu0 0
      %476 = vmatpush1.bf16.msra.mxu0 0
      %477 = vmatprep.subr.bf16.mxu0 0
      %478 = vmatpush1.bf16.msra.mxu0 0
      %479 = vmatprep.subr.bf16.mxu0 0
      %480 = vmatpush1.bf16.msra.mxu0 0
      %481 = vmatprep.subr.bf16.mxu0 0
      %482 = vmatpush1.bf16.msra.mxu0 0
      %483 = vmatprep.subr.bf16.mxu0 0
      %484 = vmatpush1.bf16.msra.mxu0 0
      %485 = vmatprep.subr.bf16.mxu0 0
      %486 = vmatpush1.bf16.msra.mxu0 0
      %487 = vmatprep.subr.bf16.mxu0 0
      %488 = vmatpush1.bf16.msra.mxu0 0
      %489 = vmatprep.subr.bf16.mxu0 0
      %490 = vmatpush1.bf16.msra.mxu0 0
      %491 = vmatprep.subr.bf16.mxu0 0
      %492 = vmatpush1.bf16.msra.mxu0 0
      %493 = vmatprep.mubr.bf16.mxu0 0
      %494 = vmatmul.mubr.bf16.gmra.mrb[0].mxu0 %v455
      %v495 = vpop.f32.mrb[0].mxu0
      %v496 = vadd.f32 0.0, %v495
      %v497 = vpop.f32.mrb[0].mxu0
      %v498 = vpop.f32.mrb[0].mxu0
      %v499 = vpop.f32.mrb[0].mxu0
      %500 = vdwg.mxu0
      %v502 = vsel %vm453, %v451, 0
      %v505 = vsel %vm457, %v322, 0
      %507 = vmatprep.subr.bf16.mxu0 0
      %508 = vmatpush1.bf16.msra.mxu0 %v505
      %509 = vmatprep.subr.bf16.mxu0 0
      %510 = vmatpush1.bf16.msra.mxu0 0
      %511 = vmatprep.subr.bf16.mxu0 0
      %512 = vmatpush1.bf16.msra.mxu0 0
      %513 = vmatprep.subr.bf16.mxu0 0
      %514 = vmatpush1.bf16.msra.mxu0 0
      %515 = vmatprep.subr.bf16.mxu0 0
      %516 = vmatpush1.bf16.msra.mxu0 0
      %517 = vmatprep.subr.bf16.mxu0 0
      %518 = vmatpush1.bf16.msra.mxu0 0
      %519 = vmatprep.subr.bf16.mxu0 0
      %520 = vmatpush1.bf16.msra.mxu0 0
      %521 = vmatprep.subr.bf16.mxu0 0
      %522 = vmatpush1.bf16.msra.mxu0 0
      %523 = vmatprep.subr.bf16.mxu0 0
      %524 = vmatpush1.bf16.msra.mxu0 0
      %525 = vmatprep.subr.bf16.mxu0 0
      %526 = vmatpush1.bf16.msra.mxu0 0
      %527 = vmatprep.subr.bf16.mxu0 0
      %528 = vmatpush1.bf16.msra.mxu0 0
      %529 = vmatprep.subr.bf16.mxu0 0
      %530 = vmatpush1.bf16.msra.mxu0 0
      %531 = vmatprep.subr.bf16.mxu0 0
      %532 = vmatpush1.bf16.msra.mxu0 0
      %533 = vmatprep.subr.bf16.mxu0 0
      %534 = vmatpush1.bf16.msra.mxu0 0
      %535 = vmatprep.subr.bf16.mxu0 0
      %536 = vmatpush1.bf16.msra.mxu0 0
      %537 = vmatprep.subr.bf16.mxu0 0
      %538 = vmatpush1.bf16.msra.mxu0 0
      %539 = vmatprep.mubr.bf16.mxu0 0
      %540 = vmatmul.mubr.bf16.gmra.mrb[0].mxu0 %v502
      %v541 = vpop.f32.mrb[0].mxu0
      %v542 = vadd.f32 0.0, %v541
      %v543 = vpop.f32.mrb[0].mxu0
      %v544 = vpop.f32.mrb[0].mxu0
      %v545 = vpop.f32.mrb[0].mxu0
      %546 = vdwg.mxu0
      %v548 = vsel %vm453, %v452, 0
      %v551 = vsel %vm457, %v323, 0
      %553 = vmatprep.subr.bf16.mxu0 0
      %554 = vmatpush1.bf16.msra.mxu0 %v551
      %555 = vmatprep.subr.bf16.mxu0 0
      %556 = vmatpush1.bf16.msra.mxu0 0
      %557 = vmatprep.subr.bf16.mxu0 0
      %558 = vmatpush1.bf16.msra.mxu0 0
      %559 = vmatprep.subr.bf16.mxu0 0
      %560 = vmatpush1.bf16.msra.mxu0 0
      %561 = vmatprep.subr.bf16.mxu0 0
      %562 = vmatpush1.bf16.msra.mxu0 0
      %563 = vmatprep.subr.bf16.mxu0 0
      %564 = vmatpush1.bf16.msra.mxu0 0
      %565 = vmatprep.subr.bf16.mxu0 0
      %566 = vmatpush1.bf16.msra.mxu0 0
      %567 = vmatprep.subr.bf16.mxu0 0
      %568 = vmatpush1.bf16.msra.mxu0 0
      %569 = vmatprep.subr.bf16.mxu0 0
      %570 = vmatpush1.bf16.msra.mxu0 0
      %571 = vmatprep.subr.bf16.mxu0 0
      %572 = vmatpush1.bf16.msra.mxu0 0
      %573 = vmatprep.subr.bf16.mxu0 0
      %574 = vmatpush1.bf16.msra.mxu0 0
      %575 = vmatprep.subr.bf16.mxu0 0
      %576 = vmatpush1.bf16.msra.mxu0 0
      %577 = vmatprep.subr.bf16.mxu0 0
      %578 = vmatpush1.bf16.msra.mxu0 0
      %579 = vmatprep.subr.bf16.mxu0 0
      %580 = vmatpush1.bf16.msra.mxu0 0
      %581 = vmatprep.subr.bf16.mxu0 0
      %582 = vmatpush1.bf16.msra.mxu0 0
      %583 = vmatprep.subr.bf16.mxu0 0
      %584 = vmatpush1.bf16.msra.mxu0 0
      %585 = vmatprep.mubr.bf16.mxu0 0
      %586 = vmatmul.mubr.bf16.gmra.mrb[0].mxu0 %v548
      %v587 = vpop.f32.mrb[0].mxu0
      %v588 = vadd.f32 0.0, %v587
      %v589 = vpop.f32.mrb[0].mxu0
      %v590 = vpop.f32.mrb[0].mxu0
      %v591 = vpop.f32.mrb[0].mxu0
      %592 = vdwg.mxu0
      %593 = vst [vmem:[%s216] sm:$0xff] %v496
      %594 = vst [vmem:[%s216 + $0x8] sm:$0xff] %v542
      %595 = vst [vmem:[%s216 + $0x10] sm:$0xff] %v588
      %s596 = smul.u32 3, %s14
      %p597 = scmp.lt.s32.totalorder %s596, 5
      %s598 = scalar_select %p597, %s596, 5
      %s599 = smul.addr %s598, 8
      %s600 = scalar_lea.vmem %s3, %s599
      // Predicated region
      $region33: #{_lambda_.42} parent=31 // pred_check
        %p601 = pneg %p110
      $region34: #{_lambda_.42} parent=31 // pred_check_branch
        %603 = sbr.rel (%p601) target = $region36
      $region35: #{_lambda_.42} parent=31 // pred_region
        %s604 = smul.u32 3, %s14
      $region36: #{_lambda_.42} parent=31 // pred_fallthru
        _
    $region32: #{_lambda_.42} parent=5 // pred_fallthru
      _
    %p605 = scmp.le.s32.totalorder 2, %s9
    // Predicated region
    $region37: #{_lambda_.42} parent=5 // pred_check
      %p606 = pneg %p605
    $region38: #{_lambda_.42} parent=5 // pred_check_branch
      %608 = sbr.rel (%p606) target = $region40
    $region39: #{_lambda_.42} parent=5 // pred_region
      %s609 = ssub.s32 %s9, 2
      // Predicated region
      $region41: #{_lambda_.42} parent=39 // pred_check
        %p610 = pneg %p116
      $region42: #{_lambda_.42} parent=39 // pred_check_branch
        %612 = sbr.rel (%p610) target = $region44
      $region43: #{_lambda_.42} parent=39 // pred_region
        %s613 = smul.u32 3, %s15
        %p614 = scmp.lt.s32.totalorder %s613, 5
        %s615 = scalar_select %p614, %s613, 5
        %s616 = smul.addr %s615, 8
        %s617 = scalar_lea.vmem %s3, %s616
      $region44: #{_lambda_.42} parent=39 // pred_fallthru
        _
    $region40: #{_lambda_.42} parent=5 // pred_fallthru
      _
  $region6: #{_lambda_.42} parent=0 // loop_footer
    %s13 = sadd.s32 1, %s9
  $region7: #{_lambda_.42} parent=0 // loop_footer_branch
    %8 = sbr.rel target = $region3
  $region8: #{_lambda_.42} parent=0 // loop_exit
    _

// kernel: _lambda_.43
$region0: #{_lambda_.43}
  #allocation0 [shape = 'u32[]', space=smem, size = 0x4, offset = 0x4, fixed_abs, tag = 'smem constant byte address 0x4 - core index']
  #allocation1 [shape = 'u32[144,128]{1,0:T(1,128)}', space=vmem, size = 0x12000, scoped, tag = 'internal scratch']
  %s0 = inlined_call_operand.vmem [shape: bf16[2,16,128], index: 0, kind: input, shape index: {}]
  %s1 = inlined_call_operand.vmem [shape: bf16[128,128], index: 1, kind: input, shape index: {}]
  %s2 = inlined_call_operand.vmem [shape: f32[1,128], index: 2, kind: input, shape index: {}]
  %s3 = inlined_call_operand.vmem [shape: bf16[2,16,128], index: 3, kind: input, shape index: {}]
  %s4 = inlined_call_operand.vmem [shape: bf16[2,16,128], index: 4, kind: output, shape index: {}]
  %s5 = sld [smem:[#allocation0]]
  $region49: #{_lambda_.43} parent=0
    _
  %s7 = ssub.s32 1, %s5
  %s8 = scalar_select 0, %s7, %s5
  loop: start=0, step=1, limit=4
  $region2: #{_lambda_.43} parent=0 // loop_pre_header
    _
  $region3: #{_lambda_.43} parent=0 // loop_header
    %s10 = sphi 0, %s14
    %p11 = scmp.ge.s32.totalorder %s10, 4
    %s17 = sphi 0, %s29
    %s18 = sphi 0, %s25
    %s19 = sphi 0, %s17
    %s20 = sphi 0, %s18
    %s21 = sphi 0, %s19
    %s22 = sphi 0, %s20
    %s34 = sphi 0, %s36
    %s37 = sphi 0, %s34
    %s38 = sphi 0, %s37
    %s54 = sphi 0, %s38
    %s58 = sphi 0, %s58
    %s60 = sphi 0, %s58
    %s61 = sphi 0, %s60
    %s75 = sphi 0, %s61
    %s79 = sphi 0, %s79
    %s81 = sphi 0, %s79
    %s82 = sphi 0, %s81
    %s96 = sphi 0, %s82
    %s104 = sphi 0, %s106
    %s107 = sphi 0, %s104
    %s108 = sphi 0, %s107
    %s124 = sphi 0, %s108
    %s132 = sphi 0, %s134
    %s135 = sphi 0, %s132
    %s136 = sphi 0, %s135
    %s152 = sphi 0, %s136
  $region4: #{_lambda_.43} parent=0 // loop_header_branch
    %13 = sbr.rel (%p11) target = $region8
  $region5: #{_lambda_.43} parent=0 // loop_body
    %s15 = ssub.s32 %s10, 1
    %s16 = ssub.s32 %s10, 2
    %s23 = sadd.s32 1, %s18
    %p24 = scmp.ge.s32.totalorder %s23, 1
    %s25 = scalar_select %p24, 0, %s23
    %s26 = sadd.s32 1, %s17
    %s27 = scalar_select %p24, %s26, %s17
    %p28 = scmp.ge.s32.totalorder %s27, 2
    %s29 = scalar_select %p28, 0, %s27
    %s30 = ssub.s32 %s17, %s29
    %s31 = ssub.s32 %s18, %s25
    %s32 = sor.u32 %s30, %s31
    %p33 = scmp.eq.s32.totalorder %s32, 0
    %s35 = sadd.s32 %s34, 1
    %s36 = scalar_select %p33, %s34, %s35
    %p39 = pneg %p33
    %p40 = scmp.eq.s32.totalorder %s10, 1
    %p41 = por %p39, %p40
    %p42 = scmp.ne.s32.totalorder %s34, %s37
    %p43 = scmp.eq.s32.totalorder %s10, 0
    %p44 = por %p42, %p43
    %p45 = scmp.ne.s32.totalorder %s34, %s37
    %p46 = scmp.eq.s32.totalorder %s15, 1
    %p47 = por %p45, %p46
    %p48 = scmp.ne.s32.totalorder %s37, %s38
    %p49 = scmp.eq.s32.totalorder %s15, 0
    %p50 = por %p48, %p49
    %p51 = scmp.ne.s32.totalorder %s37, %s38
    %p52 = scmp.eq.s32.totalorder %s16, 1
    %p53 = por %p51, %p52
    %p55 = scmp.ne.s32.totalorder %s38, %s54
    %p56 = scmp.eq.s32.totalorder %s16, 0
    %p57 = por %p55, %p56
    %s59 = sadd.s32 %s58, 1
    %p62 = scmp.eq.s32.totalorder %s10, 1
    %p63 = scmp.ne.s32.totalorder %s58, %s60
    %p64 = scmp.eq.s32.totalorder %s10, 0
    %p65 = por %p63, %p64
    %p66 = scmp.ne.s32.totalorder %s58, %s60
    %p67 = scmp.eq.s32.totalorder %s15, 1
    %p68 = por %p66, %p67
    %p69 = scmp.ne.s32.totalorder %s60, %s61
    %p70 = scmp.eq.s32.totalorder %s15, 0
    %p71 = por %p69, %p70
    %p72 = scmp.ne.s32.totalorder %s60, %s61
    %p73 = scmp.eq.s32.totalorder %s16, 1
    %p74 = por %p72, %p73
    %p76 = scmp.ne.s32.totalorder %s61, %s75
    %p77 = scmp.eq.s32.totalorder %s16, 0
    %p78 = por %p76, %p77
    %s80 = sadd.s32 %s79, 1
    %p83 = scmp.eq.s32.totalorder %s10, 1
    %p84 = scmp.ne.s32.totalorder %s79, %s81
    %p85 = scmp.eq.s32.totalorder %s10, 0
    %p86 = por %p84, %p85
    %p87 = scmp.ne.s32.totalorder %s79, %s81
    %p88 = scmp.eq.s32.totalorder %s15, 1
    %p89 = por %p87, %p88
    %p90 = scmp.ne.s32.totalorder %s81, %s82
    %p91 = scmp.eq.s32.totalorder %s15, 0
    %p92 = por %p90, %p91
    %p93 = scmp.ne.s32.totalorder %s81, %s82
    %p94 = scmp.eq.s32.totalorder %s16, 1
    %p95 = por %p93, %p94
    %p97 = scmp.ne.s32.totalorder %s82, %s96
    %p98 = scmp.eq.s32.totalorder %s16, 0
    %p99 = por %p97, %p98
    %s100 = ssub.s32 %s17, %s29
    %s101 = ssub.s32 %s18, %s25
    %s102 = sor.u32 %s100, %s101
    %p103 = scmp.eq.s32.totalorder %s102, 0
    %s105 = sadd.s32 %s104, 1
    %s106 = scalar_select %p103, %s104, %s105
    %p109 = pneg %p103
    %p110 = scmp.eq.s32.totalorder %s10, 1
    %p111 = por %p109, %p110
    %p112 = scmp.ne.s32.totalorder %s104, %s107
    %p113 = scmp.eq.s32.totalorder %s10, 0
    %p114 = por %p112, %p113
    %p115 = scmp.ne.s32.totalorder %s104, %s107
    %p116 = scmp.eq.s32.totalorder %s15, 1
    %p117 = por %p115, %p116
    %p118 = scmp.ne.s32.totalorder %s107, %s108
    %p119 = scmp.eq.s32.totalorder %s15, 0
    %p120 = por %p118, %p119
    %p121 = scmp.ne.s32.totalorder %s107, %s108
    %p122 = scmp.eq.s32.totalorder %s16, 1
    %p123 = por %p121, %p122
    %p125 = scmp.ne.s32.totalorder %s108, %s124
    %p126 = scmp.eq.s32.totalorder %s16, 0
    %p127 = por %p125, %p126
    %s128 = ssub.s32 %s17, %s29
    %s129 = ssub.s32 %s18, %s25
    %s130 = sor.u32 %s128, %s129
    %p131 = scmp.eq.s32.totalorder %s130, 0
    %s133 = sadd.s32 %s132, 1
    %s134 = scalar_select %p131, %s132, %s133
    %p137 = pneg %p131
    %p138 = scmp.eq.s32.totalorder %s10, 1
    %p139 = por %p137, %p138
    %p140 = scmp.ne.s32.totalorder %s132, %s135
    %p141 = scmp.eq.s32.totalorder %s10, 0
    %p142 = por %p140, %p141
    %p143 = scmp.ne.s32.totalorder %s132, %s135
    %p144 = scmp.eq.s32.totalorder %s15, 1
    %p145 = por %p143, %p144
    %p146 = scmp.ne.s32.totalorder %s135, %s136
    %p147 = scmp.eq.s32.totalorder %s15, 0
    %p148 = por %p146, %p147
    %p149 = scmp.ne.s32.totalorder %s135, %s136
    %p150 = scmp.eq.s32.totalorder %s16, 1
    %p151 = por %p149, %p150
    %p153 = scmp.ne.s32.totalorder %s136, %s152
    %p154 = scmp.eq.s32.totalorder %s16, 0
    %p155 = por %p153, %p154
    %p156 = scmp.le.s32.totalorder 1, %s10
    %p157 = scmp.lt.s32.totalorder %s10, 3
    %p158 = pnand %p156, %p157
    %p159 = pneg %p158
    // Predicated region
    $region9: #{_lambda_.43} parent=5 // pred_check
      _
    $region10: #{_lambda_.43} parent=5 // pred_check_branch
      %161 = sbr.rel (%p158) target = $region12
    $region11: #{_lambda_.43} parent=5 // pred_region
      %s162 = ssub.s32 %s10, 1
      // Predicated region
      $region13: #{_lambda_.43} parent=11 // pred_check
        %p163 = pneg %p71
      $region14: #{_lambda_.43} parent=11 // pred_check_branch
        %165 = sbr.rel (%p163) target = $region16
      $region15: #{_lambda_.43} parent=11 // pred_region
        _
      $region16: #{_lambda_.43} parent=11 // pred_fallthru
        _
      // Predicated region
      $region17: #{_lambda_.43} parent=11 // pred_check
        %p166 = pneg %p92
      $region18: #{_lambda_.43} parent=11 // pred_check_branch
        %168 = sbr.rel (%p166) target = $region20
      $region19: #{_lambda_.43} parent=11 // pred_region
        _
      $region20: #{_lambda_.43} parent=11 // pred_fallthru
        _
    $region12: #{_lambda_.43} parent=5 // pred_fallthru
      _
    %p169 = scmp.lt.s32.totalorder %s10, 2
    // Predicated region
    $region21: #{_lambda_.43} parent=5 // pred_check
      %p170 = pneg %p169
    $region22: #{_lambda_.43} parent=5 // pred_check_branch
      %172 = sbr.rel (%p170) target = $region24
    $region23: #{_lambda_.43} parent=5 // pred_region
      // Predicated region
      $region25: #{_lambda_.43} parent=23 // pred_check
        %p173 = pneg %p44
      $region26: #{_lambda_.43} parent=23 // pred_check_branch
        %175 = sbr.rel (%p173) target = $region28
      $region27: #{_lambda_.43} parent=23 // pred_region
        %s176 = smul.u32 2, %s18
        %p177 = scmp.lt.s32.totalorder %s17, 1
        %s178 = scalar_select %p177, %s17, 1
        %p179 = scmp.lt.s32.totalorder %s176, 1
        %s180 = scalar_select %p179, %s176, 1
        %s181 = smul.addr %s178, 2
        %s182 = sadd.s32 %s180, %s181
        %s183 = smul.addr %s182, 4
        %s184 = scalar_lea.vmem %s0, %s183
        %s185 = smul.u32 2, %s18
      $region28: #{_lambda_.43} parent=23 // pred_fallthru
        _
      // Predicated region
      $region29: #{_lambda_.43} parent=23 // pred_check
        %p186 = pneg %p114
      $region30: #{_lambda_.43} parent=23 // pred_check_branch
        %188 = sbr.rel (%p186) target = $region32
      $region31: #{_lambda_.43} parent=23 // pred_region
        %s189 = smul.u32 2, %s18
        %p190 = scmp.lt.s32.totalorder %s17, 1
        %s191 = scalar_select %p190, %s17, 1
        %p192 = scmp.lt.s32.totalorder %s189, 1
        %s193 = scalar_select %p192, %s189, 1
        %s194 = smul.addr %s191, 2
        %s195 = sadd.s32 %s193, %s194
        %s196 = smul.addr %s195, 4
        %s197 = scalar_lea.vmem %s3, %s196
        %s198 = smul.u32 2, %s18
      $region32: #{_lambda_.43} parent=23 // pred_fallthru
        _
    $region24: #{_lambda_.43} parent=5 // pred_fallthru
      _
    %p199 = scmp.le.s32.totalorder 1, %s10
    %p200 = scmp.lt.s32.totalorder %s10, 3
    %p201 = pnand %p199, %p200
    %p202 = pneg %p201
    // Predicated region
    $region33: #{_lambda_.43} parent=5 // pred_check
      _
    $region34: #{_lambda_.43} parent=5 // pred_check_branch
      %204 = sbr.rel (%p201) target = $region36
    $region35: #{_lambda_.43} parent=5 // pred_region
      %s205 = ssub.s32 %s10, 1
      %s206 = smul.u32 2, %s20
      %p207 = scmp.lt.s32.totalorder %s19, 1
      %s208 = scalar_select %p207, %s19, 1
      %p209 = scmp.lt.s32.totalorder %s206, 1
      %s210 = scalar_select %p209, %s206, 1
      %s211 = smul.addr %s208, 2
      %s212 = sadd.s32 %s210, %s211
      %s213 = smul.addr %s212, 4
      %s214 = scalar_lea.vmem %s0, %s213
      %p215 = pneg %p50
      %p216 = pneg %p47
      %p217 = pneg %p71
      %p218 = pneg %p68
      %p219 = pneg %p92
      %p220 = pneg %p89
      %s221 = smul.u32 2, %s20
      %p222 = scmp.lt.s32.totalorder %s19, 1
      %s223 = scalar_select %p222, %s19, 1
      %p224 = scmp.lt.s32.totalorder %s221, 1
      %s225 = scalar_select %p224, %s221, 1
      %s226 = smul.addr %s223, 2
      %s227 = sadd.s32 %s225, %s226
      %s228 = smul.addr %s227, 4
      %s229 = scalar_lea.vmem %s3, %s228
      %p230 = pneg %p120
      %p231 = pneg %p117
      %p232 = pneg %p148
      %p233 = pneg %p145
      %s234 = smul.u32 2, %s20
      %p235 = scmp.lt.s32.totalorder %s19, 1
      %s236 = scalar_select %p235, %s19, 1
      %p237 = scmp.lt.s32.totalorder %s234, 1
      %s238 = scalar_select %p237, %s234, 1
      %s239 = smul.addr %s236, 2
      %s240 = sadd.s32 %s238, %s239
      %s241 = smul.addr %s240, 4
      %s242 = scalar_lea.vmem %s4, %s241
      %s243 = smul.u32 2, %s20
      %p244 = scmp.lt.s32.totalorder %s19, 1
      %s245 = scalar_select %p244, %s19, 1
      %p246 = scmp.lt.s32.totalorder %s243, 1
      %s247 = scalar_select %p246, %s243, 1
      %s248 = smul.addr %s245, 2
      %s249 = sadd.s32 %s247, %s248
      %s250 = smul.addr %s249, 4
      %s251 = scalar_lea.vmem %s0, %s250
      %s252 = smul.u32 2, %s20
      %s253 = smul.u32 2, %s20
      %p254 = scmp.lt.s32.totalorder %s19, 1
      %s255 = scalar_select %p254, %s19, 1
      %p256 = scmp.lt.s32.totalorder %s253, 1
      %s257 = scalar_select %p256, %s253, 1
      %s258 = smul.addr %s255, 2
      %s259 = sadd.s32 %s257, %s258
      %s260 = smul.addr %s259, 4
      %s261 = scalar_lea.vmem %s3, %s260
      %s262 = smul.u32 2, %s20
      %s263 = smul.u32 2, %s20
      %p264 = scmp.lt.s32.totalorder %s19, 1
      %s265 = scalar_select %p264, %s19, 1
      %p266 = scmp.lt.s32.totalorder %s263, 1
      %s267 = scalar_select %p266, %s263, 1
      %s268 = smul.addr %s265, 2
      %s269 = sadd.s32 %s267, %s268
      %s270 = smul.addr %s269, 4
      %s271 = scalar_lea.vmem %s4, %s270
      %s272 = smul.u32 2, %s20
      %v274 = vld [vmem:[%s251] sm:$0xf]
      %v275 = vld [vmem:[%s251 + $0x4] sm:$0xf]
      %v276 = vld [vmem:[%s1] sm:$0xf]
      %v277 = vld [vmem:[%s1 + $0x4] sm:$0xf]
      %v278 = vld [vmem:[%s1 + $0x8] sm:$0xf]
      %v279 = vld [vmem:[%s1 + $0xc] sm:$0xf]
      %v280 = vld [vmem:[%s1 + $0x10] sm:$0xf]
      %v281 = vld [vmem:[%s1 + $0x14] sm:$0xf]
      %v282 = vld [vmem:[%s1 + $0x18] sm:$0xf]
      %v283 = vld [vmem:[%s1 + $0x1c] sm:$0xf]
      %v284 = vld [vmem:[%s1 + $0x20] sm:$0xf]
      %v285 = vld [vmem:[%s1 + $0x24] sm:$0xf]
      %v286 = vld [vmem:[%s1 + $0x28] sm:$0xf]
      %v287 = vld [vmem:[%s1 + $0x2c] sm:$0xf]
      %v288 = vld [vmem:[%s1 + $0x30] sm:$0xf]
      %v289 = vld [vmem:[%s1 + $0x34] sm:$0xf]
      %v290 = vld [vmem:[%s1 + $0x38] sm:$0xf]
      %v291 = vld [vmem:[%s1 + $0x3c] sm:$0xf]
      %v292 = vld [vmem:[%s2] sm:$0x1]
      %v294 = vlaneseq
      %v295 = vshrl.u32 %v294, 7
      %v296 = vsub.s32 0, %v295
      %v297 = vrot.slane %v292, %v296
      %v301 = vunpack.c.l.b16 %v274
      %v302 = vunpack.c.l.b16 %v275
      %v303 = vpack.c.b16 %v302, %v301
      %v321 = vunpack.c.l.b16 %v276
      %v322 = vunpack.c.l.b16 %v277
      %v323 = vunpack.c.l.b16 %v278
      %v324 = vunpack.c.l.b16 %v279
      %v325 = vunpack.c.l.b16 %v280
      %v326 = vunpack.c.l.b16 %v281
      %v327 = vunpack.c.l.b16 %v282
      %v328 = vunpack.c.l.b16 %v283
      %v329 = vunpack.c.l.b16 %v284
      %v330 = vunpack.c.l.b16 %v285
      %v331 = vunpack.c.l.b16 %v286
      %v332 = vunpack.c.l.b16 %v287
      %v333 = vunpack.c.l.b16 %v288
      %v334 = vunpack.c.l.b16 %v289
      %v335 = vunpack.c.l.b16 %v290
      %v336 = vunpack.c.l.b16 %v291
      %v337 = vpack.c.b16 %v322, %v321
      %v338 = vpack.c.b16 %v324, %v323
      %v339 = vpack.c.b16 %v326, %v325
      %v340 = vpack.c.b16 %v328, %v327
      %v341 = vpack.c.b16 %v330, %v329
      %v342 = vpack.c.b16 %v332, %v331
      %v343 = vpack.c.b16 %v334, %v333
      %v344 = vpack.c.b16 %v336, %v335
      %353 = vmatprep.subr.bf16.mxu0 0
      %354 = vmatpush1.bf16.msra.mxu0 %v337
      %355 = vmatprep.subr.bf16.mxu0 0
      %356 = vmatpush1.bf16.msra.mxu0 %v338
      %357 = vmatprep.subr.bf16.mxu0 0
      %358 = vmatpush1.bf16.msra.mxu0 %v339
      %359 = vmatprep.subr.bf16.mxu0 0
      %360 = vmatpush1.bf16.msra.mxu0 %v340
      %361 = vmatprep.subr.bf16.mxu0 0
      %362 = vmatpush1.bf16.msra.mxu0 %v341
      %363 = vmatprep.subr.bf16.mxu0 0
      %364 = vmatpush1.bf16.msra.mxu0 %v342
      %365 = vmatprep.subr.bf16.mxu0 0
      %366 = vmatpush1.bf16.msra.mxu0 %v343
      %367 = vmatprep.subr.bf16.mxu0 0
      %368 = vmatpush1.bf16.msra.mxu0 %v344
      %369 = vmatprep.subr.bf16.mxu0 0
      %370 = vmatpush1.bf16.msra.mxu0 0
      %371 = vmatprep.subr.bf16.mxu0 0
      %372 = vmatpush1.bf16.msra.mxu0 0
      %373 = vmatprep.subr.bf16.mxu0 0
      %374 = vmatpush1.bf16.msra.mxu0 0
      %375 = vmatprep.subr.bf16.mxu0 0
      %376 = vmatpush1.bf16.msra.mxu0 0
      %377 = vmatprep.subr.bf16.mxu0 0
      %378 = vmatpush1.bf16.msra.mxu0 0
      %379 = vmatprep.subr.bf16.mxu0 0
      %380 = vmatpush1.bf16.msra.mxu0 0
      %381 = vmatprep.subr.bf16.mxu0 0
      %382 = vmatpush1.bf16.msra.mxu0 0
      %383 = vmatprep.subr.bf16.mxu0 0
      %384 = vmatpush1.bf16.msra.mxu0 0
      %385 = vmatprep.mubr.bf16.mxu0 0
      %386 = vmatmul.mubr.bf16.gmra.mrb[0].mxu0 %v303
      %v387 = vpop.f32.mrb[0].mxu0
      %v388 = vadd.f32 %v297, %v387
      %v389 = vpop.f32.mrb[0].mxu0
      %v390 = vpop.f32.mrb[0].mxu0
      %v391 = vadd.f32 %v297, %v390
      %v392 = vpop.f32.mrb[0].mxu0
      %393 = vdwg.mxu0
      %v394 = vld [vmem:[%s261] sm:$0xf]
      %v395 = vld [vmem:[%s261 + $0x4] sm:$0xf]
      %v396 = vunpack.c.l.bf16 %v394
      %v397 = vunpack.c.l.bf16 %v395
      %v398 = vadd.f32 %v388, %v396
      %v399 = vadd.f32 %v391, %v397
      %v400 = vpack.c.bf16 %v399, %v398
      %v402 = vunpack.c.l.b16 %v400
      %v403 = vunpack.c.h.b16 %v400
      %v404 = vpack.c.b16 %v402, %v402
      %v405 = vpack.c.b16 %v403, %v403
      %408 = vst [vmem:[%s271] sm:$0xf] %v404
      %409 = vst [vmem:[%s271 + $0x4] sm:$0xf] %v405
      %s410 = smul.u32 2, %s20
      %p411 = scmp.lt.s32.totalorder %s19, 1
      %s412 = scalar_select %p411, %s19, 1
      %p413 = scmp.lt.s32.totalorder %s410, 1
      %s414 = scalar_select %p413, %s410, 1
      %s415 = smul.addr %s412, 2
      %s416 = sadd.s32 %s414, %s415
      %s417 = smul.addr %s416, 4
      %s418 = scalar_lea.vmem %s4, %s417
      // Predicated region
      $region37: #{_lambda_.43} parent=35 // pred_check
        %p419 = pneg %p145
      $region38: #{_lambda_.43} parent=35 // pred_check_branch
        %421 = sbr.rel (%p419) target = $region40
      $region39: #{_lambda_.43} parent=35 // pred_region
        %s422 = smul.u32 2, %s20
      $region40: #{_lambda_.43} parent=35 // pred_fallthru
        _
    $region36: #{_lambda_.43} parent=5 // pred_fallthru
      _
    %p423 = scmp.le.s32.totalorder 2, %s10
    // Predicated region
    $region41: #{_lambda_.43} parent=5 // pred_check
      %p424 = pneg %p423
    $region42: #{_lambda_.43} parent=5 // pred_check_branch
      %426 = sbr.rel (%p424) target = $region44
    $region43: #{_lambda_.43} parent=5 // pred_region
      %s427 = ssub.s32 %s10, 2
      // Predicated region
      $region45: #{_lambda_.43} parent=43 // pred_check
        %p428 = pneg %p151
      $region46: #{_lambda_.43} parent=43 // pred_check_branch
        %430 = sbr.rel (%p428) target = $region48
      $region47: #{_lambda_.43} parent=43 // pred_region
        %s431 = smul.u32 2, %s22
        %p432 = scmp.lt.s32.totalorder %s21, 1
        %s433 = scalar_select %p432, %s21, 1
        %p434 = scmp.lt.s32.totalorder %s431, 1
        %s435 = scalar_select %p434, %s431, 1
        %s436 = smul.addr %s433, 2
        %s437 = sadd.s32 %s435, %s436
        %s438 = smul.addr %s437, 4
        %s439 = scalar_lea.vmem %s4, %s438
      $region48: #{_lambda_.43} parent=43 // pred_fallthru
        _
    $region44: #{_lambda_.43} parent=5 // pred_fallthru
      _
  $region6: #{_lambda_.43} parent=0 // loop_footer
    %s14 = sadd.s32 1, %s10
  $region7: #{_lambda_.43} parent=0 // loop_footer_branch
    %9 = sbr.rel target = $region3
  $region8: #{_lambda_.43} parent=0 // loop_exit
    _

// kernel: _lambda_.48
$region0: #{_lambda_.48}
  #allocation0 [shape = 'u32[]', space=smem, size = 0x4, offset = 0x4, fixed_abs, tag = 'smem constant byte address 0x4 - core index']
  #allocation1 [shape = 'u32[144,128]{1,0:T(1,128)}', space=vmem, size = 0x12000, scoped, tag = 'internal scratch']
  %s0 = inlined_call_operand.vmem [shape: f32[6,8,128], index: 0, kind: input, shape index: {}]
  %s1 = inlined_call_operand.vmem [shape: f32[6,8,128], index: 1, kind: input, shape index: {}]
  %s2 = inlined_call_operand.vmem [shape: f32[6,8,128], index: 2, kind: input, shape index: {}]
  %s3 = inlined_call_operand.vmem [shape: f32[6,8,128], index: 3, kind: output, shape index: {}]
  %s4 = sld [smem:[#allocation0]]
  $region45: #{_lambda_.48} parent=0
    _
  %s6 = ssub.s32 1, %s4
  %s7 = scalar_select 0, %s6, %s4
  loop: start=0, step=1, limit=4
  $region2: #{_lambda_.48} parent=0 // loop_pre_header
    _
  $region3: #{_lambda_.48} parent=0 // loop_header
    %s9 = sphi 0, %s13
    %p10 = scmp.ge.s32.totalorder %s9, 4
    %s19 = sphi 0, %s21
    %s22 = sphi 0, %s19
    %s23 = sphi 0, %s22
    %s39 = sphi 0, %s23
    %s45 = sphi 0, %s47
    %s48 = sphi 0, %s45
    %s49 = sphi 0, %s48
    %s65 = sphi 0, %s49
    %s71 = sphi 0, %s73
    %s74 = sphi 0, %s71
    %s75 = sphi 0, %s74
    %s91 = sphi 0, %s75
    %s97 = sphi 0, %s99
    %s100 = sphi 0, %s97
    %s101 = sphi 0, %s100
    %s117 = sphi 0, %s101
  $region4: #{_lambda_.48} parent=0 // loop_header_branch
    %12 = sbr.rel (%p10) target = $region8
  $region5: #{_lambda_.48} parent=0 // loop_body
    %s14 = ssub.s32 %s9, 1
    %s15 = ssub.s32 %s9, 2
    %s16 = sadd.s32 %s9, 1
    %s17 = ssub.s32 %s9, %s16
    %p18 = scmp.eq.s32.totalorder %s17, 0
    %s20 = sadd.s32 %s19, 1
    %s21 = scalar_select %p18, %s19, %s20
    %p24 = pneg %p18
    %p25 = scmp.eq.s32.totalorder %s9, 1
    %p26 = por %p24, %p25
    %p27 = scmp.ne.s32.totalorder %s19, %s22
    %p28 = scmp.eq.s32.totalorder %s9, 0
    %p29 = por %p27, %p28
    %p30 = scmp.ne.s32.totalorder %s19, %s22
    %p31 = scmp.eq.s32.totalorder %s14, 1
    %p32 = por %p30, %p31
    %p33 = scmp.ne.s32.totalorder %s22, %s23
    %p34 = scmp.eq.s32.totalorder %s14, 0
    %p35 = por %p33, %p34
    %p36 = scmp.ne.s32.totalorder %s22, %s23
    %p37 = scmp.eq.s32.totalorder %s15, 1
    %p38 = por %p36, %p37
    %p40 = scmp.ne.s32.totalorder %s23, %s39
    %p41 = scmp.eq.s32.totalorder %s15, 0
    %p42 = por %p40, %p41
    %s43 = ssub.s32 %s9, %s16
    %p44 = scmp.eq.s32.totalorder %s43, 0
    %s46 = sadd.s32 %s45, 1
    %s47 = scalar_select %p44, %s45, %s46
    %p50 = pneg %p44
    %p51 = scmp.eq.s32.totalorder %s9, 1
    %p52 = por %p50, %p51
    %p53 = scmp.ne.s32.totalorder %s45, %s48
    %p54 = scmp.eq.s32.totalorder %s9, 0
    %p55 = por %p53, %p54
    %p56 = scmp.ne.s32.totalorder %s45, %s48
    %p57 = scmp.eq.s32.totalorder %s14, 1
    %p58 = por %p56, %p57
    %p59 = scmp.ne.s32.totalorder %s48, %s49
    %p60 = scmp.eq.s32.totalorder %s14, 0
    %p61 = por %p59, %p60
    %p62 = scmp.ne.s32.totalorder %s48, %s49
    %p63 = scmp.eq.s32.totalorder %s15, 1
    %p64 = por %p62, %p63
    %p66 = scmp.ne.s32.totalorder %s49, %s65
    %p67 = scmp.eq.s32.totalorder %s15, 0
    %p68 = por %p66, %p67
    %s69 = ssub.s32 %s9, %s16
    %p70 = scmp.eq.s32.totalorder %s69, 0
    %s72 = sadd.s32 %s71, 1
    %s73 = scalar_select %p70, %s71, %s72
    %p76 = pneg %p70
    %p77 = scmp.eq.s32.totalorder %s9, 1
    %p78 = por %p76, %p77
    %p79 = scmp.ne.s32.totalorder %s71, %s74
    %p80 = scmp.eq.s32.totalorder %s9, 0
    %p81 = por %p79, %p80
    %p82 = scmp.ne.s32.totalorder %s71, %s74
    %p83 = scmp.eq.s32.totalorder %s14, 1
    %p84 = por %p82, %p83
    %p85 = scmp.ne.s32.totalorder %s74, %s75
    %p86 = scmp.eq.s32.totalorder %s14, 0
    %p87 = por %p85, %p86
    %p88 = scmp.ne.s32.totalorder %s74, %s75
    %p89 = scmp.eq.s32.totalorder %s15, 1
    %p90 = por %p88, %p89
    %p92 = scmp.ne.s32.totalorder %s75, %s91
    %p93 = scmp.eq.s32.totalorder %s15, 0
    %p94 = por %p92, %p93
    %s95 = ssub.s32 %s9, %s16
    %p96 = scmp.eq.s32.totalorder %s95, 0
    %s98 = sadd.s32 %s97, 1
    %s99 = scalar_select %p96, %s97, %s98
    %p102 = pneg %p96
    %p103 = scmp.eq.s32.totalorder %s9, 1
    %p104 = por %p102, %p103
    %p105 = scmp.ne.s32.totalorder %s97, %s100
    %p106 = scmp.eq.s32.totalorder %s9, 0
    %p107 = por %p105, %p106
    %p108 = scmp.ne.s32.totalorder %s97, %s100
    %p109 = scmp.eq.s32.totalorder %s14, 1
    %p110 = por %p108, %p109
    %p111 = scmp.ne.s32.totalorder %s100, %s101
    %p112 = scmp.eq.s32.totalorder %s14, 0
    %p113 = por %p111, %p112
    %p114 = scmp.ne.s32.totalorder %s100, %s101
    %p115 = scmp.eq.s32.totalorder %s15, 1
    %p116 = por %p114, %p115
    %p118 = scmp.ne.s32.totalorder %s101, %s117
    %p119 = scmp.eq.s32.totalorder %s15, 0
    %p120 = por %p118, %p119
    %p121 = scmp.le.s32.totalorder 1, %s9
    %p122 = scmp.lt.s32.totalorder %s9, 3
    %p123 = pnand %p121, %p122
    %p124 = pneg %p123
    // Predicated region
    $region9: #{_lambda_.48} parent=5 // pred_check
      _
    $region10: #{_lambda_.48} parent=5 // pred_check_branch
      %126 = sbr.rel (%p123) target = $region12
    $region11: #{_lambda_.48} parent=5 // pred_region
      %s127 = ssub.s32 %s9, 1
    $region12: #{_lambda_.48} parent=5 // pred_fallthru
      _
    %p128 = scmp.lt.s32.totalorder %s9, 2
    // Predicated region
    $region13: #{_lambda_.48} parent=5 // pred_check
      %p129 = pneg %p128
    $region14: #{_lambda_.48} parent=5 // pred_check_branch
      %131 = sbr.rel (%p129) target = $region16
    $region15: #{_lambda_.48} parent=5 // pred_region
      // Predicated region
      $region17: #{_lambda_.48} parent=15 // pred_check
        %p132 = pneg %p29
      $region18: #{_lambda_.48} parent=15 // pred_check_branch
        %134 = sbr.rel (%p132) target = $region20
      $region19: #{_lambda_.48} parent=15 // pred_region
        %s135 = smul.u32 3, %s9
        %p136 = scmp.lt.s32.totalorder %s135, 5
        %s137 = scalar_select %p136, %s135, 5
        %s138 = smul.addr %s137, 8
        %s139 = scalar_lea.vmem %s0, %s138
        %s140 = smul.u32 3, %s9
      $region20: #{_lambda_.48} parent=15 // pred_fallthru
        _
      // Predicated region
      $region21: #{_lambda_.48} parent=15 // pred_check
        %p141 = pneg %p55
      $region22: #{_lambda_.48} parent=15 // pred_check_branch
        %143 = sbr.rel (%p141) target = $region24
      $region23: #{_lambda_.48} parent=15 // pred_region
        %s144 = smul.u32 3, %s9
        %p145 = scmp.lt.s32.totalorder %s144, 5
        %s146 = scalar_select %p145, %s144, 5
        %s147 = smul.addr %s146, 8
        %s148 = scalar_lea.vmem %s1, %s147
        %s149 = smul.u32 3, %s9
      $region24: #{_lambda_.48} parent=15 // pred_fallthru
        _
      // Predicated region
      $region25: #{_lambda_.48} parent=15 // pred_check
        %p150 = pneg %p81
      $region26: #{_lambda_.48} parent=15 // pred_check_branch
        %152 = sbr.rel (%p150) target = $region28
      $region27: #{_lambda_.48} parent=15 // pred_region
        %s153 = smul.u32 3, %s9
        %p154 = scmp.lt.s32.totalorder %s153, 5
        %s155 = scalar_select %p154, %s153, 5
        %s156 = smul.addr %s155, 8
        %s157 = scalar_lea.vmem %s2, %s156
        %s158 = smul.u32 3, %s9
      $region28: #{_lambda_.48} parent=15 // pred_fallthru
        _
    $region16: #{_lambda_.48} parent=5 // pred_fallthru
      _
    %p159 = scmp.le.s32.totalorder 1, %s9
    %p160 = scmp.lt.s32.totalorder %s9, 3
    %p161 = pnand %p159, %p160
    %p162 = pneg %p161
    // Predicated region
    $region29: #{_lambda_.48} parent=5 // pred_check
      _
    $region30: #{_lambda_.48} parent=5 // pred_check_branch
      %164 = sbr.rel (%p161) target = $region32
    $region31: #{_lambda_.48} parent=5 // pred_region
      %s165 = ssub.s32 %s9, 1
      %s166 = smul.u32 3, %s14
      %p167 = scmp.lt.s32.totalorder %s166, 5
      %s168 = scalar_select %p167, %s166, 5
      %s169 = smul.addr %s168, 8
      %s170 = scalar_lea.vmem %s0, %s169
      %p171 = pneg %p35
      %p172 = pneg %p32
      %s173 = smul.u32 3, %s14
      %p174 = scmp.lt.s32.totalorder %s173, 5
      %s175 = scalar_select %p174, %s173, 5
      %s176 = smul.addr %s175, 8
      %s177 = scalar_lea.vmem %s1, %s176
      %p178 = pneg %p61
      %p179 = pneg %p58
      %s180 = smul.u32 3, %s14
      %p181 = scmp.lt.s32.totalorder %s180, 5
      %s182 = scalar_select %p181, %s180, 5
      %s183 = smul.addr %s182, 8
      %s184 = scalar_lea.vmem %s2, %s183
      %p185 = pneg %p87
      %p186 = pneg %p84
      %p187 = pneg %p113
      %p188 = pneg %p110
      %s189 = smul.u32 3, %s14
      %p190 = scmp.lt.s32.totalorder %s189, 5
      %s191 = scalar_select %p190, %s189, 5
      %s192 = smul.addr %s191, 8
      %s193 = scalar_lea.vmem %s3, %s192
      %s194 = smul.u32 3, %s14
      %p195 = scmp.lt.s32.totalorder %s194, 5
      %s196 = scalar_select %p195, %s194, 5
      %s197 = smul.addr %s196, 8
      %s198 = scalar_lea.vmem %s0, %s197
      %s199 = smul.u32 3, %s14
      %s200 = smul.u32 3, %s14
      %p201 = scmp.lt.s32.totalorder %s200, 5
      %s202 = scalar_select %p201, %s200, 5
      %s203 = smul.addr %s202, 8
      %s204 = scalar_lea.vmem %s1, %s203
      %s205 = smul.u32 3, %s14
      %s206 = smul.u32 3, %s14
      %p207 = scmp.lt.s32.totalorder %s206, 5
      %s208 = scalar_select %p207, %s206, 5
      %s209 = smul.addr %s208, 8
      %s210 = scalar_lea.vmem %s2, %s209
      %s211 = smul.u32 3, %s14
      %s212 = smul.u32 3, %s14
      %p213 = scmp.lt.s32.totalorder %s212, 5
      %s214 = scalar_select %p213, %s212, 5
      %s215 = smul.addr %s214, 8
      %s216 = scalar_lea.vmem %s3, %s215
      %s217 = smul.u32 3, %s14
      %v219 = vld [vmem:[%s198] sm:$0xff]
      %v220 = vld [vmem:[%s198 + $0x8] sm:$0xff]
      %v221 = vld [vmem:[%s198 + $0x10] sm:$0xff]
      %v222 = vld [vmem:[%s204] sm:$0xff]
      %v223 = vld [vmem:[%s204 + $0x8] sm:$0xff]
      %v224 = vld [vmem:[%s204 + $0x10] sm:$0xff]
      %v225 = vld [vmem:[%s210] sm:$0xff]
      %v226 = vld [vmem:[%s210 + $0x8] sm:$0xff]
      %v227 = vld [vmem:[%s210 + $0x10] sm:$0xff]
      %v228 = vlaneseq
      %v229 = vshrl.u32 %v228, 7
      %v230 = vlaneseq
      %v231 = vand.u32 %v230, 127
      %vm232 = vcmp.lt.s32.totalorder %v229, 4
      %v233 = vsel %vm232, %v219, -1e+30
      %v234 = vsel %vm232, %v220, -1e+30
      %v235 = vsel %vm232, %v221, -1e+30
      %v236 = vrot.slane %v233, 4
      %v237 = vmax.f32 %v233, %v236
      %v238 = vrot.slane %v237, 2
      %v239 = vmax.f32 %v237, %v238
      %v240 = vrot.slane %v239, 1
      %v241 = vmax.f32 %v239, %v240
      %v242 = vrot.slane %v234, 4
      %v243 = vmax.f32 %v234, %v242
      %v244 = vrot.slane %v243, 2
      %v245 = vmax.f32 %v243, %v244
      %v246 = vrot.slane %v245, 1
      %v247 = vmax.f32 %v245, %v246
      %v248 = vrot.slane %v235, 4
      %v249 = vmax.f32 %v235, %v248
      %v250 = vrot.slane %v249, 2
      %v251 = vmax.f32 %v249, %v250
      %v252 = vrot.slane %v251, 1
      %v253 = vmax.f32 %v251, %v252
      %v254 = vsub.f32 %v233, %v241
      %v255 = vsub.f32 %v234, %v247
      %v256 = vsub.f32 %v235, %v253
      %v257 = vmul.f32 %v254, 1.442695
      %v258 = vpow.pop %v257
      %v259 = vmul.f32 %v255, 1.442695
      %v260 = vpow.pop %v259
      %v261 = vmul.f32 %v256, 1.442695
      %v262 = vpow.pop %v261
      %v263 = vrot.slane %v258, 4
      %v264 = vadd.f32 %v258, %v263
      %v265 = vrot.slane %v264, 2
      %v266 = vadd.f32 %v264, %v265
      %v267 = vrot.slane %v266, 1
      %v268 = vadd.f32 %v266, %v267
      %v269 = vrot.slane %v260, 4
      %v270 = vadd.f32 %v260, %v269
      %v271 = vrot.slane %v270, 2
      %v272 = vadd.f32 %v270, %v271
      %v273 = vrot.slane %v272, 1
      %v274 = vadd.f32 %v272, %v273
      %v275 = vrot.slane %v262, 4
      %v276 = vadd.f32 %v262, %v275
      %v277 = vrot.slane %v276, 2
      %v278 = vadd.f32 %v276, %v277
      %v279 = vrot.slane %v278, 1
      %v280 = vadd.f32 %v278, %v279
      %v281 = vrcp.pop %v268
      %v282 = vmul.f32 %v258, %v281
      %v283 = vrcp.pop %v274
      %v284 = vmul.f32 %v260, %v283
      %v285 = vrcp.pop %v280
      %v286 = vmul.f32 %v262, %v285
      %v287 = vmul.f32 %v282, 0.5
      %v288 = vmul.f32 %v284, 0.5
      %v289 = vmul.f32 %v286, 0.5
      %vm290 = vcmp.lt.s32.totalorder %v231, 16
      %v291 = vsel %vm290, %v222, -1e+30
      %v292 = vsel %vm290, %v223, -1e+30
      %v293 = vsel %vm290, %v224, -1e+30
      %294 = vmax.xlane.f32.xlu0 %v291
      %v295 = vpop.xlane.xlu0 %294
      %296 = vmax.xlane.f32.xlu0 %v292
      %v297 = vpop.xlane.xlu0 %296
      %298 = vmax.xlane.f32.xlu0 %v293
      %v299 = vpop.xlane.xlu0 %298
      %v300 = vsub.f32 %v291, %v295
      %v301 = vsub.f32 %v292, %v297
      %v302 = vsub.f32 %v293, %v299
      %v303 = vmul.f32 %v300, 1.442695
      %v304 = vpow.pop %v303
      %v305 = vmul.f32 %v301, 1.442695
      %v306 = vpow.pop %v305
      %v307 = vmul.f32 %v302, 1.442695
      %v308 = vpow.pop %v307
      %309 = vadd.xlane.f32.xlu0 %v304
      %v310 = vpop.xlane.xlu0 %309
      %311 = vadd.xlane.f32.xlu0 %v306
      %v312 = vpop.xlane.xlu0 %311
      %313 = vadd.xlane.f32.xlu0 %v308
      %v314 = vpop.xlane.xlu0 %313
      %v315 = vrcp.pop %v310
      %v316 = vmul.f32 %v304, %v315
      %v317 = vrcp.pop %v312
      %v318 = vmul.f32 %v306, %v317
      %v319 = vrcp.pop %v314
      %v320 = vmul.f32 %v308, %v319
      %v321 = vpack.c.bf16 %v287, %v287
      %v322 = vpack.c.bf16 %v288, %v288
      %v323 = vpack.c.bf16 %v289, %v289
      %v324 = vpack.c.bf16 %v316, %v316
      %v325 = vpack.c.bf16 %v318, %v318
      %v326 = vpack.c.bf16 %v320, %v320
      %v327 = vpack.c.bf16 %v225, %v225
      %v328 = vpack.c.bf16 %v226, %v226
      %v329 = vpack.c.bf16 %v227, %v227
      %330 = vmatprep.subr.bf16.mxu0 0
      %331 = vmatpush1.bf16.xpose.msra.mxu0 %v324
      %332 = vmatprep.subr.bf16.mxu0 0
      %333 = vmatpush1.bf16.xpose.msra.mxu0 0
      %334 = vmatprep.subr.bf16.mxu0 0
      %335 = vmatpush1.bf16.xpose.msra.mxu0 0
      %336 = vmatprep.subr.bf16.mxu0 0
      %337 = vmatpush1.bf16.xpose.msra.mxu0 0
      %338 = vmatprep.subr.bf16.mxu0 0
      %339 = vmatpush1.bf16.xpose.msra.mxu0 0
      %340 = vmatprep.subr.bf16.mxu0 0
      %341 = vmatpush1.bf16.xpose.msra.mxu0 0
      %342 = vmatprep.subr.bf16.mxu0 0
      %343 = vmatpush1.bf16.xpose.msra.mxu0 0
      %344 = vmatprep.subr.bf16.mxu0 0
      %345 = vmatpush1.bf16.xpose.msra.mxu0 0
      %346 = vmatprep.subr.bf16.mxu0 0
      %347 = vmatpush1.bf16.xpose.msra.mxu0 0
      %348 = vmatprep.subr.bf16.mxu0 0
      %349 = vmatpush1.bf16.xpose.msra.mxu0 0
      %350 = vmatprep.subr.bf16.mxu0 0
      %351 = vmatpush1.bf16.xpose.msra.mxu0 0
      %352 = vmatprep.subr.bf16.mxu0 0
      %353 = vmatpush1.bf16.xpose.msra.mxu0 0
      %354 = vmatprep.subr.bf16.mxu0 0
      %355 = vmatpush1.bf16.xpose.msra.mxu0 0
      %356 = vmatprep.subr.bf16.mxu0 0
      %357 = vmatpush1.bf16.xpose.msra.mxu0 0
      %358 = vmatprep.subr.bf16.mxu0 0
      %359 = vmatpush1.bf16.xpose.msra.mxu0 0
      %360 = vmatprep.subr.bf16.mxu0 0
      %361 = vmatpush1.bf16.xpose.msra.mxu0 0
      %362 = vmatprep.mubr.bf16.mxu0 0
      %363 = vmatmul.mubr.bf16.gmra.mrb[0].mxu0 %v327
      %v364 = vpop.f32.mrb[0].mxu0
      %v365 = vadd.f32 0.0, %v364
      %v366 = vpop.f32.mrb[0].mxu0
      %v367 = vpop.f32.mrb[0].mxu0
      %v368 = vpop.f32.mrb[0].mxu0
      %369 = vdwg.mxu0
      %370 = vmatprep.subr.bf16.mxu0 0
      %371 = vmatpush1.bf16.xpose.msra.mxu0 %v325
      %372 = vmatprep.subr.bf16.mxu0 0
      %373 = vmatpush1.bf16.xpose.msra.mxu0 0
      %374 = vmatprep.subr.bf16.mxu0 0
      %375 = vmatpush1.bf16.xpose.msra.mxu0 0
      %376 = vmatprep.subr.bf16.mxu0 0
      %377 = vmatpush1.bf16.xpose.msra.mxu0 0
      %378 = vmatprep.subr.bf16.mxu0 0
      %379 = vmatpush1.bf16.xpose.msra.mxu0 0
      %380 = vmatprep.subr.bf16.mxu0 0
      %381 = vmatpush1.bf16.xpose.msra.mxu0 0
      %382 = vmatprep.subr.bf16.mxu0 0
      %383 = vmatpush1.bf16.xpose.msra.mxu0 0
      %384 = vmatprep.subr.bf16.mxu0 0
      %385 = vmatpush1.bf16.xpose.msra.mxu0 0
      %386 = vmatprep.subr.bf16.mxu0 0
      %387 = vmatpush1.bf16.xpose.msra.mxu0 0
      %388 = vmatprep.subr.bf16.mxu0 0
      %389 = vmatpush1.bf16.xpose.msra.mxu0 0
      %390 = vmatprep.subr.bf16.mxu0 0
      %391 = vmatpush1.bf16.xpose.msra.mxu0 0
      %392 = vmatprep.subr.bf16.mxu0 0
      %393 = vmatpush1.bf16.xpose.msra.mxu0 0
      %394 = vmatprep.subr.bf16.mxu0 0
      %395 = vmatpush1.bf16.xpose.msra.mxu0 0
      %396 = vmatprep.subr.bf16.mxu0 0
      %397 = vmatpush1.bf16.xpose.msra.mxu0 0
      %398 = vmatprep.subr.bf16.mxu0 0
      %399 = vmatpush1.bf16.xpose.msra.mxu0 0
      %400 = vmatprep.subr.bf16.mxu0 0
      %401 = vmatpush1.bf16.xpose.msra.mxu0 0
      %402 = vmatprep.mubr.bf16.mxu0 0
      %403 = vmatmul.mubr.bf16.gmra.mrb[0].mxu0 %v328
      %v404 = vpop.f32.mrb[0].mxu0
      %v405 = vadd.f32 0.0, %v404
      %v406 = vpop.f32.mrb[0].mxu0
      %v407 = vpop.f32.mrb[0].mxu0
      %v408 = vpop.f32.mrb[0].mxu0
      %409 = vdwg.mxu0
      %410 = vmatprep.subr.bf16.mxu0 0
      %411 = vmatpush1.bf16.xpose.msra.mxu0 %v326
      %412 = vmatprep.subr.bf16.mxu0 0
      %413 = vmatpush1.bf16.xpose.msra.mxu0 0
      %414 = vmatprep.subr.bf16.mxu0 0
      %415 = vmatpush1.bf16.xpose.msra.mxu0 0
      %416 = vmatprep.subr.bf16.mxu0 0
      %417 = vmatpush1.bf16.xpose.msra.mxu0 0
      %418 = vmatprep.subr.bf16.mxu0 0
      %419 = vmatpush1.bf16.xpose.msra.mxu0 0
      %420 = vmatprep.subr.bf16.mxu0 0
      %421 = vmatpush1.bf16.xpose.msra.mxu0 0
      %422 = vmatprep.subr.bf16.mxu0 0
      %423 = vmatpush1.bf16.xpose.msra.mxu0 0
      %424 = vmatprep.subr.bf16.mxu0 0
      %425 = vmatpush1.bf16.xpose.msra.mxu0 0
      %426 = vmatprep.subr.bf16.mxu0 0
      %427 = vmatpush1.bf16.xpose.msra.mxu0 0
      %428 = vmatprep.subr.bf16.mxu0 0
      %429 = vmatpush1.bf16.xpose.msra.mxu0 0
      %430 = vmatprep.subr.bf16.mxu0 0
      %431 = vmatpush1.bf16.xpose.msra.mxu0 0
      %432 = vmatprep.subr.bf16.mxu0 0
      %433 = vmatpush1.bf16.xpose.msra.mxu0 0
      %434 = vmatprep.subr.bf16.mxu0 0
      %435 = vmatpush1.bf16.xpose.msra.mxu0 0
      %436 = vmatprep.subr.bf16.mxu0 0
      %437 = vmatpush1.bf16.xpose.msra.mxu0 0
      %438 = vmatprep.subr.bf16.mxu0 0
      %439 = vmatpush1.bf16.xpose.msra.mxu0 0
      %440 = vmatprep.subr.bf16.mxu0 0
      %441 = vmatpush1.bf16.xpose.msra.mxu0 0
      %442 = vmatprep.mubr.bf16.mxu0 0
      %443 = vmatmul.mubr.bf16.gmra.mrb[0].mxu0 %v329
      %v444 = vpop.f32.mrb[0].mxu0
      %v445 = vadd.f32 0.0, %v444
      %v446 = vpop.f32.mrb[0].mxu0
      %v447 = vpop.f32.mrb[0].mxu0
      %v448 = vpop.f32.mrb[0].mxu0
      %449 = vdwg.mxu0
      %v450 = vpack.c.bf16 %v365, %v365
      %v451 = vpack.c.bf16 %v405, %v405
      %v452 = vpack.c.bf16 %v445, %v445
      %vm453 = vcmask 64512
      %v455 = vsel %vm453, %v450, 0
      %vm457 = vcmask 1043456
      %v459 = vsel %vm457, %v321, 0
      %461 = vmatprep.subr.bf16.mxu0 0
      %462 = vmatpush1.bf16.msra.mxu0 %v459
      %463 = vmatprep.subr.bf16.mxu0 0
      %464 = vmatpush1.bf16.msra.mxu0 0
      %465 = vmatprep.subr.bf16.mxu0 0
      %466 = vmatpush1.bf16.msra.mxu0 0
      %467 = vmatprep.subr.bf16.mxu0 0
      %468 = vmatpush1.bf16.msra.mxu0 0
      %469 = vmatprep.subr.bf16.mxu0 0
      %470 = vmatpush1.bf16.msra.mxu0 0
      %471 = vmatprep.subr.bf16.mxu0 0
      %472 = vmatpush1.bf16.msra.mxu0 0
      %473 = vmatprep.subr.bf16.mxu0 0
      %474 = vmatpush1.bf16.msra.mxu0 0
      %475 = vmatprep.subr.bf16.mxu0 0
      %476 = vmatpush1.bf16.msra.mxu0 0
      %477 = vmatprep.subr.bf16.mxu0 0
      %478 = vmatpush1.bf16.msra.mxu0 0
      %479 = vmatprep.subr.bf16.mxu0 0
      %480 = vmatpush1.bf16.msra.mxu0 0
      %481 = vmatprep.subr.bf16.mxu0 0
      %482 = vmatpush1.bf16.msra.mxu0 0
      %483 = vmatprep.subr.bf16.mxu0 0
      %484 = vmatpush1.bf16.msra.mxu0 0
      %485 = vmatprep.subr.bf16.mxu0 0
      %486 = vmatpush1.bf16.msra.mxu0 0
      %487 = vmatprep.subr.bf16.mxu0 0
      %488 = vmatpush1.bf16.msra.mxu0 0
      %489 = vmatprep.subr.bf16.mxu0 0
      %490 = vmatpush1.bf16.msra.mxu0 0
      %491 = vmatprep.subr.bf16.mxu0 0
      %492 = vmatpush1.bf16.msra.mxu0 0
      %493 = vmatprep.mubr.bf16.mxu0 0
      %494 = vmatmul.mubr.bf16.gmra.mrb[0].mxu0 %v455
      %v495 = vpop.f32.mrb[0].mxu0
      %v496 = vadd.f32 0.0, %v495
      %v497 = vpop.f32.mrb[0].mxu0
      %v498 = vpop.f32.mrb[0].mxu0
      %v499 = vpop.f32.mrb[0].mxu0
      %500 = vdwg.mxu0
      %v502 = vsel %vm453, %v451, 0
      %v505 = vsel %vm457, %v322, 0
      %507 = vmatprep.subr.bf16.mxu0 0
      %508 = vmatpush1.bf16.msra.mxu0 %v505
      %509 = vmatprep.subr.bf16.mxu0 0
      %510 = vmatpush1.bf16.msra.mxu0 0
      %511 = vmatprep.subr.bf16.mxu0 0
      %512 = vmatpush1.bf16.msra.mxu0 0
      %513 = vmatprep.subr.bf16.mxu0 0
      %514 = vmatpush1.bf16.msra.mxu0 0
      %515 = vmatprep.subr.bf16.mxu0 0
      %516 = vmatpush1.bf16.msra.mxu0 0
      %517 = vmatprep.subr.bf16.mxu0 0
      %518 = vmatpush1.bf16.msra.mxu0 0
      %519 = vmatprep.subr.bf16.mxu0 0
      %520 = vmatpush1.bf16.msra.mxu0 0
      %521 = vmatprep.subr.bf16.mxu0 0
      %522 = vmatpush1.bf16.msra.mxu0 0
      %523 = vmatprep.subr.bf16.mxu0 0
      %524 = vmatpush1.bf16.msra.mxu0 0
      %525 = vmatprep.subr.bf16.mxu0 0
      %526 = vmatpush1.bf16.msra.mxu0 0
      %527 = vmatprep.subr.bf16.mxu0 0
      %528 = vmatpush1.bf16.msra.mxu0 0
      %529 = vmatprep.subr.bf16.mxu0 0
      %530 = vmatpush1.bf16.msra.mxu0 0
      %531 = vmatprep.subr.bf16.mxu0 0
      %532 = vmatpush1.bf16.msra.mxu0 0
      %533 = vmatprep.subr.bf16.mxu0 0
      %534 = vmatpush1.bf16.msra.mxu0 0
      %535 = vmatprep.subr.bf16.mxu0 0
      %536 = vmatpush1.bf16.msra.mxu0 0
      %537 = vmatprep.subr.bf16.mxu0 0
      %538 = vmatpush1.bf16.msra.mxu0 0
      %539 = vmatprep.mubr.bf16.mxu0 0
      %540 = vmatmul.mubr.bf16.gmra.mrb[0].mxu0 %v502
      %v541 = vpop.f32.mrb[0].mxu0
      %v542 = vadd.f32 0.0, %v541
      %v543 = vpop.f32.mrb[0].mxu0
      %v544 = vpop.f32.mrb[0].mxu0
      %v545 = vpop.f32.mrb[0].mxu0
      %546 = vdwg.mxu0
      %v548 = vsel %vm453, %v452, 0
      %v551 = vsel %vm457, %v323, 0
      %553 = vmatprep.subr.bf16.mxu0 0
      %554 = vmatpush1.bf16.msra.mxu0 %v551
      %555 = vmatprep.subr.bf16.mxu0 0
      %556 = vmatpush1.bf16.msra.mxu0 0
      %557 = vmatprep.subr.bf16.mxu0 0
      %558 = vmatpush1.bf16.msra.mxu0 0
      %559 = vmatprep.subr.bf16.mxu0 0
      %560 = vmatpush1.bf16.msra.mxu0 0
      %561 = vmatprep.subr.bf16.mxu0 0
      %562 = vmatpush1.bf16.msra.mxu0 0
      %563 = vmatprep.subr.bf16.mxu0 0
      %564 = vmatpush1.bf16.msra.mxu0 0
      %565 = vmatprep.subr.bf16.mxu0 0
      %566 = vmatpush1.bf16.msra.mxu0 0
      %567 = vmatprep.subr.bf16.mxu0 0
      %568 = vmatpush1.bf16.msra.mxu0 0
      %569 = vmatprep.subr.bf16.mxu0 0
      %570 = vmatpush1.bf16.msra.mxu0 0
      %571 = vmatprep.subr.bf16.mxu0 0
      %572 = vmatpush1.bf16.msra.mxu0 0
      %573 = vmatprep.subr.bf16.mxu0 0
      %574 = vmatpush1.bf16.msra.mxu0 0
      %575 = vmatprep.subr.bf16.mxu0 0
      %576 = vmatpush1.bf16.msra.mxu0 0
      %577 = vmatprep.subr.bf16.mxu0 0
      %578 = vmatpush1.bf16.msra.mxu0 0
      %579 = vmatprep.subr.bf16.mxu0 0
      %580 = vmatpush1.bf16.msra.mxu0 0
      %581 = vmatprep.subr.bf16.mxu0 0
      %582 = vmatpush1.bf16.msra.mxu0 0
      %583 = vmatprep.subr.bf16.mxu0 0
      %584 = vmatpush1.bf16.msra.mxu0 0
      %585 = vmatprep.mubr.bf16.mxu0 0
      %586 = vmatmul.mubr.bf16.gmra.mrb[0].mxu0 %v548
      %v587 = vpop.f32.mrb[0].mxu0
      %v588 = vadd.f32 0.0, %v587
      %v589 = vpop.f32.mrb[0].mxu0
      %v590 = vpop.f32.mrb[0].mxu0
      %v591 = vpop.f32.mrb[0].mxu0
      %592 = vdwg.mxu0
      %593 = vst [vmem:[%s216] sm:$0xff] %v496
      %594 = vst [vmem:[%s216 + $0x8] sm:$0xff] %v542
      %595 = vst [vmem:[%s216 + $0x10] sm:$0xff] %v588
      %s596 = smul.u32 3, %s14
      %p597 = scmp.lt.s32.totalorder %s596, 5
      %s598 = scalar_select %p597, %s596, 5
      %s599 = smul.addr %s598, 8
      %s600 = scalar_lea.vmem %s3, %s599
      // Predicated region
      $region33: #{_lambda_.48} parent=31 // pred_check
        %p601 = pneg %p110
      $region34: #{_lambda_.48} parent=31 // pred_check_branch
        %603 = sbr.rel (%p601) target = $region36
      $region35: #{_lambda_.48} parent=31 // pred_region
        %s604 = smul.u32 3, %s14
      $region36: #{_lambda_.48} parent=31 // pred_fallthru
        _
    $region32: #{_lambda_.48} parent=5 // pred_fallthru
      _
    %p605 = scmp.le.s32.totalorder 2, %s9
    // Predicated region
    $region37: #{_lambda_.48} parent=5 // pred_check
      %p606 = pneg %p605
    $region38: #{_lambda_.48} parent=5 // pred_check_branch
      %608 = sbr.rel (%p606) target = $region40
    $region39: #{_lambda_.48} parent=5 // pred_region
      %s609 = ssub.s32 %s9, 2
      // Predicated region
      $region41: #{_lambda_.48} parent=39 // pred_check
        %p610 = pneg %p116
      $region42: #{_lambda_.48} parent=39 // pred_check_branch
        %612 = sbr.rel (%p610) target = $region44
      $region43: #{_lambda_.48} parent=39 // pred_region
        %s613 = smul.u32 3, %s15
        %p614 = scmp.lt.s32.totalorder %s613, 5
        %s615 = scalar_select %p614, %s613, 5
        %s616 = smul.addr %s615, 8
        %s617 = scalar_lea.vmem %s3, %s616
      $region44: #{_lambda_.48} parent=39 // pred_fallthru
        _
    $region40: #{_lambda_.48} parent=5 // pred_fallthru
      _
  $region6: #{_lambda_.48} parent=0 // loop_footer
    %s13 = sadd.s32 1, %s9
  $region7: #{_lambda_.48} parent=0 // loop_footer_branch
    %8 = sbr.rel target = $region3
  $region8: #{_lambda_.48} parent=0 // loop_exit
    _

</llo_original>
